<compile_context>
chip_gen: v7x
topology: tpu7x:2x2x1
jax: 0.10.0
libtpu: 0.0.40
codegen_flags: <defaults>
</compile_context>

<pallas_src>
import functools

import jax
import jax.numpy as jnp
from jax.experimental import pallas as pl
from jax.experimental.pallas import tpu as pltpu


def _dyn_obs_kernel(x_ref,
                    wc1_ref, wc2_ref, wc3_ref, wc4_ref,
                    bconv_ref,
                    pool_ref,
                    wl1_ref, wl2_ref,
                    blin_ref,
                    out_ref,
                    *, couts, emb_pad, compute_dtype):
    f32 = jnp.float32

    # Channels-first activations: (C, M) with M = Bt*N on the (dense) lane axis.
    h = x_ref[...].astype(compute_dtype)                      # (8, M): 4 real + 4 zero rows

    def conv_bn_relu(h, w_ref, layer, cout):
        # BN scale already folded into the bf16 weight; only the folded shift
        # remains, applied in f32 on the f32 MXU accumulator, then one
        # f32->bf16 cast so h stays bf16 between layers.
        y = jnp.dot(w_ref[...], h, preferred_element_type=f32)  # (cout, M) f32
        b = bconv_ref[0:cout, layer:layer + 1]                   # (cout, 1) f32
        return jnp.maximum(y + b, 0.0).astype(compute_dtype)

    h = conv_bn_relu(h, wc1_ref, 0, couts[0])   # (32,  M)
    h = conv_bn_relu(h, wc2_ref, 1, couts[1])   # (64,  M)
    h = conv_bn_relu(h, wc3_ref, 2, couts[2])   # (128, M)
    h = conv_bn_relu(h, wc4_ref, 3, couts[3])   # (hidden, M)

    # AdaptiveAvgPool1d(1) + Flatten: block-diagonal averaging matrix on the MXU
    # (contraction over M of both operands, same pattern as q @ k.T).  The 1/N
    # factor is pre-folded (into pool_mat or wl1), so no extra scaling pass.
    # Padded batch rows only ever see their own columns (block-diagonal), so
    # their garbage cannot leak across batches; the wrapper slices them away.
    pooled = jnp.einsum('bm,cm->bc', pool_ref[...], h,
                        preferred_element_type=f32)              # (Bt, hidden)
    pooled = pooled.astype(compute_dtype)

    # Linear(hidden, 128) + ReLU.
    # TODO(synk): nn.Dropout() is identity in eval mode; training-mode dropout
    # (RNG masking) is not implemented.
    z = jnp.dot(pooled, wl1_ref[...], preferred_element_type=f32)
    z = jnp.maximum(z + blin_ref[0:1, 0:128], 0.0).astype(compute_dtype)

    # Linear(128, embedding_dim), lane-padded to emb_pad -> unmasked vst stores.
    out = jnp.dot(z, wl2_ref[...], preferred_element_type=f32)
    out_ref[...] = (out + blin_ref[1:2, 0:emb_pad]).astype(out_ref.dtype)


def _num_batch_tiles_default():
    # The grid is a serial loop on one TensorCore: a single step minimizes the
    # fixed per-step overhead on single-TC v5e/v6e.  On dual-TC v7x, two
    # "parallel" batch tiles let megacore shard the work across both cores.
    try:
        kind = jax.devices()[0].device_kind.lower()
    except Exception:
        return 1
    return 2 if ("v7" in kind or "7x" in kind) else 1


def dynamic_obstacle_embedding(x_bcn, params, *, num_batch_tiles=None,
                               compute_dtype=jnp.bfloat16):
    """Eval-mode forward of DynamicObstacleEmbedding.

    x_bcn: (B, 4, N) float32, channels-first (PyTorch Conv1d convention).
    Returns (B, embedding_dim) float32.
    """
    B, Cin, N = x_bcn.shape
    assert Cin == 4
    hidden = params["w4"].shape[0]
    emb_dim = params["wl2"].shape[1]
    couts = (params["w1"].shape[0], params["w2"].shape[0],
             params["w3"].shape[0], params["w4"].shape[0])
    cd = compute_dtype

    # ---- Batch tiling / grid selection (per generation).
    G = num_batch_tiles if num_batch_tiles is not None else _num_batch_tiles_default()
    G = max(1, int(G))
    if G == 1:
        Bt, B_pad = B, B
    else:
        Bt = -(-B // G)
        Bt = -(-Bt // 8) * 8           # out-block sublane dim: multiple of 8
        B_pad = Bt * G
    assert (Bt * N) % 128 == 0, "Bt*N must be a multiple of 128 (lane tile)"

    # ---- Input: channels-first (8, B_pad*N) f32 (channel dim zero-padded 4->8)
    # so the x DMA is a few dense 128-lane rows, not ~Bt*N tiny strided writes.
    Cpad = 8
    x_p = x_bcn.astype(jnp.float32)
    if B_pad != B:
        x_p = jnp.pad(x_p, ((0, B_pad - B), (0, 0), (0, 0)))
    x_cm = jnp.transpose(x_p, (1, 0, 2)).reshape(Cin, B_pad * N)
    x_cm = jnp.pad(x_cm, ((0, Cpad - Cin), (0, 0)))

    # ---- Fold BN scale into the conv weights in f32, then cast to bf16.
    def folded_w(li):
        w = params[f"w{li}"].astype(jnp.float32) * params[f"s{li}"][:, None]
        return w.astype(cd)

    wc1 = jnp.pad(folded_w(1), ((0, 0), (0, Cpad - Cin)))        # (32, 8)
    wc2, wc3, wc4 = folded_w(2), folded_w(3), folded_w(4)

    # ---- Pack the four folded BN shifts into a single (Cmax, 4) f32 operand.
    cmax = -(-max(couts) // 8) * 8
    bconv = jnp.zeros((cmax, 4), jnp.float32)
    for li in range(4):
        bconv = bconv.at[:couts[li], li].set(params[f"b{li + 1}"].astype(jnp.float32))

    # ---- Block-diagonal averaging matrix.  1/N folded into it when exact in
    # bf16 (power-of-two N), otherwise folded into wl1 in f32.
    pool = (jnp.arange(Bt)[:, None] == (jnp.arange(Bt * N)[None, :] // N))
    pool = pool.astype(jnp.float32)
    wl1_f32 = params["wl1"].astype(jnp.float32)
    if N & (N - 1) == 0:
        pool = pool * (1.0 / N)
    else:
        wl1_f32 = wl1_f32 * (1.0 / N)
    pool = pool.astype(cd)
    wl1 = wl1_f32.astype(cd)

    # ---- Output head, lane-padded to a multiple of 128 (unmasked stores).
    emb_pad = -(-emb_dim // 128) * 128
    wl2 = jnp.pad(params["wl2"].astype(jnp.float32),
                  ((0, 0), (0, emb_pad - emb_dim))).astype(cd)
    wb = max(128, emb_pad)
    blin = jnp.zeros((2, wb), jnp.float32)
    blin = blin.at[0, :128].set(params["bl1"].astype(jnp.float32))
    blin = blin.at[1, :emb_dim].set(params["bl2"].astype(jnp.float32))

    operands = (x_cm, wc1, wc2, wc3, wc4, bconv, pool, wl1, wl2, blin)

    in_specs = [pl.BlockSpec((Cpad, Bt * N), lambda i: (0, i))]
    in_specs += [pl.BlockSpec(a.shape, lambda i: (0, 0)) for a in operands[1:]]
    out_specs = pl.BlockSpec((Bt, emb_pad), lambda i: (i, 0))

    # Advisory cost estimate so XLA schedules neighbours sensibly around a
    # kernel whose wall time is latency-dominated, not FLOP-dominated.
    m_tot = B_pad * N
    flops = 2 * m_tot * (Cpad * couts[0] + couts[0] * couts[1]
                         + couts[1] * couts[2] + couts[2] * couts[3])
    flops += 2 * Bt * m_tot * hidden                         # pool matmul as executed
    flops += 2 * B_pad * (hidden * 128 + 128 * emb_pad)
    bytes_accessed = sum(int(a.size) * a.dtype.itemsize for a in operands)
    bytes_accessed += B_pad * emb_pad * 4

    kernel = functools.partial(_dyn_obs_kernel, couts=couts, emb_pad=emb_pad,
                               compute_dtype=cd)

    out = pl.pallas_call(
        kernel,
        out_shape=jax.ShapeDtypeStruct((B_pad, emb_pad), jnp.float32),
        grid=(G,),
        in_specs=in_specs,
        out_specs=out_specs,
        compiler_params=pltpu.CompilerParams(
            dimension_semantics=("parallel",)),
        cost_estimate=pl.CostEstimate(flops=flops, transcendentals=0,
                                      bytes_accessed=bytes_accessed),
    )(*operands)

    return out[:B, :emb_dim]


def _fold_bn(gamma, beta, mean, var, eps=1e-5):
    scale = gamma / jnp.sqrt(var + eps)
    shift = beta - mean * scale
    return scale, shift


def make_params(key, embedding_dim=32, hidden_channels=256):
    """Deterministic synthetic parameters matching the nn.Module shapes."""
    dims = [4, 32, 64, 128, hidden_channels]
    keys = jax.random.split(key, 32)
    ki = iter(range(32))
    params = {}
    for li in range(4):
        cin, cout = dims[li], dims[li + 1]
        # Conv1d(cin, cout, k=1, bias=False): torch weight (cout, cin, 1) -> (cout, cin).
        w = jax.random.normal(keys[next(ki)], (cout, cin), jnp.float32) / jnp.sqrt(1.0 * cin)
        gamma = 1.0 + 0.1 * jax.random.normal(keys[next(ki)], (cout,), jnp.float32)
        beta = 0.1 * jax.random.normal(keys[next(ki)], (cout,), jnp.float32)
        mean = 0.1 * jax.random.normal(keys[next(ki)], (cout,), jnp.float32)
        var = jnp.abs(jax.random.normal(keys[next(ki)], (cout,), jnp.float32)) + 0.5
        s, b = _fold_bn(gamma, beta, mean, var)
        params[f"w{li + 1}"] = w
        params[f"s{li + 1}"] = s
        params[f"b{li + 1}"] = b
    # Linear(hidden, 128): torch weight (128, hidden) -> stored transposed (hidden, 128).
    params["wl1"] = jax.random.normal(keys[next(ki)], (hidden_channels, 128),
                                      jnp.float32) / jnp.sqrt(1.0 * hidden_channels)
    params["bl1"] = 0.1 * jax.random.normal(keys[next(ki)], (128,), jnp.float32)
    # Linear(128, embedding_dim) -> stored transposed (128, emb).
    params["wl2"] = jax.random.normal(keys[next(ki)], (128, embedding_dim),
                                      jnp.float32) / jnp.sqrt(128.0)
    params["bl2"] = 0.1 * jax.random.normal(keys[next(ki)], (embedding_dim,), jnp.float32)
    return params


def reference_forward(x_bcn, params):
    """Pure-JAX f32 reference of the same (eval-mode) forward pass."""
    h = x_bcn                                                  # (B, 4, N)
    for li in range(1, 5):
        w = params[f"w{li}"]                                   # (cout, cin)
        h = jnp.einsum("oc,bcn->bon", w, h)
        h = h * params[f"s{li}"][None, :, None] + params[f"b{li}"][None, :, None]
        h = jnp.maximum(h, 0.0)
    pooled = jnp.mean(h, axis=2)                               # (B, hidden)
    z = jnp.maximum(pooled @ params["wl1"] + params["bl1"][None, :], 0.0)
    return z @ params["wl2"] + params["bl2"][None, :]


if __name__ == "__main__":
    B, N = 16, 128           # batch, number of dynamic-obstacle samples (sequence length)
    EMB, HIDDEN = 32, 256

    key = jax.random.PRNGKey(0)
    k_x, k_p = jax.random.split(key)

    # PyTorch Conv1d convention: (B, C=4, L=N).
    x = jax.random.normal(k_x, (B, 4, N), jnp.float32)
    params = make_params(k_p, embedding_dim=EMB, hidden_channels=HIDDEN)

    out = dynamic_obstacle_embedding(x, params)
    out = jax.block_until_ready(out)

    ref = reference_forward(x, params)
    assert out.shape == (B, EMB), out.shape
    max_err = float(jnp.max(jnp.abs(out - ref)))
    # bf16 MXU inputs / bf16 inter-layer activations (f32 accumulation).
    assert jnp.allclose(out, ref, rtol=5e-2, atol=5e-2), \
        f"mismatch vs reference (max abs err {max_err})"

    print("KERNEL_OK")
</pallas_src>

<mosaic_0001>
module attributes {stable_mosaic.version = 11 : i64} {
  func.func @_dyn_obs_kernel(%arg0: i32, %arg1: memref<8x2048xf32, #tpu.memory_space<vmem>>, %arg2: memref<32x8xbf16, #tpu.memory_space<vmem>>, %arg3: memref<64x32xbf16, #tpu.memory_space<vmem>>, %arg4: memref<128x64xbf16, #tpu.memory_space<vmem>>, %arg5: memref<256x128xbf16, #tpu.memory_space<vmem>>, %arg6: memref<256x4xf32, #tpu.memory_space<vmem>>, %arg7: memref<16x2048xbf16, #tpu.memory_space<vmem>>, %arg8: memref<256x128xbf16, #tpu.memory_space<vmem>>, %arg9: memref<128x128xbf16, #tpu.memory_space<vmem>>, %arg10: memref<2x128xf32, #tpu.memory_space<vmem>>, %arg11: memref<16x128xf32, #tpu.memory_space<vmem>>) attributes {dimension_semantics = [#tpu.dimension_semantics<parallel>], iteration_bounds = array<i64: 1>, scalar_prefetch = 0 : i64, scratch_operands = 0 : i64, tpu.core_type = #tpu.core_type<tc>, window_params = [{transform_indices = @transform_0, window_bounds = array<i64: 8, 2048>}, {pipeline_mode = #tpu.pipeline_mode<synchronous>, transform_indices = @transform_1, window_bounds = array<i64: 32, 8>}, {pipeline_mode = #tpu.pipeline_mode<synchronous>, transform_indices = @transform_2, window_bounds = array<i64: 64, 32>}, {pipeline_mode = #tpu.pipeline_mode<synchronous>, transform_indices = @transform_3, window_bounds = array<i64: 128, 64>}, {pipeline_mode = #tpu.pipeline_mode<synchronous>, transform_indices = @transform_4, window_bounds = array<i64: 256, 128>}, {pipeline_mode = #tpu.pipeline_mode<synchronous>, transform_indices = @transform_5, window_bounds = array<i64: 256, 4>}, {pipeline_mode = #tpu.pipeline_mode<synchronous>, transform_indices = @transform_6, window_bounds = array<i64: 16, 2048>}, {pipeline_mode = #tpu.pipeline_mode<synchronous>, transform_indices = @transform_7, window_bounds = array<i64: 256, 128>}, {pipeline_mode = #tpu.pipeline_mode<synchronous>, transform_indices = @transform_8, window_bounds = array<i64: 128, 128>}, {pipeline_mode = #tpu.pipeline_mode<synchronous>, transform_indices = @transform_9, window_bounds = array<i64: 2, 128>}, {transform_indices = @transform_10, window_bounds = array<i64: 16, 128>}]} {
    %c0 = arith.constant 0 : index
    %c0_0 = arith.constant 0 : index
    %0 = vector.load %arg1[%c0, %c0_0] : memref<8x2048xf32, #tpu.memory_space<vmem>>, vector<8x2048xf32>
    %1 = arith.truncf %0 : vector<8x2048xf32> to vector<8x2048xbf16>
    %c0_1 = arith.constant 0 : index
    %c0_2 = arith.constant 0 : index
    %2 = vector.load %arg2[%c0_1, %c0_2] : memref<32x8xbf16, #tpu.memory_space<vmem>>, vector<32x8xbf16>
    %cst = arith.constant dense<0.000000e+00> : vector<32x2048xf32>
    %3 = tpu.matmul %2, %1, %cst {dimension_numbers = #tpu.dot_dimension_numbers<[1], [0], [0], [1], [0, 0, 1, 1], [], []>} : vector<32x8xbf16>, vector<8x2048xbf16>, vector<32x2048xf32> -> vector<32x2048xf32>
    %c0_3 = arith.constant 0 : index
    %c0_4 = arith.constant 0 : index
    %4 = vector.load %arg6[%c0_3, %c0_4] : memref<256x4xf32, #tpu.memory_space<vmem>>, vector<32x1xf32>
    %5 = vector.broadcast %4 : vector<32x1xf32> to vector<32x2048xf32>
    %6 = arith.addf %3, %5 : vector<32x2048xf32>
    %cst_5 = arith.constant 0.000000e+00 : f32
    %7 = vector.broadcast %cst_5 : f32 to vector<32x2048xf32>
    %8 = arith.maximumf %6, %7 : vector<32x2048xf32>
    %9 = arith.truncf %8 : vector<32x2048xf32> to vector<32x2048xbf16>
    %c0_6 = arith.constant 0 : index
    %c0_7 = arith.constant 0 : index
    %10 = vector.load %arg3[%c0_6, %c0_7] : memref<64x32xbf16, #tpu.memory_space<vmem>>, vector<64x32xbf16>
    %cst_8 = arith.constant dense<0.000000e+00> : vector<64x2048xf32>
    %11 = tpu.matmul %10, %9, %cst_8 {dimension_numbers = #tpu.dot_dimension_numbers<[1], [0], [0], [1], [0, 0, 1, 1], [], []>} : vector<64x32xbf16>, vector<32x2048xbf16>, vector<64x2048xf32> -> vector<64x2048xf32>
    %c0_9 = arith.constant 0 : index
    %c1 = arith.constant 1 : index
    %12 = vector.load %arg6[%c0_9, %c1] : memref<256x4xf32, #tpu.memory_space<vmem>>, vector<64x1xf32>
    %13 = vector.broadcast %12 : vector<64x1xf32> to vector<64x2048xf32>
    %14 = arith.addf %11, %13 : vector<64x2048xf32>
    %cst_10 = arith.constant 0.000000e+00 : f32
    %15 = vector.broadcast %cst_10 : f32 to vector<64x2048xf32>
    %16 = arith.maximumf %14, %15 : vector<64x2048xf32>
    %17 = arith.truncf %16 : vector<64x2048xf32> to vector<64x2048xbf16>
    %c0_11 = arith.constant 0 : index
    %c0_12 = arith.constant 0 : index
    %18 = vector.load %arg4[%c0_11, %c0_12] : memref<128x64xbf16, #tpu.memory_space<vmem>>, vector<128x64xbf16>
    %cst_13 = arith.constant dense<0.000000e+00> : vector<128x2048xf32>
    %19 = tpu.matmul %18, %17, %cst_13 {dimension_numbers = #tpu.dot_dimension_numbers<[1], [0], [0], [1], [0, 0, 1, 1], [], []>} : vector<128x64xbf16>, vector<64x2048xbf16>, vector<128x2048xf32> -> vector<128x2048xf32>
    %c0_14 = arith.constant 0 : index
    %c2 = arith.constant 2 : index
    %20 = vector.load %arg6[%c0_14, %c2] : memref<256x4xf32, #tpu.memory_space<vmem>>, vector<128x1xf32>
    %21 = vector.broadcast %20 : vector<128x1xf32> to vector<128x2048xf32>
    %22 = arith.addf %19, %21 : vector<128x2048xf32>
    %cst_15 = arith.constant 0.000000e+00 : f32
    %23 = vector.broadcast %cst_15 : f32 to vector<128x2048xf32>
    %24 = arith.maximumf %22, %23 : vector<128x2048xf32>
    %25 = arith.truncf %24 : vector<128x2048xf32> to vector<128x2048xbf16>
    %c0_16 = arith.constant 0 : index
    %c0_17 = arith.constant 0 : index
    %26 = vector.load %arg5[%c0_16, %c0_17] : memref<256x128xbf16, #tpu.memory_space<vmem>>, vector<256x128xbf16>
    %cst_18 = arith.constant dense<0.000000e+00> : vector<256x2048xf32>
    %27 = tpu.matmul %26, %25, %cst_18 {dimension_numbers = #tpu.dot_dimension_numbers<[1], [0], [0], [1], [0, 0, 1, 1], [], []>} : vector<256x128xbf16>, vector<128x2048xbf16>, vector<256x2048xf32> -> vector<256x2048xf32>
    %c0_19 = arith.constant 0 : index
    %c3 = arith.constant 3 : index
    %28 = vector.load %arg6[%c0_19, %c3] : memref<256x4xf32, #tpu.memory_space<vmem>>, vector<256x1xf32>
    %29 = vector.broadcast %28 : vector<256x1xf32> to vector<256x2048xf32>
    %30 = arith.addf %27, %29 : vector<256x2048xf32>
    %cst_20 = arith.constant 0.000000e+00 : f32
    %31 = vector.broadcast %cst_20 : f32 to vector<256x2048xf32>
    %32 = arith.maximumf %30, %31 : vector<256x2048xf32>
    %33 = arith.truncf %32 : vector<256x2048xf32> to vector<256x2048xbf16>
    %c0_21 = arith.constant 0 : index
    %c0_22 = arith.constant 0 : index
    %34 = vector.load %arg7[%c0_21, %c0_22] : memref<16x2048xbf16, #tpu.memory_space<vmem>>, vector<16x2048xbf16>
    "tpu.trace_start"() <{level = 10 : i32, message = "bm,cm->bc"}> : () -> ()
    %cst_23 = arith.constant dense<0.000000e+00> : vector<16x256xf32>
    %35 = tpu.matmul %34, %33, %cst_23 {dimension_numbers = #tpu.dot_dimension_numbers<[1], [1], [0], [0], [0, 0, 1, 0], [], []>} : vector<16x2048xbf16>, vector<256x2048xbf16>, vector<16x256xf32> -> vector<16x256xf32>
    "tpu.trace_stop"() : () -> ()
    %36 = arith.truncf %35 : vector<16x256xf32> to vector<16x256xbf16>
    %c0_24 = arith.constant 0 : index
    %c0_25 = arith.constant 0 : index
    %37 = vector.load %arg8[%c0_24, %c0_25] : memref<256x128xbf16, #tpu.memory_space<vmem>>, vector<256x128xbf16>
    %cst_26 = arith.constant dense<0.000000e+00> : vector<16x128xf32>
    %38 = tpu.matmul %36, %37, %cst_26 {dimension_numbers = #tpu.dot_dimension_numbers<[1], [0], [0], [1], [0, 0, 1, 1], [], []>} : vector<16x256xbf16>, vector<256x128xbf16>, vector<16x128xf32> -> vector<16x128xf32>
    %c0_27 = arith.constant 0 : index
    %c0_28 = arith.constant 0 : index
    %39 = vector.load %arg10[%c0_27, %c0_28] : memref<2x128xf32, #tpu.memory_space<vmem>>, vector<1x128xf32>
    %40 = vector.broadcast %39 : vector<1x128xf32> to vector<16x128xf32>
    %41 = arith.addf %38, %40 : vector<16x128xf32>
    %cst_29 = arith.constant 0.000000e+00 : f32
    %42 = vector.broadcast %cst_29 : f32 to vector<16x128xf32>
    %43 = arith.maximumf %41, %42 : vector<16x128xf32>
    %44 = arith.truncf %43 : vector<16x128xf32> to vector<16x128xbf16>
    %c0_30 = arith.constant 0 : index
    %c0_31 = arith.constant 0 : index
    %45 = vector.load %arg9[%c0_30, %c0_31] : memref<128x128xbf16, #tpu.memory_space<vmem>>, vector<128x128xbf16>
    %cst_32 = arith.constant dense<0.000000e+00> : vector<16x128xf32>
    %46 = tpu.matmul %44, %45, %cst_32 {dimension_numbers = #tpu.dot_dimension_numbers<[1], [0], [0], [1], [0, 0, 1, 1], [], []>} : vector<16x128xbf16>, vector<128x128xbf16>, vector<16x128xf32> -> vector<16x128xf32>
    %c1_33 = arith.constant 1 : index
    %c0_34 = arith.constant 0 : index
    %47 = vector.load %arg10[%c1_33, %c0_34] : memref<2x128xf32, #tpu.memory_space<vmem>>, vector<1x128xf32>
    %48 = vector.broadcast %47 : vector<1x128xf32> to vector<16x128xf32>
    %49 = arith.addf %46, %48 : vector<16x128xf32>
    %c0_35 = arith.constant 0 : index
    %c0_36 = arith.constant 0 : index
    %50 = vector.load %arg11[%c0_35, %c0_36] : memref<16x128xf32, #tpu.memory_space<vmem>>, vector<16x128xf32>
    tpu.vector_store %arg11[%c0_35, %c0_36], %49 {strides = array<i32>} : memref<16x128xf32, #tpu.memory_space<vmem>>, vector<16x128xf32>,
    return
  }
  func.func @transform_0(%arg0: i32) -> (i32, i32) {
    %c0_i32 = arith.constant 0 : i32
    %c0_i32_0 = arith.constant 0 : i32
    return %c0_i32, %arg0 : i32, i32
  }
  func.func @transform_1(%arg0: i32) -> (i32, i32) {
    %c0_i32 = arith.constant 0 : i32
    %c0_i32_0 = arith.constant 0 : i32
    %c0_i32_1 = arith.constant 0 : i32
    return %c0_i32, %c0_i32_0 : i32, i32
  }
  func.func @transform_2(%arg0: i32) -> (i32, i32) {
    %c0_i32 = arith.constant 0 : i32
    %c0_i32_0 = arith.constant 0 : i32
    %c0_i32_1 = arith.constant 0 : i32
    return %c0_i32, %c0_i32_0 : i32, i32
  }
  func.func @transform_3(%arg0: i32) -> (i32, i32) {
    %c0_i32 = arith.constant 0 : i32
    %c0_i32_0 = arith.constant 0 : i32
    %c0_i32_1 = arith.constant 0 : i32
    return %c0_i32, %c0_i32_0 : i32, i32
  }
  func.func @transform_4(%arg0: i32) -> (i32, i32) {
    %c0_i32 = arith.constant 0 : i32
    %c0_i32_0 = arith.constant 0 : i32
    %c0_i32_1 = arith.constant 0 : i32
    return %c0_i32, %c0_i32_0 : i32, i32
  }
  func.func @transform_5(%arg0: i32) -> (i32, i32) {
    %c0_i32 = arith.constant 0 : i32
    %c0_i32_0 = arith.constant 0 : i32
    %c0_i32_1 = arith.constant 0 : i32
    return %c0_i32, %c0_i32_0 : i32, i32
  }
  func.func @transform_6(%arg0: i32) -> (i32, i32) {
    %c0_i32 = arith.constant 0 : i32
    %c0_i32_0 = arith.constant 0 : i32
    %c0_i32_1 = arith.constant 0 : i32
    return %c0_i32, %c0_i32_0 : i32, i32
  }
  func.func @transform_7(%arg0: i32) -> (i32, i32) {
    %c0_i32 = arith.constant 0 : i32
    %c0_i32_0 = arith.constant 0 : i32
    %c0_i32_1 = arith.constant 0 : i32
    return %c0_i32, %c0_i32_0 : i32, i32
  }
  func.func @transform_8(%arg0: i32) -> (i32, i32) {
    %c0_i32 = arith.constant 0 : i32
    %c0_i32_0 = arith.constant 0 : i32
    %c0_i32_1 = arith.constant 0 : i32
    return %c0_i32, %c0_i32_0 : i32, i32
  }
  func.func @transform_9(%arg0: i32) -> (i32, i32) {
    %c0_i32 = arith.constant 0 : i32
    %c0_i32_0 = arith.constant 0 : i32
    %c0_i32_1 = arith.constant 0 : i32
    return %c0_i32, %c0_i32_0 : i32, i32
  }
  func.func @transform_10(%arg0: i32) -> (i32, i32) {
    %c0_i32 = arith.constant 0 : i32
    %c0_i32_0 = arith.constant 0 : i32
    return %arg0, %c0_i32 : i32, i32
  }
}

</mosaic_0001>

<llo_original>
// kernel: tpu_custom_call.1
$region0: #{tpu_custom_call.1}
  #allocation0 [shape = 'u32[]', space=smem, size = 0x4, offset = 0x4, fixed_abs, tag = 'smem constant byte address 0x4 - core index']
  #allocation1 [shape = 'u32[144,128]{1,0:T(1,128)}', space=vmem, size = 0x12000, scoped, tag = 'internal scratch']
  %s0 = inlined_call_operand.vmem [shape: f32[8,2048], index: 0, kind: input, shape index: {}]
  %s1 = inlined_call_operand.vmem [shape: bf16[32,8], index: 1, kind: input, shape index: {}]
  %s2 = inlined_call_operand.vmem [shape: bf16[64,32], index: 2, kind: input, shape index: {}]
  %s3 = inlined_call_operand.vmem [shape: bf16[128,64], index: 3, kind: input, shape index: {}]
  %s4 = inlined_call_operand.vmem [shape: bf16[256,128], index: 4, kind: input, shape index: {}]
  %s5 = inlined_call_operand.vmem [shape: f32[256,4], index: 5, kind: input, shape index: {}]
  %s6 = inlined_call_operand.hbm [shape: bf16[16,2048], index: 6, kind: input, shape index: {}]
  %s7 = inlined_call_operand.hbm [shape: bf16[256,128], index: 7, kind: input, shape index: {}]
  %s8 = inlined_call_operand.vmem [shape: bf16[128,128], index: 8, kind: input, shape index: {}]
  %s9 = inlined_call_operand.vmem [shape: f32[2,128], index: 9, kind: input, shape index: {}]
  %s10 = inlined_call_operand.hbm [shape: f32[16,128], index: 10, kind: output, shape index: {}]
  %s11 = sld [smem:[#allocation0]]
  $region58: #{tpu_custom_call.1} parent=0
    _
  %s13 = ssub.s32 1, %s11
  %s14 = scalar_select 0, %s13, %s11
  $region1: #{tpu_custom_call.1} parent=0
    #allocation2 [shape = 'u8[65536]{0}', space=vmem, size = 0x10000, scoped, tag = 'input window, operand 6, single buffered']
    #allocation3 [shape = 's32[1]{0}', space=sflag, size = 0x4, scoped, tag = 'scoped memory for tpu_custom_call.1']
    #allocation4 [shape = 's32[1]{0}', space=sflag, size = 0x4, scoped, tag = 'scoped memory for tpu_custom_call.1']
    #allocation5 [shape = 'u8[65536]{0}', space=vmem, size = 0x10000, scoped, tag = 'input window, operand 7, single buffered']
    #allocation6 [shape = 's32[1]{0}', space=sflag, size = 0x4, scoped, tag = 'scoped memory for tpu_custom_call.1']
    #allocation7 [shape = 'u8[8192]{0}', space=vmem, size = 0x2000, scoped, tag = 'output window, operand 0, single buffered']
    %15 = vsyncpa [#allocation3], 0
    %16 = vsyncpa [#allocation6], 0
    %17 = vsyncpa [#allocation4], 0
    // Predicated region
    $region2: #{tpu_custom_call.1} parent=1 // pred_check
      _
    $region3: #{tpu_custom_call.1} parent=1 // pred_check_branch
      %19 = sbr.rel (0) target = $region5
    $region4: #{tpu_custom_call.1} parent=1 // pred_region
      _
    $region5: #{tpu_custom_call.1} parent=1 // pred_fallthru
      _
    // Predicated region
    $region6: #{tpu_custom_call.1} parent=1 // pred_check
      _
    $region7: #{tpu_custom_call.1} parent=1 // pred_check_branch
      %21 = sbr.rel (0) target = $region9
    $region8: #{tpu_custom_call.1} parent=1 // pred_region
      _
    $region9: #{tpu_custom_call.1} parent=1 // pred_fallthru
      _
    // Predicated region
    $region10: #{tpu_custom_call.1} parent=1 // pred_check
      _
    $region11: #{tpu_custom_call.1} parent=1 // pred_check_branch
      %23 = sbr.rel (0) target = $region13
    $region12: #{tpu_custom_call.1} parent=1 // pred_region
      _
    $region13: #{tpu_custom_call.1} parent=1 // pred_fallthru
      _
    // Predicated region
    $region14: #{tpu_custom_call.1} parent=1 // pred_check
      _
    $region15: #{tpu_custom_call.1} parent=1 // pred_check_branch
      %25 = sbr.rel (0) target = $region17
    $region16: #{tpu_custom_call.1} parent=1 // pred_region
      _
    $region17: #{tpu_custom_call.1} parent=1 // pred_fallthru
      _
    // Predicated region
    $region18: #{tpu_custom_call.1} parent=1 // pred_check
      _
    $region19: #{tpu_custom_call.1} parent=1 // pred_check_branch
      %27 = sbr.rel (0) target = $region21
    $region20: #{tpu_custom_call.1} parent=1 // pred_region
      _
    $region21: #{tpu_custom_call.1} parent=1 // pred_fallthru
      _
    // Predicated region
    $region22: #{tpu_custom_call.1} parent=1 // pred_check
      _
    $region23: #{tpu_custom_call.1} parent=1 // pred_check_branch
      %29 = sbr.rel (0) target = $region25
    $region24: #{tpu_custom_call.1} parent=1 // pred_region
      _
    $region25: #{tpu_custom_call.1} parent=1 // pred_fallthru
      _
    // Predicated region
    $region26: #{tpu_custom_call.1} parent=1 // pred_check
      _
    $region27: #{tpu_custom_call.1} parent=1 // pred_check_branch
      %31 = sbr.rel (0) target = $region29
    $region28: #{tpu_custom_call.1} parent=1 // pred_region
      %s33 = ssub.s32 2048, 2048
      %34 = vsyncadd [#allocation3], %s33
      %s35 = sshll.u32 [#allocation2], 4
      %s36 = int_to_ptr.vmem [resolvable:$true] %s35
      %41 = dma.hbm_to_vmem [thread:$0]  %s6, 2048, %s36, [#allocation3], 1024, 1024, 64
    $region29: #{tpu_custom_call.1} parent=1 // pred_fallthru
      _
    // Predicated region
    $region30: #{tpu_custom_call.1} parent=1 // pred_check
      _
    $region31: #{tpu_custom_call.1} parent=1 // pred_check_branch
      %43 = sbr.rel (0) target = $region33
    $region32: #{tpu_custom_call.1} parent=1 // pred_region
      %s45 = ssub.s32 2048, 2048
      %46 = vsyncadd [#allocation6], %s45
      %s47 = sshll.u32 [#allocation5], 4
      %s48 = int_to_ptr.vmem [resolvable:$true] %s47
      %53 = dma.hbm_to_vmem [thread:$0]  %s7, 2048, %s48, [#allocation6], 64, 64, 4
    $region33: #{tpu_custom_call.1} parent=1 // pred_fallthru
      _
    // Predicated region
    $region34: #{tpu_custom_call.1} parent=1 // pred_check
      _
    $region35: #{tpu_custom_call.1} parent=1 // pred_check_branch
      %55 = sbr.rel (0) target = $region37
    $region36: #{tpu_custom_call.1} parent=1 // pred_region
      _
    $region37: #{tpu_custom_call.1} parent=1 // pred_fallthru
      _
    // Predicated region
    $region38: #{tpu_custom_call.1} parent=1 // pred_check
      _
    $region39: #{tpu_custom_call.1} parent=1 // pred_check_branch
      %57 = sbr.rel (0) target = $region41
    $region40: #{tpu_custom_call.1} parent=1 // pred_region
      _
    $region41: #{tpu_custom_call.1} parent=1 // pred_fallthru
      _
    // Predicated region
    $region42: #{tpu_custom_call.1} parent=1 // pred_check
      _
    $region43: #{tpu_custom_call.1} parent=1 // pred_check_branch
      %59 = sbr.rel (0) target = $region45
    $region44: #{tpu_custom_call.1} parent=1 // pred_region
      %60 = dma.done [#allocation3], 2048
    $region45: #{tpu_custom_call.1} parent=1 // pred_fallthru
      _
    // Predicated region
    $region46: #{tpu_custom_call.1} parent=1 // pred_check
      _
    $region47: #{tpu_custom_call.1} parent=1 // pred_check_branch
      %62 = sbr.rel (0) target = $region49
    $region48: #{tpu_custom_call.1} parent=1 // pred_region
      %63 = dma.done [#allocation6], 2048
    $region49: #{tpu_custom_call.1} parent=1 // pred_fallthru
      _
    %v65 = vld [vmem:[%s0] sm:$0xff]
    %v66 = vld [vmem:[%s0 + $0x8] sm:$0xff]
    %v67 = vld [vmem:[%s0 + $0x10] sm:$0xff]
    %v68 = vld [vmem:[%s0 + $0x18] sm:$0xff]
    %v69 = vld [vmem:[%s0 + $0x20] sm:$0xff]
    %v70 = vld [vmem:[%s0 + $0x28] sm:$0xff]
    %v71 = vld [vmem:[%s0 + $0x30] sm:$0xff]
    %v72 = vld [vmem:[%s0 + $0x38] sm:$0xff]
    %v73 = vld [vmem:[%s0 + $0x40] sm:$0xff]
    %v74 = vld [vmem:[%s0 + $0x48] sm:$0xff]
    %v75 = vld [vmem:[%s0 + $0x50] sm:$0xff]
    %v76 = vld [vmem:[%s0 + $0x58] sm:$0xff]
    %v77 = vld [vmem:[%s0 + $0x60] sm:$0xff]
    %v78 = vld [vmem:[%s0 + $0x68] sm:$0xff]
    %v79 = vld [vmem:[%s0 + $0x70] sm:$0xff]
    %v80 = vld [vmem:[%s0 + $0x78] sm:$0xff]
    %v81 = vpack.c.bf16 %v65, %v65
    %v82 = vpack.c.bf16 %v66, %v66
    %v83 = vpack.c.bf16 %v67, %v67
    %v84 = vpack.c.bf16 %v68, %v68
    %v85 = vpack.c.bf16 %v69, %v69
    %v86 = vpack.c.bf16 %v70, %v70
    %v87 = vpack.c.bf16 %v71, %v71
    %v88 = vpack.c.bf16 %v72, %v72
    %v89 = vpack.c.bf16 %v73, %v73
    %v90 = vpack.c.bf16 %v74, %v74
    %v91 = vpack.c.bf16 %v75, %v75
    %v92 = vpack.c.bf16 %v76, %v76
    %v93 = vpack.c.bf16 %v77, %v77
    %v94 = vpack.c.bf16 %v78, %v78
    %v95 = vpack.c.bf16 %v79, %v79
    %v96 = vpack.c.bf16 %v80, %v80
    %v97 = vld [vmem:[%s1] sm:$0xf]
    %v98 = vld [vmem:[%s1 + $0x4] sm:$0xf]
    %v99 = vld [vmem:[%s1 + $0x8] sm:$0xf]
    %v100 = vld [vmem:[%s1 + $0xc] sm:$0xf]
    %v101 = vld [vmem:[%s5] sm:$0xff]
    %v102 = vld [vmem:[%s5 + $0x8] sm:$0xff]
    %v103 = vld [vmem:[%s5 + $0x10] sm:$0xff]
    %v104 = vld [vmem:[%s5 + $0x18] sm:$0xff]
    %106 = vset.pattern.permute.xlu0 0
    %107 = vperm.xlu0 %106, %v101
    %v108 = vpop.permute.xlu0 %107
    %111 = vset.pattern.permute.xlu0 0
    %112 = vperm.xlu0 %111, %v102
    %v113 = vpop.permute.xlu0 %112
    %116 = vset.pattern.permute.xlu0 0
    %117 = vperm.xlu0 %116, %v103
    %v118 = vpop.permute.xlu0 %117
    %121 = vset.pattern.permute.xlu0 0
    %122 = vperm.xlu0 %121, %v104
    %v123 = vpop.permute.xlu0 %122
    %v129 = vunpack.c.l.b16 %v97
    %v130 = vunpack.c.l.b16 %v98
    %v131 = vunpack.c.l.b16 %v99
    %v132 = vunpack.c.l.b16 %v100
    %v133 = vpack.c.b16 %v130, %v129
    %v134 = vpack.c.b16 %v132, %v131
    %vm135 = vcmask 64512
    %v137 = vsel %vm135, %v133, 0
    %v140 = vsel %vm135, %v134, 0
    %vm142 = vcmask 1043456
    %v144 = vsel %vm142, %v81, 0
    %v147 = vsel %vm142, %v82, 0
    %v150 = vsel %vm142, %v83, 0
    %v153 = vsel %vm142, %v84, 0
    %v156 = vsel %vm142, %v85, 0
    %v159 = vsel %vm142, %v86, 0
    %v162 = vsel %vm142, %v87, 0
    %v165 = vsel %vm142, %v88, 0
    %v168 = vsel %vm142, %v89, 0
    %v171 = vsel %vm142, %v90, 0
    %v174 = vsel %vm142, %v91, 0
    %v177 = vsel %vm142, %v92, 0
    %v180 = vsel %vm142, %v93, 0
    %v183 = vsel %vm142, %v94, 0
    %v186 = vsel %vm142, %v95, 0
    %v189 = vsel %vm142, %v96, 0
    %191 = vmatprep.subr.bf16.mxu0 %v147
    %192 = vmatpush1.bf16.msra.mxu0 %v144
    %193 = vmatprep.subr.bf16.mxu0 0
    %194 = vmatpush1.bf16.msra.mxu0 0
    %195 = vmatprep.subr.bf16.mxu0 0
    %196 = vmatpush1.bf16.msra.mxu0 0
    %197 = vmatprep.subr.bf16.mxu0 0
    %198 = vmatpush1.bf16.msra.mxu0 0
    %199 = vmatprep.subr.bf16.mxu0 0
    %200 = vmatpush1.bf16.msra.mxu0 0
    %201 = vmatprep.subr.bf16.mxu0 0
    %202 = vmatpush1.bf16.msra.mxu0 0
    %203 = vmatprep.subr.bf16.mxu0 0
    %204 = vmatpush1.bf16.msra.mxu0 0
    %205 = vmatprep.subr.bf16.mxu0 0
    %206 = vmatpush1.bf16.msra.mxu0 0
    %207 = vmatprep.subr.bf16.mxu0 0
    %208 = vmatpush1.bf16.msra.mxu0 0
    %209 = vmatprep.subr.bf16.mxu0 0
    %210 = vmatpush1.bf16.msra.mxu0 0
    %211 = vmatprep.subr.bf16.mxu0 0
    %212 = vmatpush1.bf16.msra.mxu0 0
    %213 = vmatprep.subr.bf16.mxu0 0
    %214 = vmatpush1.bf16.msra.mxu0 0
    %215 = vmatprep.subr.bf16.mxu0 0
    %216 = vmatpush1.bf16.msra.mxu0 0
    %217 = vmatprep.subr.bf16.mxu0 0
    %218 = vmatpush1.bf16.msra.mxu0 0
    %219 = vmatprep.subr.bf16.mxu0 0
    %220 = vmatpush1.bf16.msra.mxu0 0
    %221 = vmatprep.subr.bf16.mxu0 0
    %222 = vmatpush1.bf16.msra.mxu0 0
    %223 = vmatprep.mubr.bf16.mxu0 0
    %224 = vmatmul.mubr.bf16.gmra.mrb[0].mxu0 %v137
    %v225 = vpop.f32.mrb[0].mxu0
    %v226 = vadd.f32 %v108, %v225
    %v227 = vpop.f32.mrb[0].mxu0
    %v228 = vadd.f32 %v108, %v227
    %v229 = vpop.f32.mrb[0].mxu0
    %v230 = vadd.f32 %v113, %v229
    %v231 = vpop.f32.mrb[0].mxu0
    %v232 = vadd.f32 %v113, %v231
    %233 = vmatprep.mubr.bf16.mxu0 0
    %234 = vmatmul.mubr.bf16.gmra.mrb[0].mxu0 %v140
    %v235 = vpop.f32.mrb[0].mxu0
    %v236 = vadd.f32 %v118, %v235
    %v237 = vpop.f32.mrb[0].mxu0
    %v238 = vadd.f32 %v118, %v237
    %v239 = vpop.f32.mrb[0].mxu0
    %v240 = vadd.f32 %v123, %v239
    %v241 = vpop.f32.mrb[0].mxu0
    %v242 = vadd.f32 %v123, %v241
    %243 = vdwg.mxu0
    %244 = vmatprep.subr.bf16.mxu0 %v153
    %245 = vmatpush1.bf16.msra.mxu0 %v150
    %246 = vmatprep.subr.bf16.mxu0 0
    %247 = vmatpush1.bf16.msra.mxu0 0
    %248 = vmatprep.subr.bf16.mxu0 0
    %249 = vmatpush1.bf16.msra.mxu0 0
    %250 = vmatprep.subr.bf16.mxu0 0
    %251 = vmatpush1.bf16.msra.mxu0 0
    %252 = vmatprep.subr.bf16.mxu0 0
    %253 = vmatpush1.bf16.msra.mxu0 0
    %254 = vmatprep.subr.bf16.mxu0 0
    %255 = vmatpush1.bf16.msra.mxu0 0
    %256 = vmatprep.subr.bf16.mxu0 0
    %257 = vmatpush1.bf16.msra.mxu0 0
    %258 = vmatprep.subr.bf16.mxu0 0
    %259 = vmatpush1.bf16.msra.mxu0 0
    %260 = vmatprep.subr.bf16.mxu0 0
    %261 = vmatpush1.bf16.msra.mxu0 0
    %262 = vmatprep.subr.bf16.mxu0 0
    %263 = vmatpush1.bf16.msra.mxu0 0
    %264 = vmatprep.subr.bf16.mxu0 0
    %265 = vmatpush1.bf16.msra.mxu0 0
    %266 = vmatprep.subr.bf16.mxu0 0
    %267 = vmatpush1.bf16.msra.mxu0 0
    %268 = vmatprep.subr.bf16.mxu0 0
    %269 = vmatpush1.bf16.msra.mxu0 0
    %270 = vmatprep.subr.bf16.mxu0 0
    %271 = vmatpush1.bf16.msra.mxu0 0
    %272 = vmatprep.subr.bf16.mxu0 0
    %273 = vmatpush1.bf16.msra.mxu0 0
    %274 = vmatprep.subr.bf16.mxu0 0
    %275 = vmatpush1.bf16.msra.mxu0 0
    %276 = vmatprep.mubr.bf16.mxu0 0
    %277 = vmatmul.mubr.bf16.gmra.mrb[0].mxu0 %v137
    %v278 = vpop.f32.mrb[0].mxu0
    %v279 = vadd.f32 %v108, %v278
    %v280 = vpop.f32.mrb[0].mxu0
    %v281 = vadd.f32 %v108, %v280
    %v282 = vpop.f32.mrb[0].mxu0
    %v283 = vadd.f32 %v113, %v282
    %v284 = vpop.f32.mrb[0].mxu0
    %v285 = vadd.f32 %v113, %v284
    %286 = vmatprep.mubr.bf16.mxu0 0
    %287 = vmatmul.mubr.bf16.gmra.mrb[0].mxu0 %v140
    %v288 = vpop.f32.mrb[0].mxu0
    %v289 = vadd.f32 %v118, %v288
    %v290 = vpop.f32.mrb[0].mxu0
    %v291 = vadd.f32 %v118, %v290
    %v292 = vpop.f32.mrb[0].mxu0
    %v293 = vadd.f32 %v123, %v292
    %v294 = vpop.f32.mrb[0].mxu0
    %v295 = vadd.f32 %v123, %v294
    %296 = vdwg.mxu0
    %297 = vmatprep.subr.bf16.mxu0 %v159
    %298 = vmatpush1.bf16.msra.mxu0 %v156
    %299 = vmatprep.subr.bf16.mxu0 0
    %300 = vmatpush1.bf16.msra.mxu0 0
    %301 = vmatprep.subr.bf16.mxu0 0
    %302 = vmatpush1.bf16.msra.mxu0 0
    %303 = vmatprep.subr.bf16.mxu0 0
    %304 = vmatpush1.bf16.msra.mxu0 0
    %305 = vmatprep.subr.bf16.mxu0 0
    %306 = vmatpush1.bf16.msra.mxu0 0
    %307 = vmatprep.subr.bf16.mxu0 0
    %308 = vmatpush1.bf16.msra.mxu0 0
    %309 = vmatprep.subr.bf16.mxu0 0
    %310 = vmatpush1.bf16.msra.mxu0 0
    %311 = vmatprep.subr.bf16.mxu0 0
    %312 = vmatpush1.bf16.msra.mxu0 0
    %313 = vmatprep.subr.bf16.mxu0 0
    %314 = vmatpush1.bf16.msra.mxu0 0
    %315 = vmatprep.subr.bf16.mxu0 0
    %316 = vmatpush1.bf16.msra.mxu0 0
    %317 = vmatprep.subr.bf16.mxu0 0
    %318 = vmatpush1.bf16.msra.mxu0 0
    %319 = vmatprep.subr.bf16.mxu0 0
    %320 = vmatpush1.bf16.msra.mxu0 0
    %321 = vmatprep.subr.bf16.mxu0 0
    %322 = vmatpush1.bf16.msra.mxu0 0
    %323 = vmatprep.subr.bf16.mxu0 0
    %324 = vmatpush1.bf16.msra.mxu0 0
    %325 = vmatprep.subr.bf16.mxu0 0
    %326 = vmatpush1.bf16.msra.mxu0 0
    %327 = vmatprep.subr.bf16.mxu0 0
    %328 = vmatpush1.bf16.msra.mxu0 0
    %329 = vmatprep.mubr.bf16.mxu0 0
    %330 = vmatmul.mubr.bf16.gmra.mrb[0].mxu0 %v137
    %v331 = vpop.f32.mrb[0].mxu0
    %v332 = vadd.f32 %v108, %v331
    %v333 = vpop.f32.mrb[0].mxu0
    %v334 = vadd.f32 %v108, %v333
    %v335 = vpop.f32.mrb[0].mxu0
    %v336 = vadd.f32 %v113, %v335
    %v337 = vpop.f32.mrb[0].mxu0
    %v338 = vadd.f32 %v113, %v337
    %339 = vmatprep.mubr.bf16.mxu0 0
    %340 = vmatmul.mubr.bf16.gmra.mrb[0].mxu0 %v140
    %v341 = vpop.f32.mrb[0].mxu0
    %v342 = vadd.f32 %v118, %v341
    %v343 = vpop.f32.mrb[0].mxu0
    %v344 = vadd.f32 %v118, %v343
    %v345 = vpop.f32.mrb[0].mxu0
    %v346 = vadd.f32 %v123, %v345
    %v347 = vpop.f32.mrb[0].mxu0
    %v348 = vadd.f32 %v123, %v347
    %349 = vdwg.mxu0
    %350 = vmatprep.subr.bf16.mxu0 %v165
    %351 = vmatpush1.bf16.msra.mxu0 %v162
    %352 = vmatprep.subr.bf16.mxu0 0
    %353 = vmatpush1.bf16.msra.mxu0 0
    %354 = vmatprep.subr.bf16.mxu0 0
    %355 = vmatpush1.bf16.msra.mxu0 0
    %356 = vmatprep.subr.bf16.mxu0 0
    %357 = vmatpush1.bf16.msra.mxu0 0
    %358 = vmatprep.subr.bf16.mxu0 0
    %359 = vmatpush1.bf16.msra.mxu0 0
    %360 = vmatprep.subr.bf16.mxu0 0
    %361 = vmatpush1.bf16.msra.mxu0 0
    %362 = vmatprep.subr.bf16.mxu0 0
    %363 = vmatpush1.bf16.msra.mxu0 0
    %364 = vmatprep.subr.bf16.mxu0 0
    %365 = vmatpush1.bf16.msra.mxu0 0
    %366 = vmatprep.subr.bf16.mxu0 0
    %367 = vmatpush1.bf16.msra.mxu0 0
    %368 = vmatprep.subr.bf16.mxu0 0
    %369 = vmatpush1.bf16.msra.mxu0 0
    %370 = vmatprep.subr.bf16.mxu0 0
    %371 = vmatpush1.bf16.msra.mxu0 0
    %372 = vmatprep.subr.bf16.mxu0 0
    %373 = vmatpush1.bf16.msra.mxu0 0
    %374 = vmatprep.subr.bf16.mxu0 0
    %375 = vmatpush1.bf16.msra.mxu0 0
    %376 = vmatprep.subr.bf16.mxu0 0
    %377 = vmatpush1.bf16.msra.mxu0 0
    %378 = vmatprep.subr.bf16.mxu0 0
    %379 = vmatpush1.bf16.msra.mxu0 0
    %380 = vmatprep.subr.bf16.mxu0 0
    %381 = vmatpush1.bf16.msra.mxu0 0
    %382 = vmatprep.mubr.bf16.mxu0 0
    %383 = vmatmul.mubr.bf16.gmra.mrb[0].mxu0 %v137
    %v384 = vpop.f32.mrb[0].mxu0
    %v385 = vadd.f32 %v108, %v384
    %v386 = vpop.f32.mrb[0].mxu0
    %v387 = vadd.f32 %v108, %v386
    %v388 = vpop.f32.mrb[0].mxu0
    %v389 = vadd.f32 %v113, %v388
    %v390 = vpop.f32.mrb[0].mxu0
    %v391 = vadd.f32 %v113, %v390
    %392 = vmatprep.mubr.bf16.mxu0 0
    %393 = vmatmul.mubr.bf16.gmra.mrb[0].mxu0 %v140
    %v394 = vpop.f32.mrb[0].mxu0
    %v395 = vadd.f32 %v118, %v394
    %v396 = vpop.f32.mrb[0].mxu0
    %v397 = vadd.f32 %v118, %v396
    %v398 = vpop.f32.mrb[0].mxu0
    %v399 = vadd.f32 %v123, %v398
    %v400 = vpop.f32.mrb[0].mxu0
    %v401 = vadd.f32 %v123, %v400
    %402 = vdwg.mxu0
    %403 = vmatprep.subr.bf16.mxu0 %v171
    %404 = vmatpush1.bf16.msra.mxu0 %v168
    %405 = vmatprep.subr.bf16.mxu0 0
    %406 = vmatpush1.bf16.msra.mxu0 0
    %407 = vmatprep.subr.bf16.mxu0 0
    %408 = vmatpush1.bf16.msra.mxu0 0
    %409 = vmatprep.subr.bf16.mxu0 0
    %410 = vmatpush1.bf16.msra.mxu0 0
    %411 = vmatprep.subr.bf16.mxu0 0
    %412 = vmatpush1.bf16.msra.mxu0 0
    %413 = vmatprep.subr.bf16.mxu0 0
    %414 = vmatpush1.bf16.msra.mxu0 0
    %415 = vmatprep.subr.bf16.mxu0 0
    %416 = vmatpush1.bf16.msra.mxu0 0
    %417 = vmatprep.subr.bf16.mxu0 0
    %418 = vmatpush1.bf16.msra.mxu0 0
    %419 = vmatprep.subr.bf16.mxu0 0
    %420 = vmatpush1.bf16.msra.mxu0 0
    %421 = vmatprep.subr.bf16.mxu0 0
    %422 = vmatpush1.bf16.msra.mxu0 0
    %423 = vmatprep.subr.bf16.mxu0 0
    %424 = vmatpush1.bf16.msra.mxu0 0
    %425 = vmatprep.subr.bf16.mxu0 0
    %426 = vmatpush1.bf16.msra.mxu0 0
    %427 = vmatprep.subr.bf16.mxu0 0
    %428 = vmatpush1.bf16.msra.mxu0 0
    %429 = vmatprep.subr.bf16.mxu0 0
    %430 = vmatpush1.bf16.msra.mxu0 0
    %431 = vmatprep.subr.bf16.mxu0 0
    %432 = vmatpush1.bf16.msra.mxu0 0
    %433 = vmatprep.subr.bf16.mxu0 0
    %434 = vmatpush1.bf16.msra.mxu0 0
    %435 = vmatprep.mubr.bf16.mxu0 0
    %436 = vmatmul.mubr.bf16.gmra.mrb[0].mxu0 %v137
    %v437 = vpop.f32.mrb[0].mxu0
    %v438 = vadd.f32 %v108, %v437
    %v439 = vpop.f32.mrb[0].mxu0
    %v440 = vadd.f32 %v108, %v439
    %v441 = vpop.f32.mrb[0].mxu0
    %v442 = vadd.f32 %v113, %v441
    %v443 = vpop.f32.mrb[0].mxu0
    %v444 = vadd.f32 %v113, %v443
    %445 = vmatprep.mubr.bf16.mxu0 0
    %446 = vmatmul.mubr.bf16.gmra.mrb[0].mxu0 %v140
    %v447 = vpop.f32.mrb[0].mxu0
    %v448 = vadd.f32 %v118, %v447
    %v449 = vpop.f32.mrb[0].mxu0
    %v450 = vadd.f32 %v118, %v449
    %v451 = vpop.f32.mrb[0].mxu0
    %v452 = vadd.f32 %v123, %v451
    %v453 = vpop.f32.mrb[0].mxu0
    %v454 = vadd.f32 %v123, %v453
    %455 = vdwg.mxu0
    %456 = vmatprep.subr.bf16.mxu0 %v177
    %457 = vmatpush1.bf16.msra.mxu0 %v174
    %458 = vmatprep.subr.bf16.mxu0 0
    %459 = vmatpush1.bf16.msra.mxu0 0
    %460 = vmatprep.subr.bf16.mxu0 0
    %461 = vmatpush1.bf16.msra.mxu0 0
    %462 = vmatprep.subr.bf16.mxu0 0
    %463 = vmatpush1.bf16.msra.mxu0 0
    %464 = vmatprep.subr.bf16.mxu0 0
    %465 = vmatpush1.bf16.msra.mxu0 0
    %466 = vmatprep.subr.bf16.mxu0 0
    %467 = vmatpush1.bf16.msra.mxu0 0
    %468 = vmatprep.subr.bf16.mxu0 0
    %469 = vmatpush1.bf16.msra.mxu0 0
    %470 = vmatprep.subr.bf16.mxu0 0
    %471 = vmatpush1.bf16.msra.mxu0 0
    %472 = vmatprep.subr.bf16.mxu0 0
    %473 = vmatpush1.bf16.msra.mxu0 0
    %474 = vmatprep.subr.bf16.mxu0 0
    %475 = vmatpush1.bf16.msra.mxu0 0
    %476 = vmatprep.subr.bf16.mxu0 0
    %477 = vmatpush1.bf16.msra.mxu0 0
    %478 = vmatprep.subr.bf16.mxu0 0
    %479 = vmatpush1.bf16.msra.mxu0 0
    %480 = vmatprep.subr.bf16.mxu0 0
    %481 = vmatpush1.bf16.msra.mxu0 0
    %482 = vmatprep.subr.bf16.mxu0 0
    %483 = vmatpush1.bf16.msra.mxu0 0
    %484 = vmatprep.subr.bf16.mxu0 0
    %485 = vmatpush1.bf16.msra.mxu0 0
    %486 = vmatprep.subr.bf16.mxu0 0
    %487 = vmatpush1.bf16.msra.mxu0 0
    %488 = vmatprep.mubr.bf16.mxu0 0
    %489 = vmatmul.mubr.bf16.gmra.mrb[0].mxu0 %v137
    %v490 = vpop.f32.mrb[0].mxu0
    %v491 = vadd.f32 %v108, %v490
    %v492 = vpop.f32.mrb[0].mxu0
    %v493 = vadd.f32 %v108, %v492
    %v494 = vpop.f32.mrb[0].mxu0
    %v495 = vadd.f32 %v113, %v494
    %v496 = vpop.f32.mrb[0].mxu0
    %v497 = vadd.f32 %v113, %v496
    %498 = vmatprep.mubr.bf16.mxu0 0
    %499 = vmatmul.mubr.bf16.gmra.mrb[0].mxu0 %v140
    %v500 = vpop.f32.mrb[0].mxu0
    %v501 = vadd.f32 %v118, %v500
    %v502 = vpop.f32.mrb[0].mxu0
    %v503 = vadd.f32 %v118, %v502
    %v504 = vpop.f32.mrb[0].mxu0
    %v505 = vadd.f32 %v123, %v504
    %v506 = vpop.f32.mrb[0].mxu0
    %v507 = vadd.f32 %v123, %v506
    %508 = vdwg.mxu0
    %509 = vmatprep.subr.bf16.mxu0 %v183
    %510 = vmatpush1.bf16.msra.mxu0 %v180
    %511 = vmatprep.subr.bf16.mxu0 0
    %512 = vmatpush1.bf16.msra.mxu0 0
    %513 = vmatprep.subr.bf16.mxu0 0
    %514 = vmatpush1.bf16.msra.mxu0 0
    %515 = vmatprep.subr.bf16.mxu0 0
    %516 = vmatpush1.bf16.msra.mxu0 0
    %517 = vmatprep.subr.bf16.mxu0 0
    %518 = vmatpush1.bf16.msra.mxu0 0
    %519 = vmatprep.subr.bf16.mxu0 0
    %520 = vmatpush1.bf16.msra.mxu0 0
    %521 = vmatprep.subr.bf16.mxu0 0
    %522 = vmatpush1.bf16.msra.mxu0 0
    %523 = vmatprep.subr.bf16.mxu0 0
    %524 = vmatpush1.bf16.msra.mxu0 0
    %525 = vmatprep.subr.bf16.mxu0 0
    %526 = vmatpush1.bf16.msra.mxu0 0
    %527 = vmatprep.subr.bf16.mxu0 0
    %528 = vmatpush1.bf16.msra.mxu0 0
    %529 = vmatprep.subr.bf16.mxu0 0
    %530 = vmatpush1.bf16.msra.mxu0 0
    %531 = vmatprep.subr.bf16.mxu0 0
    %532 = vmatpush1.bf16.msra.mxu0 0
    %533 = vmatprep.subr.bf16.mxu0 0
    %534 = vmatpush1.bf16.msra.mxu0 0
    %535 = vmatprep.subr.bf16.mxu0 0
    %536 = vmatpush1.bf16.msra.mxu0 0
    %537 = vmatprep.subr.bf16.mxu0 0
    %538 = vmatpush1.bf16.msra.mxu0 0
    %539 = vmatprep.subr.bf16.mxu0 0
    %540 = vmatpush1.bf16.msra.mxu0 0
    %541 = vmatprep.mubr.bf16.mxu0 0
    %542 = vmatmul.mubr.bf16.gmra.mrb[0].mxu0 %v137
    %v543 = vpop.f32.mrb[0].mxu0
    %v544 = vadd.f32 %v108, %v543
    %v545 = vpop.f32.mrb[0].mxu0
    %v546 = vadd.f32 %v108, %v545
    %v547 = vpop.f32.mrb[0].mxu0
    %v548 = vadd.f32 %v113, %v547
    %v549 = vpop.f32.mrb[0].mxu0
    %v550 = vadd.f32 %v113, %v549
    %551 = vmatprep.mubr.bf16.mxu0 0
    %552 = vmatmul.mubr.bf16.gmra.mrb[0].mxu0 %v140
    %v553 = vpop.f32.mrb[0].mxu0
    %v554 = vadd.f32 %v118, %v553
    %v555 = vpop.f32.mrb[0].mxu0
    %v556 = vadd.f32 %v118, %v555
    %v557 = vpop.f32.mrb[0].mxu0
    %v558 = vadd.f32 %v123, %v557
    %v559 = vpop.f32.mrb[0].mxu0
    %v560 = vadd.f32 %v123, %v559
    %561 = vdwg.mxu0
    %562 = vmatprep.subr.bf16.mxu0 %v189
    %563 = vmatpush1.bf16.msra.mxu0 %v186
    %564 = vmatprep.subr.bf16.mxu0 0
    %565 = vmatpush1.bf16.msra.mxu0 0
    %566 = vmatprep.subr.bf16.mxu0 0
    %567 = vmatpush1.bf16.msra.mxu0 0
    %568 = vmatprep.subr.bf16.mxu0 0
    %569 = vmatpush1.bf16.msra.mxu0 0
    %570 = vmatprep.subr.bf16.mxu0 0
    %571 = vmatpush1.bf16.msra.mxu0 0
    %572 = vmatprep.subr.bf16.mxu0 0
    %573 = vmatpush1.bf16.msra.mxu0 0
    %574 = vmatprep.subr.bf16.mxu0 0
    %575 = vmatpush1.bf16.msra.mxu0 0
    %576 = vmatprep.subr.bf16.mxu0 0
    %577 = vmatpush1.bf16.msra.mxu0 0
    %578 = vmatprep.subr.bf16.mxu0 0
    %579 = vmatpush1.bf16.msra.mxu0 0
    %580 = vmatprep.subr.bf16.mxu0 0
    %581 = vmatpush1.bf16.msra.mxu0 0
    %582 = vmatprep.subr.bf16.mxu0 0
    %583 = vmatpush1.bf16.msra.mxu0 0
    %584 = vmatprep.subr.bf16.mxu0 0
    %585 = vmatpush1.bf16.msra.mxu0 0
    %586 = vmatprep.subr.bf16.mxu0 0
    %587 = vmatpush1.bf16.msra.mxu0 0
    %588 = vmatprep.subr.bf16.mxu0 0
    %589 = vmatpush1.bf16.msra.mxu0 0
    %590 = vmatprep.subr.bf16.mxu0 0
    %591 = vmatpush1.bf16.msra.mxu0 0
    %592 = vmatprep.subr.bf16.mxu0 0
    %593 = vmatpush1.bf16.msra.mxu0 0
    %594 = vmatprep.mubr.bf16.mxu0 0
    %595 = vmatmul.mubr.bf16.gmra.mrb[0].mxu0 %v137
    %v596 = vpop.f32.mrb[0].mxu0
    %v597 = vadd.f32 %v108, %v596
    %v598 = vpop.f32.mrb[0].mxu0
    %v599 = vadd.f32 %v108, %v598
    %v600 = vpop.f32.mrb[0].mxu0
    %v601 = vadd.f32 %v113, %v600
    %v602 = vpop.f32.mrb[0].mxu0
    %v603 = vadd.f32 %v113, %v602
    %604 = vmatprep.mubr.bf16.mxu0 0
    %605 = vmatmul.mubr.bf16.gmra.mrb[0].mxu0 %v140
    %v606 = vpop.f32.mrb[0].mxu0
    %v607 = vadd.f32 %v118, %v606
    %v608 = vpop.f32.mrb[0].mxu0
    %v609 = vadd.f32 %v118, %v608
    %v610 = vpop.f32.mrb[0].mxu0
    %v611 = vadd.f32 %v123, %v610
    %v612 = vpop.f32.mrb[0].mxu0
    %v613 = vadd.f32 %v123, %v612
    %614 = vdwg.mxu0
    %v615 = vmax.f32 %v226, 0.0
    %v616 = vmax.f32 %v228, 0.0
    %v617 = vmax.f32 %v279, 0.0
    %v618 = vmax.f32 %v281, 0.0
    %v619 = vmax.f32 %v332, 0.0
    %v620 = vmax.f32 %v334, 0.0
    %v621 = vmax.f32 %v385, 0.0
    %v622 = vmax.f32 %v387, 0.0
    %v623 = vmax.f32 %v438, 0.0
    %v624 = vmax.f32 %v440, 0.0
    %v625 = vmax.f32 %v491, 0.0
    %v626 = vmax.f32 %v493, 0.0
    %v627 = vmax.f32 %v544, 0.0
    %v628 = vmax.f32 %v546, 0.0
    %v629 = vmax.f32 %v597, 0.0
    %v630 = vmax.f32 %v599, 0.0
    %v631 = vmax.f32 %v230, 0.0
    %v632 = vmax.f32 %v232, 0.0
    %v633 = vmax.f32 %v283, 0.0
    %v634 = vmax.f32 %v285, 0.0
    %v635 = vmax.f32 %v336, 0.0
    %v636 = vmax.f32 %v338, 0.0
    %v637 = vmax.f32 %v389, 0.0
    %v638 = vmax.f32 %v391, 0.0
    %v639 = vmax.f32 %v442, 0.0
    %v640 = vmax.f32 %v444, 0.0
    %v641 = vmax.f32 %v495, 0.0
    %v642 = vmax.f32 %v497, 0.0
    %v643 = vmax.f32 %v548, 0.0
    %v644 = vmax.f32 %v550, 0.0
    %v645 = vmax.f32 %v601, 0.0
    %v646 = vmax.f32 %v603, 0.0
    %v647 = vmax.f32 %v236, 0.0
    %v648 = vmax.f32 %v238, 0.0
    %v649 = vmax.f32 %v289, 0.0
    %v650 = vmax.f32 %v291, 0.0
    %v651 = vmax.f32 %v342, 0.0
    %v652 = vmax.f32 %v344, 0.0
    %v653 = vmax.f32 %v395, 0.0
    %v654 = vmax.f32 %v397, 0.0
    %v655 = vmax.f32 %v448, 0.0
    %v656 = vmax.f32 %v450, 0.0
    %v657 = vmax.f32 %v501, 0.0
    %v658 = vmax.f32 %v503, 0.0
    %v659 = vmax.f32 %v554, 0.0
    %v660 = vmax.f32 %v556, 0.0
    %v661 = vmax.f32 %v607, 0.0
    %v662 = vmax.f32 %v609, 0.0
    %v663 = vmax.f32 %v240, 0.0
    %v664 = vmax.f32 %v242, 0.0
    %v665 = vmax.f32 %v293, 0.0
    %v666 = vmax.f32 %v295, 0.0
    %v667 = vmax.f32 %v346, 0.0
    %v668 = vmax.f32 %v348, 0.0
    %v669 = vmax.f32 %v399, 0.0
    %v670 = vmax.f32 %v401, 0.0
    %v671 = vmax.f32 %v452, 0.0
    %v672 = vmax.f32 %v454, 0.0
    %v673 = vmax.f32 %v505, 0.0
    %v674 = vmax.f32 %v507, 0.0
    %v675 = vmax.f32 %v558, 0.0
    %v676 = vmax.f32 %v560, 0.0
    %v677 = vmax.f32 %v611, 0.0
    %v678 = vmax.f32 %v613, 0.0
    %v679 = vpack.c.bf16 %v631, %v615
    %v680 = vpack.c.bf16 %v632, %v616
    %v681 = vpack.c.bf16 %v633, %v617
    %v682 = vpack.c.bf16 %v634, %v618
    %v683 = vpack.c.bf16 %v635, %v619
    %v684 = vpack.c.bf16 %v636, %v620
    %v685 = vpack.c.bf16 %v637, %v621
    %v686 = vpack.c.bf16 %v638, %v622
    %v687 = vpack.c.bf16 %v639, %v623
    %v688 = vpack.c.bf16 %v640, %v624
    %v689 = vpack.c.bf16 %v641, %v625
    %v690 = vpack.c.bf16 %v642, %v626
    %v691 = vpack.c.bf16 %v643, %v627
    %v692 = vpack.c.bf16 %v644, %v628
    %v693 = vpack.c.bf16 %v645, %v629
    %v694 = vpack.c.bf16 %v646, %v630
    %v695 = vpack.c.bf16 %v663, %v647
    %v696 = vpack.c.bf16 %v664, %v648
    %v697 = vpack.c.bf16 %v665, %v649
    %v698 = vpack.c.bf16 %v666, %v650
    %v699 = vpack.c.bf16 %v667, %v651
    %v700 = vpack.c.bf16 %v668, %v652
    %v701 = vpack.c.bf16 %v669, %v653
    %v702 = vpack.c.bf16 %v670, %v654
    %v703 = vpack.c.bf16 %v671, %v655
    %v704 = vpack.c.bf16 %v672, %v656
    %v705 = vpack.c.bf16 %v673, %v657
    %v706 = vpack.c.bf16 %v674, %v658
    %v707 = vpack.c.bf16 %v675, %v659
    %v708 = vpack.c.bf16 %v676, %v660
    %v709 = vpack.c.bf16 %v677, %v661
    %v710 = vpack.c.bf16 %v678, %v662
    %v711 = vld [vmem:[%s2] sm:$0xf]
    %v712 = vld [vmem:[%s2 + $0x4] sm:$0xf]
    %v713 = vld [vmem:[%s2 + $0x8] sm:$0xf]
    %v714 = vld [vmem:[%s2 + $0xc] sm:$0xf]
    %v715 = vld [vmem:[%s2 + $0x10] sm:$0xf]
    %v716 = vld [vmem:[%s2 + $0x14] sm:$0xf]
    %v717 = vld [vmem:[%s2 + $0x18] sm:$0xf]
    %v718 = vld [vmem:[%s2 + $0x1c] sm:$0xf]
    %v719 = vld [vmem:[%s5] sm:$0xff]
    %v720 = vld [vmem:[%s5 + $0x8] sm:$0xff]
    %v721 = vld [vmem:[%s5 + $0x10] sm:$0xff]
    %v722 = vld [vmem:[%s5 + $0x18] sm:$0xff]
    %v723 = vld [vmem:[%s5 + $0x20] sm:$0xff]
    %v724 = vld [vmem:[%s5 + $0x28] sm:$0xff]
    %v725 = vld [vmem:[%s5 + $0x30] sm:$0xff]
    %v726 = vld [vmem:[%s5 + $0x38] sm:$0xff]
    %728 = vset.pattern.permute.xlu0 1
    %729 = vperm.xlu0 %728, %v719
    %v730 = vpop.permute.xlu0 %729
    %733 = vset.pattern.permute.xlu0 1
    %734 = vperm.xlu0 %733, %v720
    %v735 = vpop.permute.xlu0 %734
    %738 = vset.pattern.permute.xlu0 1
    %739 = vperm.xlu0 %738, %v721
    %v740 = vpop.permute.xlu0 %739
    %743 = vset.pattern.permute.xlu0 1
    %744 = vperm.xlu0 %743, %v722
    %v745 = vpop.permute.xlu0 %744
    %748 = vset.pattern.permute.xlu0 1
    %749 = vperm.xlu0 %748, %v723
    %v750 = vpop.permute.xlu0 %749
    %753 = vset.pattern.permute.xlu0 1
    %754 = vperm.xlu0 %753, %v724
    %v755 = vpop.permute.xlu0 %754
    %758 = vset.pattern.permute.xlu0 1
    %759 = vperm.xlu0 %758, %v725
    %v760 = vpop.permute.xlu0 %759
    %763 = vset.pattern.permute.xlu0 1
    %764 = vperm.xlu0 %763, %v726
    %v765 = vpop.permute.xlu0 %764
    %v775 = vunpack.c.l.b16 %v711
    %v776 = vunpack.c.l.b16 %v712
    %v777 = vunpack.c.l.b16 %v713
    %v778 = vunpack.c.l.b16 %v714
    %v779 = vunpack.c.l.b16 %v715
    %v780 = vunpack.c.l.b16 %v716
    %v781 = vunpack.c.l.b16 %v717
    %v782 = vunpack.c.l.b16 %v718
    %v783 = vpack.c.b16 %v776, %v775
    %v784 = vpack.c.b16 %v778, %v777
    %v785 = vpack.c.b16 %v780, %v779
    %v786 = vpack.c.b16 %v782, %v781
    %vm787 = vcmask 261120
    %v789 = vsel %vm787, %v783, 0
    %v792 = vsel %vm787, %v784, 0
    %v795 = vsel %vm787, %v785, 0
    %v798 = vsel %vm787, %v786, 0
    %800 = vmatprep.subr.bf16.mxu0 %v680
    %801 = vmatpush1.bf16.msra.mxu0 %v679
    %802 = vmatprep.subr.bf16.mxu0 %v696
    %803 = vmatpush1.bf16.msra.mxu0 %v695
    %804 = vmatprep.subr.bf16.mxu0 0
    %805 = vmatpush1.bf16.msra.mxu0 0
    %806 = vmatprep.subr.bf16.mxu0 0
    %807 = vmatpush1.bf16.msra.mxu0 0
    %808 = vmatprep.subr.bf16.mxu0 0
    %809 = vmatpush1.bf16.msra.mxu0 0
    %810 = vmatprep.subr.bf16.mxu0 0
    %811 = vmatpush1.bf16.msra.mxu0 0
    %812 = vmatprep.subr.bf16.mxu0 0
    %813 = vmatpush1.bf16.msra.mxu0 0
    %814 = vmatprep.subr.bf16.mxu0 0
    %815 = vmatpush1.bf16.msra.mxu0 0
    %816 = vmatprep.subr.bf16.mxu0 0
    %817 = vmatpush1.bf16.msra.mxu0 0
    %818 = vmatprep.subr.bf16.mxu0 0
    %819 = vmatpush1.bf16.msra.mxu0 0
    %820 = vmatprep.subr.bf16.mxu0 0
    %821 = vmatpush1.bf16.msra.mxu0 0
    %822 = vmatprep.subr.bf16.mxu0 0
    %823 = vmatpush1.bf16.msra.mxu0 0
    %824 = vmatprep.subr.bf16.mxu0 0
    %825 = vmatpush1.bf16.msra.mxu0 0
    %826 = vmatprep.subr.bf16.mxu0 0
    %827 = vmatpush1.bf16.msra.mxu0 0
    %828 = vmatprep.subr.bf16.mxu0 0
    %829 = vmatpush1.bf16.msra.mxu0 0
    %830 = vmatprep.subr.bf16.mxu0 0
    %831 = vmatpush1.bf16.msra.mxu0 0
    %832 = vmatprep.mubr.bf16.mxu0 0
    %833 = vmatmul.mubr.bf16.gmra.mrb[0].mxu0 %v789
    %v834 = vpop.f32.mrb[0].mxu0
    %v835 = vadd.f32 %v730, %v834
    %v836 = vpop.f32.mrb[0].mxu0
    %v837 = vadd.f32 %v730, %v836
    %v838 = vpop.f32.mrb[0].mxu0
    %v839 = vadd.f32 %v735, %v838
    %v840 = vpop.f32.mrb[0].mxu0
    %v841 = vadd.f32 %v735, %v840
    %842 = vmatprep.mubr.bf16.mxu0 0
    %843 = vmatmul.mubr.bf16.gmra.mrb[0].mxu0 %v792
    %v844 = vpop.f32.mrb[0].mxu0
    %v845 = vadd.f32 %v740, %v844
    %v846 = vpop.f32.mrb[0].mxu0
    %v847 = vadd.f32 %v740, %v846
    %v848 = vpop.f32.mrb[0].mxu0
    %v849 = vadd.f32 %v745, %v848
    %v850 = vpop.f32.mrb[0].mxu0
    %v851 = vadd.f32 %v745, %v850
    %852 = vmatprep.mubr.bf16.mxu0 0
    %853 = vmatmul.mubr.bf16.gmra.mrb[0].mxu0 %v795
    %v854 = vpop.f32.mrb[0].mxu0
    %v855 = vadd.f32 %v750, %v854
    %v856 = vpop.f32.mrb[0].mxu0
    %v857 = vadd.f32 %v750, %v856
    %v858 = vpop.f32.mrb[0].mxu0
    %v859 = vadd.f32 %v755, %v858
    %v860 = vpop.f32.mrb[0].mxu0
    %v861 = vadd.f32 %v755, %v860
    %862 = vmatprep.mubr.bf16.mxu0 0
    %863 = vmatmul.mubr.bf16.gmra.mrb[0].mxu0 %v798
    %v864 = vpop.f32.mrb[0].mxu0
    %v865 = vadd.f32 %v760, %v864
    %v866 = vpop.f32.mrb[0].mxu0
    %v867 = vadd.f32 %v760, %v866
    %v868 = vpop.f32.mrb[0].mxu0
    %v869 = vadd.f32 %v765, %v868
    %v870 = vpop.f32.mrb[0].mxu0
    %v871 = vadd.f32 %v765, %v870
    %872 = vdwg.mxu0
    %873 = vmatprep.subr.bf16.mxu0 %v682
    %874 = vmatpush1.bf16.msra.mxu0 %v681
    %875 = vmatprep.subr.bf16.mxu0 %v698
    %876 = vmatpush1.bf16.msra.mxu0 %v697
    %877 = vmatprep.subr.bf16.mxu0 0
    %878 = vmatpush1.bf16.msra.mxu0 0
    %879 = vmatprep.subr.bf16.mxu0 0
    %880 = vmatpush1.bf16.msra.mxu0 0
    %881 = vmatprep.subr.bf16.mxu0 0
    %882 = vmatpush1.bf16.msra.mxu0 0
    %883 = vmatprep.subr.bf16.mxu0 0
    %884 = vmatpush1.bf16.msra.mxu0 0
    %885 = vmatprep.subr.bf16.mxu0 0
    %886 = vmatpush1.bf16.msra.mxu0 0
    %887 = vmatprep.subr.bf16.mxu0 0
    %888 = vmatpush1.bf16.msra.mxu0 0
    %889 = vmatprep.subr.bf16.mxu0 0
    %890 = vmatpush1.bf16.msra.mxu0 0
    %891 = vmatprep.subr.bf16.mxu0 0
    %892 = vmatpush1.bf16.msra.mxu0 0
    %893 = vmatprep.subr.bf16.mxu0 0
    %894 = vmatpush1.bf16.msra.mxu0 0
    %895 = vmatprep.subr.bf16.mxu0 0
    %896 = vmatpush1.bf16.msra.mxu0 0
    %897 = vmatprep.subr.bf16.mxu0 0
    %898 = vmatpush1.bf16.msra.mxu0 0
    %899 = vmatprep.subr.bf16.mxu0 0
    %900 = vmatpush1.bf16.msra.mxu0 0
    %901 = vmatprep.subr.bf16.mxu0 0
    %902 = vmatpush1.bf16.msra.mxu0 0
    %903 = vmatprep.subr.bf16.mxu0 0
    %904 = vmatpush1.bf16.msra.mxu0 0
    %905 = vmatprep.mubr.bf16.mxu0 0
    %906 = vmatmul.mubr.bf16.gmra.mrb[0].mxu0 %v789
    %v907 = vpop.f32.mrb[0].mxu0
    %v908 = vadd.f32 %v730, %v907
    %v909 = vpop.f32.mrb[0].mxu0
    %v910 = vadd.f32 %v730, %v909
    %v911 = vpop.f32.mrb[0].mxu0
    %v912 = vadd.f32 %v735, %v911
    %v913 = vpop.f32.mrb[0].mxu0
    %v914 = vadd.f32 %v735, %v913
    %915 = vmatprep.mubr.bf16.mxu0 0
    %916 = vmatmul.mubr.bf16.gmra.mrb[0].mxu0 %v792
    %v917 = vpop.f32.mrb[0].mxu0
    %v918 = vadd.f32 %v740, %v917
    %v919 = vpop.f32.mrb[0].mxu0
    %v920 = vadd.f32 %v740, %v919
    %v921 = vpop.f32.mrb[0].mxu0
    %v922 = vadd.f32 %v745, %v921
    %v923 = vpop.f32.mrb[0].mxu0
    %v924 = vadd.f32 %v745, %v923
    %925 = vmatprep.mubr.bf16.mxu0 0
    %926 = vmatmul.mubr.bf16.gmra.mrb[0].mxu0 %v795
    %v927 = vpop.f32.mrb[0].mxu0
    %v928 = vadd.f32 %v750, %v927
    %v929 = vpop.f32.mrb[0].mxu0
    %v930 = vadd.f32 %v750, %v929
    %v931 = vpop.f32.mrb[0].mxu0
    %v932 = vadd.f32 %v755, %v931
    %v933 = vpop.f32.mrb[0].mxu0
    %v934 = vadd.f32 %v755, %v933
    %935 = vmatprep.mubr.bf16.mxu0 0
    %936 = vmatmul.mubr.bf16.gmra.mrb[0].mxu0 %v798
    %v937 = vpop.f32.mrb[0].mxu0
    %v938 = vadd.f32 %v760, %v937
    %v939 = vpop.f32.mrb[0].mxu0
    %v940 = vadd.f32 %v760, %v939
    %v941 = vpop.f32.mrb[0].mxu0
    %v942 = vadd.f32 %v765, %v941
    %v943 = vpop.f32.mrb[0].mxu0
    %v944 = vadd.f32 %v765, %v943
    %945 = vdwg.mxu0
    %946 = vmatprep.subr.bf16.mxu0 %v684
    %947 = vmatpush1.bf16.msra.mxu0 %v683
    %948 = vmatprep.subr.bf16.mxu0 %v700
    %949 = vmatpush1.bf16.msra.mxu0 %v699
    %950 = vmatprep.subr.bf16.mxu0 0
    %951 = vmatpush1.bf16.msra.mxu0 0
    %952 = vmatprep.subr.bf16.mxu0 0
    %953 = vmatpush1.bf16.msra.mxu0 0
    %954 = vmatprep.subr.bf16.mxu0 0
    %955 = vmatpush1.bf16.msra.mxu0 0
    %956 = vmatprep.subr.bf16.mxu0 0
    %957 = vmatpush1.bf16.msra.mxu0 0
    %958 = vmatprep.subr.bf16.mxu0 0
    %959 = vmatpush1.bf16.msra.mxu0 0
    %960 = vmatprep.subr.bf16.mxu0 0
    %961 = vmatpush1.bf16.msra.mxu0 0
    %962 = vmatprep.subr.bf16.mxu0 0
    %963 = vmatpush1.bf16.msra.mxu0 0
    %964 = vmatprep.subr.bf16.mxu0 0
    %965 = vmatpush1.bf16.msra.mxu0 0
    %966 = vmatprep.subr.bf16.mxu0 0
    %967 = vmatpush1.bf16.msra.mxu0 0
    %968 = vmatprep.subr.bf16.mxu0 0
    %969 = vmatpush1.bf16.msra.mxu0 0
    %970 = vmatprep.subr.bf16.mxu0 0
    %971 = vmatpush1.bf16.msra.mxu0 0
    %972 = vmatprep.subr.bf16.mxu0 0
    %973 = vmatpush1.bf16.msra.mxu0 0
    %974 = vmatprep.subr.bf16.mxu0 0
    %975 = vmatpush1.bf16.msra.mxu0 0
    %976 = vmatprep.subr.bf16.mxu0 0
    %977 = vmatpush1.bf16.msra.mxu0 0
    %978 = vmatprep.mubr.bf16.mxu0 0
    %979 = vmatmul.mubr.bf16.gmra.mrb[0].mxu0 %v789
    %v980 = vpop.f32.mrb[0].mxu0
    %v981 = vadd.f32 %v730, %v980
    %v982 = vpop.f32.mrb[0].mxu0
    %v983 = vadd.f32 %v730, %v982
    %v984 = vpop.f32.mrb[0].mxu0
    %v985 = vadd.f32 %v735, %v984
    %v986 = vpop.f32.mrb[0].mxu0
    %v987 = vadd.f32 %v735, %v986
    %988 = vmatprep.mubr.bf16.mxu0 0
    %989 = vmatmul.mubr.bf16.gmra.mrb[0].mxu0 %v792
    %v990 = vpop.f32.mrb[0].mxu0
    %v991 = vadd.f32 %v740, %v990
    %v992 = vpop.f32.mrb[0].mxu0
    %v993 = vadd.f32 %v740, %v992
    %v994 = vpop.f32.mrb[0].mxu0
    %v995 = vadd.f32 %v745, %v994
    %v996 = vpop.f32.mrb[0].mxu0
    %v997 = vadd.f32 %v745, %v996
    %998 = vmatprep.mubr.bf16.mxu0 0
    %999 = vmatmul.mubr.bf16.gmra.mrb[0].mxu0 %v795
    %v1000 = vpop.f32.mrb[0].mxu0
    %v1001 = vadd.f32 %v750, %v1000
    %v1002 = vpop.f32.mrb[0].mxu0
    %v1003 = vadd.f32 %v750, %v1002
    %v1004 = vpop.f32.mrb[0].mxu0
    %v1005 = vadd.f32 %v755, %v1004
    %v1006 = vpop.f32.mrb[0].mxu0
    %v1007 = vadd.f32 %v755, %v1006
    %1008 = vmatprep.mubr.bf16.mxu0 0
    %1009 = vmatmul.mubr.bf16.gmra.mrb[0].mxu0 %v798
    %v1010 = vpop.f32.mrb[0].mxu0
    %v1011 = vadd.f32 %v760, %v1010
    %v1012 = vpop.f32.mrb[0].mxu0
    %v1013 = vadd.f32 %v760, %v1012
    %v1014 = vpop.f32.mrb[0].mxu0
    %v1015 = vadd.f32 %v765, %v1014
    %v1016 = vpop.f32.mrb[0].mxu0
    %v1017 = vadd.f32 %v765, %v1016
    %1018 = vdwg.mxu0
    %1019 = vmatprep.subr.bf16.mxu0 %v686
    %1020 = vmatpush1.bf16.msra.mxu0 %v685
    %1021 = vmatprep.subr.bf16.mxu0 %v702
    %1022 = vmatpush1.bf16.msra.mxu0 %v701
    %1023 = vmatprep.subr.bf16.mxu0 0
    %1024 = vmatpush1.bf16.msra.mxu0 0
    %1025 = vmatprep.subr.bf16.mxu0 0
    %1026 = vmatpush1.bf16.msra.mxu0 0
    %1027 = vmatprep.subr.bf16.mxu0 0
    %1028 = vmatpush1.bf16.msra.mxu0 0
    %1029 = vmatprep.subr.bf16.mxu0 0
    %1030 = vmatpush1.bf16.msra.mxu0 0
    %1031 = vmatprep.subr.bf16.mxu0 0
    %1032 = vmatpush1.bf16.msra.mxu0 0
    %1033 = vmatprep.subr.bf16.mxu0 0
    %1034 = vmatpush1.bf16.msra.mxu0 0
    %1035 = vmatprep.subr.bf16.mxu0 0
    %1036 = vmatpush1.bf16.msra.mxu0 0
    %1037 = vmatprep.subr.bf16.mxu0 0
    %1038 = vmatpush1.bf16.msra.mxu0 0
    %1039 = vmatprep.subr.bf16.mxu0 0
    %1040 = vmatpush1.bf16.msra.mxu0 0
    %1041 = vmatprep.subr.bf16.mxu0 0
    %1042 = vmatpush1.bf16.msra.mxu0 0
    %1043 = vmatprep.subr.bf16.mxu0 0
    %1044 = vmatpush1.bf16.msra.mxu0 0
    %1045 = vmatprep.subr.bf16.mxu0 0
    %1046 = vmatpush1.bf16.msra.mxu0 0
    %1047 = vmatprep.subr.bf16.mxu0 0
    %1048 = vmatpush1.bf16.msra.mxu0 0
    %1049 = vmatprep.subr.bf16.mxu0 0
    %1050 = vmatpush1.bf16.msra.mxu0 0
    %1051 = vmatprep.mubr.bf16.mxu0 0
    %1052 = vmatmul.mubr.bf16.gmra.mrb[0].mxu0 %v789
    %v1053 = vpop.f32.mrb[0].mxu0
    %v1054 = vadd.f32 %v730, %v1053
    %v1055 = vpop.f32.mrb[0].mxu0
    %v1056 = vadd.f32 %v730, %v1055
    %v1057 = vpop.f32.mrb[0].mxu0
    %v1058 = vadd.f32 %v735, %v1057
    %v1059 = vpop.f32.mrb[0].mxu0
    %v1060 = vadd.f32 %v735, %v1059
    %1061 = vmatprep.mubr.bf16.mxu0 0
    %1062 = vmatmul.mubr.bf16.gmra.mrb[0].mxu0 %v792
    %v1063 = vpop.f32.mrb[0].mxu0
    %v1064 = vadd.f32 %v740, %v1063
    %v1065 = vpop.f32.mrb[0].mxu0
    %v1066 = vadd.f32 %v740, %v1065
    %v1067 = vpop.f32.mrb[0].mxu0
    %v1068 = vadd.f32 %v745, %v1067
    %v1069 = vpop.f32.mrb[0].mxu0
    %v1070 = vadd.f32 %v745, %v1069
    %1071 = vmatprep.mubr.bf16.mxu0 0
    %1072 = vmatmul.mubr.bf16.gmra.mrb[0].mxu0 %v795
    %v1073 = vpop.f32.mrb[0].mxu0
    %v1074 = vadd.f32 %v750, %v1073
    %v1075 = vpop.f32.mrb[0].mxu0
    %v1076 = vadd.f32 %v750, %v1075
    %v1077 = vpop.f32.mrb[0].mxu0
    %v1078 = vadd.f32 %v755, %v1077
    %v1079 = vpop.f32.mrb[0].mxu0
    %v1080 = vadd.f32 %v755, %v1079
    %1081 = vmatprep.mubr.bf16.mxu0 0
    %1082 = vmatmul.mubr.bf16.gmra.mrb[0].mxu0 %v798
    %v1083 = vpop.f32.mrb[0].mxu0
    %v1084 = vadd.f32 %v760, %v1083
    %v1085 = vpop.f32.mrb[0].mxu0
    %v1086 = vadd.f32 %v760, %v1085
    %v1087 = vpop.f32.mrb[0].mxu0
    %v1088 = vadd.f32 %v765, %v1087
    %v1089 = vpop.f32.mrb[0].mxu0
    %v1090 = vadd.f32 %v765, %v1089
    %1091 = vdwg.mxu0
    %1092 = vmatprep.subr.bf16.mxu0 %v688
    %1093 = vmatpush1.bf16.msra.mxu0 %v687
    %1094 = vmatprep.subr.bf16.mxu0 %v704
    %1095 = vmatpush1.bf16.msra.mxu0 %v703
    %1096 = vmatprep.subr.bf16.mxu0 0
    %1097 = vmatpush1.bf16.msra.mxu0 0
    %1098 = vmatprep.subr.bf16.mxu0 0
    %1099 = vmatpush1.bf16.msra.mxu0 0
    %1100 = vmatprep.subr.bf16.mxu0 0
    %1101 = vmatpush1.bf16.msra.mxu0 0
    %1102 = vmatprep.subr.bf16.mxu0 0
    %1103 = vmatpush1.bf16.msra.mxu0 0
    %1104 = vmatprep.subr.bf16.mxu0 0
    %1105 = vmatpush1.bf16.msra.mxu0 0
    %1106 = vmatprep.subr.bf16.mxu0 0
    %1107 = vmatpush1.bf16.msra.mxu0 0
    %1108 = vmatprep.subr.bf16.mxu0 0
    %1109 = vmatpush1.bf16.msra.mxu0 0
    %1110 = vmatprep.subr.bf16.mxu0 0
    %1111 = vmatpush1.bf16.msra.mxu0 0
    %1112 = vmatprep.subr.bf16.mxu0 0
    %1113 = vmatpush1.bf16.msra.mxu0 0
    %1114 = vmatprep.subr.bf16.mxu0 0
    %1115 = vmatpush1.bf16.msra.mxu0 0
    %1116 = vmatprep.subr.bf16.mxu0 0
    %1117 = vmatpush1.bf16.msra.mxu0 0
    %1118 = vmatprep.subr.bf16.mxu0 0
    %1119 = vmatpush1.bf16.msra.mxu0 0
    %1120 = vmatprep.subr.bf16.mxu0 0
    %1121 = vmatpush1.bf16.msra.mxu0 0
    %1122 = vmatprep.subr.bf16.mxu0 0
    %1123 = vmatpush1.bf16.msra.mxu0 0
    %1124 = vmatprep.mubr.bf16.mxu0 0
    %1125 = vmatmul.mubr.bf16.gmra.mrb[0].mxu0 %v789
    %v1126 = vpop.f32.mrb[0].mxu0
    %v1127 = vadd.f32 %v730, %v1126
    %v1128 = vpop.f32.mrb[0].mxu0
    %v1129 = vadd.f32 %v730, %v1128
    %v1130 = vpop.f32.mrb[0].mxu0
    %v1131 = vadd.f32 %v735, %v1130
    %v1132 = vpop.f32.mrb[0].mxu0
    %v1133 = vadd.f32 %v735, %v1132
    %1134 = vmatprep.mubr.bf16.mxu0 0
    %1135 = vmatmul.mubr.bf16.gmra.mrb[0].mxu0 %v792
    %v1136 = vpop.f32.mrb[0].mxu0
    %v1137 = vadd.f32 %v740, %v1136
    %v1138 = vpop.f32.mrb[0].mxu0
    %v1139 = vadd.f32 %v740, %v1138
    %v1140 = vpop.f32.mrb[0].mxu0
    %v1141 = vadd.f32 %v745, %v1140
    %v1142 = vpop.f32.mrb[0].mxu0
    %v1143 = vadd.f32 %v745, %v1142
    %1144 = vmatprep.mubr.bf16.mxu0 0
    %1145 = vmatmul.mubr.bf16.gmra.mrb[0].mxu0 %v795
    %v1146 = vpop.f32.mrb[0].mxu0
    %v1147 = vadd.f32 %v750, %v1146
    %v1148 = vpop.f32.mrb[0].mxu0
    %v1149 = vadd.f32 %v750, %v1148
    %v1150 = vpop.f32.mrb[0].mxu0
    %v1151 = vadd.f32 %v755, %v1150
    %v1152 = vpop.f32.mrb[0].mxu0
    %v1153 = vadd.f32 %v755, %v1152
    %1154 = vmatprep.mubr.bf16.mxu0 0
    %1155 = vmatmul.mubr.bf16.gmra.mrb[0].mxu0 %v798
    %v1156 = vpop.f32.mrb[0].mxu0
    %v1157 = vadd.f32 %v760, %v1156
    %v1158 = vpop.f32.mrb[0].mxu0
    %v1159 = vadd.f32 %v760, %v1158
    %v1160 = vpop.f32.mrb[0].mxu0
    %v1161 = vadd.f32 %v765, %v1160
    %v1162 = vpop.f32.mrb[0].mxu0
    %v1163 = vadd.f32 %v765, %v1162
    %1164 = vdwg.mxu0
    %1165 = vmatprep.subr.bf16.mxu0 %v690
    %1166 = vmatpush1.bf16.msra.mxu0 %v689
    %1167 = vmatprep.subr.bf16.mxu0 %v706
    %1168 = vmatpush1.bf16.msra.mxu0 %v705
    %1169 = vmatprep.subr.bf16.mxu0 0
    %1170 = vmatpush1.bf16.msra.mxu0 0
    %1171 = vmatprep.subr.bf16.mxu0 0
    %1172 = vmatpush1.bf16.msra.mxu0 0
    %1173 = vmatprep.subr.bf16.mxu0 0
    %1174 = vmatpush1.bf16.msra.mxu0 0
    %1175 = vmatprep.subr.bf16.mxu0 0
    %1176 = vmatpush1.bf16.msra.mxu0 0
    %1177 = vmatprep.subr.bf16.mxu0 0
    %1178 = vmatpush1.bf16.msra.mxu0 0
    %1179 = vmatprep.subr.bf16.mxu0 0
    %1180 = vmatpush1.bf16.msra.mxu0 0
    %1181 = vmatprep.subr.bf16.mxu0 0
    %1182 = vmatpush1.bf16.msra.mxu0 0
    %1183 = vmatprep.subr.bf16.mxu0 0
    %1184 = vmatpush1.bf16.msra.mxu0 0
    %1185 = vmatprep.subr.bf16.mxu0 0
    %1186 = vmatpush1.bf16.msra.mxu0 0
    %1187 = vmatprep.subr.bf16.mxu0 0
    %1188 = vmatpush1.bf16.msra.mxu0 0
    %1189 = vmatprep.subr.bf16.mxu0 0
    %1190 = vmatpush1.bf16.msra.mxu0 0
    %1191 = vmatprep.subr.bf16.mxu0 0
    %1192 = vmatpush1.bf16.msra.mxu0 0
    %1193 = vmatprep.subr.bf16.mxu0 0
    %1194 = vmatpush1.bf16.msra.mxu0 0
    %1195 = vmatprep.subr.bf16.mxu0 0
    %1196 = vmatpush1.bf16.msra.mxu0 0
    %1197 = vmatprep.mubr.bf16.mxu0 0
    %1198 = vmatmul.mubr.bf16.gmra.mrb[0].mxu0 %v789
    %v1199 = vpop.f32.mrb[0].mxu0
    %v1200 = vadd.f32 %v730, %v1199
    %v1201 = vpop.f32.mrb[0].mxu0
    %v1202 = vadd.f32 %v730, %v1201
    %v1203 = vpop.f32.mrb[0].mxu0
    %v1204 = vadd.f32 %v735, %v1203
    %v1205 = vpop.f32.mrb[0].mxu0
    %v1206 = vadd.f32 %v735, %v1205
    %1207 = vmatprep.mubr.bf16.mxu0 0
    %1208 = vmatmul.mubr.bf16.gmra.mrb[0].mxu0 %v792
    %v1209 = vpop.f32.mrb[0].mxu0
    %v1210 = vadd.f32 %v740, %v1209
    %v1211 = vpop.f32.mrb[0].mxu0
    %v1212 = vadd.f32 %v740, %v1211
    %v1213 = vpop.f32.mrb[0].mxu0
    %v1214 = vadd.f32 %v745, %v1213
    %v1215 = vpop.f32.mrb[0].mxu0
    %v1216 = vadd.f32 %v745, %v1215
    %1217 = vmatprep.mubr.bf16.mxu0 0
    %1218 = vmatmul.mubr.bf16.gmra.mrb[0].mxu0 %v795
    %v1219 = vpop.f32.mrb[0].mxu0
    %v1220 = vadd.f32 %v750, %v1219
    %v1221 = vpop.f32.mrb[0].mxu0
    %v1222 = vadd.f32 %v750, %v1221
    %v1223 = vpop.f32.mrb[0].mxu0
    %v1224 = vadd.f32 %v755, %v1223
    %v1225 = vpop.f32.mrb[0].mxu0
    %v1226 = vadd.f32 %v755, %v1225
    %1227 = vmatprep.mubr.bf16.mxu0 0
    %1228 = vmatmul.mubr.bf16.gmra.mrb[0].mxu0 %v798
    %v1229 = vpop.f32.mrb[0].mxu0
    %v1230 = vadd.f32 %v760, %v1229
    %v1231 = vpop.f32.mrb[0].mxu0
    %v1232 = vadd.f32 %v760, %v1231
    %v1233 = vpop.f32.mrb[0].mxu0
    %v1234 = vadd.f32 %v765, %v1233
    %v1235 = vpop.f32.mrb[0].mxu0
    %v1236 = vadd.f32 %v765, %v1235
    %1237 = vdwg.mxu0
    %1238 = vmatprep.subr.bf16.mxu0 %v692
    %1239 = vmatpush1.bf16.msra.mxu0 %v691
    %1240 = vmatprep.subr.bf16.mxu0 %v708
    %1241 = vmatpush1.bf16.msra.mxu0 %v707
    %1242 = vmatprep.subr.bf16.mxu0 0
    %1243 = vmatpush1.bf16.msra.mxu0 0
    %1244 = vmatprep.subr.bf16.mxu0 0
    %1245 = vmatpush1.bf16.msra.mxu0 0
    %1246 = vmatprep.subr.bf16.mxu0 0
    %1247 = vmatpush1.bf16.msra.mxu0 0
    %1248 = vmatprep.subr.bf16.mxu0 0
    %1249 = vmatpush1.bf16.msra.mxu0 0
    %1250 = vmatprep.subr.bf16.mxu0 0
    %1251 = vmatpush1.bf16.msra.mxu0 0
    %1252 = vmatprep.subr.bf16.mxu0 0
    %1253 = vmatpush1.bf16.msra.mxu0 0
    %1254 = vmatprep.subr.bf16.mxu0 0
    %1255 = vmatpush1.bf16.msra.mxu0 0
    %1256 = vmatprep.subr.bf16.mxu0 0
    %1257 = vmatpush1.bf16.msra.mxu0 0
    %1258 = vmatprep.subr.bf16.mxu0 0
    %1259 = vmatpush1.bf16.msra.mxu0 0
    %1260 = vmatprep.subr.bf16.mxu0 0
    %1261 = vmatpush1.bf16.msra.mxu0 0
    %1262 = vmatprep.subr.bf16.mxu0 0
    %1263 = vmatpush1.bf16.msra.mxu0 0
    %1264 = vmatprep.subr.bf16.mxu0 0
    %1265 = vmatpush1.bf16.msra.mxu0 0
    %1266 = vmatprep.subr.bf16.mxu0 0
    %1267 = vmatpush1.bf16.msra.mxu0 0
    %1268 = vmatprep.subr.bf16.mxu0 0
    %1269 = vmatpush1.bf16.msra.mxu0 0
    %1270 = vmatprep.mubr.bf16.mxu0 0
    %1271 = vmatmul.mubr.bf16.gmra.mrb[0].mxu0 %v789
    %v1272 = vpop.f32.mrb[0].mxu0
    %v1273 = vadd.f32 %v730, %v1272
    %v1274 = vpop.f32.mrb[0].mxu0
    %v1275 = vadd.f32 %v730, %v1274
    %v1276 = vpop.f32.mrb[0].mxu0
    %v1277 = vadd.f32 %v735, %v1276
    %v1278 = vpop.f32.mrb[0].mxu0
    %v1279 = vadd.f32 %v735, %v1278
    %1280 = vmatprep.mubr.bf16.mxu0 0
    %1281 = vmatmul.mubr.bf16.gmra.mrb[0].mxu0 %v792
    %v1282 = vpop.f32.mrb[0].mxu0
    %v1283 = vadd.f32 %v740, %v1282
    %v1284 = vpop.f32.mrb[0].mxu0
    %v1285 = vadd.f32 %v740, %v1284
    %v1286 = vpop.f32.mrb[0].mxu0
    %v1287 = vadd.f32 %v745, %v1286
    %v1288 = vpop.f32.mrb[0].mxu0
    %v1289 = vadd.f32 %v745, %v1288
    %1290 = vmatprep.mubr.bf16.mxu0 0
    %1291 = vmatmul.mubr.bf16.gmra.mrb[0].mxu0 %v795
    %v1292 = vpop.f32.mrb[0].mxu0
    %v1293 = vadd.f32 %v750, %v1292
    %v1294 = vpop.f32.mrb[0].mxu0
    %v1295 = vadd.f32 %v750, %v1294
    %v1296 = vpop.f32.mrb[0].mxu0
    %v1297 = vadd.f32 %v755, %v1296
    %v1298 = vpop.f32.mrb[0].mxu0
    %v1299 = vadd.f32 %v755, %v1298
    %1300 = vmatprep.mubr.bf16.mxu0 0
    %1301 = vmatmul.mubr.bf16.gmra.mrb[0].mxu0 %v798
    %v1302 = vpop.f32.mrb[0].mxu0
    %v1303 = vadd.f32 %v760, %v1302
    %v1304 = vpop.f32.mrb[0].mxu0
    %v1305 = vadd.f32 %v760, %v1304
    %v1306 = vpop.f32.mrb[0].mxu0
    %v1307 = vadd.f32 %v765, %v1306
    %v1308 = vpop.f32.mrb[0].mxu0
    %v1309 = vadd.f32 %v765, %v1308
    %1310 = vdwg.mxu0
    %1311 = vmatprep.subr.bf16.mxu0 %v694
    %1312 = vmatpush1.bf16.msra.mxu0 %v693
    %1313 = vmatprep.subr.bf16.mxu0 %v710
    %1314 = vmatpush1.bf16.msra.mxu0 %v709
    %1315 = vmatprep.subr.bf16.mxu0 0
    %1316 = vmatpush1.bf16.msra.mxu0 0
    %1317 = vmatprep.subr.bf16.mxu0 0
    %1318 = vmatpush1.bf16.msra.mxu0 0
    %1319 = vmatprep.subr.bf16.mxu0 0
    %1320 = vmatpush1.bf16.msra.mxu0 0
    %1321 = vmatprep.subr.bf16.mxu0 0
    %1322 = vmatpush1.bf16.msra.mxu0 0
    %1323 = vmatprep.subr.bf16.mxu0 0
    %1324 = vmatpush1.bf16.msra.mxu0 0
    %1325 = vmatprep.subr.bf16.mxu0 0
    %1326 = vmatpush1.bf16.msra.mxu0 0
    %1327 = vmatprep.subr.bf16.mxu0 0
    %1328 = vmatpush1.bf16.msra.mxu0 0
    %1329 = vmatprep.subr.bf16.mxu0 0
    %1330 = vmatpush1.bf16.msra.mxu0 0
    %1331 = vmatprep.subr.bf16.mxu0 0
    %1332 = vmatpush1.bf16.msra.mxu0 0
    %1333 = vmatprep.subr.bf16.mxu0 0
    %1334 = vmatpush1.bf16.msra.mxu0 0
    %1335 = vmatprep.subr.bf16.mxu0 0
    %1336 = vmatpush1.bf16.msra.mxu0 0
    %1337 = vmatprep.subr.bf16.mxu0 0
    %1338 = vmatpush1.bf16.msra.mxu0 0
    %1339 = vmatprep.subr.bf16.mxu0 0
    %1340 = vmatpush1.bf16.msra.mxu0 0
    %1341 = vmatprep.subr.bf16.mxu0 0
    %1342 = vmatpush1.bf16.msra.mxu0 0
    %1343 = vmatprep.mubr.bf16.mxu0 0
    %1344 = vmatmul.mubr.bf16.gmra.mrb[0].mxu0 %v789
    %v1345 = vpop.f32.mrb[0].mxu0
    %v1346 = vadd.f32 %v730, %v1345
    %v1347 = vpop.f32.mrb[0].mxu0
    %v1348 = vadd.f32 %v730, %v1347
    %v1349 = vpop.f32.mrb[0].mxu0
    %v1350 = vadd.f32 %v735, %v1349
    %v1351 = vpop.f32.mrb[0].mxu0
    %v1352 = vadd.f32 %v735, %v1351
    %1353 = vmatprep.mubr.bf16.mxu0 0
    %1354 = vmatmul.mubr.bf16.gmra.mrb[0].mxu0 %v792
    %v1355 = vpop.f32.mrb[0].mxu0
    %v1356 = vadd.f32 %v740, %v1355
    %v1357 = vpop.f32.mrb[0].mxu0
    %v1358 = vadd.f32 %v740, %v1357
    %v1359 = vpop.f32.mrb[0].mxu0
    %v1360 = vadd.f32 %v745, %v1359
    %v1361 = vpop.f32.mrb[0].mxu0
    %v1362 = vadd.f32 %v745, %v1361
    %1363 = vmatprep.mubr.bf16.mxu0 0
    %1364 = vmatmul.mubr.bf16.gmra.mrb[0].mxu0 %v795
    %v1365 = vpop.f32.mrb[0].mxu0
    %v1366 = vadd.f32 %v750, %v1365
    %v1367 = vpop.f32.mrb[0].mxu0
    %v1368 = vadd.f32 %v750, %v1367
    %v1369 = vpop.f32.mrb[0].mxu0
    %v1370 = vadd.f32 %v755, %v1369
    %v1371 = vpop.f32.mrb[0].mxu0
    %v1372 = vadd.f32 %v755, %v1371
    %1373 = vmatprep.mubr.bf16.mxu0 0
    %1374 = vmatmul.mubr.bf16.gmra.mrb[0].mxu0 %v798
    %v1375 = vpop.f32.mrb[0].mxu0
    %v1376 = vadd.f32 %v760, %v1375
    %v1377 = vpop.f32.mrb[0].mxu0
    %v1378 = vadd.f32 %v760, %v1377
    %v1379 = vpop.f32.mrb[0].mxu0
    %v1380 = vadd.f32 %v765, %v1379
    %v1381 = vpop.f32.mrb[0].mxu0
    %v1382 = vadd.f32 %v765, %v1381
    %1383 = vdwg.mxu0
    %v1384 = vmax.f32 %v835, 0.0
    %v1385 = vmax.f32 %v837, 0.0
    %v1386 = vmax.f32 %v908, 0.0
    %v1387 = vmax.f32 %v910, 0.0
    %v1388 = vmax.f32 %v981, 0.0
    %v1389 = vmax.f32 %v983, 0.0
    %v1390 = vmax.f32 %v1054, 0.0
    %v1391 = vmax.f32 %v1056, 0.0
    %v1392 = vmax.f32 %v1127, 0.0
    %v1393 = vmax.f32 %v1129, 0.0
    %v1394 = vmax.f32 %v1200, 0.0
    %v1395 = vmax.f32 %v1202, 0.0
    %v1396 = vmax.f32 %v1273, 0.0
    %v1397 = vmax.f32 %v1275, 0.0
    %v1398 = vmax.f32 %v1346, 0.0
    %v1399 = vmax.f32 %v1348, 0.0
    %v1400 = vmax.f32 %v839, 0.0
    %v1401 = vmax.f32 %v841, 0.0
    %v1402 = vmax.f32 %v912, 0.0
    %v1403 = vmax.f32 %v914, 0.0
    %v1404 = vmax.f32 %v985, 0.0
    %v1405 = vmax.f32 %v987, 0.0
    %v1406 = vmax.f32 %v1058, 0.0
    %v1407 = vmax.f32 %v1060, 0.0
    %v1408 = vmax.f32 %v1131, 0.0
    %v1409 = vmax.f32 %v1133, 0.0
    %v1410 = vmax.f32 %v1204, 0.0
    %v1411 = vmax.f32 %v1206, 0.0
    %v1412 = vmax.f32 %v1277, 0.0
    %v1413 = vmax.f32 %v1279, 0.0
    %v1414 = vmax.f32 %v1350, 0.0
    %v1415 = vmax.f32 %v1352, 0.0
    %v1416 = vmax.f32 %v845, 0.0
    %v1417 = vmax.f32 %v847, 0.0
    %v1418 = vmax.f32 %v918, 0.0
    %v1419 = vmax.f32 %v920, 0.0
    %v1420 = vmax.f32 %v991, 0.0
    %v1421 = vmax.f32 %v993, 0.0
    %v1422 = vmax.f32 %v1064, 0.0
    %v1423 = vmax.f32 %v1066, 0.0
    %v1424 = vmax.f32 %v1137, 0.0
    %v1425 = vmax.f32 %v1139, 0.0
    %v1426 = vmax.f32 %v1210, 0.0
    %v1427 = vmax.f32 %v1212, 0.0
    %v1428 = vmax.f32 %v1283, 0.0
    %v1429 = vmax.f32 %v1285, 0.0
    %v1430 = vmax.f32 %v1356, 0.0
    %v1431 = vmax.f32 %v1358, 0.0
    %v1432 = vmax.f32 %v849, 0.0
    %v1433 = vmax.f32 %v851, 0.0
    %v1434 = vmax.f32 %v922, 0.0
    %v1435 = vmax.f32 %v924, 0.0
    %v1436 = vmax.f32 %v995, 0.0
    %v1437 = vmax.f32 %v997, 0.0
    %v1438 = vmax.f32 %v1068, 0.0
    %v1439 = vmax.f32 %v1070, 0.0
    %v1440 = vmax.f32 %v1141, 0.0
    %v1441 = vmax.f32 %v1143, 0.0
    %v1442 = vmax.f32 %v1214, 0.0
    %v1443 = vmax.f32 %v1216, 0.0
    %v1444 = vmax.f32 %v1287, 0.0
    %v1445 = vmax.f32 %v1289, 0.0
    %v1446 = vmax.f32 %v1360, 0.0
    %v1447 = vmax.f32 %v1362, 0.0
    %v1448 = vmax.f32 %v855, 0.0
    %v1449 = vmax.f32 %v857, 0.0
    %v1450 = vmax.f32 %v928, 0.0
    %v1451 = vmax.f32 %v930, 0.0
    %v1452 = vmax.f32 %v1001, 0.0
    %v1453 = vmax.f32 %v1003, 0.0
    %v1454 = vmax.f32 %v1074, 0.0
    %v1455 = vmax.f32 %v1076, 0.0
    %v1456 = vmax.f32 %v1147, 0.0
    %v1457 = vmax.f32 %v1149, 0.0
    %v1458 = vmax.f32 %v1220, 0.0
    %v1459 = vmax.f32 %v1222, 0.0
    %v1460 = vmax.f32 %v1293, 0.0
    %v1461 = vmax.f32 %v1295, 0.0
    %v1462 = vmax.f32 %v1366, 0.0
    %v1463 = vmax.f32 %v1368, 0.0
    %v1464 = vmax.f32 %v859, 0.0
    %v1465 = vmax.f32 %v861, 0.0
    %v1466 = vmax.f32 %v932, 0.0
    %v1467 = vmax.f32 %v934, 0.0
    %v1468 = vmax.f32 %v1005, 0.0
    %v1469 = vmax.f32 %v1007, 0.0
    %v1470 = vmax.f32 %v1078, 0.0
    %v1471 = vmax.f32 %v1080, 0.0
    %v1472 = vmax.f32 %v1151, 0.0
    %v1473 = vmax.f32 %v1153, 0.0
    %v1474 = vmax.f32 %v1224, 0.0
    %v1475 = vmax.f32 %v1226, 0.0
    %v1476 = vmax.f32 %v1297, 0.0
    %v1477 = vmax.f32 %v1299, 0.0
    %v1478 = vmax.f32 %v1370, 0.0
    %v1479 = vmax.f32 %v1372, 0.0
    %v1480 = vmax.f32 %v865, 0.0
    %v1481 = vmax.f32 %v867, 0.0
    %v1482 = vmax.f32 %v938, 0.0
    %v1483 = vmax.f32 %v940, 0.0
    %v1484 = vmax.f32 %v1011, 0.0
    %v1485 = vmax.f32 %v1013, 0.0
    %v1486 = vmax.f32 %v1084, 0.0
    %v1487 = vmax.f32 %v1086, 0.0
    %v1488 = vmax.f32 %v1157, 0.0
    %v1489 = vmax.f32 %v1159, 0.0
    %v1490 = vmax.f32 %v1230, 0.0
    %v1491 = vmax.f32 %v1232, 0.0
    %v1492 = vmax.f32 %v1303, 0.0
    %v1493 = vmax.f32 %v1305, 0.0
    %v1494 = vmax.f32 %v1376, 0.0
    %v1495 = vmax.f32 %v1378, 0.0
    %v1496 = vmax.f32 %v869, 0.0
    %v1497 = vmax.f32 %v871, 0.0
    %v1498 = vmax.f32 %v942, 0.0
    %v1499 = vmax.f32 %v944, 0.0
    %v1500 = vmax.f32 %v1015, 0.0
    %v1501 = vmax.f32 %v1017, 0.0
    %v1502 = vmax.f32 %v1088, 0.0
    %v1503 = vmax.f32 %v1090, 0.0
    %v1504 = vmax.f32 %v1161, 0.0
    %v1505 = vmax.f32 %v1163, 0.0
    %v1506 = vmax.f32 %v1234, 0.0
    %v1507 = vmax.f32 %v1236, 0.0
    %v1508 = vmax.f32 %v1307, 0.0
    %v1509 = vmax.f32 %v1309, 0.0
    %v1510 = vmax.f32 %v1380, 0.0
    %v1511 = vmax.f32 %v1382, 0.0
    %v1512 = vpack.c.bf16 %v1400, %v1384
    %v1513 = vpack.c.bf16 %v1401, %v1385
    %v1514 = vpack.c.bf16 %v1402, %v1386
    %v1515 = vpack.c.bf16 %v1403, %v1387
    %v1516 = vpack.c.bf16 %v1404, %v1388
    %v1517 = vpack.c.bf16 %v1405, %v1389
    %v1518 = vpack.c.bf16 %v1406, %v1390
    %v1519 = vpack.c.bf16 %v1407, %v1391
    %v1520 = vpack.c.bf16 %v1408, %v1392
    %v1521 = vpack.c.bf16 %v1409, %v1393
    %v1522 = vpack.c.bf16 %v1410, %v1394
    %v1523 = vpack.c.bf16 %v1411, %v1395
    %v1524 = vpack.c.bf16 %v1412, %v1396
    %v1525 = vpack.c.bf16 %v1413, %v1397
    %v1526 = vpack.c.bf16 %v1414, %v1398
    %v1527 = vpack.c.bf16 %v1415, %v1399
    %v1528 = vpack.c.bf16 %v1432, %v1416
    %v1529 = vpack.c.bf16 %v1433, %v1417
    %v1530 = vpack.c.bf16 %v1434, %v1418
    %v1531 = vpack.c.bf16 %v1435, %v1419
    %v1532 = vpack.c.bf16 %v1436, %v1420
    %v1533 = vpack.c.bf16 %v1437, %v1421
    %v1534 = vpack.c.bf16 %v1438, %v1422
    %v1535 = vpack.c.bf16 %v1439, %v1423
    %v1536 = vpack.c.bf16 %v1440, %v1424
    %v1537 = vpack.c.bf16 %v1441, %v1425
    %v1538 = vpack.c.bf16 %v1442, %v1426
    %v1539 = vpack.c.bf16 %v1443, %v1427
    %v1540 = vpack.c.bf16 %v1444, %v1428
    %v1541 = vpack.c.bf16 %v1445, %v1429
    %v1542 = vpack.c.bf16 %v1446, %v1430
    %v1543 = vpack.c.bf16 %v1447, %v1431
    %v1544 = vpack.c.bf16 %v1464, %v1448
    %v1545 = vpack.c.bf16 %v1465, %v1449
    %v1546 = vpack.c.bf16 %v1466, %v1450
    %v1547 = vpack.c.bf16 %v1467, %v1451
    %v1548 = vpack.c.bf16 %v1468, %v1452
    %v1549 = vpack.c.bf16 %v1469, %v1453
    %v1550 = vpack.c.bf16 %v1470, %v1454
    %v1551 = vpack.c.bf16 %v1471, %v1455
    %v1552 = vpack.c.bf16 %v1472, %v1456
    %v1553 = vpack.c.bf16 %v1473, %v1457
    %v1554 = vpack.c.bf16 %v1474, %v1458
    %v1555 = vpack.c.bf16 %v1475, %v1459
    %v1556 = vpack.c.bf16 %v1476, %v1460
    %v1557 = vpack.c.bf16 %v1477, %v1461
    %v1558 = vpack.c.bf16 %v1478, %v1462
    %v1559 = vpack.c.bf16 %v1479, %v1463
    %v1560 = vpack.c.bf16 %v1496, %v1480
    %v1561 = vpack.c.bf16 %v1497, %v1481
    %v1562 = vpack.c.bf16 %v1498, %v1482
    %v1563 = vpack.c.bf16 %v1499, %v1483
    %v1564 = vpack.c.bf16 %v1500, %v1484
    %v1565 = vpack.c.bf16 %v1501, %v1485
    %v1566 = vpack.c.bf16 %v1502, %v1486
    %v1567 = vpack.c.bf16 %v1503, %v1487
    %v1568 = vpack.c.bf16 %v1504, %v1488
    %v1569 = vpack.c.bf16 %v1505, %v1489
    %v1570 = vpack.c.bf16 %v1506, %v1490
    %v1571 = vpack.c.bf16 %v1507, %v1491
    %v1572 = vpack.c.bf16 %v1508, %v1492
    %v1573 = vpack.c.bf16 %v1509, %v1493
    %v1574 = vpack.c.bf16 %v1510, %v1494
    %v1575 = vpack.c.bf16 %v1511, %v1495
    %v1576 = vld [vmem:[%s3] sm:$0xf]
    %v1577 = vld [vmem:[%s3 + $0x4] sm:$0xf]
    %v1578 = vld [vmem:[%s3 + $0x8] sm:$0xf]
    %v1579 = vld [vmem:[%s3 + $0xc] sm:$0xf]
    %v1580 = vld [vmem:[%s3 + $0x10] sm:$0xf]
    %v1581 = vld [vmem:[%s3 + $0x14] sm:$0xf]
    %v1582 = vld [vmem:[%s3 + $0x18] sm:$0xf]
    %v1583 = vld [vmem:[%s3 + $0x1c] sm:$0xf]
    %v1584 = vld [vmem:[%s3 + $0x20] sm:$0xf]
    %v1585 = vld [vmem:[%s3 + $0x24] sm:$0xf]
    %v1586 = vld [vmem:[%s3 + $0x28] sm:$0xf]
    %v1587 = vld [vmem:[%s3 + $0x2c] sm:$0xf]
    %v1588 = vld [vmem:[%s3 + $0x30] sm:$0xf]
    %v1589 = vld [vmem:[%s3 + $0x34] sm:$0xf]
    %v1590 = vld [vmem:[%s3 + $0x38] sm:$0xf]
    %v1591 = vld [vmem:[%s3 + $0x3c] sm:$0xf]
    %v1592 = vld [vmem:[%s5] sm:$0xff]
    %v1593 = vld [vmem:[%s5 + $0x8] sm:$0xff]
    %v1594 = vld [vmem:[%s5 + $0x10] sm:$0xff]
    %v1595 = vld [vmem:[%s5 + $0x18] sm:$0xff]
    %v1596 = vld [vmem:[%s5 + $0x20] sm:$0xff]
    %v1597 = vld [vmem:[%s5 + $0x28] sm:$0xff]
    %v1598 = vld [vmem:[%s5 + $0x30] sm:$0xff]
    %v1599 = vld [vmem:[%s5 + $0x38] sm:$0xff]
    %v1600 = vld [vmem:[%s5 + $0x40] sm:$0xff]
    %v1601 = vld [vmem:[%s5 + $0x48] sm:$0xff]
    %v1602 = vld [vmem:[%s5 + $0x50] sm:$0xff]
    %v1603 = vld [vmem:[%s5 + $0x58] sm:$0xff]
    %v1604 = vld [vmem:[%s5 + $0x60] sm:$0xff]
    %v1605 = vld [vmem:[%s5 + $0x68] sm:$0xff]
    %v1606 = vld [vmem:[%s5 + $0x70] sm:$0xff]
    %v1607 = vld [vmem:[%s5 + $0x78] sm:$0xff]
    %1609 = vset.pattern.permute.xlu0 2
    %1610 = vperm.xlu0 %1609, %v1592
    %v1611 = vpop.permute.xlu0 %1610
    %1614 = vset.pattern.permute.xlu0 2
    %1615 = vperm.xlu0 %1614, %v1593
    %v1616 = vpop.permute.xlu0 %1615
    %1619 = vset.pattern.permute.xlu0 2
    %1620 = vperm.xlu0 %1619, %v1594
    %v1621 = vpop.permute.xlu0 %1620
    %1624 = vset.pattern.permute.xlu0 2
    %1625 = vperm.xlu0 %1624, %v1595
    %v1626 = vpop.permute.xlu0 %1625
    %1629 = vset.pattern.permute.xlu0 2
    %1630 = vperm.xlu0 %1629, %v1596
    %v1631 = vpop.permute.xlu0 %1630
    %1634 = vset.pattern.permute.xlu0 2
    %1635 = vperm.xlu0 %1634, %v1597
    %v1636 = vpop.permute.xlu0 %1635
    %1639 = vset.pattern.permute.xlu0 2
    %1640 = vperm.xlu0 %1639, %v1598
    %v1641 = vpop.permute.xlu0 %1640
    %1644 = vset.pattern.permute.xlu0 2
    %1645 = vperm.xlu0 %1644, %v1599
    %v1646 = vpop.permute.xlu0 %1645
    %1649 = vset.pattern.permute.xlu0 2
    %1650 = vperm.xlu0 %1649, %v1600
    %v1651 = vpop.permute.xlu0 %1650
    %1654 = vset.pattern.permute.xlu0 2
    %1655 = vperm.xlu0 %1654, %v1601
    %v1656 = vpop.permute.xlu0 %1655
    %1659 = vset.pattern.permute.xlu0 2
    %1660 = vperm.xlu0 %1659, %v1602
    %v1661 = vpop.permute.xlu0 %1660
    %1664 = vset.pattern.permute.xlu0 2
    %1665 = vperm.xlu0 %1664, %v1603
    %v1666 = vpop.permute.xlu0 %1665
    %1669 = vset.pattern.permute.xlu0 2
    %1670 = vperm.xlu0 %1669, %v1604
    %v1671 = vpop.permute.xlu0 %1670
    %1674 = vset.pattern.permute.xlu0 2
    %1675 = vperm.xlu0 %1674, %v1605
    %v1676 = vpop.permute.xlu0 %1675
    %1679 = vset.pattern.permute.xlu0 2
    %1680 = vperm.xlu0 %1679, %v1606
    %v1681 = vpop.permute.xlu0 %1680
    %1684 = vset.pattern.permute.xlu0 2
    %1685 = vperm.xlu0 %1684, %v1607
    %v1686 = vpop.permute.xlu0 %1685
    %v1704 = vunpack.c.l.b16 %v1576
    %v1705 = vunpack.c.l.b16 %v1577
    %v1706 = vunpack.c.l.b16 %v1578
    %v1707 = vunpack.c.l.b16 %v1579
    %v1708 = vunpack.c.l.b16 %v1580
    %v1709 = vunpack.c.l.b16 %v1581
    %v1710 = vunpack.c.l.b16 %v1582
    %v1711 = vunpack.c.l.b16 %v1583
    %v1712 = vunpack.c.l.b16 %v1584
    %v1713 = vunpack.c.l.b16 %v1585
    %v1714 = vunpack.c.l.b16 %v1586
    %v1715 = vunpack.c.l.b16 %v1587
    %v1716 = vunpack.c.l.b16 %v1588
    %v1717 = vunpack.c.l.b16 %v1589
    %v1718 = vunpack.c.l.b16 %v1590
    %v1719 = vunpack.c.l.b16 %v1591
    %v1720 = vpack.c.b16 %v1705, %v1704
    %v1721 = vpack.c.b16 %v1707, %v1706
    %v1722 = vpack.c.b16 %v1709, %v1708
    %v1723 = vpack.c.b16 %v1711, %v1710
    %v1724 = vpack.c.b16 %v1713, %v1712
    %v1725 = vpack.c.b16 %v1715, %v1714
    %v1726 = vpack.c.b16 %v1717, %v1716
    %v1727 = vpack.c.b16 %v1719, %v1718
    %vm1728 = vcmask 523264
    %v1730 = vsel %vm1728, %v1720, 0
    %v1733 = vsel %vm1728, %v1721, 0
    %v1736 = vsel %vm1728, %v1722, 0
    %v1739 = vsel %vm1728, %v1723, 0
    %v1742 = vsel %vm1728, %v1724, 0
    %v1745 = vsel %vm1728, %v1725, 0
    %v1748 = vsel %vm1728, %v1726, 0
    %v1751 = vsel %vm1728, %v1727, 0
    %1753 = vmatprep.subr.bf16.mxu0 %v1513
    %1754 = vmatpush1.bf16.msra.mxu0 %v1512
    %1755 = vmatprep.subr.bf16.mxu0 %v1529
    %1756 = vmatpush1.bf16.msra.mxu0 %v1528
    %1757 = vmatprep.subr.bf16.mxu0 %v1545
    %1758 = vmatpush1.bf16.msra.mxu0 %v1544
    %1759 = vmatprep.subr.bf16.mxu0 %v1561
    %1760 = vmatpush1.bf16.msra.mxu0 %v1560
    %1761 = vmatprep.subr.bf16.mxu0 0
    %1762 = vmatpush1.bf16.msra.mxu0 0
    %1763 = vmatprep.subr.bf16.mxu0 0
    %1764 = vmatpush1.bf16.msra.mxu0 0
    %1765 = vmatprep.subr.bf16.mxu0 0
    %1766 = vmatpush1.bf16.msra.mxu0 0
    %1767 = vmatprep.subr.bf16.mxu0 0
    %1768 = vmatpush1.bf16.msra.mxu0 0
    %1769 = vmatprep.subr.bf16.mxu0 0
    %1770 = vmatpush1.bf16.msra.mxu0 0
    %1771 = vmatprep.subr.bf16.mxu0 0
    %1772 = vmatpush1.bf16.msra.mxu0 0
    %1773 = vmatprep.subr.bf16.mxu0 0
    %1774 = vmatpush1.bf16.msra.mxu0 0
    %1775 = vmatprep.subr.bf16.mxu0 0
    %1776 = vmatpush1.bf16.msra.mxu0 0
    %1777 = vmatprep.subr.bf16.mxu0 0
    %1778 = vmatpush1.bf16.msra.mxu0 0
    %1779 = vmatprep.subr.bf16.mxu0 0
    %1780 = vmatpush1.bf16.msra.mxu0 0
    %1781 = vmatprep.subr.bf16.mxu0 0
    %1782 = vmatpush1.bf16.msra.mxu0 0
    %1783 = vmatprep.subr.bf16.mxu0 0
    %1784 = vmatpush1.bf16.msra.mxu0 0
    %1785 = vmatprep.mubr.bf16.mxu0 0
    %1786 = vmatmul.mubr.bf16.gmra.mrb[0].mxu0 %v1730
    %v1787 = vpop.f32.mrb[0].mxu0
    %v1788 = vadd.f32 %v1611, %v1787
    %v1789 = vpop.f32.mrb[0].mxu0
    %v1790 = vadd.f32 %v1611, %v1789
    %v1791 = vpop.f32.mrb[0].mxu0
    %v1792 = vadd.f32 %v1616, %v1791
    %v1793 = vpop.f32.mrb[0].mxu0
    %v1794 = vadd.f32 %v1616, %v1793
    %1795 = vmatprep.mubr.bf16.mxu0 0
    %1796 = vmatmul.mubr.bf16.gmra.mrb[0].mxu0 %v1733
    %v1797 = vpop.f32.mrb[0].mxu0
    %v1798 = vadd.f32 %v1621, %v1797
    %v1799 = vpop.f32.mrb[0].mxu0
    %v1800 = vadd.f32 %v1621, %v1799
    %v1801 = vpop.f32.mrb[0].mxu0
    %v1802 = vadd.f32 %v1626, %v1801
    %v1803 = vpop.f32.mrb[0].mxu0
    %v1804 = vadd.f32 %v1626, %v1803
    %1805 = vmatprep.mubr.bf16.mxu0 0
    %1806 = vmatmul.mubr.bf16.gmra.mrb[0].mxu0 %v1736
    %v1807 = vpop.f32.mrb[0].mxu0
    %v1808 = vadd.f32 %v1631, %v1807
    %v1809 = vpop.f32.mrb[0].mxu0
    %v1810 = vadd.f32 %v1631, %v1809
    %v1811 = vpop.f32.mrb[0].mxu0
    %v1812 = vadd.f32 %v1636, %v1811
    %v1813 = vpop.f32.mrb[0].mxu0
    %v1814 = vadd.f32 %v1636, %v1813
    %1815 = vmatprep.mubr.bf16.mxu0 0
    %1816 = vmatmul.mubr.bf16.gmra.mrb[0].mxu0 %v1739
    %v1817 = vpop.f32.mrb[0].mxu0
    %v1818 = vadd.f32 %v1641, %v1817
    %v1819 = vpop.f32.mrb[0].mxu0
    %v1820 = vadd.f32 %v1641, %v1819
    %v1821 = vpop.f32.mrb[0].mxu0
    %v1822 = vadd.f32 %v1646, %v1821
    %v1823 = vpop.f32.mrb[0].mxu0
    %v1824 = vadd.f32 %v1646, %v1823
    %1825 = vmatprep.mubr.bf16.mxu0 0
    %1826 = vmatmul.mubr.bf16.gmra.mrb[0].mxu0 %v1742
    %v1827 = vpop.f32.mrb[0].mxu0
    %v1828 = vadd.f32 %v1651, %v1827
    %v1829 = vpop.f32.mrb[0].mxu0
    %v1830 = vadd.f32 %v1651, %v1829
    %v1831 = vpop.f32.mrb[0].mxu0
    %v1832 = vadd.f32 %v1656, %v1831
    %v1833 = vpop.f32.mrb[0].mxu0
    %v1834 = vadd.f32 %v1656, %v1833
    %1835 = vmatprep.mubr.bf16.mxu0 0
    %1836 = vmatmul.mubr.bf16.gmra.mrb[0].mxu0 %v1745
    %v1837 = vpop.f32.mrb[0].mxu0
    %v1838 = vadd.f32 %v1661, %v1837
    %v1839 = vpop.f32.mrb[0].mxu0
    %v1840 = vadd.f32 %v1661, %v1839
    %v1841 = vpop.f32.mrb[0].mxu0
    %v1842 = vadd.f32 %v1666, %v1841
    %v1843 = vpop.f32.mrb[0].mxu0
    %v1844 = vadd.f32 %v1666, %v1843
    %1845 = vmatprep.mubr.bf16.mxu0 0
    %1846 = vmatmul.mubr.bf16.gmra.mrb[0].mxu0 %v1748
    %v1847 = vpop.f32.mrb[0].mxu0
    %v1848 = vadd.f32 %v1671, %v1847
    %v1849 = vpop.f32.mrb[0].mxu0
    %v1850 = vadd.f32 %v1671, %v1849
    %v1851 = vpop.f32.mrb[0].mxu0
    %v1852 = vadd.f32 %v1676, %v1851
    %v1853 = vpop.f32.mrb[0].mxu0
    %v1854 = vadd.f32 %v1676, %v1853
    %1855 = vmatprep.mubr.bf16.mxu0 0
    %1856 = vmatmul.mubr.bf16.gmra.mrb[0].mxu0 %v1751
    %v1857 = vpop.f32.mrb[0].mxu0
    %v1858 = vadd.f32 %v1681, %v1857
    %v1859 = vpop.f32.mrb[0].mxu0
    %v1860 = vadd.f32 %v1681, %v1859
    %v1861 = vpop.f32.mrb[0].mxu0
    %v1862 = vadd.f32 %v1686, %v1861
    %v1863 = vpop.f32.mrb[0].mxu0
    %v1864 = vadd.f32 %v1686, %v1863
    %1865 = vdwg.mxu0
    %1866 = vmatprep.subr.bf16.mxu0 %v1515
    %1867 = vmatpush1.bf16.msra.mxu0 %v1514
    %1868 = vmatprep.subr.bf16.mxu0 %v1531
    %1869 = vmatpush1.bf16.msra.mxu0 %v1530
    %1870 = vmatprep.subr.bf16.mxu0 %v1547
    %1871 = vmatpush1.bf16.msra.mxu0 %v1546
    %1872 = vmatprep.subr.bf16.mxu0 %v1563
    %1873 = vmatpush1.bf16.msra.mxu0 %v1562
    %1874 = vmatprep.subr.bf16.mxu0 0
    %1875 = vmatpush1.bf16.msra.mxu0 0
    %1876 = vmatprep.subr.bf16.mxu0 0
    %1877 = vmatpush1.bf16.msra.mxu0 0
    %1878 = vmatprep.subr.bf16.mxu0 0
    %1879 = vmatpush1.bf16.msra.mxu0 0
    %1880 = vmatprep.subr.bf16.mxu0 0
    %1881 = vmatpush1.bf16.msra.mxu0 0
    %1882 = vmatprep.subr.bf16.mxu0 0
    %1883 = vmatpush1.bf16.msra.mxu0 0
    %1884 = vmatprep.subr.bf16.mxu0 0
    %1885 = vmatpush1.bf16.msra.mxu0 0
    %1886 = vmatprep.subr.bf16.mxu0 0
    %1887 = vmatpush1.bf16.msra.mxu0 0
    %1888 = vmatprep.subr.bf16.mxu0 0
    %1889 = vmatpush1.bf16.msra.mxu0 0
    %1890 = vmatprep.subr.bf16.mxu0 0
    %1891 = vmatpush1.bf16.msra.mxu0 0
    %1892 = vmatprep.subr.bf16.mxu0 0
    %1893 = vmatpush1.bf16.msra.mxu0 0
    %1894 = vmatprep.subr.bf16.mxu0 0
    %1895 = vmatpush1.bf16.msra.mxu0 0
    %1896 = vmatprep.subr.bf16.mxu0 0
    %1897 = vmatpush1.bf16.msra.mxu0 0
    %1898 = vmatprep.mubr.bf16.mxu0 0
    %1899 = vmatmul.mubr.bf16.gmra.mrb[0].mxu0 %v1730
    %v1900 = vpop.f32.mrb[0].mxu0
    %v1901 = vadd.f32 %v1611, %v1900
    %v1902 = vpop.f32.mrb[0].mxu0
    %v1903 = vadd.f32 %v1611, %v1902
    %v1904 = vpop.f32.mrb[0].mxu0
    %v1905 = vadd.f32 %v1616, %v1904
    %v1906 = vpop.f32.mrb[0].mxu0
    %v1907 = vadd.f32 %v1616, %v1906
    %1908 = vmatprep.mubr.bf16.mxu0 0
    %1909 = vmatmul.mubr.bf16.gmra.mrb[0].mxu0 %v1733
    %v1910 = vpop.f32.mrb[0].mxu0
    %v1911 = vadd.f32 %v1621, %v1910
    %v1912 = vpop.f32.mrb[0].mxu0
    %v1913 = vadd.f32 %v1621, %v1912
    %v1914 = vpop.f32.mrb[0].mxu0
    %v1915 = vadd.f32 %v1626, %v1914
    %v1916 = vpop.f32.mrb[0].mxu0
    %v1917 = vadd.f32 %v1626, %v1916
    %1918 = vmatprep.mubr.bf16.mxu0 0
    %1919 = vmatmul.mubr.bf16.gmra.mrb[0].mxu0 %v1736
    %v1920 = vpop.f32.mrb[0].mxu0
    %v1921 = vadd.f32 %v1631, %v1920
    %v1922 = vpop.f32.mrb[0].mxu0
    %v1923 = vadd.f32 %v1631, %v1922
    %v1924 = vpop.f32.mrb[0].mxu0
    %v1925 = vadd.f32 %v1636, %v1924
    %v1926 = vpop.f32.mrb[0].mxu0
    %v1927 = vadd.f32 %v1636, %v1926
    %1928 = vmatprep.mubr.bf16.mxu0 0
    %1929 = vmatmul.mubr.bf16.gmra.mrb[0].mxu0 %v1739
    %v1930 = vpop.f32.mrb[0].mxu0
    %v1931 = vadd.f32 %v1641, %v1930
    %v1932 = vpop.f32.mrb[0].mxu0
    %v1933 = vadd.f32 %v1641, %v1932
    %v1934 = vpop.f32.mrb[0].mxu0
    %v1935 = vadd.f32 %v1646, %v1934
    %v1936 = vpop.f32.mrb[0].mxu0
    %v1937 = vadd.f32 %v1646, %v1936
    %1938 = vmatprep.mubr.bf16.mxu0 0
    %1939 = vmatmul.mubr.bf16.gmra.mrb[0].mxu0 %v1742
    %v1940 = vpop.f32.mrb[0].mxu0
    %v1941 = vadd.f32 %v1651, %v1940
    %v1942 = vpop.f32.mrb[0].mxu0
    %v1943 = vadd.f32 %v1651, %v1942
    %v1944 = vpop.f32.mrb[0].mxu0
    %v1945 = vadd.f32 %v1656, %v1944
    %v1946 = vpop.f32.mrb[0].mxu0
    %v1947 = vadd.f32 %v1656, %v1946
    %1948 = vmatprep.mubr.bf16.mxu0 0
    %1949 = vmatmul.mubr.bf16.gmra.mrb[0].mxu0 %v1745
    %v1950 = vpop.f32.mrb[0].mxu0
    %v1951 = vadd.f32 %v1661, %v1950
    %v1952 = vpop.f32.mrb[0].mxu0
    %v1953 = vadd.f32 %v1661, %v1952
    %v1954 = vpop.f32.mrb[0].mxu0
    %v1955 = vadd.f32 %v1666, %v1954
    %v1956 = vpop.f32.mrb[0].mxu0
    %v1957 = vadd.f32 %v1666, %v1956
    %1958 = vmatprep.mubr.bf16.mxu0 0
    %1959 = vmatmul.mubr.bf16.gmra.mrb[0].mxu0 %v1748
    %v1960 = vpop.f32.mrb[0].mxu0
    %v1961 = vadd.f32 %v1671, %v1960
    %v1962 = vpop.f32.mrb[0].mxu0
    %v1963 = vadd.f32 %v1671, %v1962
    %v1964 = vpop.f32.mrb[0].mxu0
    %v1965 = vadd.f32 %v1676, %v1964
    %v1966 = vpop.f32.mrb[0].mxu0
    %v1967 = vadd.f32 %v1676, %v1966
    %1968 = vmatprep.mubr.bf16.mxu0 0
    %1969 = vmatmul.mubr.bf16.gmra.mrb[0].mxu0 %v1751
    %v1970 = vpop.f32.mrb[0].mxu0
    %v1971 = vadd.f32 %v1681, %v1970
    %v1972 = vpop.f32.mrb[0].mxu0
    %v1973 = vadd.f32 %v1681, %v1972
    %v1974 = vpop.f32.mrb[0].mxu0
    %v1975 = vadd.f32 %v1686, %v1974
    %v1976 = vpop.f32.mrb[0].mxu0
    %v1977 = vadd.f32 %v1686, %v1976
    %1978 = vdwg.mxu0
    %1979 = vmatprep.subr.bf16.mxu0 %v1517
    %1980 = vmatpush1.bf16.msra.mxu0 %v1516
    %1981 = vmatprep.subr.bf16.mxu0 %v1533
    %1982 = vmatpush1.bf16.msra.mxu0 %v1532
    %1983 = vmatprep.subr.bf16.mxu0 %v1549
    %1984 = vmatpush1.bf16.msra.mxu0 %v1548
    %1985 = vmatprep.subr.bf16.mxu0 %v1565
    %1986 = vmatpush1.bf16.msra.mxu0 %v1564
    %1987 = vmatprep.subr.bf16.mxu0 0
    %1988 = vmatpush1.bf16.msra.mxu0 0
    %1989 = vmatprep.subr.bf16.mxu0 0
    %1990 = vmatpush1.bf16.msra.mxu0 0
    %1991 = vmatprep.subr.bf16.mxu0 0
    %1992 = vmatpush1.bf16.msra.mxu0 0
    %1993 = vmatprep.subr.bf16.mxu0 0
    %1994 = vmatpush1.bf16.msra.mxu0 0
    %1995 = vmatprep.subr.bf16.mxu0 0
    %1996 = vmatpush1.bf16.msra.mxu0 0
    %1997 = vmatprep.subr.bf16.mxu0 0
    %1998 = vmatpush1.bf16.msra.mxu0 0
    %1999 = vmatprep.subr.bf16.mxu0 0
    %2000 = vmatpush1.bf16.msra.mxu0 0
    %2001 = vmatprep.subr.bf16.mxu0 0
    %2002 = vmatpush1.bf16.msra.mxu0 0
    %2003 = vmatprep.subr.bf16.mxu0 0
    %2004 = vmatpush1.bf16.msra.mxu0 0
    %2005 = vmatprep.subr.bf16.mxu0 0
    %2006 = vmatpush1.bf16.msra.mxu0 0
    %2007 = vmatprep.subr.bf16.mxu0 0
    %2008 = vmatpush1.bf16.msra.mxu0 0
    %2009 = vmatprep.subr.bf16.mxu0 0
    %2010 = vmatpush1.bf16.msra.mxu0 0
    %2011 = vmatprep.mubr.bf16.mxu0 0
    %2012 = vmatmul.mubr.bf16.gmra.mrb[0].mxu0 %v1730
    %v2013 = vpop.f32.mrb[0].mxu0
    %v2014 = vadd.f32 %v1611, %v2013
    %v2015 = vpop.f32.mrb[0].mxu0
    %v2016 = vadd.f32 %v1611, %v2015
    %v2017 = vpop.f32.mrb[0].mxu0
    %v2018 = vadd.f32 %v1616, %v2017
    %v2019 = vpop.f32.mrb[0].mxu0
    %v2020 = vadd.f32 %v1616, %v2019
    %2021 = vmatprep.mubr.bf16.mxu0 0
    %2022 = vmatmul.mubr.bf16.gmra.mrb[0].mxu0 %v1733
    %v2023 = vpop.f32.mrb[0].mxu0
    %v2024 = vadd.f32 %v1621, %v2023
    %v2025 = vpop.f32.mrb[0].mxu0
    %v2026 = vadd.f32 %v1621, %v2025
    %v2027 = vpop.f32.mrb[0].mxu0
    %v2028 = vadd.f32 %v1626, %v2027
    %v2029 = vpop.f32.mrb[0].mxu0
    %v2030 = vadd.f32 %v1626, %v2029
    %2031 = vmatprep.mubr.bf16.mxu0 0
    %2032 = vmatmul.mubr.bf16.gmra.mrb[0].mxu0 %v1736
    %v2033 = vpop.f32.mrb[0].mxu0
    %v2034 = vadd.f32 %v1631, %v2033
    %v2035 = vpop.f32.mrb[0].mxu0
    %v2036 = vadd.f32 %v1631, %v2035
    %v2037 = vpop.f32.mrb[0].mxu0
    %v2038 = vadd.f32 %v1636, %v2037
    %v2039 = vpop.f32.mrb[0].mxu0
    %v2040 = vadd.f32 %v1636, %v2039
    %2041 = vmatprep.mubr.bf16.mxu0 0
    %2042 = vmatmul.mubr.bf16.gmra.mrb[0].mxu0 %v1739
    %v2043 = vpop.f32.mrb[0].mxu0
    %v2044 = vadd.f32 %v1641, %v2043
    %v2045 = vpop.f32.mrb[0].mxu0
    %v2046 = vadd.f32 %v1641, %v2045
    %v2047 = vpop.f32.mrb[0].mxu0
    %v2048 = vadd.f32 %v1646, %v2047
    %v2049 = vpop.f32.mrb[0].mxu0
    %v2050 = vadd.f32 %v1646, %v2049
    %2051 = vmatprep.mubr.bf16.mxu0 0
    %2052 = vmatmul.mubr.bf16.gmra.mrb[0].mxu0 %v1742
    %v2053 = vpop.f32.mrb[0].mxu0
    %v2054 = vadd.f32 %v1651, %v2053
    %v2055 = vpop.f32.mrb[0].mxu0
    %v2056 = vadd.f32 %v1651, %v2055
    %v2057 = vpop.f32.mrb[0].mxu0
    %v2058 = vadd.f32 %v1656, %v2057
    %v2059 = vpop.f32.mrb[0].mxu0
    %v2060 = vadd.f32 %v1656, %v2059
    %2061 = vmatprep.mubr.bf16.mxu0 0
    %2062 = vmatmul.mubr.bf16.gmra.mrb[0].mxu0 %v1745
    %v2063 = vpop.f32.mrb[0].mxu0
    %v2064 = vadd.f32 %v1661, %v2063
    %v2065 = vpop.f32.mrb[0].mxu0
    %v2066 = vadd.f32 %v1661, %v2065
    %v2067 = vpop.f32.mrb[0].mxu0
    %v2068 = vadd.f32 %v1666, %v2067
    %v2069 = vpop.f32.mrb[0].mxu0
    %v2070 = vadd.f32 %v1666, %v2069
    %2071 = vmatprep.mubr.bf16.mxu0 0
    %2072 = vmatmul.mubr.bf16.gmra.mrb[0].mxu0 %v1748
    %v2073 = vpop.f32.mrb[0].mxu0
    %v2074 = vadd.f32 %v1671, %v2073
    %v2075 = vpop.f32.mrb[0].mxu0
    %v2076 = vadd.f32 %v1671, %v2075
    %v2077 = vpop.f32.mrb[0].mxu0
    %v2078 = vadd.f32 %v1676, %v2077
    %v2079 = vpop.f32.mrb[0].mxu0
    %v2080 = vadd.f32 %v1676, %v2079
    %2081 = vmatprep.mubr.bf16.mxu0 0
    %2082 = vmatmul.mubr.bf16.gmra.mrb[0].mxu0 %v1751
    %v2083 = vpop.f32.mrb[0].mxu0
    %v2084 = vadd.f32 %v1681, %v2083
    %v2085 = vpop.f32.mrb[0].mxu0
    %v2086 = vadd.f32 %v1681, %v2085
    %v2087 = vpop.f32.mrb[0].mxu0
    %v2088 = vadd.f32 %v1686, %v2087
    %v2089 = vpop.f32.mrb[0].mxu0
    %v2090 = vadd.f32 %v1686, %v2089
    %2091 = vdwg.mxu0
    %2092 = vmatprep.subr.bf16.mxu0 %v1519
    %2093 = vmatpush1.bf16.msra.mxu0 %v1518
    %2094 = vmatprep.subr.bf16.mxu0 %v1535
    %2095 = vmatpush1.bf16.msra.mxu0 %v1534
    %2096 = vmatprep.subr.bf16.mxu0 %v1551
    %2097 = vmatpush1.bf16.msra.mxu0 %v1550
    %2098 = vmatprep.subr.bf16.mxu0 %v1567
    %2099 = vmatpush1.bf16.msra.mxu0 %v1566
    %2100 = vmatprep.subr.bf16.mxu0 0
    %2101 = vmatpush1.bf16.msra.mxu0 0
    %2102 = vmatprep.subr.bf16.mxu0 0
    %2103 = vmatpush1.bf16.msra.mxu0 0
    %2104 = vmatprep.subr.bf16.mxu0 0
    %2105 = vmatpush1.bf16.msra.mxu0 0
    %2106 = vmatprep.subr.bf16.mxu0 0
    %2107 = vmatpush1.bf16.msra.mxu0 0
    %2108 = vmatprep.subr.bf16.mxu0 0
    %2109 = vmatpush1.bf16.msra.mxu0 0
    %2110 = vmatprep.subr.bf16.mxu0 0
    %2111 = vmatpush1.bf16.msra.mxu0 0
    %2112 = vmatprep.subr.bf16.mxu0 0
    %2113 = vmatpush1.bf16.msra.mxu0 0
    %2114 = vmatprep.subr.bf16.mxu0 0
    %2115 = vmatpush1.bf16.msra.mxu0 0
    %2116 = vmatprep.subr.bf16.mxu0 0
    %2117 = vmatpush1.bf16.msra.mxu0 0
    %2118 = vmatprep.subr.bf16.mxu0 0
    %2119 = vmatpush1.bf16.msra.mxu0 0
    %2120 = vmatprep.subr.bf16.mxu0 0
    %2121 = vmatpush1.bf16.msra.mxu0 0
    %2122 = vmatprep.subr.bf16.mxu0 0
    %2123 = vmatpush1.bf16.msra.mxu0 0
    %2124 = vmatprep.mubr.bf16.mxu0 0
    %2125 = vmatmul.mubr.bf16.gmra.mrb[0].mxu0 %v1730
    %v2126 = vpop.f32.mrb[0].mxu0
    %v2127 = vadd.f32 %v1611, %v2126
    %v2128 = vpop.f32.mrb[0].mxu0
    %v2129 = vadd.f32 %v1611, %v2128
    %v2130 = vpop.f32.mrb[0].mxu0
    %v2131 = vadd.f32 %v1616, %v2130
    %v2132 = vpop.f32.mrb[0].mxu0
    %v2133 = vadd.f32 %v1616, %v2132
    %2134 = vmatprep.mubr.bf16.mxu0 0
    %2135 = vmatmul.mubr.bf16.gmra.mrb[0].mxu0 %v1733
    %v2136 = vpop.f32.mrb[0].mxu0
    %v2137 = vadd.f32 %v1621, %v2136
    %v2138 = vpop.f32.mrb[0].mxu0
    %v2139 = vadd.f32 %v1621, %v2138
    %v2140 = vpop.f32.mrb[0].mxu0
    %v2141 = vadd.f32 %v1626, %v2140
    %v2142 = vpop.f32.mrb[0].mxu0
    %v2143 = vadd.f32 %v1626, %v2142
    %2144 = vmatprep.mubr.bf16.mxu0 0
    %2145 = vmatmul.mubr.bf16.gmra.mrb[0].mxu0 %v1736
    %v2146 = vpop.f32.mrb[0].mxu0
    %v2147 = vadd.f32 %v1631, %v2146
    %v2148 = vpop.f32.mrb[0].mxu0
    %v2149 = vadd.f32 %v1631, %v2148
    %v2150 = vpop.f32.mrb[0].mxu0
    %v2151 = vadd.f32 %v1636, %v2150
    %v2152 = vpop.f32.mrb[0].mxu0
    %v2153 = vadd.f32 %v1636, %v2152
    %2154 = vmatprep.mubr.bf16.mxu0 0
    %2155 = vmatmul.mubr.bf16.gmra.mrb[0].mxu0 %v1739
    %v2156 = vpop.f32.mrb[0].mxu0
    %v2157 = vadd.f32 %v1641, %v2156
    %v2158 = vpop.f32.mrb[0].mxu0
    %v2159 = vadd.f32 %v1641, %v2158
    %v2160 = vpop.f32.mrb[0].mxu0
    %v2161 = vadd.f32 %v1646, %v2160
    %v2162 = vpop.f32.mrb[0].mxu0
    %v2163 = vadd.f32 %v1646, %v2162
    %2164 = vmatprep.mubr.bf16.mxu0 0
    %2165 = vmatmul.mubr.bf16.gmra.mrb[0].mxu0 %v1742
    %v2166 = vpop.f32.mrb[0].mxu0
    %v2167 = vadd.f32 %v1651, %v2166
    %v2168 = vpop.f32.mrb[0].mxu0
    %v2169 = vadd.f32 %v1651, %v2168
    %v2170 = vpop.f32.mrb[0].mxu0
    %v2171 = vadd.f32 %v1656, %v2170
    %v2172 = vpop.f32.mrb[0].mxu0
    %v2173 = vadd.f32 %v1656, %v2172
    %2174 = vmatprep.mubr.bf16.mxu0 0
    %2175 = vmatmul.mubr.bf16.gmra.mrb[0].mxu0 %v1745
    %v2176 = vpop.f32.mrb[0].mxu0
    %v2177 = vadd.f32 %v1661, %v2176
    %v2178 = vpop.f32.mrb[0].mxu0
    %v2179 = vadd.f32 %v1661, %v2178
    %v2180 = vpop.f32.mrb[0].mxu0
    %v2181 = vadd.f32 %v1666, %v2180
    %v2182 = vpop.f32.mrb[0].mxu0
    %v2183 = vadd.f32 %v1666, %v2182
    %2184 = vmatprep.mubr.bf16.mxu0 0
    %2185 = vmatmul.mubr.bf16.gmra.mrb[0].mxu0 %v1748
    %v2186 = vpop.f32.mrb[0].mxu0
    %v2187 = vadd.f32 %v1671, %v2186
    %v2188 = vpop.f32.mrb[0].mxu0
    %v2189 = vadd.f32 %v1671, %v2188
    %v2190 = vpop.f32.mrb[0].mxu0
    %v2191 = vadd.f32 %v1676, %v2190
    %v2192 = vpop.f32.mrb[0].mxu0
    %v2193 = vadd.f32 %v1676, %v2192
    %2194 = vmatprep.mubr.bf16.mxu0 0
    %2195 = vmatmul.mubr.bf16.gmra.mrb[0].mxu0 %v1751
    %v2196 = vpop.f32.mrb[0].mxu0
    %v2197 = vadd.f32 %v1681, %v2196
    %v2198 = vpop.f32.mrb[0].mxu0
    %v2199 = vadd.f32 %v1681, %v2198
    %v2200 = vpop.f32.mrb[0].mxu0
    %v2201 = vadd.f32 %v1686, %v2200
    %v2202 = vpop.f32.mrb[0].mxu0
    %v2203 = vadd.f32 %v1686, %v2202
    %2204 = vdwg.mxu0
    %2205 = vmatprep.subr.bf16.mxu0 %v1521
    %2206 = vmatpush1.bf16.msra.mxu0 %v1520
    %2207 = vmatprep.subr.bf16.mxu0 %v1537
    %2208 = vmatpush1.bf16.msra.mxu0 %v1536
    %2209 = vmatprep.subr.bf16.mxu0 %v1553
    %2210 = vmatpush1.bf16.msra.mxu0 %v1552
    %2211 = vmatprep.subr.bf16.mxu0 %v1569
    %2212 = vmatpush1.bf16.msra.mxu0 %v1568
    %2213 = vmatprep.subr.bf16.mxu0 0
    %2214 = vmatpush1.bf16.msra.mxu0 0
    %2215 = vmatprep.subr.bf16.mxu0 0
    %2216 = vmatpush1.bf16.msra.mxu0 0
    %2217 = vmatprep.subr.bf16.mxu0 0
    %2218 = vmatpush1.bf16.msra.mxu0 0
    %2219 = vmatprep.subr.bf16.mxu0 0
    %2220 = vmatpush1.bf16.msra.mxu0 0
    %2221 = vmatprep.subr.bf16.mxu0 0
    %2222 = vmatpush1.bf16.msra.mxu0 0
    %2223 = vmatprep.subr.bf16.mxu0 0
    %2224 = vmatpush1.bf16.msra.mxu0 0
    %2225 = vmatprep.subr.bf16.mxu0 0
    %2226 = vmatpush1.bf16.msra.mxu0 0
    %2227 = vmatprep.subr.bf16.mxu0 0
    %2228 = vmatpush1.bf16.msra.mxu0 0
    %2229 = vmatprep.subr.bf16.mxu0 0
    %2230 = vmatpush1.bf16.msra.mxu0 0
    %2231 = vmatprep.subr.bf16.mxu0 0
    %2232 = vmatpush1.bf16.msra.mxu0 0
    %2233 = vmatprep.subr.bf16.mxu0 0
    %2234 = vmatpush1.bf16.msra.mxu0 0
    %2235 = vmatprep.subr.bf16.mxu0 0
    %2236 = vmatpush1.bf16.msra.mxu0 0
    %2237 = vmatprep.mubr.bf16.mxu0 0
    %2238 = vmatmul.mubr.bf16.gmra.mrb[0].mxu0 %v1730
    %v2239 = vpop.f32.mrb[0].mxu0
    %v2240 = vadd.f32 %v1611, %v2239
    %v2241 = vpop.f32.mrb[0].mxu0
    %v2242 = vadd.f32 %v1611, %v2241
    %v2243 = vpop.f32.mrb[0].mxu0
    %v2244 = vadd.f32 %v1616, %v2243
    %v2245 = vpop.f32.mrb[0].mxu0
    %v2246 = vadd.f32 %v1616, %v2245
    %2247 = vmatprep.mubr.bf16.mxu0 0
    %2248 = vmatmul.mubr.bf16.gmra.mrb[0].mxu0 %v1733
    %v2249 = vpop.f32.mrb[0].mxu0
    %v2250 = vadd.f32 %v1621, %v2249
    %v2251 = vpop.f32.mrb[0].mxu0
    %v2252 = vadd.f32 %v1621, %v2251
    %v2253 = vpop.f32.mrb[0].mxu0
    %v2254 = vadd.f32 %v1626, %v2253
    %v2255 = vpop.f32.mrb[0].mxu0
    %v2256 = vadd.f32 %v1626, %v2255
    %2257 = vmatprep.mubr.bf16.mxu0 0
    %2258 = vmatmul.mubr.bf16.gmra.mrb[0].mxu0 %v1736
    %v2259 = vpop.f32.mrb[0].mxu0
    %v2260 = vadd.f32 %v1631, %v2259
    %v2261 = vpop.f32.mrb[0].mxu0
    %v2262 = vadd.f32 %v1631, %v2261
    %v2263 = vpop.f32.mrb[0].mxu0
    %v2264 = vadd.f32 %v1636, %v2263
    %v2265 = vpop.f32.mrb[0].mxu0
    %v2266 = vadd.f32 %v1636, %v2265
    %2267 = vmatprep.mubr.bf16.mxu0 0
    %2268 = vmatmul.mubr.bf16.gmra.mrb[0].mxu0 %v1739
    %v2269 = vpop.f32.mrb[0].mxu0
    %v2270 = vadd.f32 %v1641, %v2269
    %v2271 = vpop.f32.mrb[0].mxu0
    %v2272 = vadd.f32 %v1641, %v2271
    %v2273 = vpop.f32.mrb[0].mxu0
    %v2274 = vadd.f32 %v1646, %v2273
    %v2275 = vpop.f32.mrb[0].mxu0
    %v2276 = vadd.f32 %v1646, %v2275
    %2277 = vmatprep.mubr.bf16.mxu0 0
    %2278 = vmatmul.mubr.bf16.gmra.mrb[0].mxu0 %v1742
    %v2279 = vpop.f32.mrb[0].mxu0
    %v2280 = vadd.f32 %v1651, %v2279
    %v2281 = vpop.f32.mrb[0].mxu0
    %v2282 = vadd.f32 %v1651, %v2281
    %v2283 = vpop.f32.mrb[0].mxu0
    %v2284 = vadd.f32 %v1656, %v2283
    %v2285 = vpop.f32.mrb[0].mxu0
    %v2286 = vadd.f32 %v1656, %v2285
    %2287 = vmatprep.mubr.bf16.mxu0 0
    %2288 = vmatmul.mubr.bf16.gmra.mrb[0].mxu0 %v1745
    %v2289 = vpop.f32.mrb[0].mxu0
    %v2290 = vadd.f32 %v1661, %v2289
    %v2291 = vpop.f32.mrb[0].mxu0
    %v2292 = vadd.f32 %v1661, %v2291
    %v2293 = vpop.f32.mrb[0].mxu0
    %v2294 = vadd.f32 %v1666, %v2293
    %v2295 = vpop.f32.mrb[0].mxu0
    %v2296 = vadd.f32 %v1666, %v2295
    %2297 = vmatprep.mubr.bf16.mxu0 0
    %2298 = vmatmul.mubr.bf16.gmra.mrb[0].mxu0 %v1748
    %v2299 = vpop.f32.mrb[0].mxu0
    %v2300 = vadd.f32 %v1671, %v2299
    %v2301 = vpop.f32.mrb[0].mxu0
    %v2302 = vadd.f32 %v1671, %v2301
    %v2303 = vpop.f32.mrb[0].mxu0
    %v2304 = vadd.f32 %v1676, %v2303
    %v2305 = vpop.f32.mrb[0].mxu0
    %v2306 = vadd.f32 %v1676, %v2305
    %2307 = vmatprep.mubr.bf16.mxu0 0
    %2308 = vmatmul.mubr.bf16.gmra.mrb[0].mxu0 %v1751
    %v2309 = vpop.f32.mrb[0].mxu0
    %v2310 = vadd.f32 %v1681, %v2309
    %v2311 = vpop.f32.mrb[0].mxu0
    %v2312 = vadd.f32 %v1681, %v2311
    %v2313 = vpop.f32.mrb[0].mxu0
    %v2314 = vadd.f32 %v1686, %v2313
    %v2315 = vpop.f32.mrb[0].mxu0
    %v2316 = vadd.f32 %v1686, %v2315
    %2317 = vdwg.mxu0
    %2318 = vmatprep.subr.bf16.mxu0 %v1523
    %2319 = vmatpush1.bf16.msra.mxu0 %v1522
    %2320 = vmatprep.subr.bf16.mxu0 %v1539
    %2321 = vmatpush1.bf16.msra.mxu0 %v1538
    %2322 = vmatprep.subr.bf16.mxu0 %v1555
    %2323 = vmatpush1.bf16.msra.mxu0 %v1554
    %2324 = vmatprep.subr.bf16.mxu0 %v1571
    %2325 = vmatpush1.bf16.msra.mxu0 %v1570
    %2326 = vmatprep.subr.bf16.mxu0 0
    %2327 = vmatpush1.bf16.msra.mxu0 0
    %2328 = vmatprep.subr.bf16.mxu0 0
    %2329 = vmatpush1.bf16.msra.mxu0 0
    %2330 = vmatprep.subr.bf16.mxu0 0
    %2331 = vmatpush1.bf16.msra.mxu0 0
    %2332 = vmatprep.subr.bf16.mxu0 0
    %2333 = vmatpush1.bf16.msra.mxu0 0
    %2334 = vmatprep.subr.bf16.mxu0 0
    %2335 = vmatpush1.bf16.msra.mxu0 0
    %2336 = vmatprep.subr.bf16.mxu0 0
    %2337 = vmatpush1.bf16.msra.mxu0 0
    %2338 = vmatprep.subr.bf16.mxu0 0
    %2339 = vmatpush1.bf16.msra.mxu0 0
    %2340 = vmatprep.subr.bf16.mxu0 0
    %2341 = vmatpush1.bf16.msra.mxu0 0
    %2342 = vmatprep.subr.bf16.mxu0 0
    %2343 = vmatpush1.bf16.msra.mxu0 0
    %2344 = vmatprep.subr.bf16.mxu0 0
    %2345 = vmatpush1.bf16.msra.mxu0 0
    %2346 = vmatprep.subr.bf16.mxu0 0
    %2347 = vmatpush1.bf16.msra.mxu0 0
    %2348 = vmatprep.subr.bf16.mxu0 0
    %2349 = vmatpush1.bf16.msra.mxu0 0
    %2350 = vmatprep.mubr.bf16.mxu0 0
    %2351 = vmatmul.mubr.bf16.gmra.mrb[0].mxu0 %v1730
    %v2352 = vpop.f32.mrb[0].mxu0
    %v2353 = vadd.f32 %v1611, %v2352
    %v2354 = vpop.f32.mrb[0].mxu0
    %v2355 = vadd.f32 %v1611, %v2354
    %v2356 = vpop.f32.mrb[0].mxu0
    %v2357 = vadd.f32 %v1616, %v2356
    %v2358 = vpop.f32.mrb[0].mxu0
    %v2359 = vadd.f32 %v1616, %v2358
    %2360 = vmatprep.mubr.bf16.mxu0 0
    %2361 = vmatmul.mubr.bf16.gmra.mrb[0].mxu0 %v1733
    %v2362 = vpop.f32.mrb[0].mxu0
    %v2363 = vadd.f32 %v1621, %v2362
    %v2364 = vpop.f32.mrb[0].mxu0
    %v2365 = vadd.f32 %v1621, %v2364
    %v2366 = vpop.f32.mrb[0].mxu0
    %v2367 = vadd.f32 %v1626, %v2366
    %v2368 = vpop.f32.mrb[0].mxu0
    %v2369 = vadd.f32 %v1626, %v2368
    %2370 = vmatprep.mubr.bf16.mxu0 0
    %2371 = vmatmul.mubr.bf16.gmra.mrb[0].mxu0 %v1736
    %v2372 = vpop.f32.mrb[0].mxu0
    %v2373 = vadd.f32 %v1631, %v2372
    %v2374 = vpop.f32.mrb[0].mxu0
    %v2375 = vadd.f32 %v1631, %v2374
    %v2376 = vpop.f32.mrb[0].mxu0
    %v2377 = vadd.f32 %v1636, %v2376
    %v2378 = vpop.f32.mrb[0].mxu0
    %v2379 = vadd.f32 %v1636, %v2378
    %2380 = vmatprep.mubr.bf16.mxu0 0
    %2381 = vmatmul.mubr.bf16.gmra.mrb[0].mxu0 %v1739
    %v2382 = vpop.f32.mrb[0].mxu0
    %v2383 = vadd.f32 %v1641, %v2382
    %v2384 = vpop.f32.mrb[0].mxu0
    %v2385 = vadd.f32 %v1641, %v2384
    %v2386 = vpop.f32.mrb[0].mxu0
    %v2387 = vadd.f32 %v1646, %v2386
    %v2388 = vpop.f32.mrb[0].mxu0
    %v2389 = vadd.f32 %v1646, %v2388
    %2390 = vmatprep.mubr.bf16.mxu0 0
    %2391 = vmatmul.mubr.bf16.gmra.mrb[0].mxu0 %v1742
    %v2392 = vpop.f32.mrb[0].mxu0
    %v2393 = vadd.f32 %v1651, %v2392
    %v2394 = vpop.f32.mrb[0].mxu0
    %v2395 = vadd.f32 %v1651, %v2394
    %v2396 = vpop.f32.mrb[0].mxu0
    %v2397 = vadd.f32 %v1656, %v2396
    %v2398 = vpop.f32.mrb[0].mxu0
    %v2399 = vadd.f32 %v1656, %v2398
    %2400 = vmatprep.mubr.bf16.mxu0 0
    %2401 = vmatmul.mubr.bf16.gmra.mrb[0].mxu0 %v1745
    %v2402 = vpop.f32.mrb[0].mxu0
    %v2403 = vadd.f32 %v1661, %v2402
    %v2404 = vpop.f32.mrb[0].mxu0
    %v2405 = vadd.f32 %v1661, %v2404
    %v2406 = vpop.f32.mrb[0].mxu0
    %v2407 = vadd.f32 %v1666, %v2406
    %v2408 = vpop.f32.mrb[0].mxu0
    %v2409 = vadd.f32 %v1666, %v2408
    %2410 = vmatprep.mubr.bf16.mxu0 0
    %2411 = vmatmul.mubr.bf16.gmra.mrb[0].mxu0 %v1748
    %v2412 = vpop.f32.mrb[0].mxu0
    %v2413 = vadd.f32 %v1671, %v2412
    %v2414 = vpop.f32.mrb[0].mxu0
    %v2415 = vadd.f32 %v1671, %v2414
    %v2416 = vpop.f32.mrb[0].mxu0
    %v2417 = vadd.f32 %v1676, %v2416
    %v2418 = vpop.f32.mrb[0].mxu0
    %v2419 = vadd.f32 %v1676, %v2418
    %2420 = vmatprep.mubr.bf16.mxu0 0
    %2421 = vmatmul.mubr.bf16.gmra.mrb[0].mxu0 %v1751
    %v2422 = vpop.f32.mrb[0].mxu0
    %v2423 = vadd.f32 %v1681, %v2422
    %v2424 = vpop.f32.mrb[0].mxu0
    %v2425 = vadd.f32 %v1681, %v2424
    %v2426 = vpop.f32.mrb[0].mxu0
    %v2427 = vadd.f32 %v1686, %v2426
    %v2428 = vpop.f32.mrb[0].mxu0
    %v2429 = vadd.f32 %v1686, %v2428
    %2430 = vdwg.mxu0
    %2431 = vmatprep.subr.bf16.mxu0 %v1525
    %2432 = vmatpush1.bf16.msra.mxu0 %v1524
    %2433 = vmatprep.subr.bf16.mxu0 %v1541
    %2434 = vmatpush1.bf16.msra.mxu0 %v1540
    %2435 = vmatprep.subr.bf16.mxu0 %v1557
    %2436 = vmatpush1.bf16.msra.mxu0 %v1556
    %2437 = vmatprep.subr.bf16.mxu0 %v1573
    %2438 = vmatpush1.bf16.msra.mxu0 %v1572
    %2439 = vmatprep.subr.bf16.mxu0 0
    %2440 = vmatpush1.bf16.msra.mxu0 0
    %2441 = vmatprep.subr.bf16.mxu0 0
    %2442 = vmatpush1.bf16.msra.mxu0 0
    %2443 = vmatprep.subr.bf16.mxu0 0
    %2444 = vmatpush1.bf16.msra.mxu0 0
    %2445 = vmatprep.subr.bf16.mxu0 0
    %2446 = vmatpush1.bf16.msra.mxu0 0
    %2447 = vmatprep.subr.bf16.mxu0 0
    %2448 = vmatpush1.bf16.msra.mxu0 0
    %2449 = vmatprep.subr.bf16.mxu0 0
    %2450 = vmatpush1.bf16.msra.mxu0 0
    %2451 = vmatprep.subr.bf16.mxu0 0
    %2452 = vmatpush1.bf16.msra.mxu0 0
    %2453 = vmatprep.subr.bf16.mxu0 0
    %2454 = vmatpush1.bf16.msra.mxu0 0
    %2455 = vmatprep.subr.bf16.mxu0 0
    %2456 = vmatpush1.bf16.msra.mxu0 0
    %2457 = vmatprep.subr.bf16.mxu0 0
    %2458 = vmatpush1.bf16.msra.mxu0 0
    %2459 = vmatprep.subr.bf16.mxu0 0
    %2460 = vmatpush1.bf16.msra.mxu0 0
    %2461 = vmatprep.subr.bf16.mxu0 0
    %2462 = vmatpush1.bf16.msra.mxu0 0
    %2463 = vmatprep.mubr.bf16.mxu0 0
    %2464 = vmatmul.mubr.bf16.gmra.mrb[0].mxu0 %v1730
    %v2465 = vpop.f32.mrb[0].mxu0
    %v2466 = vadd.f32 %v1611, %v2465
    %v2467 = vpop.f32.mrb[0].mxu0
    %v2468 = vadd.f32 %v1611, %v2467
    %v2469 = vpop.f32.mrb[0].mxu0
    %v2470 = vadd.f32 %v1616, %v2469
    %v2471 = vpop.f32.mrb[0].mxu0
    %v2472 = vadd.f32 %v1616, %v2471
    %2473 = vmatprep.mubr.bf16.mxu0 0
    %2474 = vmatmul.mubr.bf16.gmra.mrb[0].mxu0 %v1733
    %v2475 = vpop.f32.mrb[0].mxu0
    %v2476 = vadd.f32 %v1621, %v2475
    %v2477 = vpop.f32.mrb[0].mxu0
    %v2478 = vadd.f32 %v1621, %v2477
    %v2479 = vpop.f32.mrb[0].mxu0
    %v2480 = vadd.f32 %v1626, %v2479
    %v2481 = vpop.f32.mrb[0].mxu0
    %v2482 = vadd.f32 %v1626, %v2481
    %2483 = vmatprep.mubr.bf16.mxu0 0
    %2484 = vmatmul.mubr.bf16.gmra.mrb[0].mxu0 %v1736
    %v2485 = vpop.f32.mrb[0].mxu0
    %v2486 = vadd.f32 %v1631, %v2485
    %v2487 = vpop.f32.mrb[0].mxu0
    %v2488 = vadd.f32 %v1631, %v2487
    %v2489 = vpop.f32.mrb[0].mxu0
    %v2490 = vadd.f32 %v1636, %v2489
    %v2491 = vpop.f32.mrb[0].mxu0
    %v2492 = vadd.f32 %v1636, %v2491
    %2493 = vmatprep.mubr.bf16.mxu0 0
    %2494 = vmatmul.mubr.bf16.gmra.mrb[0].mxu0 %v1739
    %v2495 = vpop.f32.mrb[0].mxu0
    %v2496 = vadd.f32 %v1641, %v2495
    %v2497 = vpop.f32.mrb[0].mxu0
    %v2498 = vadd.f32 %v1641, %v2497
    %v2499 = vpop.f32.mrb[0].mxu0
    %v2500 = vadd.f32 %v1646, %v2499
    %v2501 = vpop.f32.mrb[0].mxu0
    %v2502 = vadd.f32 %v1646, %v2501
    %2503 = vmatprep.mubr.bf16.mxu0 0
    %2504 = vmatmul.mubr.bf16.gmra.mrb[0].mxu0 %v1742
    %v2505 = vpop.f32.mrb[0].mxu0
    %v2506 = vadd.f32 %v1651, %v2505
    %v2507 = vpop.f32.mrb[0].mxu0
    %v2508 = vadd.f32 %v1651, %v2507
    %v2509 = vpop.f32.mrb[0].mxu0
    %v2510 = vadd.f32 %v1656, %v2509
    %v2511 = vpop.f32.mrb[0].mxu0
    %v2512 = vadd.f32 %v1656, %v2511
    %2513 = vmatprep.mubr.bf16.mxu0 0
    %2514 = vmatmul.mubr.bf16.gmra.mrb[0].mxu0 %v1745
    %v2515 = vpop.f32.mrb[0].mxu0
    %v2516 = vadd.f32 %v1661, %v2515
    %v2517 = vpop.f32.mrb[0].mxu0
    %v2518 = vadd.f32 %v1661, %v2517
    %v2519 = vpop.f32.mrb[0].mxu0
    %v2520 = vadd.f32 %v1666, %v2519
    %v2521 = vpop.f32.mrb[0].mxu0
    %v2522 = vadd.f32 %v1666, %v2521
    %2523 = vmatprep.mubr.bf16.mxu0 0
    %2524 = vmatmul.mubr.bf16.gmra.mrb[0].mxu0 %v1748
    %v2525 = vpop.f32.mrb[0].mxu0
    %v2526 = vadd.f32 %v1671, %v2525
    %v2527 = vpop.f32.mrb[0].mxu0
    %v2528 = vadd.f32 %v1671, %v2527
    %v2529 = vpop.f32.mrb[0].mxu0
    %v2530 = vadd.f32 %v1676, %v2529
    %v2531 = vpop.f32.mrb[0].mxu0
    %v2532 = vadd.f32 %v1676, %v2531
    %2533 = vmatprep.mubr.bf16.mxu0 0
    %2534 = vmatmul.mubr.bf16.gmra.mrb[0].mxu0 %v1751
    %v2535 = vpop.f32.mrb[0].mxu0
    %v2536 = vadd.f32 %v1681, %v2535
    %v2537 = vpop.f32.mrb[0].mxu0
    %v2538 = vadd.f32 %v1681, %v2537
    %v2539 = vpop.f32.mrb[0].mxu0
    %v2540 = vadd.f32 %v1686, %v2539
    %v2541 = vpop.f32.mrb[0].mxu0
    %v2542 = vadd.f32 %v1686, %v2541
    %2543 = vdwg.mxu0
    %2544 = vmatprep.subr.bf16.mxu0 %v1527
    %2545 = vmatpush1.bf16.msra.mxu0 %v1526
    %2546 = vmatprep.subr.bf16.mxu0 %v1543
    %2547 = vmatpush1.bf16.msra.mxu0 %v1542
    %2548 = vmatprep.subr.bf16.mxu0 %v1559
    %2549 = vmatpush1.bf16.msra.mxu0 %v1558
    %2550 = vmatprep.subr.bf16.mxu0 %v1575
    %2551 = vmatpush1.bf16.msra.mxu0 %v1574
    %2552 = vmatprep.subr.bf16.mxu0 0
    %2553 = vmatpush1.bf16.msra.mxu0 0
    %2554 = vmatprep.subr.bf16.mxu0 0
    %2555 = vmatpush1.bf16.msra.mxu0 0
    %2556 = vmatprep.subr.bf16.mxu0 0
    %2557 = vmatpush1.bf16.msra.mxu0 0
    %2558 = vmatprep.subr.bf16.mxu0 0
    %2559 = vmatpush1.bf16.msra.mxu0 0
    %2560 = vmatprep.subr.bf16.mxu0 0
    %2561 = vmatpush1.bf16.msra.mxu0 0
    %2562 = vmatprep.subr.bf16.mxu0 0
    %2563 = vmatpush1.bf16.msra.mxu0 0
    %2564 = vmatprep.subr.bf16.mxu0 0
    %2565 = vmatpush1.bf16.msra.mxu0 0
    %2566 = vmatprep.subr.bf16.mxu0 0
    %2567 = vmatpush1.bf16.msra.mxu0 0
    %2568 = vmatprep.subr.bf16.mxu0 0
    %2569 = vmatpush1.bf16.msra.mxu0 0
    %2570 = vmatprep.subr.bf16.mxu0 0
    %2571 = vmatpush1.bf16.msra.mxu0 0
    %2572 = vmatprep.subr.bf16.mxu0 0
    %2573 = vmatpush1.bf16.msra.mxu0 0
    %2574 = vmatprep.subr.bf16.mxu0 0
    %2575 = vmatpush1.bf16.msra.mxu0 0
    %2576 = vmatprep.mubr.bf16.mxu0 0
    %2577 = vmatmul.mubr.bf16.gmra.mrb[0].mxu0 %v1730
    %v2578 = vpop.f32.mrb[0].mxu0
    %v2579 = vadd.f32 %v1611, %v2578
    %v2580 = vpop.f32.mrb[0].mxu0
    %v2581 = vadd.f32 %v1611, %v2580
    %v2582 = vpop.f32.mrb[0].mxu0
    %v2583 = vadd.f32 %v1616, %v2582
    %v2584 = vpop.f32.mrb[0].mxu0
    %v2585 = vadd.f32 %v1616, %v2584
    %2586 = vmatprep.mubr.bf16.mxu0 0
    %2587 = vmatmul.mubr.bf16.gmra.mrb[0].mxu0 %v1733
    %v2588 = vpop.f32.mrb[0].mxu0
    %v2589 = vadd.f32 %v1621, %v2588
    %v2590 = vpop.f32.mrb[0].mxu0
    %v2591 = vadd.f32 %v1621, %v2590
    %v2592 = vpop.f32.mrb[0].mxu0
    %v2593 = vadd.f32 %v1626, %v2592
    %v2594 = vpop.f32.mrb[0].mxu0
    %v2595 = vadd.f32 %v1626, %v2594
    %2596 = vmatprep.mubr.bf16.mxu0 0
    %2597 = vmatmul.mubr.bf16.gmra.mrb[0].mxu0 %v1736
    %v2598 = vpop.f32.mrb[0].mxu0
    %v2599 = vadd.f32 %v1631, %v2598
    %v2600 = vpop.f32.mrb[0].mxu0
    %v2601 = vadd.f32 %v1631, %v2600
    %v2602 = vpop.f32.mrb[0].mxu0
    %v2603 = vadd.f32 %v1636, %v2602
    %v2604 = vpop.f32.mrb[0].mxu0
    %v2605 = vadd.f32 %v1636, %v2604
    %2606 = vmatprep.mubr.bf16.mxu0 0
    %2607 = vmatmul.mubr.bf16.gmra.mrb[0].mxu0 %v1739
    %v2608 = vpop.f32.mrb[0].mxu0
    %v2609 = vadd.f32 %v1641, %v2608
    %v2610 = vpop.f32.mrb[0].mxu0
    %v2611 = vadd.f32 %v1641, %v2610
    %v2612 = vpop.f32.mrb[0].mxu0
    %v2613 = vadd.f32 %v1646, %v2612
    %v2614 = vpop.f32.mrb[0].mxu0
    %v2615 = vadd.f32 %v1646, %v2614
    %2616 = vmatprep.mubr.bf16.mxu0 0
    %2617 = vmatmul.mubr.bf16.gmra.mrb[0].mxu0 %v1742
    %v2618 = vpop.f32.mrb[0].mxu0
    %v2619 = vadd.f32 %v1651, %v2618
    %v2620 = vpop.f32.mrb[0].mxu0
    %v2621 = vadd.f32 %v1651, %v2620
    %v2622 = vpop.f32.mrb[0].mxu0
    %v2623 = vadd.f32 %v1656, %v2622
    %v2624 = vpop.f32.mrb[0].mxu0
    %v2625 = vadd.f32 %v1656, %v2624
    %2626 = vmatprep.mubr.bf16.mxu0 0
    %2627 = vmatmul.mubr.bf16.gmra.mrb[0].mxu0 %v1745
    %v2628 = vpop.f32.mrb[0].mxu0
    %v2629 = vadd.f32 %v1661, %v2628
    %v2630 = vpop.f32.mrb[0].mxu0
    %v2631 = vadd.f32 %v1661, %v2630
    %v2632 = vpop.f32.mrb[0].mxu0
    %v2633 = vadd.f32 %v1666, %v2632
    %v2634 = vpop.f32.mrb[0].mxu0
    %v2635 = vadd.f32 %v1666, %v2634
    %2636 = vmatprep.mubr.bf16.mxu0 0
    %2637 = vmatmul.mubr.bf16.gmra.mrb[0].mxu0 %v1748
    %v2638 = vpop.f32.mrb[0].mxu0
    %v2639 = vadd.f32 %v1671, %v2638
    %v2640 = vpop.f32.mrb[0].mxu0
    %v2641 = vadd.f32 %v1671, %v2640
    %v2642 = vpop.f32.mrb[0].mxu0
    %v2643 = vadd.f32 %v1676, %v2642
    %v2644 = vpop.f32.mrb[0].mxu0
    %v2645 = vadd.f32 %v1676, %v2644
    %2646 = vmatprep.mubr.bf16.mxu0 0
    %2647 = vmatmul.mubr.bf16.gmra.mrb[0].mxu0 %v1751
    %v2648 = vpop.f32.mrb[0].mxu0
    %v2649 = vadd.f32 %v1681, %v2648
    %v2650 = vpop.f32.mrb[0].mxu0
    %v2651 = vadd.f32 %v1681, %v2650
    %v2652 = vpop.f32.mrb[0].mxu0
    %v2653 = vadd.f32 %v1686, %v2652
    %v2654 = vpop.f32.mrb[0].mxu0
    %v2655 = vadd.f32 %v1686, %v2654
    %2656 = vdwg.mxu0
    %v2657 = vmax.f32 %v1788, 0.0
    %v2658 = vmax.f32 %v1790, 0.0
    %v2659 = vmax.f32 %v1901, 0.0
    %v2660 = vmax.f32 %v1903, 0.0
    %v2661 = vmax.f32 %v2014, 0.0
    %v2662 = vmax.f32 %v2016, 0.0
    %v2663 = vmax.f32 %v2127, 0.0
    %v2664 = vmax.f32 %v2129, 0.0
    %v2665 = vmax.f32 %v2240, 0.0
    %v2666 = vmax.f32 %v2242, 0.0
    %v2667 = vmax.f32 %v2353, 0.0
    %v2668 = vmax.f32 %v2355, 0.0
    %v2669 = vmax.f32 %v2466, 0.0
    %v2670 = vmax.f32 %v2468, 0.0
    %v2671 = vmax.f32 %v2579, 0.0
    %v2672 = vmax.f32 %v2581, 0.0
    %v2673 = vmax.f32 %v1792, 0.0
    %v2674 = vmax.f32 %v1794, 0.0
    %v2675 = vmax.f32 %v1905, 0.0
    %v2676 = vmax.f32 %v1907, 0.0
    %v2677 = vmax.f32 %v2018, 0.0
    %v2678 = vmax.f32 %v2020, 0.0
    %v2679 = vmax.f32 %v2131, 0.0
    %v2680 = vmax.f32 %v2133, 0.0
    %v2681 = vmax.f32 %v2244, 0.0
    %v2682 = vmax.f32 %v2246, 0.0
    %v2683 = vmax.f32 %v2357, 0.0
    %v2684 = vmax.f32 %v2359, 0.0
    %v2685 = vmax.f32 %v2470, 0.0
    %v2686 = vmax.f32 %v2472, 0.0
    %v2687 = vmax.f32 %v2583, 0.0
    %v2688 = vmax.f32 %v2585, 0.0
    %v2689 = vmax.f32 %v1798, 0.0
    %v2690 = vmax.f32 %v1800, 0.0
    %v2691 = vmax.f32 %v1911, 0.0
    %v2692 = vmax.f32 %v1913, 0.0
    %v2693 = vmax.f32 %v2024, 0.0
    %v2694 = vmax.f32 %v2026, 0.0
    %v2695 = vmax.f32 %v2137, 0.0
    %v2696 = vmax.f32 %v2139, 0.0
    %v2697 = vmax.f32 %v2250, 0.0
    %v2698 = vmax.f32 %v2252, 0.0
    %v2699 = vmax.f32 %v2363, 0.0
    %v2700 = vmax.f32 %v2365, 0.0
    %v2701 = vmax.f32 %v2476, 0.0
    %v2702 = vmax.f32 %v2478, 0.0
    %v2703 = vmax.f32 %v2589, 0.0
    %v2704 = vmax.f32 %v2591, 0.0
    %v2705 = vmax.f32 %v1802, 0.0
    %v2706 = vmax.f32 %v1804, 0.0
    %v2707 = vmax.f32 %v1915, 0.0
    %v2708 = vmax.f32 %v1917, 0.0
    %v2709 = vmax.f32 %v2028, 0.0
    %v2710 = vmax.f32 %v2030, 0.0
    %v2711 = vmax.f32 %v2141, 0.0
    %v2712 = vmax.f32 %v2143, 0.0
    %v2713 = vmax.f32 %v2254, 0.0
    %v2714 = vmax.f32 %v2256, 0.0
    %v2715 = vmax.f32 %v2367, 0.0
    %v2716 = vmax.f32 %v2369, 0.0
    %v2717 = vmax.f32 %v2480, 0.0
    %v2718 = vmax.f32 %v2482, 0.0
    %v2719 = vmax.f32 %v2593, 0.0
    %v2720 = vmax.f32 %v2595, 0.0
    %v2721 = vmax.f32 %v1808, 0.0
    %v2722 = vmax.f32 %v1810, 0.0
    %v2723 = vmax.f32 %v1921, 0.0
    %v2724 = vmax.f32 %v1923, 0.0
    %v2725 = vmax.f32 %v2034, 0.0
    %v2726 = vmax.f32 %v2036, 0.0
    %v2727 = vmax.f32 %v2147, 0.0
    %v2728 = vmax.f32 %v2149, 0.0
    %v2729 = vmax.f32 %v2260, 0.0
    %v2730 = vmax.f32 %v2262, 0.0
    %v2731 = vmax.f32 %v2373, 0.0
    %v2732 = vmax.f32 %v2375, 0.0
    %v2733 = vmax.f32 %v2486, 0.0
    %v2734 = vmax.f32 %v2488, 0.0
    %v2735 = vmax.f32 %v2599, 0.0
    %v2736 = vmax.f32 %v2601, 0.0
    %v2737 = vmax.f32 %v1812, 0.0
    %v2738 = vmax.f32 %v1814, 0.0
    %v2739 = vmax.f32 %v1925, 0.0
    %v2740 = vmax.f32 %v1927, 0.0
    %v2741 = vmax.f32 %v2038, 0.0
    %v2742 = vmax.f32 %v2040, 0.0
    %v2743 = vmax.f32 %v2151, 0.0
    %v2744 = vmax.f32 %v2153, 0.0
    %v2745 = vmax.f32 %v2264, 0.0
    %v2746 = vmax.f32 %v2266, 0.0
    %v2747 = vmax.f32 %v2377, 0.0
    %v2748 = vmax.f32 %v2379, 0.0
    %v2749 = vmax.f32 %v2490, 0.0
    %v2750 = vmax.f32 %v2492, 0.0
    %v2751 = vmax.f32 %v2603, 0.0
    %v2752 = vmax.f32 %v2605, 0.0
    %v2753 = vmax.f32 %v1818, 0.0
    %v2754 = vmax.f32 %v1820, 0.0
    %v2755 = vmax.f32 %v1931, 0.0
    %v2756 = vmax.f32 %v1933, 0.0
    %v2757 = vmax.f32 %v2044, 0.0
    %v2758 = vmax.f32 %v2046, 0.0
    %v2759 = vmax.f32 %v2157, 0.0
    %v2760 = vmax.f32 %v2159, 0.0
    %v2761 = vmax.f32 %v2270, 0.0
    %v2762 = vmax.f32 %v2272, 0.0
    %v2763 = vmax.f32 %v2383, 0.0
    %v2764 = vmax.f32 %v2385, 0.0
    %v2765 = vmax.f32 %v2496, 0.0
    %v2766 = vmax.f32 %v2498, 0.0
    %v2767 = vmax.f32 %v2609, 0.0
    %v2768 = vmax.f32 %v2611, 0.0
    %v2769 = vmax.f32 %v1822, 0.0
    %v2770 = vmax.f32 %v1824, 0.0
    %v2771 = vmax.f32 %v1935, 0.0
    %v2772 = vmax.f32 %v1937, 0.0
    %v2773 = vmax.f32 %v2048, 0.0
    %v2774 = vmax.f32 %v2050, 0.0
    %v2775 = vmax.f32 %v2161, 0.0
    %v2776 = vmax.f32 %v2163, 0.0
    %v2777 = vmax.f32 %v2274, 0.0
    %v2778 = vmax.f32 %v2276, 0.0
    %v2779 = vmax.f32 %v2387, 0.0
    %v2780 = vmax.f32 %v2389, 0.0
    %v2781 = vmax.f32 %v2500, 0.0
    %v2782 = vmax.f32 %v2502, 0.0
    %v2783 = vmax.f32 %v2613, 0.0
    %v2784 = vmax.f32 %v2615, 0.0
    %v2785 = vmax.f32 %v1828, 0.0
    %v2786 = vmax.f32 %v1830, 0.0
    %v2787 = vmax.f32 %v1941, 0.0
    %v2788 = vmax.f32 %v1943, 0.0
    %v2789 = vmax.f32 %v2054, 0.0
    %v2790 = vmax.f32 %v2056, 0.0
    %v2791 = vmax.f32 %v2167, 0.0
    %v2792 = vmax.f32 %v2169, 0.0
    %v2793 = vmax.f32 %v2280, 0.0
    %v2794 = vmax.f32 %v2282, 0.0
    %v2795 = vmax.f32 %v2393, 0.0
    %v2796 = vmax.f32 %v2395, 0.0
    %v2797 = vmax.f32 %v2506, 0.0
    %v2798 = vmax.f32 %v2508, 0.0
    %v2799 = vmax.f32 %v2619, 0.0
    %v2800 = vmax.f32 %v2621, 0.0
    %v2801 = vmax.f32 %v1832, 0.0
    %v2802 = vmax.f32 %v1834, 0.0
    %v2803 = vmax.f32 %v1945, 0.0
    %v2804 = vmax.f32 %v1947, 0.0
    %v2805 = vmax.f32 %v2058, 0.0
    %v2806 = vmax.f32 %v2060, 0.0
    %v2807 = vmax.f32 %v2171, 0.0
    %v2808 = vmax.f32 %v2173, 0.0
    %v2809 = vmax.f32 %v2284, 0.0
    %v2810 = vmax.f32 %v2286, 0.0
    %v2811 = vmax.f32 %v2397, 0.0
    %v2812 = vmax.f32 %v2399, 0.0
    %v2813 = vmax.f32 %v2510, 0.0
    %v2814 = vmax.f32 %v2512, 0.0
    %v2815 = vmax.f32 %v2623, 0.0
    %v2816 = vmax.f32 %v2625, 0.0
    %v2817 = vmax.f32 %v1838, 0.0
    %v2818 = vmax.f32 %v1840, 0.0
    %v2819 = vmax.f32 %v1951, 0.0
    %v2820 = vmax.f32 %v1953, 0.0
    %v2821 = vmax.f32 %v2064, 0.0
    %v2822 = vmax.f32 %v2066, 0.0
    %v2823 = vmax.f32 %v2177, 0.0
    %v2824 = vmax.f32 %v2179, 0.0
    %v2825 = vmax.f32 %v2290, 0.0
    %v2826 = vmax.f32 %v2292, 0.0
    %v2827 = vmax.f32 %v2403, 0.0
    %v2828 = vmax.f32 %v2405, 0.0
    %v2829 = vmax.f32 %v2516, 0.0
    %v2830 = vmax.f32 %v2518, 0.0
    %v2831 = vmax.f32 %v2629, 0.0
    %v2832 = vmax.f32 %v2631, 0.0
    %v2833 = vmax.f32 %v1842, 0.0
    %v2834 = vmax.f32 %v1844, 0.0
    %v2835 = vmax.f32 %v1955, 0.0
    %v2836 = vmax.f32 %v1957, 0.0
    %v2837 = vmax.f32 %v2068, 0.0
    %v2838 = vmax.f32 %v2070, 0.0
    %v2839 = vmax.f32 %v2181, 0.0
    %v2840 = vmax.f32 %v2183, 0.0
    %v2841 = vmax.f32 %v2294, 0.0
    %v2842 = vmax.f32 %v2296, 0.0
    %v2843 = vmax.f32 %v2407, 0.0
    %v2844 = vmax.f32 %v2409, 0.0
    %v2845 = vmax.f32 %v2520, 0.0
    %v2846 = vmax.f32 %v2522, 0.0
    %v2847 = vmax.f32 %v2633, 0.0
    %v2848 = vmax.f32 %v2635, 0.0
    %v2849 = vmax.f32 %v1848, 0.0
    %v2850 = vmax.f32 %v1850, 0.0
    %v2851 = vmax.f32 %v1961, 0.0
    %v2852 = vmax.f32 %v1963, 0.0
    %v2853 = vmax.f32 %v2074, 0.0
    %v2854 = vmax.f32 %v2076, 0.0
    %v2855 = vmax.f32 %v2187, 0.0
    %v2856 = vmax.f32 %v2189, 0.0
    %v2857 = vmax.f32 %v2300, 0.0
    %v2858 = vmax.f32 %v2302, 0.0
    %v2859 = vmax.f32 %v2413, 0.0
    %v2860 = vmax.f32 %v2415, 0.0
    %v2861 = vmax.f32 %v2526, 0.0
    %v2862 = vmax.f32 %v2528, 0.0
    %v2863 = vmax.f32 %v2639, 0.0
    %v2864 = vmax.f32 %v2641, 0.0
    %v2865 = vmax.f32 %v1852, 0.0
    %v2866 = vmax.f32 %v1854, 0.0
    %v2867 = vmax.f32 %v1965, 0.0
    %v2868 = vmax.f32 %v1967, 0.0
    %v2869 = vmax.f32 %v2078, 0.0
    %v2870 = vmax.f32 %v2080, 0.0
    %v2871 = vmax.f32 %v2191, 0.0
    %v2872 = vmax.f32 %v2193, 0.0
    %v2873 = vmax.f32 %v2304, 0.0
    %v2874 = vmax.f32 %v2306, 0.0
    %v2875 = vmax.f32 %v2417, 0.0
    %v2876 = vmax.f32 %v2419, 0.0
    %v2877 = vmax.f32 %v2530, 0.0
    %v2878 = vmax.f32 %v2532, 0.0
    %v2879 = vmax.f32 %v2643, 0.0
    %v2880 = vmax.f32 %v2645, 0.0
    %v2881 = vmax.f32 %v1858, 0.0
    %v2882 = vmax.f32 %v1860, 0.0
    %v2883 = vmax.f32 %v1971, 0.0
    %v2884 = vmax.f32 %v1973, 0.0
    %v2885 = vmax.f32 %v2084, 0.0
    %v2886 = vmax.f32 %v2086, 0.0
    %v2887 = vmax.f32 %v2197, 0.0
    %v2888 = vmax.f32 %v2199, 0.0
    %v2889 = vmax.f32 %v2310, 0.0
    %v2890 = vmax.f32 %v2312, 0.0
    %v2891 = vmax.f32 %v2423, 0.0
    %v2892 = vmax.f32 %v2425, 0.0
    %v2893 = vmax.f32 %v2536, 0.0
    %v2894 = vmax.f32 %v2538, 0.0
    %v2895 = vmax.f32 %v2649, 0.0
    %v2896 = vmax.f32 %v2651, 0.0
    %v2897 = vmax.f32 %v1862, 0.0
    %v2898 = vmax.f32 %v1864, 0.0
    %v2899 = vmax.f32 %v1975, 0.0
    %v2900 = vmax.f32 %v1977, 0.0
    %v2901 = vmax.f32 %v2088, 0.0
    %v2902 = vmax.f32 %v2090, 0.0
    %v2903 = vmax.f32 %v2201, 0.0
    %v2904 = vmax.f32 %v2203, 0.0
    %v2905 = vmax.f32 %v2314, 0.0
    %v2906 = vmax.f32 %v2316, 0.0
    %v2907 = vmax.f32 %v2427, 0.0
    %v2908 = vmax.f32 %v2429, 0.0
    %v2909 = vmax.f32 %v2540, 0.0
    %v2910 = vmax.f32 %v2542, 0.0
    %v2911 = vmax.f32 %v2653, 0.0
    %v2912 = vmax.f32 %v2655, 0.0
    %v2913 = vpack.c.bf16 %v2673, %v2657
    %v2914 = vpack.c.bf16 %v2674, %v2658
    %v2915 = vpack.c.bf16 %v2675, %v2659
    %v2916 = vpack.c.bf16 %v2676, %v2660
    %v2917 = vpack.c.bf16 %v2677, %v2661
    %v2918 = vpack.c.bf16 %v2678, %v2662
    %v2919 = vpack.c.bf16 %v2679, %v2663
    %v2920 = vpack.c.bf16 %v2680, %v2664
    %v2921 = vpack.c.bf16 %v2681, %v2665
    %v2922 = vpack.c.bf16 %v2682, %v2666
    %v2923 = vpack.c.bf16 %v2683, %v2667
    %v2924 = vpack.c.bf16 %v2684, %v2668
    %v2925 = vpack.c.bf16 %v2685, %v2669
    %v2926 = vpack.c.bf16 %v2686, %v2670
    %v2927 = vpack.c.bf16 %v2687, %v2671
    %v2928 = vpack.c.bf16 %v2688, %v2672
    %v2929 = vpack.c.bf16 %v2705, %v2689
    %v2930 = vpack.c.bf16 %v2706, %v2690
    %v2931 = vpack.c.bf16 %v2707, %v2691
    %v2932 = vpack.c.bf16 %v2708, %v2692
    %v2933 = vpack.c.bf16 %v2709, %v2693
    %v2934 = vpack.c.bf16 %v2710, %v2694
    %v2935 = vpack.c.bf16 %v2711, %v2695
    %v2936 = vpack.c.bf16 %v2712, %v2696
    %v2937 = vpack.c.bf16 %v2713, %v2697
    %v2938 = vpack.c.bf16 %v2714, %v2698
    %v2939 = vpack.c.bf16 %v2715, %v2699
    %v2940 = vpack.c.bf16 %v2716, %v2700
    %v2941 = vpack.c.bf16 %v2717, %v2701
    %v2942 = vpack.c.bf16 %v2718, %v2702
    %v2943 = vpack.c.bf16 %v2719, %v2703
    %v2944 = vpack.c.bf16 %v2720, %v2704
    %v2945 = vpack.c.bf16 %v2737, %v2721
    %v2946 = vpack.c.bf16 %v2738, %v2722
    %v2947 = vpack.c.bf16 %v2739, %v2723
    %v2948 = vpack.c.bf16 %v2740, %v2724
    %v2949 = vpack.c.bf16 %v2741, %v2725
    %v2950 = vpack.c.bf16 %v2742, %v2726
    %v2951 = vpack.c.bf16 %v2743, %v2727
    %v2952 = vpack.c.bf16 %v2744, %v2728
    %v2953 = vpack.c.bf16 %v2745, %v2729
    %v2954 = vpack.c.bf16 %v2746, %v2730
    %v2955 = vpack.c.bf16 %v2747, %v2731
    %v2956 = vpack.c.bf16 %v2748, %v2732
    %v2957 = vpack.c.bf16 %v2749, %v2733
    %v2958 = vpack.c.bf16 %v2750, %v2734
    %v2959 = vpack.c.bf16 %v2751, %v2735
    %v2960 = vpack.c.bf16 %v2752, %v2736
    %v2961 = vpack.c.bf16 %v2769, %v2753
    %v2962 = vpack.c.bf16 %v2770, %v2754
    %v2963 = vpack.c.bf16 %v2771, %v2755
    %v2964 = vpack.c.bf16 %v2772, %v2756
    %v2965 = vpack.c.bf16 %v2773, %v2757
    %v2966 = vpack.c.bf16 %v2774, %v2758
    %v2967 = vpack.c.bf16 %v2775, %v2759
    %v2968 = vpack.c.bf16 %v2776, %v2760
    %v2969 = vpack.c.bf16 %v2777, %v2761
    %v2970 = vpack.c.bf16 %v2778, %v2762
    %v2971 = vpack.c.bf16 %v2779, %v2763
    %v2972 = vpack.c.bf16 %v2780, %v2764
    %v2973 = vpack.c.bf16 %v2781, %v2765
    %v2974 = vpack.c.bf16 %v2782, %v2766
    %v2975 = vpack.c.bf16 %v2783, %v2767
    %v2976 = vpack.c.bf16 %v2784, %v2768
    %v2977 = vpack.c.bf16 %v2801, %v2785
    %v2978 = vpack.c.bf16 %v2802, %v2786
    %v2979 = vpack.c.bf16 %v2803, %v2787
    %v2980 = vpack.c.bf16 %v2804, %v2788
    %v2981 = vpack.c.bf16 %v2805, %v2789
    %v2982 = vpack.c.bf16 %v2806, %v2790
    %v2983 = vpack.c.bf16 %v2807, %v2791
    %v2984 = vpack.c.bf16 %v2808, %v2792
    %v2985 = vpack.c.bf16 %v2809, %v2793
    %v2986 = vpack.c.bf16 %v2810, %v2794
    %v2987 = vpack.c.bf16 %v2811, %v2795
    %v2988 = vpack.c.bf16 %v2812, %v2796
    %v2989 = vpack.c.bf16 %v2813, %v2797
    %v2990 = vpack.c.bf16 %v2814, %v2798
    %v2991 = vpack.c.bf16 %v2815, %v2799
    %v2992 = vpack.c.bf16 %v2816, %v2800
    %v2993 = vpack.c.bf16 %v2833, %v2817
    %v2994 = vpack.c.bf16 %v2834, %v2818
    %v2995 = vpack.c.bf16 %v2835, %v2819
    %v2996 = vpack.c.bf16 %v2836, %v2820
    %v2997 = vpack.c.bf16 %v2837, %v2821
    %v2998 = vpack.c.bf16 %v2838, %v2822
    %v2999 = vpack.c.bf16 %v2839, %v2823
    %v3000 = vpack.c.bf16 %v2840, %v2824
    %v3001 = vpack.c.bf16 %v2841, %v2825
    %v3002 = vpack.c.bf16 %v2842, %v2826
    %v3003 = vpack.c.bf16 %v2843, %v2827
    %v3004 = vpack.c.bf16 %v2844, %v2828
    %v3005 = vpack.c.bf16 %v2845, %v2829
    %v3006 = vpack.c.bf16 %v2846, %v2830
    %v3007 = vpack.c.bf16 %v2847, %v2831
    %v3008 = vpack.c.bf16 %v2848, %v2832
    %v3009 = vpack.c.bf16 %v2865, %v2849
    %v3010 = vpack.c.bf16 %v2866, %v2850
    %v3011 = vpack.c.bf16 %v2867, %v2851
    %v3012 = vpack.c.bf16 %v2868, %v2852
    %v3013 = vpack.c.bf16 %v2869, %v2853
    %v3014 = vpack.c.bf16 %v2870, %v2854
    %v3015 = vpack.c.bf16 %v2871, %v2855
    %v3016 = vpack.c.bf16 %v2872, %v2856
    %v3017 = vpack.c.bf16 %v2873, %v2857
    %v3018 = vpack.c.bf16 %v2874, %v2858
    %v3019 = vpack.c.bf16 %v2875, %v2859
    %v3020 = vpack.c.bf16 %v2876, %v2860
    %v3021 = vpack.c.bf16 %v2877, %v2861
    %v3022 = vpack.c.bf16 %v2878, %v2862
    %v3023 = vpack.c.bf16 %v2879, %v2863
    %v3024 = vpack.c.bf16 %v2880, %v2864
    %v3025 = vpack.c.bf16 %v2897, %v2881
    %v3026 = vpack.c.bf16 %v2898, %v2882
    %v3027 = vpack.c.bf16 %v2899, %v2883
    %v3028 = vpack.c.bf16 %v2900, %v2884
    %v3029 = vpack.c.bf16 %v2901, %v2885
    %v3030 = vpack.c.bf16 %v2902, %v2886
    %v3031 = vpack.c.bf16 %v2903, %v2887
    %v3032 = vpack.c.bf16 %v2904, %v2888
    %v3033 = vpack.c.bf16 %v2905, %v2889
    %v3034 = vpack.c.bf16 %v2906, %v2890
    %v3035 = vpack.c.bf16 %v2907, %v2891
    %v3036 = vpack.c.bf16 %v2908, %v2892
    %v3037 = vpack.c.bf16 %v2909, %v2893
    %v3038 = vpack.c.bf16 %v2910, %v2894
    %v3039 = vpack.c.bf16 %v2911, %v2895
    %v3040 = vpack.c.bf16 %v2912, %v2896
    %v3041 = vld [vmem:[%s4] sm:$0xf]
    %v3042 = vld [vmem:[%s4 + $0x4] sm:$0xf]
    %v3043 = vld [vmem:[%s4 + $0x8] sm:$0xf]
    %v3044 = vld [vmem:[%s4 + $0xc] sm:$0xf]
    %v3045 = vld [vmem:[%s4 + $0x10] sm:$0xf]
    %v3046 = vld [vmem:[%s4 + $0x14] sm:$0xf]
    %v3047 = vld [vmem:[%s4 + $0x18] sm:$0xf]
    %v3048 = vld [vmem:[%s4 + $0x1c] sm:$0xf]
    %v3049 = vld [vmem:[%s4 + $0x20] sm:$0xf]
    %v3050 = vld [vmem:[%s4 + $0x24] sm:$0xf]
    %v3051 = vld [vmem:[%s4 + $0x28] sm:$0xf]
    %v3052 = vld [vmem:[%s4 + $0x2c] sm:$0xf]
    %v3053 = vld [vmem:[%s4 + $0x30] sm:$0xf]
    %v3054 = vld [vmem:[%s4 + $0x34] sm:$0xf]
    %v3055 = vld [vmem:[%s4 + $0x38] sm:$0xf]
    %v3056 = vld [vmem:[%s4 + $0x3c] sm:$0xf]
    %v3057 = vld [vmem:[%s4 + $0x40] sm:$0xf]
    %v3058 = vld [vmem:[%s4 + $0x44] sm:$0xf]
    %v3059 = vld [vmem:[%s4 + $0x48] sm:$0xf]
    %v3060 = vld [vmem:[%s4 + $0x4c] sm:$0xf]
    %v3061 = vld [vmem:[%s4 + $0x50] sm:$0xf]
    %v3062 = vld [vmem:[%s4 + $0x54] sm:$0xf]
    %v3063 = vld [vmem:[%s4 + $0x58] sm:$0xf]
    %v3064 = vld [vmem:[%s4 + $0x5c] sm:$0xf]
    %v3065 = vld [vmem:[%s4 + $0x60] sm:$0xf]
    %v3066 = vld [vmem:[%s4 + $0x64] sm:$0xf]
    %v3067 = vld [vmem:[%s4 + $0x68] sm:$0xf]
    %v3068 = vld [vmem:[%s4 + $0x6c] sm:$0xf]
    %v3069 = vld [vmem:[%s4 + $0x70] sm:$0xf]
    %v3070 = vld [vmem:[%s4 + $0x74] sm:$0xf]
    %v3071 = vld [vmem:[%s4 + $0x78] sm:$0xf]
    %v3072 = vld [vmem:[%s4 + $0x7c] sm:$0xf]
    %v3073 = vld [vmem:[%s5] sm:$0xff]
    %v3074 = vld [vmem:[%s5 + $0x8] sm:$0xff]
    %v3075 = vld [vmem:[%s5 + $0x10] sm:$0xff]
    %v3076 = vld [vmem:[%s5 + $0x18] sm:$0xff]
    %v3077 = vld [vmem:[%s5 + $0x20] sm:$0xff]
    %v3078 = vld [vmem:[%s5 + $0x28] sm:$0xff]
    %v3079 = vld [vmem:[%s5 + $0x30] sm:$0xff]
    %v3080 = vld [vmem:[%s5 + $0x38] sm:$0xff]
    %v3081 = vld [vmem:[%s5 + $0x40] sm:$0xff]
    %v3082 = vld [vmem:[%s5 + $0x48] sm:$0xff]
    %v3083 = vld [vmem:[%s5 + $0x50] sm:$0xff]
    %v3084 = vld [vmem:[%s5 + $0x58] sm:$0xff]
    %v3085 = vld [vmem:[%s5 + $0x60] sm:$0xff]
    %v3086 = vld [vmem:[%s5 + $0x68] sm:$0xff]
    %v3087 = vld [vmem:[%s5 + $0x70] sm:$0xff]
    %v3088 = vld [vmem:[%s5 + $0x78] sm:$0xff]
    %v3089 = vld [vmem:[%s5 + $0x80] sm:$0xff]
    %v3090 = vld [vmem:[%s5 + $0x88] sm:$0xff]
    %v3091 = vld [vmem:[%s5 + $0x90] sm:$0xff]
    %v3092 = vld [vmem:[%s5 + $0x98] sm:$0xff]
    %v3093 = vld [vmem:[%s5 + $0xa0] sm:$0xff]
    %v3094 = vld [vmem:[%s5 + $0xa8] sm:$0xff]
    %v3095 = vld [vmem:[%s5 + $0xb0] sm:$0xff]
    %v3096 = vld [vmem:[%s5 + $0xb8] sm:$0xff]
    %v3097 = vld [vmem:[%s5 + $0xc0] sm:$0xff]
    %v3098 = vld [vmem:[%s5 + $0xc8] sm:$0xff]
    %v3099 = vld [vmem:[%s5 + $0xd0] sm:$0xff]
    %v3100 = vld [vmem:[%s5 + $0xd8] sm:$0xff]
    %v3101 = vld [vmem:[%s5 + $0xe0] sm:$0xff]
    %v3102 = vld [vmem:[%s5 + $0xe8] sm:$0xff]
    %v3103 = vld [vmem:[%s5 + $0xf0] sm:$0xff]
    %v3104 = vld [vmem:[%s5 + $0xf8] sm:$0xff]
    %3106 = vset.pattern.permute.xlu0 3
    %3107 = vperm.xlu0 %3106, %v3073
    %v3108 = vpop.permute.xlu0 %3107
    %3111 = vset.pattern.permute.xlu0 3
    %3112 = vperm.xlu0 %3111, %v3074
    %v3113 = vpop.permute.xlu0 %3112
    %3116 = vset.pattern.permute.xlu0 3
    %3117 = vperm.xlu0 %3116, %v3075
    %v3118 = vpop.permute.xlu0 %3117
    %3121 = vset.pattern.permute.xlu0 3
    %3122 = vperm.xlu0 %3121, %v3076
    %v3123 = vpop.permute.xlu0 %3122
    %3126 = vset.pattern.permute.xlu0 3
    %3127 = vperm.xlu0 %3126, %v3077
    %v3128 = vpop.permute.xlu0 %3127
    %3131 = vset.pattern.permute.xlu0 3
    %3132 = vperm.xlu0 %3131, %v3078
    %v3133 = vpop.permute.xlu0 %3132
    %3136 = vset.pattern.permute.xlu0 3
    %3137 = vperm.xlu0 %3136, %v3079
    %v3138 = vpop.permute.xlu0 %3137
    %3141 = vset.pattern.permute.xlu0 3
    %3142 = vperm.xlu0 %3141, %v3080
    %v3143 = vpop.permute.xlu0 %3142
    %3146 = vset.pattern.permute.xlu0 3
    %3147 = vperm.xlu0 %3146, %v3081
    %v3148 = vpop.permute.xlu0 %3147
    %3151 = vset.pattern.permute.xlu0 3
    %3152 = vperm.xlu0 %3151, %v3082
    %v3153 = vpop.permute.xlu0 %3152
    %3156 = vset.pattern.permute.xlu0 3
    %3157 = vperm.xlu0 %3156, %v3083
    %v3158 = vpop.permute.xlu0 %3157
    %3161 = vset.pattern.permute.xlu0 3
    %3162 = vperm.xlu0 %3161, %v3084
    %v3163 = vpop.permute.xlu0 %3162
    %3166 = vset.pattern.permute.xlu0 3
    %3167 = vperm.xlu0 %3166, %v3085
    %v3168 = vpop.permute.xlu0 %3167
    %3171 = vset.pattern.permute.xlu0 3
    %3172 = vperm.xlu0 %3171, %v3086
    %v3173 = vpop.permute.xlu0 %3172
    %3176 = vset.pattern.permute.xlu0 3
    %3177 = vperm.xlu0 %3176, %v3087
    %v3178 = vpop.permute.xlu0 %3177
    %3181 = vset.pattern.permute.xlu0 3
    %3182 = vperm.xlu0 %3181, %v3088
    %v3183 = vpop.permute.xlu0 %3182
    %3186 = vset.pattern.permute.xlu0 3
    %3187 = vperm.xlu0 %3186, %v3089
    %v3188 = vpop.permute.xlu0 %3187
    %3191 = vset.pattern.permute.xlu0 3
    %3192 = vperm.xlu0 %3191, %v3090
    %v3193 = vpop.permute.xlu0 %3192
    %3196 = vset.pattern.permute.xlu0 3
    %3197 = vperm.xlu0 %3196, %v3091
    %v3198 = vpop.permute.xlu0 %3197
    %3201 = vset.pattern.permute.xlu0 3
    %3202 = vperm.xlu0 %3201, %v3092
    %v3203 = vpop.permute.xlu0 %3202
    %3206 = vset.pattern.permute.xlu0 3
    %3207 = vperm.xlu0 %3206, %v3093
    %v3208 = vpop.permute.xlu0 %3207
    %3211 = vset.pattern.permute.xlu0 3
    %3212 = vperm.xlu0 %3211, %v3094
    %v3213 = vpop.permute.xlu0 %3212
    %3216 = vset.pattern.permute.xlu0 3
    %3217 = vperm.xlu0 %3216, %v3095
    %v3218 = vpop.permute.xlu0 %3217
    %3221 = vset.pattern.permute.xlu0 3
    %3222 = vperm.xlu0 %3221, %v3096
    %v3223 = vpop.permute.xlu0 %3222
    %3226 = vset.pattern.permute.xlu0 3
    %3227 = vperm.xlu0 %3226, %v3097
    %v3228 = vpop.permute.xlu0 %3227
    %3231 = vset.pattern.permute.xlu0 3
    %3232 = vperm.xlu0 %3231, %v3098
    %v3233 = vpop.permute.xlu0 %3232
    %3236 = vset.pattern.permute.xlu0 3
    %3237 = vperm.xlu0 %3236, %v3099
    %v3238 = vpop.permute.xlu0 %3237
    %3241 = vset.pattern.permute.xlu0 3
    %3242 = vperm.xlu0 %3241, %v3100
    %v3243 = vpop.permute.xlu0 %3242
    %3246 = vset.pattern.permute.xlu0 3
    %3247 = vperm.xlu0 %3246, %v3101
    %v3248 = vpop.permute.xlu0 %3247
    %3251 = vset.pattern.permute.xlu0 3
    %3252 = vperm.xlu0 %3251, %v3102
    %v3253 = vpop.permute.xlu0 %3252
    %3256 = vset.pattern.permute.xlu0 3
    %3257 = vperm.xlu0 %3256, %v3103
    %v3258 = vpop.permute.xlu0 %3257
    %3261 = vset.pattern.permute.xlu0 3
    %3262 = vperm.xlu0 %3261, %v3104
    %v3263 = vpop.permute.xlu0 %3262
    %v3297 = vunpack.c.l.b16 %v3041
    %v3298 = vunpack.c.l.b16 %v3042
    %v3299 = vunpack.c.l.b16 %v3043
    %v3300 = vunpack.c.l.b16 %v3044
    %v3301 = vunpack.c.l.b16 %v3045
    %v3302 = vunpack.c.l.b16 %v3046
    %v3303 = vunpack.c.l.b16 %v3047
    %v3304 = vunpack.c.l.b16 %v3048
    %v3305 = vunpack.c.l.b16 %v3049
    %v3306 = vunpack.c.l.b16 %v3050
    %v3307 = vunpack.c.l.b16 %v3051
    %v3308 = vunpack.c.l.b16 %v3052
    %v3309 = vunpack.c.l.b16 %v3053
    %v3310 = vunpack.c.l.b16 %v3054
    %v3311 = vunpack.c.l.b16 %v3055
    %v3312 = vunpack.c.l.b16 %v3056
    %v3313 = vunpack.c.l.b16 %v3057
    %v3314 = vunpack.c.l.b16 %v3058
    %v3315 = vunpack.c.l.b16 %v3059
    %v3316 = vunpack.c.l.b16 %v3060
    %v3317 = vunpack.c.l.b16 %v3061
    %v3318 = vunpack.c.l.b16 %v3062
    %v3319 = vunpack.c.l.b16 %v3063
    %v3320 = vunpack.c.l.b16 %v3064
    %v3321 = vunpack.c.l.b16 %v3065
    %v3322 = vunpack.c.l.b16 %v3066
    %v3323 = vunpack.c.l.b16 %v3067
    %v3324 = vunpack.c.l.b16 %v3068
    %v3325 = vunpack.c.l.b16 %v3069
    %v3326 = vunpack.c.l.b16 %v3070
    %v3327 = vunpack.c.l.b16 %v3071
    %v3328 = vunpack.c.l.b16 %v3072
    %v3329 = vpack.c.b16 %v3298, %v3297
    %v3330 = vpack.c.b16 %v3300, %v3299
    %v3331 = vpack.c.b16 %v3302, %v3301
    %v3332 = vpack.c.b16 %v3304, %v3303
    %v3333 = vpack.c.b16 %v3306, %v3305
    %v3334 = vpack.c.b16 %v3308, %v3307
    %v3335 = vpack.c.b16 %v3310, %v3309
    %v3336 = vpack.c.b16 %v3312, %v3311
    %v3337 = vpack.c.b16 %v3314, %v3313
    %v3338 = vpack.c.b16 %v3316, %v3315
    %v3339 = vpack.c.b16 %v3318, %v3317
    %v3340 = vpack.c.b16 %v3320, %v3319
    %v3341 = vpack.c.b16 %v3322, %v3321
    %v3342 = vpack.c.b16 %v3324, %v3323
    %v3343 = vpack.c.b16 %v3326, %v3325
    %v3344 = vpack.c.b16 %v3328, %v3327
    %3361 = vmatprep.subr.bf16.mxu0 %v2914
    %3362 = vmatpush1.bf16.msra.mxu0 %v2913
    %3363 = vmatprep.subr.bf16.mxu0 %v2930
    %3364 = vmatpush1.bf16.msra.mxu0 %v2929
    %3365 = vmatprep.subr.bf16.mxu0 %v2946
    %3366 = vmatpush1.bf16.msra.mxu0 %v2945
    %3367 = vmatprep.subr.bf16.mxu0 %v2962
    %3368 = vmatpush1.bf16.msra.mxu0 %v2961
    %3369 = vmatprep.subr.bf16.mxu0 %v2978
    %3370 = vmatpush1.bf16.msra.mxu0 %v2977
    %3371 = vmatprep.subr.bf16.mxu0 %v2994
    %3372 = vmatpush1.bf16.msra.mxu0 %v2993
    %3373 = vmatprep.subr.bf16.mxu0 %v3010
    %3374 = vmatpush1.bf16.msra.mxu0 %v3009
    %3375 = vmatprep.subr.bf16.mxu0 %v3026
    %3376 = vmatpush1.bf16.msra.mxu0 %v3025
    %3377 = vmatprep.subr.bf16.mxu0 0
    %3378 = vmatpush1.bf16.msra.mxu0 0
    %3379 = vmatprep.subr.bf16.mxu0 0
    %3380 = vmatpush1.bf16.msra.mxu0 0
    %3381 = vmatprep.subr.bf16.mxu0 0
    %3382 = vmatpush1.bf16.msra.mxu0 0
    %3383 = vmatprep.subr.bf16.mxu0 0
    %3384 = vmatpush1.bf16.msra.mxu0 0
    %3385 = vmatprep.subr.bf16.mxu0 0
    %3386 = vmatpush1.bf16.msra.mxu0 0
    %3387 = vmatprep.subr.bf16.mxu0 0
    %3388 = vmatpush1.bf16.msra.mxu0 0
    %3389 = vmatprep.subr.bf16.mxu0 0
    %3390 = vmatpush1.bf16.msra.mxu0 0
    %3391 = vmatprep.subr.bf16.mxu0 0
    %3392 = vmatpush1.bf16.msra.mxu0 0
    %3393 = vmatprep.mubr.bf16.mxu0 0
    %3394 = vmatmul.mubr.bf16.gmra.mrb[0].mxu0 %v3329
    %v3395 = vpop.f32.mrb[0].mxu0
    %v3396 = vadd.f32 %v3108, %v3395
    %v3397 = vpop.f32.mrb[0].mxu0
    %v3398 = vadd.f32 %v3108, %v3397
    %v3399 = vpop.f32.mrb[0].mxu0
    %v3400 = vadd.f32 %v3113, %v3399
    %v3401 = vpop.f32.mrb[0].mxu0
    %v3402 = vadd.f32 %v3113, %v3401
    %3403 = vmatprep.mubr.bf16.mxu0 0
    %3404 = vmatmul.mubr.bf16.gmra.mrb[0].mxu0 %v3330
    %v3405 = vpop.f32.mrb[0].mxu0
    %v3406 = vadd.f32 %v3118, %v3405
    %v3407 = vpop.f32.mrb[0].mxu0
    %v3408 = vadd.f32 %v3118, %v3407
    %v3409 = vpop.f32.mrb[0].mxu0
    %v3410 = vadd.f32 %v3123, %v3409
    %v3411 = vpop.f32.mrb[0].mxu0
    %v3412 = vadd.f32 %v3123, %v3411
    %3413 = vmatprep.mubr.bf16.mxu0 0
    %3414 = vmatmul.mubr.bf16.gmra.mrb[0].mxu0 %v3331
    %v3415 = vpop.f32.mrb[0].mxu0
    %v3416 = vadd.f32 %v3128, %v3415
    %v3417 = vpop.f32.mrb[0].mxu0
    %v3418 = vadd.f32 %v3128, %v3417
    %v3419 = vpop.f32.mrb[0].mxu0
    %v3420 = vadd.f32 %v3133, %v3419
    %v3421 = vpop.f32.mrb[0].mxu0
    %v3422 = vadd.f32 %v3133, %v3421
    %3423 = vmatprep.mubr.bf16.mxu0 0
    %3424 = vmatmul.mubr.bf16.gmra.mrb[0].mxu0 %v3332
    %v3425 = vpop.f32.mrb[0].mxu0
    %v3426 = vadd.f32 %v3138, %v3425
    %v3427 = vpop.f32.mrb[0].mxu0
    %v3428 = vadd.f32 %v3138, %v3427
    %v3429 = vpop.f32.mrb[0].mxu0
    %v3430 = vadd.f32 %v3143, %v3429
    %v3431 = vpop.f32.mrb[0].mxu0
    %v3432 = vadd.f32 %v3143, %v3431
    %3433 = vmatprep.mubr.bf16.mxu0 0
    %3434 = vmatmul.mubr.bf16.gmra.mrb[0].mxu0 %v3333
    %v3435 = vpop.f32.mrb[0].mxu0
    %v3436 = vadd.f32 %v3148, %v3435
    %v3437 = vpop.f32.mrb[0].mxu0
    %v3438 = vadd.f32 %v3148, %v3437
    %v3439 = vpop.f32.mrb[0].mxu0
    %v3440 = vadd.f32 %v3153, %v3439
    %v3441 = vpop.f32.mrb[0].mxu0
    %v3442 = vadd.f32 %v3153, %v3441
    %3443 = vmatprep.mubr.bf16.mxu0 0
    %3444 = vmatmul.mubr.bf16.gmra.mrb[0].mxu0 %v3334
    %v3445 = vpop.f32.mrb[0].mxu0
    %v3446 = vadd.f32 %v3158, %v3445
    %v3447 = vpop.f32.mrb[0].mxu0
    %v3448 = vadd.f32 %v3158, %v3447
    %v3449 = vpop.f32.mrb[0].mxu0
    %v3450 = vadd.f32 %v3163, %v3449
    %v3451 = vpop.f32.mrb[0].mxu0
    %v3452 = vadd.f32 %v3163, %v3451
    %3453 = vmatprep.mubr.bf16.mxu0 0
    %3454 = vmatmul.mubr.bf16.gmra.mrb[0].mxu0 %v3335
    %v3455 = vpop.f32.mrb[0].mxu0
    %v3456 = vadd.f32 %v3168, %v3455
    %v3457 = vpop.f32.mrb[0].mxu0
    %v3458 = vadd.f32 %v3168, %v3457
    %v3459 = vpop.f32.mrb[0].mxu0
    %v3460 = vadd.f32 %v3173, %v3459
    %v3461 = vpop.f32.mrb[0].mxu0
    %v3462 = vadd.f32 %v3173, %v3461
    %3463 = vmatprep.mubr.bf16.mxu0 0
    %3464 = vmatmul.mubr.bf16.gmra.mrb[0].mxu0 %v3336
    %v3465 = vpop.f32.mrb[0].mxu0
    %v3466 = vadd.f32 %v3178, %v3465
    %v3467 = vpop.f32.mrb[0].mxu0
    %v3468 = vadd.f32 %v3178, %v3467
    %v3469 = vpop.f32.mrb[0].mxu0
    %v3470 = vadd.f32 %v3183, %v3469
    %v3471 = vpop.f32.mrb[0].mxu0
    %v3472 = vadd.f32 %v3183, %v3471
    %3473 = vmatprep.mubr.bf16.mxu0 0
    %3474 = vmatmul.mubr.bf16.gmra.mrb[0].mxu0 %v3337
    %v3475 = vpop.f32.mrb[0].mxu0
    %v3476 = vadd.f32 %v3188, %v3475
    %v3477 = vpop.f32.mrb[0].mxu0
    %v3478 = vadd.f32 %v3188, %v3477
    %v3479 = vpop.f32.mrb[0].mxu0
    %v3480 = vadd.f32 %v3193, %v3479
    %v3481 = vpop.f32.mrb[0].mxu0
    %v3482 = vadd.f32 %v3193, %v3481
    %3483 = vmatprep.mubr.bf16.mxu0 0
    %3484 = vmatmul.mubr.bf16.gmra.mrb[0].mxu0 %v3338
    %v3485 = vpop.f32.mrb[0].mxu0
    %v3486 = vadd.f32 %v3198, %v3485
    %v3487 = vpop.f32.mrb[0].mxu0
    %v3488 = vadd.f32 %v3198, %v3487
    %v3489 = vpop.f32.mrb[0].mxu0
    %v3490 = vadd.f32 %v3203, %v3489
    %v3491 = vpop.f32.mrb[0].mxu0
    %v3492 = vadd.f32 %v3203, %v3491
    %3493 = vmatprep.mubr.bf16.mxu0 0
    %3494 = vmatmul.mubr.bf16.gmra.mrb[0].mxu0 %v3339
    %v3495 = vpop.f32.mrb[0].mxu0
    %v3496 = vadd.f32 %v3208, %v3495
    %v3497 = vpop.f32.mrb[0].mxu0
    %v3498 = vadd.f32 %v3208, %v3497
    %v3499 = vpop.f32.mrb[0].mxu0
    %v3500 = vadd.f32 %v3213, %v3499
    %v3501 = vpop.f32.mrb[0].mxu0
    %v3502 = vadd.f32 %v3213, %v3501
    %3503 = vmatprep.mubr.bf16.mxu0 0
    %3504 = vmatmul.mubr.bf16.gmra.mrb[0].mxu0 %v3340
    %v3505 = vpop.f32.mrb[0].mxu0
    %v3506 = vadd.f32 %v3218, %v3505
    %v3507 = vpop.f32.mrb[0].mxu0
    %v3508 = vadd.f32 %v3218, %v3507
    %v3509 = vpop.f32.mrb[0].mxu0
    %v3510 = vadd.f32 %v3223, %v3509
    %v3511 = vpop.f32.mrb[0].mxu0
    %v3512 = vadd.f32 %v3223, %v3511
    %3513 = vmatprep.mubr.bf16.mxu0 0
    %3514 = vmatmul.mubr.bf16.gmra.mrb[0].mxu0 %v3341
    %v3515 = vpop.f32.mrb[0].mxu0
    %v3516 = vadd.f32 %v3228, %v3515
    %v3517 = vpop.f32.mrb[0].mxu0
    %v3518 = vadd.f32 %v3228, %v3517
    %v3519 = vpop.f32.mrb[0].mxu0
    %v3520 = vadd.f32 %v3233, %v3519
    %v3521 = vpop.f32.mrb[0].mxu0
    %v3522 = vadd.f32 %v3233, %v3521
    %3523 = vmatprep.mubr.bf16.mxu0 0
    %3524 = vmatmul.mubr.bf16.gmra.mrb[0].mxu0 %v3342
    %v3525 = vpop.f32.mrb[0].mxu0
    %v3526 = vadd.f32 %v3238, %v3525
    %v3527 = vpop.f32.mrb[0].mxu0
    %v3528 = vadd.f32 %v3238, %v3527
    %v3529 = vpop.f32.mrb[0].mxu0
    %v3530 = vadd.f32 %v3243, %v3529
    %v3531 = vpop.f32.mrb[0].mxu0
    %v3532 = vadd.f32 %v3243, %v3531
    %3533 = vmatprep.mubr.bf16.mxu0 0
    %3534 = vmatmul.mubr.bf16.gmra.mrb[0].mxu0 %v3343
    %v3535 = vpop.f32.mrb[0].mxu0
    %v3536 = vadd.f32 %v3248, %v3535
    %v3537 = vpop.f32.mrb[0].mxu0
    %v3538 = vadd.f32 %v3248, %v3537
    %v3539 = vpop.f32.mrb[0].mxu0
    %v3540 = vadd.f32 %v3253, %v3539
    %v3541 = vpop.f32.mrb[0].mxu0
    %v3542 = vadd.f32 %v3253, %v3541
    %3543 = vmatprep.mubr.bf16.mxu0 0
    %3544 = vmatmul.mubr.bf16.gmra.mrb[0].mxu0 %v3344
    %v3545 = vpop.f32.mrb[0].mxu0
    %v3546 = vadd.f32 %v3258, %v3545
    %v3547 = vpop.f32.mrb[0].mxu0
    %v3548 = vadd.f32 %v3258, %v3547
    %v3549 = vpop.f32.mrb[0].mxu0
    %v3550 = vadd.f32 %v3263, %v3549
    %v3551 = vpop.f32.mrb[0].mxu0
    %v3552 = vadd.f32 %v3263, %v3551
    %3553 = vdwg.mxu0
    %3554 = vmatprep.subr.bf16.mxu0 %v2916
    %3555 = vmatpush1.bf16.msra.mxu0 %v2915
    %3556 = vmatprep.subr.bf16.mxu0 %v2932
    %3557 = vmatpush1.bf16.msra.mxu0 %v2931
    %3558 = vmatprep.subr.bf16.mxu0 %v2948
    %3559 = vmatpush1.bf16.msra.mxu0 %v2947
    %3560 = vmatprep.subr.bf16.mxu0 %v2964
    %3561 = vmatpush1.bf16.msra.mxu0 %v2963
    %3562 = vmatprep.subr.bf16.mxu0 %v2980
    %3563 = vmatpush1.bf16.msra.mxu0 %v2979
    %3564 = vmatprep.subr.bf16.mxu0 %v2996
    %3565 = vmatpush1.bf16.msra.mxu0 %v2995
    %3566 = vmatprep.subr.bf16.mxu0 %v3012
    %3567 = vmatpush1.bf16.msra.mxu0 %v3011
    %3568 = vmatprep.subr.bf16.mxu0 %v3028
    %3569 = vmatpush1.bf16.msra.mxu0 %v3027
    %3570 = vmatprep.subr.bf16.mxu0 0
    %3571 = vmatpush1.bf16.msra.mxu0 0
    %3572 = vmatprep.subr.bf16.mxu0 0
    %3573 = vmatpush1.bf16.msra.mxu0 0
    %3574 = vmatprep.subr.bf16.mxu0 0
    %3575 = vmatpush1.bf16.msra.mxu0 0
    %3576 = vmatprep.subr.bf16.mxu0 0
    %3577 = vmatpush1.bf16.msra.mxu0 0
    %3578 = vmatprep.subr.bf16.mxu0 0
    %3579 = vmatpush1.bf16.msra.mxu0 0
    %3580 = vmatprep.subr.bf16.mxu0 0
    %3581 = vmatpush1.bf16.msra.mxu0 0
    %3582 = vmatprep.subr.bf16.mxu0 0
    %3583 = vmatpush1.bf16.msra.mxu0 0
    %3584 = vmatprep.subr.bf16.mxu0 0
    %3585 = vmatpush1.bf16.msra.mxu0 0
    %3586 = vmatprep.mubr.bf16.mxu0 0
    %3587 = vmatmul.mubr.bf16.gmra.mrb[0].mxu0 %v3329
    %v3588 = vpop.f32.mrb[0].mxu0
    %v3589 = vadd.f32 %v3108, %v3588
    %v3590 = vpop.f32.mrb[0].mxu0
    %v3591 = vadd.f32 %v3108, %v3590
    %v3592 = vpop.f32.mrb[0].mxu0
    %v3593 = vadd.f32 %v3113, %v3592
    %v3594 = vpop.f32.mrb[0].mxu0
    %v3595 = vadd.f32 %v3113, %v3594
    %3596 = vmatprep.mubr.bf16.mxu0 0
    %3597 = vmatmul.mubr.bf16.gmra.mrb[0].mxu0 %v3330
    %v3598 = vpop.f32.mrb[0].mxu0
    %v3599 = vadd.f32 %v3118, %v3598
    %v3600 = vpop.f32.mrb[0].mxu0
    %v3601 = vadd.f32 %v3118, %v3600
    %v3602 = vpop.f32.mrb[0].mxu0
    %v3603 = vadd.f32 %v3123, %v3602
    %v3604 = vpop.f32.mrb[0].mxu0
    %v3605 = vadd.f32 %v3123, %v3604
    %3606 = vmatprep.mubr.bf16.mxu0 0
    %3607 = vmatmul.mubr.bf16.gmra.mrb[0].mxu0 %v3331
    %v3608 = vpop.f32.mrb[0].mxu0
    %v3609 = vadd.f32 %v3128, %v3608
    %v3610 = vpop.f32.mrb[0].mxu0
    %v3611 = vadd.f32 %v3128, %v3610
    %v3612 = vpop.f32.mrb[0].mxu0
    %v3613 = vadd.f32 %v3133, %v3612
    %v3614 = vpop.f32.mrb[0].mxu0
    %v3615 = vadd.f32 %v3133, %v3614
    %3616 = vmatprep.mubr.bf16.mxu0 0
    %3617 = vmatmul.mubr.bf16.gmra.mrb[0].mxu0 %v3332
    %v3618 = vpop.f32.mrb[0].mxu0
    %v3619 = vadd.f32 %v3138, %v3618
    %v3620 = vpop.f32.mrb[0].mxu0
    %v3621 = vadd.f32 %v3138, %v3620
    %v3622 = vpop.f32.mrb[0].mxu0
    %v3623 = vadd.f32 %v3143, %v3622
    %v3624 = vpop.f32.mrb[0].mxu0
    %v3625 = vadd.f32 %v3143, %v3624
    %3626 = vmatprep.mubr.bf16.mxu0 0
    %3627 = vmatmul.mubr.bf16.gmra.mrb[0].mxu0 %v3333
    %v3628 = vpop.f32.mrb[0].mxu0
    %v3629 = vadd.f32 %v3148, %v3628
    %v3630 = vpop.f32.mrb[0].mxu0
    %v3631 = vadd.f32 %v3148, %v3630
    %v3632 = vpop.f32.mrb[0].mxu0
    %v3633 = vadd.f32 %v3153, %v3632
    %v3634 = vpop.f32.mrb[0].mxu0
    %v3635 = vadd.f32 %v3153, %v3634
    %3636 = vmatprep.mubr.bf16.mxu0 0
    %3637 = vmatmul.mubr.bf16.gmra.mrb[0].mxu0 %v3334
    %v3638 = vpop.f32.mrb[0].mxu0
    %v3639 = vadd.f32 %v3158, %v3638
    %v3640 = vpop.f32.mrb[0].mxu0
    %v3641 = vadd.f32 %v3158, %v3640
    %v3642 = vpop.f32.mrb[0].mxu0
    %v3643 = vadd.f32 %v3163, %v3642
    %v3644 = vpop.f32.mrb[0].mxu0
    %v3645 = vadd.f32 %v3163, %v3644
    %3646 = vmatprep.mubr.bf16.mxu0 0
    %3647 = vmatmul.mubr.bf16.gmra.mrb[0].mxu0 %v3335
    %v3648 = vpop.f32.mrb[0].mxu0
    %v3649 = vadd.f32 %v3168, %v3648
    %v3650 = vpop.f32.mrb[0].mxu0
    %v3651 = vadd.f32 %v3168, %v3650
    %v3652 = vpop.f32.mrb[0].mxu0
    %v3653 = vadd.f32 %v3173, %v3652
    %v3654 = vpop.f32.mrb[0].mxu0
    %v3655 = vadd.f32 %v3173, %v3654
    %3656 = vmatprep.mubr.bf16.mxu0 0
    %3657 = vmatmul.mubr.bf16.gmra.mrb[0].mxu0 %v3336
    %v3658 = vpop.f32.mrb[0].mxu0
    %v3659 = vadd.f32 %v3178, %v3658
    %v3660 = vpop.f32.mrb[0].mxu0
    %v3661 = vadd.f32 %v3178, %v3660
    %v3662 = vpop.f32.mrb[0].mxu0
    %v3663 = vadd.f32 %v3183, %v3662
    %v3664 = vpop.f32.mrb[0].mxu0
    %v3665 = vadd.f32 %v3183, %v3664
    %3666 = vmatprep.mubr.bf16.mxu0 0
    %3667 = vmatmul.mubr.bf16.gmra.mrb[0].mxu0 %v3337
    %v3668 = vpop.f32.mrb[0].mxu0
    %v3669 = vadd.f32 %v3188, %v3668
    %v3670 = vpop.f32.mrb[0].mxu0
    %v3671 = vadd.f32 %v3188, %v3670
    %v3672 = vpop.f32.mrb[0].mxu0
    %v3673 = vadd.f32 %v3193, %v3672
    %v3674 = vpop.f32.mrb[0].mxu0
    %v3675 = vadd.f32 %v3193, %v3674
    %3676 = vmatprep.mubr.bf16.mxu0 0
    %3677 = vmatmul.mubr.bf16.gmra.mrb[0].mxu0 %v3338
    %v3678 = vpop.f32.mrb[0].mxu0
    %v3679 = vadd.f32 %v3198, %v3678
    %v3680 = vpop.f32.mrb[0].mxu0
    %v3681 = vadd.f32 %v3198, %v3680
    %v3682 = vpop.f32.mrb[0].mxu0
    %v3683 = vadd.f32 %v3203, %v3682
    %v3684 = vpop.f32.mrb[0].mxu0
    %v3685 = vadd.f32 %v3203, %v3684
    %3686 = vmatprep.mubr.bf16.mxu0 0
    %3687 = vmatmul.mubr.bf16.gmra.mrb[0].mxu0 %v3339
    %v3688 = vpop.f32.mrb[0].mxu0
    %v3689 = vadd.f32 %v3208, %v3688
    %v3690 = vpop.f32.mrb[0].mxu0
    %v3691 = vadd.f32 %v3208, %v3690
    %v3692 = vpop.f32.mrb[0].mxu0
    %v3693 = vadd.f32 %v3213, %v3692
    %v3694 = vpop.f32.mrb[0].mxu0
    %v3695 = vadd.f32 %v3213, %v3694
    %3696 = vmatprep.mubr.bf16.mxu0 0
    %3697 = vmatmul.mubr.bf16.gmra.mrb[0].mxu0 %v3340
    %v3698 = vpop.f32.mrb[0].mxu0
    %v3699 = vadd.f32 %v3218, %v3698
    %v3700 = vpop.f32.mrb[0].mxu0
    %v3701 = vadd.f32 %v3218, %v3700
    %v3702 = vpop.f32.mrb[0].mxu0
    %v3703 = vadd.f32 %v3223, %v3702
    %v3704 = vpop.f32.mrb[0].mxu0
    %v3705 = vadd.f32 %v3223, %v3704
    %3706 = vmatprep.mubr.bf16.mxu0 0
    %3707 = vmatmul.mubr.bf16.gmra.mrb[0].mxu0 %v3341
    %v3708 = vpop.f32.mrb[0].mxu0
    %v3709 = vadd.f32 %v3228, %v3708
    %v3710 = vpop.f32.mrb[0].mxu0
    %v3711 = vadd.f32 %v3228, %v3710
    %v3712 = vpop.f32.mrb[0].mxu0
    %v3713 = vadd.f32 %v3233, %v3712
    %v3714 = vpop.f32.mrb[0].mxu0
    %v3715 = vadd.f32 %v3233, %v3714
    %3716 = vmatprep.mubr.bf16.mxu0 0
    %3717 = vmatmul.mubr.bf16.gmra.mrb[0].mxu0 %v3342
    %v3718 = vpop.f32.mrb[0].mxu0
    %v3719 = vadd.f32 %v3238, %v3718
    %v3720 = vpop.f32.mrb[0].mxu0
    %v3721 = vadd.f32 %v3238, %v3720
    %v3722 = vpop.f32.mrb[0].mxu0
    %v3723 = vadd.f32 %v3243, %v3722
    %v3724 = vpop.f32.mrb[0].mxu0
    %v3725 = vadd.f32 %v3243, %v3724
    %3726 = vmatprep.mubr.bf16.mxu0 0
    %3727 = vmatmul.mubr.bf16.gmra.mrb[0].mxu0 %v3343
    %v3728 = vpop.f32.mrb[0].mxu0
    %v3729 = vadd.f32 %v3248, %v3728
    %v3730 = vpop.f32.mrb[0].mxu0
    %v3731 = vadd.f32 %v3248, %v3730
    %v3732 = vpop.f32.mrb[0].mxu0
    %v3733 = vadd.f32 %v3253, %v3732
    %v3734 = vpop.f32.mrb[0].mxu0
    %v3735 = vadd.f32 %v3253, %v3734
    %3736 = vmatprep.mubr.bf16.mxu0 0
    %3737 = vmatmul.mubr.bf16.gmra.mrb[0].mxu0 %v3344
    %v3738 = vpop.f32.mrb[0].mxu0
    %v3739 = vadd.f32 %v3258, %v3738
    %v3740 = vpop.f32.mrb[0].mxu0
    %v3741 = vadd.f32 %v3258, %v3740
    %v3742 = vpop.f32.mrb[0].mxu0
    %v3743 = vadd.f32 %v3263, %v3742
    %v3744 = vpop.f32.mrb[0].mxu0
    %v3745 = vadd.f32 %v3263, %v3744
    %3746 = vdwg.mxu0
    %3747 = vmatprep.subr.bf16.mxu0 %v2918
    %3748 = vmatpush1.bf16.msra.mxu0 %v2917
    %3749 = vmatprep.subr.bf16.mxu0 %v2934
    %3750 = vmatpush1.bf16.msra.mxu0 %v2933
    %3751 = vmatprep.subr.bf16.mxu0 %v2950
    %3752 = vmatpush1.bf16.msra.mxu0 %v2949
    %3753 = vmatprep.subr.bf16.mxu0 %v2966
    %3754 = vmatpush1.bf16.msra.mxu0 %v2965
    %3755 = vmatprep.subr.bf16.mxu0 %v2982
    %3756 = vmatpush1.bf16.msra.mxu0 %v2981
    %3757 = vmatprep.subr.bf16.mxu0 %v2998
    %3758 = vmatpush1.bf16.msra.mxu0 %v2997
    %3759 = vmatprep.subr.bf16.mxu0 %v3014
    %3760 = vmatpush1.bf16.msra.mxu0 %v3013
    %3761 = vmatprep.subr.bf16.mxu0 %v3030
    %3762 = vmatpush1.bf16.msra.mxu0 %v3029
    %3763 = vmatprep.subr.bf16.mxu0 0
    %3764 = vmatpush1.bf16.msra.mxu0 0
    %3765 = vmatprep.subr.bf16.mxu0 0
    %3766 = vmatpush1.bf16.msra.mxu0 0
    %3767 = vmatprep.subr.bf16.mxu0 0
    %3768 = vmatpush1.bf16.msra.mxu0 0
    %3769 = vmatprep.subr.bf16.mxu0 0
    %3770 = vmatpush1.bf16.msra.mxu0 0
    %3771 = vmatprep.subr.bf16.mxu0 0
    %3772 = vmatpush1.bf16.msra.mxu0 0
    %3773 = vmatprep.subr.bf16.mxu0 0
    %3774 = vmatpush1.bf16.msra.mxu0 0
    %3775 = vmatprep.subr.bf16.mxu0 0
    %3776 = vmatpush1.bf16.msra.mxu0 0
    %3777 = vmatprep.subr.bf16.mxu0 0
    %3778 = vmatpush1.bf16.msra.mxu0 0
    %3779 = vmatprep.mubr.bf16.mxu0 0
    %3780 = vmatmul.mubr.bf16.gmra.mrb[0].mxu0 %v3329
    %v3781 = vpop.f32.mrb[0].mxu0
    %v3782 = vadd.f32 %v3108, %v3781
    %v3783 = vpop.f32.mrb[0].mxu0
    %v3784 = vadd.f32 %v3108, %v3783
    %v3785 = vpop.f32.mrb[0].mxu0
    %v3786 = vadd.f32 %v3113, %v3785
    %v3787 = vpop.f32.mrb[0].mxu0
    %v3788 = vadd.f32 %v3113, %v3787
    %3789 = vmatprep.mubr.bf16.mxu0 0
    %3790 = vmatmul.mubr.bf16.gmra.mrb[0].mxu0 %v3330
    %v3791 = vpop.f32.mrb[0].mxu0
    %v3792 = vadd.f32 %v3118, %v3791
    %v3793 = vpop.f32.mrb[0].mxu0
    %v3794 = vadd.f32 %v3118, %v3793
    %v3795 = vpop.f32.mrb[0].mxu0
    %v3796 = vadd.f32 %v3123, %v3795
    %v3797 = vpop.f32.mrb[0].mxu0
    %v3798 = vadd.f32 %v3123, %v3797
    %3799 = vmatprep.mubr.bf16.mxu0 0
    %3800 = vmatmul.mubr.bf16.gmra.mrb[0].mxu0 %v3331
    %v3801 = vpop.f32.mrb[0].mxu0
    %v3802 = vadd.f32 %v3128, %v3801
    %v3803 = vpop.f32.mrb[0].mxu0
    %v3804 = vadd.f32 %v3128, %v3803
    %v3805 = vpop.f32.mrb[0].mxu0
    %v3806 = vadd.f32 %v3133, %v3805
    %v3807 = vpop.f32.mrb[0].mxu0
    %v3808 = vadd.f32 %v3133, %v3807
    %3809 = vmatprep.mubr.bf16.mxu0 0
    %3810 = vmatmul.mubr.bf16.gmra.mrb[0].mxu0 %v3332
    %v3811 = vpop.f32.mrb[0].mxu0
    %v3812 = vadd.f32 %v3138, %v3811
    %v3813 = vpop.f32.mrb[0].mxu0
    %v3814 = vadd.f32 %v3138, %v3813
    %v3815 = vpop.f32.mrb[0].mxu0
    %v3816 = vadd.f32 %v3143, %v3815
    %v3817 = vpop.f32.mrb[0].mxu0
    %v3818 = vadd.f32 %v3143, %v3817
    %3819 = vmatprep.mubr.bf16.mxu0 0
    %3820 = vmatmul.mubr.bf16.gmra.mrb[0].mxu0 %v3333
    %v3821 = vpop.f32.mrb[0].mxu0
    %v3822 = vadd.f32 %v3148, %v3821
    %v3823 = vpop.f32.mrb[0].mxu0
    %v3824 = vadd.f32 %v3148, %v3823
    %v3825 = vpop.f32.mrb[0].mxu0
    %v3826 = vadd.f32 %v3153, %v3825
    %v3827 = vpop.f32.mrb[0].mxu0
    %v3828 = vadd.f32 %v3153, %v3827
    %3829 = vmatprep.mubr.bf16.mxu0 0
    %3830 = vmatmul.mubr.bf16.gmra.mrb[0].mxu0 %v3334
    %v3831 = vpop.f32.mrb[0].mxu0
    %v3832 = vadd.f32 %v3158, %v3831
    %v3833 = vpop.f32.mrb[0].mxu0
    %v3834 = vadd.f32 %v3158, %v3833
    %v3835 = vpop.f32.mrb[0].mxu0
    %v3836 = vadd.f32 %v3163, %v3835
    %v3837 = vpop.f32.mrb[0].mxu0
    %v3838 = vadd.f32 %v3163, %v3837
    %3839 = vmatprep.mubr.bf16.mxu0 0
    %3840 = vmatmul.mubr.bf16.gmra.mrb[0].mxu0 %v3335
    %v3841 = vpop.f32.mrb[0].mxu0
    %v3842 = vadd.f32 %v3168, %v3841
    %v3843 = vpop.f32.mrb[0].mxu0
    %v3844 = vadd.f32 %v3168, %v3843
    %v3845 = vpop.f32.mrb[0].mxu0
    %v3846 = vadd.f32 %v3173, %v3845
    %v3847 = vpop.f32.mrb[0].mxu0
    %v3848 = vadd.f32 %v3173, %v3847
    %3849 = vmatprep.mubr.bf16.mxu0 0
    %3850 = vmatmul.mubr.bf16.gmra.mrb[0].mxu0 %v3336
    %v3851 = vpop.f32.mrb[0].mxu0
    %v3852 = vadd.f32 %v3178, %v3851
    %v3853 = vpop.f32.mrb[0].mxu0
    %v3854 = vadd.f32 %v3178, %v3853
    %v3855 = vpop.f32.mrb[0].mxu0
    %v3856 = vadd.f32 %v3183, %v3855
    %v3857 = vpop.f32.mrb[0].mxu0
    %v3858 = vadd.f32 %v3183, %v3857
    %3859 = vmatprep.mubr.bf16.mxu0 0
    %3860 = vmatmul.mubr.bf16.gmra.mrb[0].mxu0 %v3337
    %v3861 = vpop.f32.mrb[0].mxu0
    %v3862 = vadd.f32 %v3188, %v3861
    %v3863 = vpop.f32.mrb[0].mxu0
    %v3864 = vadd.f32 %v3188, %v3863
    %v3865 = vpop.f32.mrb[0].mxu0
    %v3866 = vadd.f32 %v3193, %v3865
    %v3867 = vpop.f32.mrb[0].mxu0
    %v3868 = vadd.f32 %v3193, %v3867
    %3869 = vmatprep.mubr.bf16.mxu0 0
    %3870 = vmatmul.mubr.bf16.gmra.mrb[0].mxu0 %v3338
    %v3871 = vpop.f32.mrb[0].mxu0
    %v3872 = vadd.f32 %v3198, %v3871
    %v3873 = vpop.f32.mrb[0].mxu0
    %v3874 = vadd.f32 %v3198, %v3873
    %v3875 = vpop.f32.mrb[0].mxu0
    %v3876 = vadd.f32 %v3203, %v3875
    %v3877 = vpop.f32.mrb[0].mxu0
    %v3878 = vadd.f32 %v3203, %v3877
    %3879 = vmatprep.mubr.bf16.mxu0 0
    %3880 = vmatmul.mubr.bf16.gmra.mrb[0].mxu0 %v3339
    %v3881 = vpop.f32.mrb[0].mxu0
    %v3882 = vadd.f32 %v3208, %v3881
    %v3883 = vpop.f32.mrb[0].mxu0
    %v3884 = vadd.f32 %v3208, %v3883
    %v3885 = vpop.f32.mrb[0].mxu0
    %v3886 = vadd.f32 %v3213, %v3885
    %v3887 = vpop.f32.mrb[0].mxu0
    %v3888 = vadd.f32 %v3213, %v3887
    %3889 = vmatprep.mubr.bf16.mxu0 0
    %3890 = vmatmul.mubr.bf16.gmra.mrb[0].mxu0 %v3340
    %v3891 = vpop.f32.mrb[0].mxu0
    %v3892 = vadd.f32 %v3218, %v3891
    %v3893 = vpop.f32.mrb[0].mxu0
    %v3894 = vadd.f32 %v3218, %v3893
    %v3895 = vpop.f32.mrb[0].mxu0
    %v3896 = vadd.f32 %v3223, %v3895
    %v3897 = vpop.f32.mrb[0].mxu0
    %v3898 = vadd.f32 %v3223, %v3897
    %3899 = vmatprep.mubr.bf16.mxu0 0
    %3900 = vmatmul.mubr.bf16.gmra.mrb[0].mxu0 %v3341
    %v3901 = vpop.f32.mrb[0].mxu0
    %v3902 = vadd.f32 %v3228, %v3901
    %v3903 = vpop.f32.mrb[0].mxu0
    %v3904 = vadd.f32 %v3228, %v3903
    %v3905 = vpop.f32.mrb[0].mxu0
    %v3906 = vadd.f32 %v3233, %v3905
    %v3907 = vpop.f32.mrb[0].mxu0
    %v3908 = vadd.f32 %v3233, %v3907
    %3909 = vmatprep.mubr.bf16.mxu0 0
    %3910 = vmatmul.mubr.bf16.gmra.mrb[0].mxu0 %v3342
    %v3911 = vpop.f32.mrb[0].mxu0
    %v3912 = vadd.f32 %v3238, %v3911
    %v3913 = vpop.f32.mrb[0].mxu0
    %v3914 = vadd.f32 %v3238, %v3913
    %v3915 = vpop.f32.mrb[0].mxu0
    %v3916 = vadd.f32 %v3243, %v3915
    %v3917 = vpop.f32.mrb[0].mxu0
    %v3918 = vadd.f32 %v3243, %v3917
    %3919 = vmatprep.mubr.bf16.mxu0 0
    %3920 = vmatmul.mubr.bf16.gmra.mrb[0].mxu0 %v3343
    %v3921 = vpop.f32.mrb[0].mxu0
    %v3922 = vadd.f32 %v3248, %v3921
    %v3923 = vpop.f32.mrb[0].mxu0
    %v3924 = vadd.f32 %v3248, %v3923
    %v3925 = vpop.f32.mrb[0].mxu0
    %v3926 = vadd.f32 %v3253, %v3925
    %v3927 = vpop.f32.mrb[0].mxu0
    %v3928 = vadd.f32 %v3253, %v3927
    %3929 = vmatprep.mubr.bf16.mxu0 0
    %3930 = vmatmul.mubr.bf16.gmra.mrb[0].mxu0 %v3344
    %v3931 = vpop.f32.mrb[0].mxu0
    %v3932 = vadd.f32 %v3258, %v3931
    %v3933 = vpop.f32.mrb[0].mxu0
    %v3934 = vadd.f32 %v3258, %v3933
    %v3935 = vpop.f32.mrb[0].mxu0
    %v3936 = vadd.f32 %v3263, %v3935
    %v3937 = vpop.f32.mrb[0].mxu0
    %v3938 = vadd.f32 %v3263, %v3937
    %3939 = vdwg.mxu0
    %3940 = vmatprep.subr.bf16.mxu0 %v2920
    %3941 = vmatpush1.bf16.msra.mxu0 %v2919
    %3942 = vmatprep.subr.bf16.mxu0 %v2936
    %3943 = vmatpush1.bf16.msra.mxu0 %v2935
    %3944 = vmatprep.subr.bf16.mxu0 %v2952
    %3945 = vmatpush1.bf16.msra.mxu0 %v2951
    %3946 = vmatprep.subr.bf16.mxu0 %v2968
    %3947 = vmatpush1.bf16.msra.mxu0 %v2967
    %3948 = vmatprep.subr.bf16.mxu0 %v2984
    %3949 = vmatpush1.bf16.msra.mxu0 %v2983
    %3950 = vmatprep.subr.bf16.mxu0 %v3000
    %3951 = vmatpush1.bf16.msra.mxu0 %v2999
    %3952 = vmatprep.subr.bf16.mxu0 %v3016
    %3953 = vmatpush1.bf16.msra.mxu0 %v3015
    %3954 = vmatprep.subr.bf16.mxu0 %v3032
    %3955 = vmatpush1.bf16.msra.mxu0 %v3031
    %3956 = vmatprep.subr.bf16.mxu0 0
    %3957 = vmatpush1.bf16.msra.mxu0 0
    %3958 = vmatprep.subr.bf16.mxu0 0
    %3959 = vmatpush1.bf16.msra.mxu0 0
    %3960 = vmatprep.subr.bf16.mxu0 0
    %3961 = vmatpush1.bf16.msra.mxu0 0
    %3962 = vmatprep.subr.bf16.mxu0 0
    %3963 = vmatpush1.bf16.msra.mxu0 0
    %3964 = vmatprep.subr.bf16.mxu0 0
    %3965 = vmatpush1.bf16.msra.mxu0 0
    %3966 = vmatprep.subr.bf16.mxu0 0
    %3967 = vmatpush1.bf16.msra.mxu0 0
    %3968 = vmatprep.subr.bf16.mxu0 0
    %3969 = vmatpush1.bf16.msra.mxu0 0
    %3970 = vmatprep.subr.bf16.mxu0 0
    %3971 = vmatpush1.bf16.msra.mxu0 0
    %3972 = vmatprep.mubr.bf16.mxu0 0
    %3973 = vmatmul.mubr.bf16.gmra.mrb[0].mxu0 %v3329
    %v3974 = vpop.f32.mrb[0].mxu0
    %v3975 = vadd.f32 %v3108, %v3974
    %v3976 = vpop.f32.mrb[0].mxu0
    %v3977 = vadd.f32 %v3108, %v3976
    %v3978 = vpop.f32.mrb[0].mxu0
    %v3979 = vadd.f32 %v3113, %v3978
    %v3980 = vpop.f32.mrb[0].mxu0
    %v3981 = vadd.f32 %v3113, %v3980
    %3982 = vmatprep.mubr.bf16.mxu0 0
    %3983 = vmatmul.mubr.bf16.gmra.mrb[0].mxu0 %v3330
    %v3984 = vpop.f32.mrb[0].mxu0
    %v3985 = vadd.f32 %v3118, %v3984
    %v3986 = vpop.f32.mrb[0].mxu0
    %v3987 = vadd.f32 %v3118, %v3986
    %v3988 = vpop.f32.mrb[0].mxu0
    %v3989 = vadd.f32 %v3123, %v3988
    %v3990 = vpop.f32.mrb[0].mxu0
    %v3991 = vadd.f32 %v3123, %v3990
    %3992 = vmatprep.mubr.bf16.mxu0 0
    %3993 = vmatmul.mubr.bf16.gmra.mrb[0].mxu0 %v3331
    %v3994 = vpop.f32.mrb[0].mxu0
    %v3995 = vadd.f32 %v3128, %v3994
    %v3996 = vpop.f32.mrb[0].mxu0
    %v3997 = vadd.f32 %v3128, %v3996
    %v3998 = vpop.f32.mrb[0].mxu0
    %v3999 = vadd.f32 %v3133, %v3998
    %v4000 = vpop.f32.mrb[0].mxu0
    %v4001 = vadd.f32 %v3133, %v4000
    %4002 = vmatprep.mubr.bf16.mxu0 0
    %4003 = vmatmul.mubr.bf16.gmra.mrb[0].mxu0 %v3332
    %v4004 = vpop.f32.mrb[0].mxu0
    %v4005 = vadd.f32 %v3138, %v4004
    %v4006 = vpop.f32.mrb[0].mxu0
    %v4007 = vadd.f32 %v3138, %v4006
    %v4008 = vpop.f32.mrb[0].mxu0
    %v4009 = vadd.f32 %v3143, %v4008
    %v4010 = vpop.f32.mrb[0].mxu0
    %v4011 = vadd.f32 %v3143, %v4010
    %4012 = vmatprep.mubr.bf16.mxu0 0
    %4013 = vmatmul.mubr.bf16.gmra.mrb[0].mxu0 %v3333
    %v4014 = vpop.f32.mrb[0].mxu0
    %v4015 = vadd.f32 %v3148, %v4014
    %v4016 = vpop.f32.mrb[0].mxu0
    %v4017 = vadd.f32 %v3148, %v4016
    %v4018 = vpop.f32.mrb[0].mxu0
    %v4019 = vadd.f32 %v3153, %v4018
    %v4020 = vpop.f32.mrb[0].mxu0
    %v4021 = vadd.f32 %v3153, %v4020
    %4022 = vmatprep.mubr.bf16.mxu0 0
    %4023 = vmatmul.mubr.bf16.gmra.mrb[0].mxu0 %v3334
    %v4024 = vpop.f32.mrb[0].mxu0
    %v4025 = vadd.f32 %v3158, %v4024
    %v4026 = vpop.f32.mrb[0].mxu0
    %v4027 = vadd.f32 %v3158, %v4026
    %v4028 = vpop.f32.mrb[0].mxu0
    %v4029 = vadd.f32 %v3163, %v4028
    %v4030 = vpop.f32.mrb[0].mxu0
    %v4031 = vadd.f32 %v3163, %v4030
    %4032 = vmatprep.mubr.bf16.mxu0 0
    %4033 = vmatmul.mubr.bf16.gmra.mrb[0].mxu0 %v3335
    %v4034 = vpop.f32.mrb[0].mxu0
    %v4035 = vadd.f32 %v3168, %v4034
    %v4036 = vpop.f32.mrb[0].mxu0
    %v4037 = vadd.f32 %v3168, %v4036
    %v4038 = vpop.f32.mrb[0].mxu0
    %v4039 = vadd.f32 %v3173, %v4038
    %v4040 = vpop.f32.mrb[0].mxu0
    %v4041 = vadd.f32 %v3173, %v4040
    %4042 = vmatprep.mubr.bf16.mxu0 0
    %4043 = vmatmul.mubr.bf16.gmra.mrb[0].mxu0 %v3336
    %v4044 = vpop.f32.mrb[0].mxu0
    %v4045 = vadd.f32 %v3178, %v4044
    %v4046 = vpop.f32.mrb[0].mxu0
    %v4047 = vadd.f32 %v3178, %v4046
    %v4048 = vpop.f32.mrb[0].mxu0
    %v4049 = vadd.f32 %v3183, %v4048
    %v4050 = vpop.f32.mrb[0].mxu0
    %v4051 = vadd.f32 %v3183, %v4050
    %4052 = vmatprep.mubr.bf16.mxu0 0
    %4053 = vmatmul.mubr.bf16.gmra.mrb[0].mxu0 %v3337
    %v4054 = vpop.f32.mrb[0].mxu0
    %v4055 = vadd.f32 %v3188, %v4054
    %v4056 = vpop.f32.mrb[0].mxu0
    %v4057 = vadd.f32 %v3188, %v4056
    %v4058 = vpop.f32.mrb[0].mxu0
    %v4059 = vadd.f32 %v3193, %v4058
    %v4060 = vpop.f32.mrb[0].mxu0
    %v4061 = vadd.f32 %v3193, %v4060
    %4062 = vmatprep.mubr.bf16.mxu0 0
    %4063 = vmatmul.mubr.bf16.gmra.mrb[0].mxu0 %v3338
    %v4064 = vpop.f32.mrb[0].mxu0
    %v4065 = vadd.f32 %v3198, %v4064
    %v4066 = vpop.f32.mrb[0].mxu0
    %v4067 = vadd.f32 %v3198, %v4066
    %v4068 = vpop.f32.mrb[0].mxu0
    %v4069 = vadd.f32 %v3203, %v4068
    %v4070 = vpop.f32.mrb[0].mxu0
    %v4071 = vadd.f32 %v3203, %v4070
    %4072 = vmatprep.mubr.bf16.mxu0 0
    %4073 = vmatmul.mubr.bf16.gmra.mrb[0].mxu0 %v3339
    %v4074 = vpop.f32.mrb[0].mxu0
    %v4075 = vadd.f32 %v3208, %v4074
    %v4076 = vpop.f32.mrb[0].mxu0
    %v4077 = vadd.f32 %v3208, %v4076
    %v4078 = vpop.f32.mrb[0].mxu0
    %v4079 = vadd.f32 %v3213, %v4078
    %v4080 = vpop.f32.mrb[0].mxu0
    %v4081 = vadd.f32 %v3213, %v4080
    %4082 = vmatprep.mubr.bf16.mxu0 0
    %4083 = vmatmul.mubr.bf16.gmra.mrb[0].mxu0 %v3340
    %v4084 = vpop.f32.mrb[0].mxu0
    %v4085 = vadd.f32 %v3218, %v4084
    %v4086 = vpop.f32.mrb[0].mxu0
    %v4087 = vadd.f32 %v3218, %v4086
    %v4088 = vpop.f32.mrb[0].mxu0
    %v4089 = vadd.f32 %v3223, %v4088
    %v4090 = vpop.f32.mrb[0].mxu0
    %v4091 = vadd.f32 %v3223, %v4090
    %4092 = vmatprep.mubr.bf16.mxu0 0
    %4093 = vmatmul.mubr.bf16.gmra.mrb[0].mxu0 %v3341
    %v4094 = vpop.f32.mrb[0].mxu0
    %v4095 = vadd.f32 %v3228, %v4094
    %v4096 = vpop.f32.mrb[0].mxu0
    %v4097 = vadd.f32 %v3228, %v4096
    %v4098 = vpop.f32.mrb[0].mxu0
    %v4099 = vadd.f32 %v3233, %v4098
    %v4100 = vpop.f32.mrb[0].mxu0
    %v4101 = vadd.f32 %v3233, %v4100
    %4102 = vmatprep.mubr.bf16.mxu0 0
    %4103 = vmatmul.mubr.bf16.gmra.mrb[0].mxu0 %v3342
    %v4104 = vpop.f32.mrb[0].mxu0
    %v4105 = vadd.f32 %v3238, %v4104
    %v4106 = vpop.f32.mrb[0].mxu0
    %v4107 = vadd.f32 %v3238, %v4106
    %v4108 = vpop.f32.mrb[0].mxu0
    %v4109 = vadd.f32 %v3243, %v4108
    %v4110 = vpop.f32.mrb[0].mxu0
    %v4111 = vadd.f32 %v3243, %v4110
    %4112 = vmatprep.mubr.bf16.mxu0 0
    %4113 = vmatmul.mubr.bf16.gmra.mrb[0].mxu0 %v3343
    %v4114 = vpop.f32.mrb[0].mxu0
    %v4115 = vadd.f32 %v3248, %v4114
    %v4116 = vpop.f32.mrb[0].mxu0
    %v4117 = vadd.f32 %v3248, %v4116
    %v4118 = vpop.f32.mrb[0].mxu0
    %v4119 = vadd.f32 %v3253, %v4118
    %v4120 = vpop.f32.mrb[0].mxu0
    %v4121 = vadd.f32 %v3253, %v4120
    %4122 = vmatprep.mubr.bf16.mxu0 0
    %4123 = vmatmul.mubr.bf16.gmra.mrb[0].mxu0 %v3344
    %v4124 = vpop.f32.mrb[0].mxu0
    %v4125 = vadd.f32 %v3258, %v4124
    %v4126 = vpop.f32.mrb[0].mxu0
    %v4127 = vadd.f32 %v3258, %v4126
    %v4128 = vpop.f32.mrb[0].mxu0
    %v4129 = vadd.f32 %v3263, %v4128
    %v4130 = vpop.f32.mrb[0].mxu0
    %v4131 = vadd.f32 %v3263, %v4130
    %4132 = vdwg.mxu0
    %4133 = vmatprep.subr.bf16.mxu0 %v2922
    %4134 = vmatpush1.bf16.msra.mxu0 %v2921
    %4135 = vmatprep.subr.bf16.mxu0 %v2938
    %4136 = vmatpush1.bf16.msra.mxu0 %v2937
    %4137 = vmatprep.subr.bf16.mxu0 %v2954
    %4138 = vmatpush1.bf16.msra.mxu0 %v2953
    %4139 = vmatprep.subr.bf16.mxu0 %v2970
    %4140 = vmatpush1.bf16.msra.mxu0 %v2969
    %4141 = vmatprep.subr.bf16.mxu0 %v2986
    %4142 = vmatpush1.bf16.msra.mxu0 %v2985
    %4143 = vmatprep.subr.bf16.mxu0 %v3002
    %4144 = vmatpush1.bf16.msra.mxu0 %v3001
    %4145 = vmatprep.subr.bf16.mxu0 %v3018
    %4146 = vmatpush1.bf16.msra.mxu0 %v3017
    %4147 = vmatprep.subr.bf16.mxu0 %v3034
    %4148 = vmatpush1.bf16.msra.mxu0 %v3033
    %4149 = vmatprep.subr.bf16.mxu0 0
    %4150 = vmatpush1.bf16.msra.mxu0 0
    %4151 = vmatprep.subr.bf16.mxu0 0
    %4152 = vmatpush1.bf16.msra.mxu0 0
    %4153 = vmatprep.subr.bf16.mxu0 0
    %4154 = vmatpush1.bf16.msra.mxu0 0
    %4155 = vmatprep.subr.bf16.mxu0 0
    %4156 = vmatpush1.bf16.msra.mxu0 0
    %4157 = vmatprep.subr.bf16.mxu0 0
    %4158 = vmatpush1.bf16.msra.mxu0 0
    %4159 = vmatprep.subr.bf16.mxu0 0
    %4160 = vmatpush1.bf16.msra.mxu0 0
    %4161 = vmatprep.subr.bf16.mxu0 0
    %4162 = vmatpush1.bf16.msra.mxu0 0
    %4163 = vmatprep.subr.bf16.mxu0 0
    %4164 = vmatpush1.bf16.msra.mxu0 0
    %4165 = vmatprep.mubr.bf16.mxu0 0
    %4166 = vmatmul.mubr.bf16.gmra.mrb[0].mxu0 %v3329
    %v4167 = vpop.f32.mrb[0].mxu0
    %v4168 = vadd.f32 %v3108, %v4167
    %v4169 = vpop.f32.mrb[0].mxu0
    %v4170 = vadd.f32 %v3108, %v4169
    %v4171 = vpop.f32.mrb[0].mxu0
    %v4172 = vadd.f32 %v3113, %v4171
    %v4173 = vpop.f32.mrb[0].mxu0
    %v4174 = vadd.f32 %v3113, %v4173
    %4175 = vmatprep.mubr.bf16.mxu0 0
    %4176 = vmatmul.mubr.bf16.gmra.mrb[0].mxu0 %v3330
    %v4177 = vpop.f32.mrb[0].mxu0
    %v4178 = vadd.f32 %v3118, %v4177
    %v4179 = vpop.f32.mrb[0].mxu0
    %v4180 = vadd.f32 %v3118, %v4179
    %v4181 = vpop.f32.mrb[0].mxu0
    %v4182 = vadd.f32 %v3123, %v4181
    %v4183 = vpop.f32.mrb[0].mxu0
    %v4184 = vadd.f32 %v3123, %v4183
    %4185 = vmatprep.mubr.bf16.mxu0 0
    %4186 = vmatmul.mubr.bf16.gmra.mrb[0].mxu0 %v3331
    %v4187 = vpop.f32.mrb[0].mxu0
    %v4188 = vadd.f32 %v3128, %v4187
    %v4189 = vpop.f32.mrb[0].mxu0
    %v4190 = vadd.f32 %v3128, %v4189
    %v4191 = vpop.f32.mrb[0].mxu0
    %v4192 = vadd.f32 %v3133, %v4191
    %v4193 = vpop.f32.mrb[0].mxu0
    %v4194 = vadd.f32 %v3133, %v4193
    %4195 = vmatprep.mubr.bf16.mxu0 0
    %4196 = vmatmul.mubr.bf16.gmra.mrb[0].mxu0 %v3332
    %v4197 = vpop.f32.mrb[0].mxu0
    %v4198 = vadd.f32 %v3138, %v4197
    %v4199 = vpop.f32.mrb[0].mxu0
    %v4200 = vadd.f32 %v3138, %v4199
    %v4201 = vpop.f32.mrb[0].mxu0
    %v4202 = vadd.f32 %v3143, %v4201
    %v4203 = vpop.f32.mrb[0].mxu0
    %v4204 = vadd.f32 %v3143, %v4203
    %4205 = vmatprep.mubr.bf16.mxu0 0
    %4206 = vmatmul.mubr.bf16.gmra.mrb[0].mxu0 %v3333
    %v4207 = vpop.f32.mrb[0].mxu0
    %v4208 = vadd.f32 %v3148, %v4207
    %v4209 = vpop.f32.mrb[0].mxu0
    %v4210 = vadd.f32 %v3148, %v4209
    %v4211 = vpop.f32.mrb[0].mxu0
    %v4212 = vadd.f32 %v3153, %v4211
    %v4213 = vpop.f32.mrb[0].mxu0
    %v4214 = vadd.f32 %v3153, %v4213
    %4215 = vmatprep.mubr.bf16.mxu0 0
    %4216 = vmatmul.mubr.bf16.gmra.mrb[0].mxu0 %v3334
    %v4217 = vpop.f32.mrb[0].mxu0
    %v4218 = vadd.f32 %v3158, %v4217
    %v4219 = vpop.f32.mrb[0].mxu0
    %v4220 = vadd.f32 %v3158, %v4219
    %v4221 = vpop.f32.mrb[0].mxu0
    %v4222 = vadd.f32 %v3163, %v4221
    %v4223 = vpop.f32.mrb[0].mxu0
    %v4224 = vadd.f32 %v3163, %v4223
    %4225 = vmatprep.mubr.bf16.mxu0 0
    %4226 = vmatmul.mubr.bf16.gmra.mrb[0].mxu0 %v3335
    %v4227 = vpop.f32.mrb[0].mxu0
    %v4228 = vadd.f32 %v3168, %v4227
    %v4229 = vpop.f32.mrb[0].mxu0
    %v4230 = vadd.f32 %v3168, %v4229
    %v4231 = vpop.f32.mrb[0].mxu0
    %v4232 = vadd.f32 %v3173, %v4231
    %v4233 = vpop.f32.mrb[0].mxu0
    %v4234 = vadd.f32 %v3173, %v4233
    %4235 = vmatprep.mubr.bf16.mxu0 0
    %4236 = vmatmul.mubr.bf16.gmra.mrb[0].mxu0 %v3336
    %v4237 = vpop.f32.mrb[0].mxu0
    %v4238 = vadd.f32 %v3178, %v4237
    %v4239 = vpop.f32.mrb[0].mxu0
    %v4240 = vadd.f32 %v3178, %v4239
    %v4241 = vpop.f32.mrb[0].mxu0
    %v4242 = vadd.f32 %v3183, %v4241
    %v4243 = vpop.f32.mrb[0].mxu0
    %v4244 = vadd.f32 %v3183, %v4243
    %4245 = vmatprep.mubr.bf16.mxu0 0
    %4246 = vmatmul.mubr.bf16.gmra.mrb[0].mxu0 %v3337
    %v4247 = vpop.f32.mrb[0].mxu0
    %v4248 = vadd.f32 %v3188, %v4247
    %v4249 = vpop.f32.mrb[0].mxu0
    %v4250 = vadd.f32 %v3188, %v4249
    %v4251 = vpop.f32.mrb[0].mxu0
    %v4252 = vadd.f32 %v3193, %v4251
    %v4253 = vpop.f32.mrb[0].mxu0
    %v4254 = vadd.f32 %v3193, %v4253
    %4255 = vmatprep.mubr.bf16.mxu0 0
    %4256 = vmatmul.mubr.bf16.gmra.mrb[0].mxu0 %v3338
    %v4257 = vpop.f32.mrb[0].mxu0
    %v4258 = vadd.f32 %v3198, %v4257
    %v4259 = vpop.f32.mrb[0].mxu0
    %v4260 = vadd.f32 %v3198, %v4259
    %v4261 = vpop.f32.mrb[0].mxu0
    %v4262 = vadd.f32 %v3203, %v4261
    %v4263 = vpop.f32.mrb[0].mxu0
    %v4264 = vadd.f32 %v3203, %v4263
    %4265 = vmatprep.mubr.bf16.mxu0 0
    %4266 = vmatmul.mubr.bf16.gmra.mrb[0].mxu0 %v3339
    %v4267 = vpop.f32.mrb[0].mxu0
    %v4268 = vadd.f32 %v3208, %v4267
    %v4269 = vpop.f32.mrb[0].mxu0
    %v4270 = vadd.f32 %v3208, %v4269
    %v4271 = vpop.f32.mrb[0].mxu0
    %v4272 = vadd.f32 %v3213, %v4271
    %v4273 = vpop.f32.mrb[0].mxu0
    %v4274 = vadd.f32 %v3213, %v4273
    %4275 = vmatprep.mubr.bf16.mxu0 0
    %4276 = vmatmul.mubr.bf16.gmra.mrb[0].mxu0 %v3340
    %v4277 = vpop.f32.mrb[0].mxu0
    %v4278 = vadd.f32 %v3218, %v4277
    %v4279 = vpop.f32.mrb[0].mxu0
    %v4280 = vadd.f32 %v3218, %v4279
    %v4281 = vpop.f32.mrb[0].mxu0
    %v4282 = vadd.f32 %v3223, %v4281
    %v4283 = vpop.f32.mrb[0].mxu0
    %v4284 = vadd.f32 %v3223, %v4283
    %4285 = vmatprep.mubr.bf16.mxu0 0
    %4286 = vmatmul.mubr.bf16.gmra.mrb[0].mxu0 %v3341
    %v4287 = vpop.f32.mrb[0].mxu0
    %v4288 = vadd.f32 %v3228, %v4287
    %v4289 = vpop.f32.mrb[0].mxu0
    %v4290 = vadd.f32 %v3228, %v4289
    %v4291 = vpop.f32.mrb[0].mxu0
    %v4292 = vadd.f32 %v3233, %v4291
    %v4293 = vpop.f32.mrb[0].mxu0
    %v4294 = vadd.f32 %v3233, %v4293
    %4295 = vmatprep.mubr.bf16.mxu0 0
    %4296 = vmatmul.mubr.bf16.gmra.mrb[0].mxu0 %v3342
    %v4297 = vpop.f32.mrb[0].mxu0
    %v4298 = vadd.f32 %v3238, %v4297
    %v4299 = vpop.f32.mrb[0].mxu0
    %v4300 = vadd.f32 %v3238, %v4299
    %v4301 = vpop.f32.mrb[0].mxu0
    %v4302 = vadd.f32 %v3243, %v4301
    %v4303 = vpop.f32.mrb[0].mxu0
    %v4304 = vadd.f32 %v3243, %v4303
    %4305 = vmatprep.mubr.bf16.mxu0 0
    %4306 = vmatmul.mubr.bf16.gmra.mrb[0].mxu0 %v3343
    %v4307 = vpop.f32.mrb[0].mxu0
    %v4308 = vadd.f32 %v3248, %v4307
    %v4309 = vpop.f32.mrb[0].mxu0
    %v4310 = vadd.f32 %v3248, %v4309
    %v4311 = vpop.f32.mrb[0].mxu0
    %v4312 = vadd.f32 %v3253, %v4311
    %v4313 = vpop.f32.mrb[0].mxu0
    %v4314 = vadd.f32 %v3253, %v4313
    %4315 = vmatprep.mubr.bf16.mxu0 0
    %4316 = vmatmul.mubr.bf16.gmra.mrb[0].mxu0 %v3344
    %v4317 = vpop.f32.mrb[0].mxu0
    %v4318 = vadd.f32 %v3258, %v4317
    %v4319 = vpop.f32.mrb[0].mxu0
    %v4320 = vadd.f32 %v3258, %v4319
    %v4321 = vpop.f32.mrb[0].mxu0
    %v4322 = vadd.f32 %v3263, %v4321
    %v4323 = vpop.f32.mrb[0].mxu0
    %v4324 = vadd.f32 %v3263, %v4323
    %4325 = vdwg.mxu0
    %4326 = vmatprep.subr.bf16.mxu0 %v2924
    %4327 = vmatpush1.bf16.msra.mxu0 %v2923
    %4328 = vmatprep.subr.bf16.mxu0 %v2940
    %4329 = vmatpush1.bf16.msra.mxu0 %v2939
    %4330 = vmatprep.subr.bf16.mxu0 %v2956
    %4331 = vmatpush1.bf16.msra.mxu0 %v2955
    %4332 = vmatprep.subr.bf16.mxu0 %v2972
    %4333 = vmatpush1.bf16.msra.mxu0 %v2971
    %4334 = vmatprep.subr.bf16.mxu0 %v2988
    %4335 = vmatpush1.bf16.msra.mxu0 %v2987
    %4336 = vmatprep.subr.bf16.mxu0 %v3004
    %4337 = vmatpush1.bf16.msra.mxu0 %v3003
    %4338 = vmatprep.subr.bf16.mxu0 %v3020
    %4339 = vmatpush1.bf16.msra.mxu0 %v3019
    %4340 = vmatprep.subr.bf16.mxu0 %v3036
    %4341 = vmatpush1.bf16.msra.mxu0 %v3035
    %4342 = vmatprep.subr.bf16.mxu0 0
    %4343 = vmatpush1.bf16.msra.mxu0 0
    %4344 = vmatprep.subr.bf16.mxu0 0
    %4345 = vmatpush1.bf16.msra.mxu0 0
    %4346 = vmatprep.subr.bf16.mxu0 0
    %4347 = vmatpush1.bf16.msra.mxu0 0
    %4348 = vmatprep.subr.bf16.mxu0 0
    %4349 = vmatpush1.bf16.msra.mxu0 0
    %4350 = vmatprep.subr.bf16.mxu0 0
    %4351 = vmatpush1.bf16.msra.mxu0 0
    %4352 = vmatprep.subr.bf16.mxu0 0
    %4353 = vmatpush1.bf16.msra.mxu0 0
    %4354 = vmatprep.subr.bf16.mxu0 0
    %4355 = vmatpush1.bf16.msra.mxu0 0
    %4356 = vmatprep.subr.bf16.mxu0 0
    %4357 = vmatpush1.bf16.msra.mxu0 0
    %4358 = vmatprep.mubr.bf16.mxu0 0
    %4359 = vmatmul.mubr.bf16.gmra.mrb[0].mxu0 %v3329
    %v4360 = vpop.f32.mrb[0].mxu0
    %v4361 = vadd.f32 %v3108, %v4360
    %v4362 = vpop.f32.mrb[0].mxu0
    %v4363 = vadd.f32 %v3108, %v4362
    %v4364 = vpop.f32.mrb[0].mxu0
    %v4365 = vadd.f32 %v3113, %v4364
    %v4366 = vpop.f32.mrb[0].mxu0
    %v4367 = vadd.f32 %v3113, %v4366
    %4368 = vmatprep.mubr.bf16.mxu0 0
    %4369 = vmatmul.mubr.bf16.gmra.mrb[0].mxu0 %v3330
    %v4370 = vpop.f32.mrb[0].mxu0
    %v4371 = vadd.f32 %v3118, %v4370
    %v4372 = vpop.f32.mrb[0].mxu0
    %v4373 = vadd.f32 %v3118, %v4372
    %v4374 = vpop.f32.mrb[0].mxu0
    %v4375 = vadd.f32 %v3123, %v4374
    %v4376 = vpop.f32.mrb[0].mxu0
    %v4377 = vadd.f32 %v3123, %v4376
    %4378 = vmatprep.mubr.bf16.mxu0 0
    %4379 = vmatmul.mubr.bf16.gmra.mrb[0].mxu0 %v3331
    %v4380 = vpop.f32.mrb[0].mxu0
    %v4381 = vadd.f32 %v3128, %v4380
    %v4382 = vpop.f32.mrb[0].mxu0
    %v4383 = vadd.f32 %v3128, %v4382
    %v4384 = vpop.f32.mrb[0].mxu0
    %v4385 = vadd.f32 %v3133, %v4384
    %v4386 = vpop.f32.mrb[0].mxu0
    %v4387 = vadd.f32 %v3133, %v4386
    %4388 = vmatprep.mubr.bf16.mxu0 0
    %4389 = vmatmul.mubr.bf16.gmra.mrb[0].mxu0 %v3332
    %v4390 = vpop.f32.mrb[0].mxu0
    %v4391 = vadd.f32 %v3138, %v4390
    %v4392 = vpop.f32.mrb[0].mxu0
    %v4393 = vadd.f32 %v3138, %v4392
    %v4394 = vpop.f32.mrb[0].mxu0
    %v4395 = vadd.f32 %v3143, %v4394
    %v4396 = vpop.f32.mrb[0].mxu0
    %v4397 = vadd.f32 %v3143, %v4396
    %4398 = vmatprep.mubr.bf16.mxu0 0
    %4399 = vmatmul.mubr.bf16.gmra.mrb[0].mxu0 %v3333
    %v4400 = vpop.f32.mrb[0].mxu0
    %v4401 = vadd.f32 %v3148, %v4400
    %v4402 = vpop.f32.mrb[0].mxu0
    %v4403 = vadd.f32 %v3148, %v4402
    %v4404 = vpop.f32.mrb[0].mxu0
    %v4405 = vadd.f32 %v3153, %v4404
    %v4406 = vpop.f32.mrb[0].mxu0
    %v4407 = vadd.f32 %v3153, %v4406
    %4408 = vmatprep.mubr.bf16.mxu0 0
    %4409 = vmatmul.mubr.bf16.gmra.mrb[0].mxu0 %v3334
    %v4410 = vpop.f32.mrb[0].mxu0
    %v4411 = vadd.f32 %v3158, %v4410
    %v4412 = vpop.f32.mrb[0].mxu0
    %v4413 = vadd.f32 %v3158, %v4412
    %v4414 = vpop.f32.mrb[0].mxu0
    %v4415 = vadd.f32 %v3163, %v4414
    %v4416 = vpop.f32.mrb[0].mxu0
    %v4417 = vadd.f32 %v3163, %v4416
    %4418 = vmatprep.mubr.bf16.mxu0 0
    %4419 = vmatmul.mubr.bf16.gmra.mrb[0].mxu0 %v3335
    %v4420 = vpop.f32.mrb[0].mxu0
    %v4421 = vadd.f32 %v3168, %v4420
    %v4422 = vpop.f32.mrb[0].mxu0
    %v4423 = vadd.f32 %v3168, %v4422
    %v4424 = vpop.f32.mrb[0].mxu0
    %v4425 = vadd.f32 %v3173, %v4424
    %v4426 = vpop.f32.mrb[0].mxu0
    %v4427 = vadd.f32 %v3173, %v4426
    %4428 = vmatprep.mubr.bf16.mxu0 0
    %4429 = vmatmul.mubr.bf16.gmra.mrb[0].mxu0 %v3336
    %v4430 = vpop.f32.mrb[0].mxu0
    %v4431 = vadd.f32 %v3178, %v4430
    %v4432 = vpop.f32.mrb[0].mxu0
    %v4433 = vadd.f32 %v3178, %v4432
    %v4434 = vpop.f32.mrb[0].mxu0
    %v4435 = vadd.f32 %v3183, %v4434
    %v4436 = vpop.f32.mrb[0].mxu0
    %v4437 = vadd.f32 %v3183, %v4436
    %4438 = vmatprep.mubr.bf16.mxu0 0
    %4439 = vmatmul.mubr.bf16.gmra.mrb[0].mxu0 %v3337
    %v4440 = vpop.f32.mrb[0].mxu0
    %v4441 = vadd.f32 %v3188, %v4440
    %v4442 = vpop.f32.mrb[0].mxu0
    %v4443 = vadd.f32 %v3188, %v4442
    %v4444 = vpop.f32.mrb[0].mxu0
    %v4445 = vadd.f32 %v3193, %v4444
    %v4446 = vpop.f32.mrb[0].mxu0
    %v4447 = vadd.f32 %v3193, %v4446
    %4448 = vmatprep.mubr.bf16.mxu0 0
    %4449 = vmatmul.mubr.bf16.gmra.mrb[0].mxu0 %v3338
    %v4450 = vpop.f32.mrb[0].mxu0
    %v4451 = vadd.f32 %v3198, %v4450
    %v4452 = vpop.f32.mrb[0].mxu0
    %v4453 = vadd.f32 %v3198, %v4452
    %v4454 = vpop.f32.mrb[0].mxu0
    %v4455 = vadd.f32 %v3203, %v4454
    %v4456 = vpop.f32.mrb[0].mxu0
    %v4457 = vadd.f32 %v3203, %v4456
    %4458 = vmatprep.mubr.bf16.mxu0 0
    %4459 = vmatmul.mubr.bf16.gmra.mrb[0].mxu0 %v3339
    %v4460 = vpop.f32.mrb[0].mxu0
    %v4461 = vadd.f32 %v3208, %v4460
    %v4462 = vpop.f32.mrb[0].mxu0
    %v4463 = vadd.f32 %v3208, %v4462
    %v4464 = vpop.f32.mrb[0].mxu0
    %v4465 = vadd.f32 %v3213, %v4464
    %v4466 = vpop.f32.mrb[0].mxu0
    %v4467 = vadd.f32 %v3213, %v4466
    %4468 = vmatprep.mubr.bf16.mxu0 0
    %4469 = vmatmul.mubr.bf16.gmra.mrb[0].mxu0 %v3340
    %v4470 = vpop.f32.mrb[0].mxu0
    %v4471 = vadd.f32 %v3218, %v4470
    %v4472 = vpop.f32.mrb[0].mxu0
    %v4473 = vadd.f32 %v3218, %v4472
    %v4474 = vpop.f32.mrb[0].mxu0
    %v4475 = vadd.f32 %v3223, %v4474
    %v4476 = vpop.f32.mrb[0].mxu0
    %v4477 = vadd.f32 %v3223, %v4476
    %4478 = vmatprep.mubr.bf16.mxu0 0
    %4479 = vmatmul.mubr.bf16.gmra.mrb[0].mxu0 %v3341
    %v4480 = vpop.f32.mrb[0].mxu0
    %v4481 = vadd.f32 %v3228, %v4480
    %v4482 = vpop.f32.mrb[0].mxu0
    %v4483 = vadd.f32 %v3228, %v4482
    %v4484 = vpop.f32.mrb[0].mxu0
    %v4485 = vadd.f32 %v3233, %v4484
    %v4486 = vpop.f32.mrb[0].mxu0
    %v4487 = vadd.f32 %v3233, %v4486
    %4488 = vmatprep.mubr.bf16.mxu0 0
    %4489 = vmatmul.mubr.bf16.gmra.mrb[0].mxu0 %v3342
    %v4490 = vpop.f32.mrb[0].mxu0
    %v4491 = vadd.f32 %v3238, %v4490
    %v4492 = vpop.f32.mrb[0].mxu0
    %v4493 = vadd.f32 %v3238, %v4492
    %v4494 = vpop.f32.mrb[0].mxu0
    %v4495 = vadd.f32 %v3243, %v4494
    %v4496 = vpop.f32.mrb[0].mxu0
    %v4497 = vadd.f32 %v3243, %v4496
    %4498 = vmatprep.mubr.bf16.mxu0 0
    %4499 = vmatmul.mubr.bf16.gmra.mrb[0].mxu0 %v3343
    %v4500 = vpop.f32.mrb[0].mxu0
    %v4501 = vadd.f32 %v3248, %v4500
    %v4502 = vpop.f32.mrb[0].mxu0
    %v4503 = vadd.f32 %v3248, %v4502
    %v4504 = vpop.f32.mrb[0].mxu0
    %v4505 = vadd.f32 %v3253, %v4504
    %v4506 = vpop.f32.mrb[0].mxu0
    %v4507 = vadd.f32 %v3253, %v4506
    %4508 = vmatprep.mubr.bf16.mxu0 0
    %4509 = vmatmul.mubr.bf16.gmra.mrb[0].mxu0 %v3344
    %v4510 = vpop.f32.mrb[0].mxu0
    %v4511 = vadd.f32 %v3258, %v4510
    %v4512 = vpop.f32.mrb[0].mxu0
    %v4513 = vadd.f32 %v3258, %v4512
    %v4514 = vpop.f32.mrb[0].mxu0
    %v4515 = vadd.f32 %v3263, %v4514
    %v4516 = vpop.f32.mrb[0].mxu0
    %v4517 = vadd.f32 %v3263, %v4516
    %4518 = vdwg.mxu0
    %4519 = vmatprep.subr.bf16.mxu0 %v2926
    %4520 = vmatpush1.bf16.msra.mxu0 %v2925
    %4521 = vmatprep.subr.bf16.mxu0 %v2942
    %4522 = vmatpush1.bf16.msra.mxu0 %v2941
    %4523 = vmatprep.subr.bf16.mxu0 %v2958
    %4524 = vmatpush1.bf16.msra.mxu0 %v2957
    %4525 = vmatprep.subr.bf16.mxu0 %v2974
    %4526 = vmatpush1.bf16.msra.mxu0 %v2973
    %4527 = vmatprep.subr.bf16.mxu0 %v2990
    %4528 = vmatpush1.bf16.msra.mxu0 %v2989
    %4529 = vmatprep.subr.bf16.mxu0 %v3006
    %4530 = vmatpush1.bf16.msra.mxu0 %v3005
    %4531 = vmatprep.subr.bf16.mxu0 %v3022
    %4532 = vmatpush1.bf16.msra.mxu0 %v3021
    %4533 = vmatprep.subr.bf16.mxu0 %v3038
    %4534 = vmatpush1.bf16.msra.mxu0 %v3037
    %4535 = vmatprep.subr.bf16.mxu0 0
    %4536 = vmatpush1.bf16.msra.mxu0 0
    %4537 = vmatprep.subr.bf16.mxu0 0
    %4538 = vmatpush1.bf16.msra.mxu0 0
    %4539 = vmatprep.subr.bf16.mxu0 0
    %4540 = vmatpush1.bf16.msra.mxu0 0
    %4541 = vmatprep.subr.bf16.mxu0 0
    %4542 = vmatpush1.bf16.msra.mxu0 0
    %4543 = vmatprep.subr.bf16.mxu0 0
    %4544 = vmatpush1.bf16.msra.mxu0 0
    %4545 = vmatprep.subr.bf16.mxu0 0
    %4546 = vmatpush1.bf16.msra.mxu0 0
    %4547 = vmatprep.subr.bf16.mxu0 0
    %4548 = vmatpush1.bf16.msra.mxu0 0
    %4549 = vmatprep.subr.bf16.mxu0 0
    %4550 = vmatpush1.bf16.msra.mxu0 0
    %4551 = vmatprep.mubr.bf16.mxu0 0
    %4552 = vmatmul.mubr.bf16.gmra.mrb[0].mxu0 %v3329
    %v4553 = vpop.f32.mrb[0].mxu0
    %v4554 = vadd.f32 %v3108, %v4553
    %v4555 = vpop.f32.mrb[0].mxu0
    %v4556 = vadd.f32 %v3108, %v4555
    %v4557 = vpop.f32.mrb[0].mxu0
    %v4558 = vadd.f32 %v3113, %v4557
    %v4559 = vpop.f32.mrb[0].mxu0
    %v4560 = vadd.f32 %v3113, %v4559
    %4561 = vmatprep.mubr.bf16.mxu0 0
    %4562 = vmatmul.mubr.bf16.gmra.mrb[0].mxu0 %v3330
    %v4563 = vpop.f32.mrb[0].mxu0
    %v4564 = vadd.f32 %v3118, %v4563
    %v4565 = vpop.f32.mrb[0].mxu0
    %v4566 = vadd.f32 %v3118, %v4565
    %v4567 = vpop.f32.mrb[0].mxu0
    %v4568 = vadd.f32 %v3123, %v4567
    %v4569 = vpop.f32.mrb[0].mxu0
    %v4570 = vadd.f32 %v3123, %v4569
    %4571 = vmatprep.mubr.bf16.mxu0 0
    %4572 = vmatmul.mubr.bf16.gmra.mrb[0].mxu0 %v3331
    %v4573 = vpop.f32.mrb[0].mxu0
    %v4574 = vadd.f32 %v3128, %v4573
    %v4575 = vpop.f32.mrb[0].mxu0
    %v4576 = vadd.f32 %v3128, %v4575
    %v4577 = vpop.f32.mrb[0].mxu0
    %v4578 = vadd.f32 %v3133, %v4577
    %v4579 = vpop.f32.mrb[0].mxu0
    %v4580 = vadd.f32 %v3133, %v4579
    %4581 = vmatprep.mubr.bf16.mxu0 0
    %4582 = vmatmul.mubr.bf16.gmra.mrb[0].mxu0 %v3332
    %v4583 = vpop.f32.mrb[0].mxu0
    %v4584 = vadd.f32 %v3138, %v4583
    %v4585 = vpop.f32.mrb[0].mxu0
    %v4586 = vadd.f32 %v3138, %v4585
    %v4587 = vpop.f32.mrb[0].mxu0
    %v4588 = vadd.f32 %v3143, %v4587
    %v4589 = vpop.f32.mrb[0].mxu0
    %v4590 = vadd.f32 %v3143, %v4589
    %4591 = vmatprep.mubr.bf16.mxu0 0
    %4592 = vmatmul.mubr.bf16.gmra.mrb[0].mxu0 %v3333
    %v4593 = vpop.f32.mrb[0].mxu0
    %v4594 = vadd.f32 %v3148, %v4593
    %v4595 = vpop.f32.mrb[0].mxu0
    %v4596 = vadd.f32 %v3148, %v4595
    %v4597 = vpop.f32.mrb[0].mxu0
    %v4598 = vadd.f32 %v3153, %v4597
    %v4599 = vpop.f32.mrb[0].mxu0
    %v4600 = vadd.f32 %v3153, %v4599
    %4601 = vmatprep.mubr.bf16.mxu0 0
    %4602 = vmatmul.mubr.bf16.gmra.mrb[0].mxu0 %v3334
    %v4603 = vpop.f32.mrb[0].mxu0
    %v4604 = vadd.f32 %v3158, %v4603
    %v4605 = vpop.f32.mrb[0].mxu0
    %v4606 = vadd.f32 %v3158, %v4605
    %v4607 = vpop.f32.mrb[0].mxu0
    %v4608 = vadd.f32 %v3163, %v4607
    %v4609 = vpop.f32.mrb[0].mxu0
    %v4610 = vadd.f32 %v3163, %v4609
    %4611 = vmatprep.mubr.bf16.mxu0 0
    %4612 = vmatmul.mubr.bf16.gmra.mrb[0].mxu0 %v3335
    %v4613 = vpop.f32.mrb[0].mxu0
    %v4614 = vadd.f32 %v3168, %v4613
    %v4615 = vpop.f32.mrb[0].mxu0
    %v4616 = vadd.f32 %v3168, %v4615
    %v4617 = vpop.f32.mrb[0].mxu0
    %v4618 = vadd.f32 %v3173, %v4617
    %v4619 = vpop.f32.mrb[0].mxu0
    %v4620 = vadd.f32 %v3173, %v4619
    %4621 = vmatprep.mubr.bf16.mxu0 0
    %4622 = vmatmul.mubr.bf16.gmra.mrb[0].mxu0 %v3336
    %v4623 = vpop.f32.mrb[0].mxu0
    %v4624 = vadd.f32 %v3178, %v4623
    %v4625 = vpop.f32.mrb[0].mxu0
    %v4626 = vadd.f32 %v3178, %v4625
    %v4627 = vpop.f32.mrb[0].mxu0
    %v4628 = vadd.f32 %v3183, %v4627
    %v4629 = vpop.f32.mrb[0].mxu0
    %v4630 = vadd.f32 %v3183, %v4629
    %4631 = vmatprep.mubr.bf16.mxu0 0
    %4632 = vmatmul.mubr.bf16.gmra.mrb[0].mxu0 %v3337
    %v4633 = vpop.f32.mrb[0].mxu0
    %v4634 = vadd.f32 %v3188, %v4633
    %v4635 = vpop.f32.mrb[0].mxu0
    %v4636 = vadd.f32 %v3188, %v4635
    %v4637 = vpop.f32.mrb[0].mxu0
    %v4638 = vadd.f32 %v3193, %v4637
    %v4639 = vpop.f32.mrb[0].mxu0
    %v4640 = vadd.f32 %v3193, %v4639
    %4641 = vmatprep.mubr.bf16.mxu0 0
    %4642 = vmatmul.mubr.bf16.gmra.mrb[0].mxu0 %v3338
    %v4643 = vpop.f32.mrb[0].mxu0
    %v4644 = vadd.f32 %v3198, %v4643
    %v4645 = vpop.f32.mrb[0].mxu0
    %v4646 = vadd.f32 %v3198, %v4645
    %v4647 = vpop.f32.mrb[0].mxu0
    %v4648 = vadd.f32 %v3203, %v4647
    %v4649 = vpop.f32.mrb[0].mxu0
    %v4650 = vadd.f32 %v3203, %v4649
    %4651 = vmatprep.mubr.bf16.mxu0 0
    %4652 = vmatmul.mubr.bf16.gmra.mrb[0].mxu0 %v3339
    %v4653 = vpop.f32.mrb[0].mxu0
    %v4654 = vadd.f32 %v3208, %v4653
    %v4655 = vpop.f32.mrb[0].mxu0
    %v4656 = vadd.f32 %v3208, %v4655
    %v4657 = vpop.f32.mrb[0].mxu0
    %v4658 = vadd.f32 %v3213, %v4657
    %v4659 = vpop.f32.mrb[0].mxu0
    %v4660 = vadd.f32 %v3213, %v4659
    %4661 = vmatprep.mubr.bf16.mxu0 0
    %4662 = vmatmul.mubr.bf16.gmra.mrb[0].mxu0 %v3340
    %v4663 = vpop.f32.mrb[0].mxu0
    %v4664 = vadd.f32 %v3218, %v4663
    %v4665 = vpop.f32.mrb[0].mxu0
    %v4666 = vadd.f32 %v3218, %v4665
    %v4667 = vpop.f32.mrb[0].mxu0
    %v4668 = vadd.f32 %v3223, %v4667
    %v4669 = vpop.f32.mrb[0].mxu0
    %v4670 = vadd.f32 %v3223, %v4669
    %4671 = vmatprep.mubr.bf16.mxu0 0
    %4672 = vmatmul.mubr.bf16.gmra.mrb[0].mxu0 %v3341
    %v4673 = vpop.f32.mrb[0].mxu0
    %v4674 = vadd.f32 %v3228, %v4673
    %v4675 = vpop.f32.mrb[0].mxu0
    %v4676 = vadd.f32 %v3228, %v4675
    %v4677 = vpop.f32.mrb[0].mxu0
    %v4678 = vadd.f32 %v3233, %v4677
    %v4679 = vpop.f32.mrb[0].mxu0
    %v4680 = vadd.f32 %v3233, %v4679
    %4681 = vmatprep.mubr.bf16.mxu0 0
    %4682 = vmatmul.mubr.bf16.gmra.mrb[0].mxu0 %v3342
    %v4683 = vpop.f32.mrb[0].mxu0
    %v4684 = vadd.f32 %v3238, %v4683
    %v4685 = vpop.f32.mrb[0].mxu0
    %v4686 = vadd.f32 %v3238, %v4685
    %v4687 = vpop.f32.mrb[0].mxu0
    %v4688 = vadd.f32 %v3243, %v4687
    %v4689 = vpop.f32.mrb[0].mxu0
    %v4690 = vadd.f32 %v3243, %v4689
    %4691 = vmatprep.mubr.bf16.mxu0 0
    %4692 = vmatmul.mubr.bf16.gmra.mrb[0].mxu0 %v3343
    %v4693 = vpop.f32.mrb[0].mxu0
    %v4694 = vadd.f32 %v3248, %v4693
    %v4695 = vpop.f32.mrb[0].mxu0
    %v4696 = vadd.f32 %v3248, %v4695
    %v4697 = vpop.f32.mrb[0].mxu0
    %v4698 = vadd.f32 %v3253, %v4697
    %v4699 = vpop.f32.mrb[0].mxu0
    %v4700 = vadd.f32 %v3253, %v4699
    %4701 = vmatprep.mubr.bf16.mxu0 0
    %4702 = vmatmul.mubr.bf16.gmra.mrb[0].mxu0 %v3344
    %v4703 = vpop.f32.mrb[0].mxu0
    %v4704 = vadd.f32 %v3258, %v4703
    %v4705 = vpop.f32.mrb[0].mxu0
    %v4706 = vadd.f32 %v3258, %v4705
    %v4707 = vpop.f32.mrb[0].mxu0
    %v4708 = vadd.f32 %v3263, %v4707
    %v4709 = vpop.f32.mrb[0].mxu0
    %v4710 = vadd.f32 %v3263, %v4709
    %4711 = vdwg.mxu0
    %4712 = vmatprep.subr.bf16.mxu0 %v2928
    %4713 = vmatpush1.bf16.msra.mxu0 %v2927
    %4714 = vmatprep.subr.bf16.mxu0 %v2944
    %4715 = vmatpush1.bf16.msra.mxu0 %v2943
    %4716 = vmatprep.subr.bf16.mxu0 %v2960
    %4717 = vmatpush1.bf16.msra.mxu0 %v2959
    %4718 = vmatprep.subr.bf16.mxu0 %v2976
    %4719 = vmatpush1.bf16.msra.mxu0 %v2975
    %4720 = vmatprep.subr.bf16.mxu0 %v2992
    %4721 = vmatpush1.bf16.msra.mxu0 %v2991
    %4722 = vmatprep.subr.bf16.mxu0 %v3008
    %4723 = vmatpush1.bf16.msra.mxu0 %v3007
    %4724 = vmatprep.subr.bf16.mxu0 %v3024
    %4725 = vmatpush1.bf16.msra.mxu0 %v3023
    %4726 = vmatprep.subr.bf16.mxu0 %v3040
    %4727 = vmatpush1.bf16.msra.mxu0 %v3039
    %4728 = vmatprep.subr.bf16.mxu0 0
    %4729 = vmatpush1.bf16.msra.mxu0 0
    %4730 = vmatprep.subr.bf16.mxu0 0
    %4731 = vmatpush1.bf16.msra.mxu0 0
    %4732 = vmatprep.subr.bf16.mxu0 0
    %4733 = vmatpush1.bf16.msra.mxu0 0
    %4734 = vmatprep.subr.bf16.mxu0 0
    %4735 = vmatpush1.bf16.msra.mxu0 0
    %4736 = vmatprep.subr.bf16.mxu0 0
    %4737 = vmatpush1.bf16.msra.mxu0 0
    %4738 = vmatprep.subr.bf16.mxu0 0
    %4739 = vmatpush1.bf16.msra.mxu0 0
    %4740 = vmatprep.subr.bf16.mxu0 0
    %4741 = vmatpush1.bf16.msra.mxu0 0
    %4742 = vmatprep.subr.bf16.mxu0 0
    %4743 = vmatpush1.bf16.msra.mxu0 0
    %4744 = vmatprep.mubr.bf16.mxu0 0
    %4745 = vmatmul.mubr.bf16.gmra.mrb[0].mxu0 %v3329
    %v4746 = vpop.f32.mrb[0].mxu0
    %v4747 = vadd.f32 %v3108, %v4746
    %v4748 = vpop.f32.mrb[0].mxu0
    %v4749 = vadd.f32 %v3108, %v4748
    %v4750 = vpop.f32.mrb[0].mxu0
    %v4751 = vadd.f32 %v3113, %v4750
    %v4752 = vpop.f32.mrb[0].mxu0
    %v4753 = vadd.f32 %v3113, %v4752
    %4754 = vmatprep.mubr.bf16.mxu0 0
    %4755 = vmatmul.mubr.bf16.gmra.mrb[0].mxu0 %v3330
    %v4756 = vpop.f32.mrb[0].mxu0
    %v4757 = vadd.f32 %v3118, %v4756
    %v4758 = vpop.f32.mrb[0].mxu0
    %v4759 = vadd.f32 %v3118, %v4758
    %v4760 = vpop.f32.mrb[0].mxu0
    %v4761 = vadd.f32 %v3123, %v4760
    %v4762 = vpop.f32.mrb[0].mxu0
    %v4763 = vadd.f32 %v3123, %v4762
    %4764 = vmatprep.mubr.bf16.mxu0 0
    %4765 = vmatmul.mubr.bf16.gmra.mrb[0].mxu0 %v3331
    %v4766 = vpop.f32.mrb[0].mxu0
    %v4767 = vadd.f32 %v3128, %v4766
    %v4768 = vpop.f32.mrb[0].mxu0
    %v4769 = vadd.f32 %v3128, %v4768
    %v4770 = vpop.f32.mrb[0].mxu0
    %v4771 = vadd.f32 %v3133, %v4770
    %v4772 = vpop.f32.mrb[0].mxu0
    %v4773 = vadd.f32 %v3133, %v4772
    %4774 = vmatprep.mubr.bf16.mxu0 0
    %4775 = vmatmul.mubr.bf16.gmra.mrb[0].mxu0 %v3332
    %v4776 = vpop.f32.mrb[0].mxu0
    %v4777 = vadd.f32 %v3138, %v4776
    %v4778 = vpop.f32.mrb[0].mxu0
    %v4779 = vadd.f32 %v3138, %v4778
    %v4780 = vpop.f32.mrb[0].mxu0
    %v4781 = vadd.f32 %v3143, %v4780
    %v4782 = vpop.f32.mrb[0].mxu0
    %v4783 = vadd.f32 %v3143, %v4782
    %4784 = vmatprep.mubr.bf16.mxu0 0
    %4785 = vmatmul.mubr.bf16.gmra.mrb[0].mxu0 %v3333
    %v4786 = vpop.f32.mrb[0].mxu0
    %v4787 = vadd.f32 %v3148, %v4786
    %v4788 = vpop.f32.mrb[0].mxu0
    %v4789 = vadd.f32 %v3148, %v4788
    %v4790 = vpop.f32.mrb[0].mxu0
    %v4791 = vadd.f32 %v3153, %v4790
    %v4792 = vpop.f32.mrb[0].mxu0
    %v4793 = vadd.f32 %v3153, %v4792
    %4794 = vmatprep.mubr.bf16.mxu0 0
    %4795 = vmatmul.mubr.bf16.gmra.mrb[0].mxu0 %v3334
    %v4796 = vpop.f32.mrb[0].mxu0
    %v4797 = vadd.f32 %v3158, %v4796
    %v4798 = vpop.f32.mrb[0].mxu0
    %v4799 = vadd.f32 %v3158, %v4798
    %v4800 = vpop.f32.mrb[0].mxu0
    %v4801 = vadd.f32 %v3163, %v4800
    %v4802 = vpop.f32.mrb[0].mxu0
    %v4803 = vadd.f32 %v3163, %v4802
    %4804 = vmatprep.mubr.bf16.mxu0 0
    %4805 = vmatmul.mubr.bf16.gmra.mrb[0].mxu0 %v3335
    %v4806 = vpop.f32.mrb[0].mxu0
    %v4807 = vadd.f32 %v3168, %v4806
    %v4808 = vpop.f32.mrb[0].mxu0
    %v4809 = vadd.f32 %v3168, %v4808
    %v4810 = vpop.f32.mrb[0].mxu0
    %v4811 = vadd.f32 %v3173, %v4810
    %v4812 = vpop.f32.mrb[0].mxu0
    %v4813 = vadd.f32 %v3173, %v4812
    %4814 = vmatprep.mubr.bf16.mxu0 0
    %4815 = vmatmul.mubr.bf16.gmra.mrb[0].mxu0 %v3336
    %v4816 = vpop.f32.mrb[0].mxu0
    %v4817 = vadd.f32 %v3178, %v4816
    %v4818 = vpop.f32.mrb[0].mxu0
    %v4819 = vadd.f32 %v3178, %v4818
    %v4820 = vpop.f32.mrb[0].mxu0
    %v4821 = vadd.f32 %v3183, %v4820
    %v4822 = vpop.f32.mrb[0].mxu0
    %v4823 = vadd.f32 %v3183, %v4822
    %4824 = vmatprep.mubr.bf16.mxu0 0
    %4825 = vmatmul.mubr.bf16.gmra.mrb[0].mxu0 %v3337
    %v4826 = vpop.f32.mrb[0].mxu0
    %v4827 = vadd.f32 %v3188, %v4826
    %v4828 = vpop.f32.mrb[0].mxu0
    %v4829 = vadd.f32 %v3188, %v4828
    %v4830 = vpop.f32.mrb[0].mxu0
    %v4831 = vadd.f32 %v3193, %v4830
    %v4832 = vpop.f32.mrb[0].mxu0
    %v4833 = vadd.f32 %v3193, %v4832
    %4834 = vmatprep.mubr.bf16.mxu0 0
    %4835 = vmatmul.mubr.bf16.gmra.mrb[0].mxu0 %v3338
    %v4836 = vpop.f32.mrb[0].mxu0
    %v4837 = vadd.f32 %v3198, %v4836
    %v4838 = vpop.f32.mrb[0].mxu0
    %v4839 = vadd.f32 %v3198, %v4838
    %v4840 = vpop.f32.mrb[0].mxu0
    %v4841 = vadd.f32 %v3203, %v4840
    %v4842 = vpop.f32.mrb[0].mxu0
    %v4843 = vadd.f32 %v3203, %v4842
    %4844 = vmatprep.mubr.bf16.mxu0 0
    %4845 = vmatmul.mubr.bf16.gmra.mrb[0].mxu0 %v3339
    %v4846 = vpop.f32.mrb[0].mxu0
    %v4847 = vadd.f32 %v3208, %v4846
    %v4848 = vpop.f32.mrb[0].mxu0
    %v4849 = vadd.f32 %v3208, %v4848
    %v4850 = vpop.f32.mrb[0].mxu0
    %v4851 = vadd.f32 %v3213, %v4850
    %v4852 = vpop.f32.mrb[0].mxu0
    %v4853 = vadd.f32 %v3213, %v4852
    %4854 = vmatprep.mubr.bf16.mxu0 0
    %4855 = vmatmul.mubr.bf16.gmra.mrb[0].mxu0 %v3340
    %v4856 = vpop.f32.mrb[0].mxu0
    %v4857 = vadd.f32 %v3218, %v4856
    %v4858 = vpop.f32.mrb[0].mxu0
    %v4859 = vadd.f32 %v3218, %v4858
    %v4860 = vpop.f32.mrb[0].mxu0
    %v4861 = vadd.f32 %v3223, %v4860
    %v4862 = vpop.f32.mrb[0].mxu0
    %v4863 = vadd.f32 %v3223, %v4862
    %4864 = vmatprep.mubr.bf16.mxu0 0
    %4865 = vmatmul.mubr.bf16.gmra.mrb[0].mxu0 %v3341
    %v4866 = vpop.f32.mrb[0].mxu0
    %v4867 = vadd.f32 %v3228, %v4866
    %v4868 = vpop.f32.mrb[0].mxu0
    %v4869 = vadd.f32 %v3228, %v4868
    %v4870 = vpop.f32.mrb[0].mxu0
    %v4871 = vadd.f32 %v3233, %v4870
    %v4872 = vpop.f32.mrb[0].mxu0
    %v4873 = vadd.f32 %v3233, %v4872
    %4874 = vmatprep.mubr.bf16.mxu0 0
    %4875 = vmatmul.mubr.bf16.gmra.mrb[0].mxu0 %v3342
    %v4876 = vpop.f32.mrb[0].mxu0
    %v4877 = vadd.f32 %v3238, %v4876
    %v4878 = vpop.f32.mrb[0].mxu0
    %v4879 = vadd.f32 %v3238, %v4878
    %v4880 = vpop.f32.mrb[0].mxu0
    %v4881 = vadd.f32 %v3243, %v4880
    %v4882 = vpop.f32.mrb[0].mxu0
    %v4883 = vadd.f32 %v3243, %v4882
    %4884 = vmatprep.mubr.bf16.mxu0 0
    %4885 = vmatmul.mubr.bf16.gmra.mrb[0].mxu0 %v3343
    %v4886 = vpop.f32.mrb[0].mxu0
    %v4887 = vadd.f32 %v3248, %v4886
    %v4888 = vpop.f32.mrb[0].mxu0
    %v4889 = vadd.f32 %v3248, %v4888
    %v4890 = vpop.f32.mrb[0].mxu0
    %v4891 = vadd.f32 %v3253, %v4890
    %v4892 = vpop.f32.mrb[0].mxu0
    %v4893 = vadd.f32 %v3253, %v4892
    %4894 = vmatprep.mubr.bf16.mxu0 0
    %4895 = vmatmul.mubr.bf16.gmra.mrb[0].mxu0 %v3344
    %v4896 = vpop.f32.mrb[0].mxu0
    %v4897 = vadd.f32 %v3258, %v4896
    %v4898 = vpop.f32.mrb[0].mxu0
    %v4899 = vadd.f32 %v3258, %v4898
    %v4900 = vpop.f32.mrb[0].mxu0
    %v4901 = vadd.f32 %v3263, %v4900
    %v4902 = vpop.f32.mrb[0].mxu0
    %v4903 = vadd.f32 %v3263, %v4902
    %4904 = vdwg.mxu0
    %v4905 = vmax.f32 %v3396, 0.0
    %v4906 = vmax.f32 %v3398, 0.0
    %v4907 = vmax.f32 %v3589, 0.0
    %v4908 = vmax.f32 %v3591, 0.0
    %v4909 = vmax.f32 %v3782, 0.0
    %v4910 = vmax.f32 %v3784, 0.0
    %v4911 = vmax.f32 %v3975, 0.0
    %v4912 = vmax.f32 %v3977, 0.0
    %v4913 = vmax.f32 %v4168, 0.0
    %v4914 = vmax.f32 %v4170, 0.0
    %v4915 = vmax.f32 %v4361, 0.0
    %v4916 = vmax.f32 %v4363, 0.0
    %v4917 = vmax.f32 %v4554, 0.0
    %v4918 = vmax.f32 %v4556, 0.0
    %v4919 = vmax.f32 %v4747, 0.0
    %v4920 = vmax.f32 %v4749, 0.0
    %v4921 = vmax.f32 %v3400, 0.0
    %v4922 = vmax.f32 %v3402, 0.0
    %v4923 = vmax.f32 %v3593, 0.0
    %v4924 = vmax.f32 %v3595, 0.0
    %v4925 = vmax.f32 %v3786, 0.0
    %v4926 = vmax.f32 %v3788, 0.0
    %v4927 = vmax.f32 %v3979, 0.0
    %v4928 = vmax.f32 %v3981, 0.0
    %v4929 = vmax.f32 %v4172, 0.0
    %v4930 = vmax.f32 %v4174, 0.0
    %v4931 = vmax.f32 %v4365, 0.0
    %v4932 = vmax.f32 %v4367, 0.0
    %v4933 = vmax.f32 %v4558, 0.0
    %v4934 = vmax.f32 %v4560, 0.0
    %v4935 = vmax.f32 %v4751, 0.0
    %v4936 = vmax.f32 %v4753, 0.0
    %v4937 = vmax.f32 %v3406, 0.0
    %v4938 = vmax.f32 %v3408, 0.0
    %v4939 = vmax.f32 %v3599, 0.0
    %v4940 = vmax.f32 %v3601, 0.0
    %v4941 = vmax.f32 %v3792, 0.0
    %v4942 = vmax.f32 %v3794, 0.0
    %v4943 = vmax.f32 %v3985, 0.0
    %v4944 = vmax.f32 %v3987, 0.0
    %v4945 = vmax.f32 %v4178, 0.0
    %v4946 = vmax.f32 %v4180, 0.0
    %v4947 = vmax.f32 %v4371, 0.0
    %v4948 = vmax.f32 %v4373, 0.0
    %v4949 = vmax.f32 %v4564, 0.0
    %v4950 = vmax.f32 %v4566, 0.0
    %v4951 = vmax.f32 %v4757, 0.0
    %v4952 = vmax.f32 %v4759, 0.0
    %v4953 = vmax.f32 %v3410, 0.0
    %v4954 = vmax.f32 %v3412, 0.0
    %v4955 = vmax.f32 %v3603, 0.0
    %v4956 = vmax.f32 %v3605, 0.0
    %v4957 = vmax.f32 %v3796, 0.0
    %v4958 = vmax.f32 %v3798, 0.0
    %v4959 = vmax.f32 %v3989, 0.0
    %v4960 = vmax.f32 %v3991, 0.0
    %v4961 = vmax.f32 %v4182, 0.0
    %v4962 = vmax.f32 %v4184, 0.0
    %v4963 = vmax.f32 %v4375, 0.0
    %v4964 = vmax.f32 %v4377, 0.0
    %v4965 = vmax.f32 %v4568, 0.0
    %v4966 = vmax.f32 %v4570, 0.0
    %v4967 = vmax.f32 %v4761, 0.0
    %v4968 = vmax.f32 %v4763, 0.0
    %v4969 = vmax.f32 %v3416, 0.0
    %v4970 = vmax.f32 %v3418, 0.0
    %v4971 = vmax.f32 %v3609, 0.0
    %v4972 = vmax.f32 %v3611, 0.0
    %v4973 = vmax.f32 %v3802, 0.0
    %v4974 = vmax.f32 %v3804, 0.0
    %v4975 = vmax.f32 %v3995, 0.0
    %v4976 = vmax.f32 %v3997, 0.0
    %v4977 = vmax.f32 %v4188, 0.0
    %v4978 = vmax.f32 %v4190, 0.0
    %v4979 = vmax.f32 %v4381, 0.0
    %v4980 = vmax.f32 %v4383, 0.0
    %v4981 = vmax.f32 %v4574, 0.0
    %v4982 = vmax.f32 %v4576, 0.0
    %v4983 = vmax.f32 %v4767, 0.0
    %v4984 = vmax.f32 %v4769, 0.0
    %v4985 = vmax.f32 %v3420, 0.0
    %v4986 = vmax.f32 %v3422, 0.0
    %v4987 = vmax.f32 %v3613, 0.0
    %v4988 = vmax.f32 %v3615, 0.0
    %v4989 = vmax.f32 %v3806, 0.0
    %v4990 = vmax.f32 %v3808, 0.0
    %v4991 = vmax.f32 %v3999, 0.0
    %v4992 = vmax.f32 %v4001, 0.0
    %v4993 = vmax.f32 %v4192, 0.0
    %v4994 = vmax.f32 %v4194, 0.0
    %v4995 = vmax.f32 %v4385, 0.0
    %v4996 = vmax.f32 %v4387, 0.0
    %v4997 = vmax.f32 %v4578, 0.0
    %v4998 = vmax.f32 %v4580, 0.0
    %v4999 = vmax.f32 %v4771, 0.0
    %v5000 = vmax.f32 %v4773, 0.0
    %v5001 = vmax.f32 %v3426, 0.0
    %v5002 = vmax.f32 %v3428, 0.0
    %v5003 = vmax.f32 %v3619, 0.0
    %v5004 = vmax.f32 %v3621, 0.0
    %v5005 = vmax.f32 %v3812, 0.0
    %v5006 = vmax.f32 %v3814, 0.0
    %v5007 = vmax.f32 %v4005, 0.0
    %v5008 = vmax.f32 %v4007, 0.0
    %v5009 = vmax.f32 %v4198, 0.0
    %v5010 = vmax.f32 %v4200, 0.0
    %v5011 = vmax.f32 %v4391, 0.0
    %v5012 = vmax.f32 %v4393, 0.0
    %v5013 = vmax.f32 %v4584, 0.0
    %v5014 = vmax.f32 %v4586, 0.0
    %v5015 = vmax.f32 %v4777, 0.0
    %v5016 = vmax.f32 %v4779, 0.0
    %v5017 = vmax.f32 %v3430, 0.0
    %v5018 = vmax.f32 %v3432, 0.0
    %v5019 = vmax.f32 %v3623, 0.0
    %v5020 = vmax.f32 %v3625, 0.0
    %v5021 = vmax.f32 %v3816, 0.0
    %v5022 = vmax.f32 %v3818, 0.0
    %v5023 = vmax.f32 %v4009, 0.0
    %v5024 = vmax.f32 %v4011, 0.0
    %v5025 = vmax.f32 %v4202, 0.0
    %v5026 = vmax.f32 %v4204, 0.0
    %v5027 = vmax.f32 %v4395, 0.0
    %v5028 = vmax.f32 %v4397, 0.0
    %v5029 = vmax.f32 %v4588, 0.0
    %v5030 = vmax.f32 %v4590, 0.0
    %v5031 = vmax.f32 %v4781, 0.0
    %v5032 = vmax.f32 %v4783, 0.0
    %v5033 = vmax.f32 %v3436, 0.0
    %v5034 = vmax.f32 %v3438, 0.0
    %v5035 = vmax.f32 %v3629, 0.0
    %v5036 = vmax.f32 %v3631, 0.0
    %v5037 = vmax.f32 %v3822, 0.0
    %v5038 = vmax.f32 %v3824, 0.0
    %v5039 = vmax.f32 %v4015, 0.0
    %v5040 = vmax.f32 %v4017, 0.0
    %v5041 = vmax.f32 %v4208, 0.0
    %v5042 = vmax.f32 %v4210, 0.0
    %v5043 = vmax.f32 %v4401, 0.0
    %v5044 = vmax.f32 %v4403, 0.0
    %v5045 = vmax.f32 %v4594, 0.0
    %v5046 = vmax.f32 %v4596, 0.0
    %v5047 = vmax.f32 %v4787, 0.0
    %v5048 = vmax.f32 %v4789, 0.0
    %v5049 = vmax.f32 %v3440, 0.0
    %v5050 = vmax.f32 %v3442, 0.0
    %v5051 = vmax.f32 %v3633, 0.0
    %v5052 = vmax.f32 %v3635, 0.0
    %v5053 = vmax.f32 %v3826, 0.0
    %v5054 = vmax.f32 %v3828, 0.0
    %v5055 = vmax.f32 %v4019, 0.0
    %v5056 = vmax.f32 %v4021, 0.0
    %v5057 = vmax.f32 %v4212, 0.0
    %v5058 = vmax.f32 %v4214, 0.0
    %v5059 = vmax.f32 %v4405, 0.0
    %v5060 = vmax.f32 %v4407, 0.0
    %v5061 = vmax.f32 %v4598, 0.0
    %v5062 = vmax.f32 %v4600, 0.0
    %v5063 = vmax.f32 %v4791, 0.0
    %v5064 = vmax.f32 %v4793, 0.0
    %v5065 = vmax.f32 %v3446, 0.0
    %v5066 = vmax.f32 %v3448, 0.0
    %v5067 = vmax.f32 %v3639, 0.0
    %v5068 = vmax.f32 %v3641, 0.0
    %v5069 = vmax.f32 %v3832, 0.0
    %v5070 = vmax.f32 %v3834, 0.0
    %v5071 = vmax.f32 %v4025, 0.0
    %v5072 = vmax.f32 %v4027, 0.0
    %v5073 = vmax.f32 %v4218, 0.0
    %v5074 = vmax.f32 %v4220, 0.0
    %v5075 = vmax.f32 %v4411, 0.0
    %v5076 = vmax.f32 %v4413, 0.0
    %v5077 = vmax.f32 %v4604, 0.0
    %v5078 = vmax.f32 %v4606, 0.0
    %v5079 = vmax.f32 %v4797, 0.0
    %v5080 = vmax.f32 %v4799, 0.0
    %v5081 = vmax.f32 %v3450, 0.0
    %v5082 = vmax.f32 %v3452, 0.0
    %v5083 = vmax.f32 %v3643, 0.0
    %v5084 = vmax.f32 %v3645, 0.0
    %v5085 = vmax.f32 %v3836, 0.0
    %v5086 = vmax.f32 %v3838, 0.0
    %v5087 = vmax.f32 %v4029, 0.0
    %v5088 = vmax.f32 %v4031, 0.0
    %v5089 = vmax.f32 %v4222, 0.0
    %v5090 = vmax.f32 %v4224, 0.0
    %v5091 = vmax.f32 %v4415, 0.0
    %v5092 = vmax.f32 %v4417, 0.0
    %v5093 = vmax.f32 %v4608, 0.0
    %v5094 = vmax.f32 %v4610, 0.0
    %v5095 = vmax.f32 %v4801, 0.0
    %v5096 = vmax.f32 %v4803, 0.0
    %v5097 = vmax.f32 %v3456, 0.0
    %v5098 = vmax.f32 %v3458, 0.0
    %v5099 = vmax.f32 %v3649, 0.0
    %v5100 = vmax.f32 %v3651, 0.0
    %v5101 = vmax.f32 %v3842, 0.0
    %v5102 = vmax.f32 %v3844, 0.0
    %v5103 = vmax.f32 %v4035, 0.0
    %v5104 = vmax.f32 %v4037, 0.0
    %v5105 = vmax.f32 %v4228, 0.0
    %v5106 = vmax.f32 %v4230, 0.0
    %v5107 = vmax.f32 %v4421, 0.0
    %v5108 = vmax.f32 %v4423, 0.0
    %v5109 = vmax.f32 %v4614, 0.0
    %v5110 = vmax.f32 %v4616, 0.0
    %v5111 = vmax.f32 %v4807, 0.0
    %v5112 = vmax.f32 %v4809, 0.0
    %v5113 = vmax.f32 %v3460, 0.0
    %v5114 = vmax.f32 %v3462, 0.0
    %v5115 = vmax.f32 %v3653, 0.0
    %v5116 = vmax.f32 %v3655, 0.0
    %v5117 = vmax.f32 %v3846, 0.0
    %v5118 = vmax.f32 %v3848, 0.0
    %v5119 = vmax.f32 %v4039, 0.0
    %v5120 = vmax.f32 %v4041, 0.0
    %v5121 = vmax.f32 %v4232, 0.0
    %v5122 = vmax.f32 %v4234, 0.0
    %v5123 = vmax.f32 %v4425, 0.0
    %v5124 = vmax.f32 %v4427, 0.0
    %v5125 = vmax.f32 %v4618, 0.0
    %v5126 = vmax.f32 %v4620, 0.0
    %v5127 = vmax.f32 %v4811, 0.0
    %v5128 = vmax.f32 %v4813, 0.0
    %v5129 = vmax.f32 %v3466, 0.0
    %v5130 = vmax.f32 %v3468, 0.0
    %v5131 = vmax.f32 %v3659, 0.0
    %v5132 = vmax.f32 %v3661, 0.0
    %v5133 = vmax.f32 %v3852, 0.0
    %v5134 = vmax.f32 %v3854, 0.0
    %v5135 = vmax.f32 %v4045, 0.0
    %v5136 = vmax.f32 %v4047, 0.0
    %v5137 = vmax.f32 %v4238, 0.0
    %v5138 = vmax.f32 %v4240, 0.0
    %v5139 = vmax.f32 %v4431, 0.0
    %v5140 = vmax.f32 %v4433, 0.0
    %v5141 = vmax.f32 %v4624, 0.0
    %v5142 = vmax.f32 %v4626, 0.0
    %v5143 = vmax.f32 %v4817, 0.0
    %v5144 = vmax.f32 %v4819, 0.0
    %v5145 = vmax.f32 %v3470, 0.0
    %v5146 = vmax.f32 %v3472, 0.0
    %v5147 = vmax.f32 %v3663, 0.0
    %v5148 = vmax.f32 %v3665, 0.0
    %v5149 = vmax.f32 %v3856, 0.0
    %v5150 = vmax.f32 %v3858, 0.0
    %v5151 = vmax.f32 %v4049, 0.0
    %v5152 = vmax.f32 %v4051, 0.0
    %v5153 = vmax.f32 %v4242, 0.0
    %v5154 = vmax.f32 %v4244, 0.0
    %v5155 = vmax.f32 %v4435, 0.0
    %v5156 = vmax.f32 %v4437, 0.0
    %v5157 = vmax.f32 %v4628, 0.0
    %v5158 = vmax.f32 %v4630, 0.0
    %v5159 = vmax.f32 %v4821, 0.0
    %v5160 = vmax.f32 %v4823, 0.0
    %v5161 = vmax.f32 %v3476, 0.0
    %v5162 = vmax.f32 %v3478, 0.0
    %v5163 = vmax.f32 %v3669, 0.0
    %v5164 = vmax.f32 %v3671, 0.0
    %v5165 = vmax.f32 %v3862, 0.0
    %v5166 = vmax.f32 %v3864, 0.0
    %v5167 = vmax.f32 %v4055, 0.0
    %v5168 = vmax.f32 %v4057, 0.0
    %v5169 = vmax.f32 %v4248, 0.0
    %v5170 = vmax.f32 %v4250, 0.0
    %v5171 = vmax.f32 %v4441, 0.0
    %v5172 = vmax.f32 %v4443, 0.0
    %v5173 = vmax.f32 %v4634, 0.0
    %v5174 = vmax.f32 %v4636, 0.0
    %v5175 = vmax.f32 %v4827, 0.0
    %v5176 = vmax.f32 %v4829, 0.0
    %v5177 = vmax.f32 %v3480, 0.0
    %v5178 = vmax.f32 %v3482, 0.0
    %v5179 = vmax.f32 %v3673, 0.0
    %v5180 = vmax.f32 %v3675, 0.0
    %v5181 = vmax.f32 %v3866, 0.0
    %v5182 = vmax.f32 %v3868, 0.0
    %v5183 = vmax.f32 %v4059, 0.0
    %v5184 = vmax.f32 %v4061, 0.0
    %v5185 = vmax.f32 %v4252, 0.0
    %v5186 = vmax.f32 %v4254, 0.0
    %v5187 = vmax.f32 %v4445, 0.0
    %v5188 = vmax.f32 %v4447, 0.0
    %v5189 = vmax.f32 %v4638, 0.0
    %v5190 = vmax.f32 %v4640, 0.0
    %v5191 = vmax.f32 %v4831, 0.0
    %v5192 = vmax.f32 %v4833, 0.0
    %v5193 = vmax.f32 %v3486, 0.0
    %v5194 = vmax.f32 %v3488, 0.0
    %v5195 = vmax.f32 %v3679, 0.0
    %v5196 = vmax.f32 %v3681, 0.0
    %v5197 = vmax.f32 %v3872, 0.0
    %v5198 = vmax.f32 %v3874, 0.0
    %v5199 = vmax.f32 %v4065, 0.0
    %v5200 = vmax.f32 %v4067, 0.0
    %v5201 = vmax.f32 %v4258, 0.0
    %v5202 = vmax.f32 %v4260, 0.0
    %v5203 = vmax.f32 %v4451, 0.0
    %v5204 = vmax.f32 %v4453, 0.0
    %v5205 = vmax.f32 %v4644, 0.0
    %v5206 = vmax.f32 %v4646, 0.0
    %v5207 = vmax.f32 %v4837, 0.0
    %v5208 = vmax.f32 %v4839, 0.0
    %v5209 = vmax.f32 %v3490, 0.0
    %v5210 = vmax.f32 %v3492, 0.0
    %v5211 = vmax.f32 %v3683, 0.0
    %v5212 = vmax.f32 %v3685, 0.0
    %v5213 = vmax.f32 %v3876, 0.0
    %v5214 = vmax.f32 %v3878, 0.0
    %v5215 = vmax.f32 %v4069, 0.0
    %v5216 = vmax.f32 %v4071, 0.0
    %v5217 = vmax.f32 %v4262, 0.0
    %v5218 = vmax.f32 %v4264, 0.0
    %v5219 = vmax.f32 %v4455, 0.0
    %v5220 = vmax.f32 %v4457, 0.0
    %v5221 = vmax.f32 %v4648, 0.0
    %v5222 = vmax.f32 %v4650, 0.0
    %v5223 = vmax.f32 %v4841, 0.0
    %v5224 = vmax.f32 %v4843, 0.0
    %v5225 = vmax.f32 %v3496, 0.0
    %v5226 = vmax.f32 %v3498, 0.0
    %v5227 = vmax.f32 %v3689, 0.0
    %v5228 = vmax.f32 %v3691, 0.0
    %v5229 = vmax.f32 %v3882, 0.0
    %v5230 = vmax.f32 %v3884, 0.0
    %v5231 = vmax.f32 %v4075, 0.0
    %v5232 = vmax.f32 %v4077, 0.0
    %v5233 = vmax.f32 %v4268, 0.0
    %v5234 = vmax.f32 %v4270, 0.0
    %v5235 = vmax.f32 %v4461, 0.0
    %v5236 = vmax.f32 %v4463, 0.0
    %v5237 = vmax.f32 %v4654, 0.0
    %v5238 = vmax.f32 %v4656, 0.0
    %v5239 = vmax.f32 %v4847, 0.0
    %v5240 = vmax.f32 %v4849, 0.0
    %v5241 = vmax.f32 %v3500, 0.0
    %v5242 = vmax.f32 %v3502, 0.0
    %v5243 = vmax.f32 %v3693, 0.0
    %v5244 = vmax.f32 %v3695, 0.0
    %v5245 = vmax.f32 %v3886, 0.0
    %v5246 = vmax.f32 %v3888, 0.0
    %v5247 = vmax.f32 %v4079, 0.0
    %v5248 = vmax.f32 %v4081, 0.0
    %v5249 = vmax.f32 %v4272, 0.0
    %v5250 = vmax.f32 %v4274, 0.0
    %v5251 = vmax.f32 %v4465, 0.0
    %v5252 = vmax.f32 %v4467, 0.0
    %v5253 = vmax.f32 %v4658, 0.0
    %v5254 = vmax.f32 %v4660, 0.0
    %v5255 = vmax.f32 %v4851, 0.0
    %v5256 = vmax.f32 %v4853, 0.0
    %v5257 = vmax.f32 %v3506, 0.0
    %v5258 = vmax.f32 %v3508, 0.0
    %v5259 = vmax.f32 %v3699, 0.0
    %v5260 = vmax.f32 %v3701, 0.0
    %v5261 = vmax.f32 %v3892, 0.0
    %v5262 = vmax.f32 %v3894, 0.0
    %v5263 = vmax.f32 %v4085, 0.0
    %v5264 = vmax.f32 %v4087, 0.0
    %v5265 = vmax.f32 %v4278, 0.0
    %v5266 = vmax.f32 %v4280, 0.0
    %v5267 = vmax.f32 %v4471, 0.0
    %v5268 = vmax.f32 %v4473, 0.0
    %v5269 = vmax.f32 %v4664, 0.0
    %v5270 = vmax.f32 %v4666, 0.0
    %v5271 = vmax.f32 %v4857, 0.0
    %v5272 = vmax.f32 %v4859, 0.0
    %v5273 = vmax.f32 %v3510, 0.0
    %v5274 = vmax.f32 %v3512, 0.0
    %v5275 = vmax.f32 %v3703, 0.0
    %v5276 = vmax.f32 %v3705, 0.0
    %v5277 = vmax.f32 %v3896, 0.0
    %v5278 = vmax.f32 %v3898, 0.0
    %v5279 = vmax.f32 %v4089, 0.0
    %v5280 = vmax.f32 %v4091, 0.0
    %v5281 = vmax.f32 %v4282, 0.0
    %v5282 = vmax.f32 %v4284, 0.0
    %v5283 = vmax.f32 %v4475, 0.0
    %v5284 = vmax.f32 %v4477, 0.0
    %v5285 = vmax.f32 %v4668, 0.0
    %v5286 = vmax.f32 %v4670, 0.0
    %v5287 = vmax.f32 %v4861, 0.0
    %v5288 = vmax.f32 %v4863, 0.0
    %v5289 = vmax.f32 %v3516, 0.0
    %v5290 = vmax.f32 %v3518, 0.0
    %v5291 = vmax.f32 %v3709, 0.0
    %v5292 = vmax.f32 %v3711, 0.0
    %v5293 = vmax.f32 %v3902, 0.0
    %v5294 = vmax.f32 %v3904, 0.0
    %v5295 = vmax.f32 %v4095, 0.0
    %v5296 = vmax.f32 %v4097, 0.0
    %v5297 = vmax.f32 %v4288, 0.0
    %v5298 = vmax.f32 %v4290, 0.0
    %v5299 = vmax.f32 %v4481, 0.0
    %v5300 = vmax.f32 %v4483, 0.0
    %v5301 = vmax.f32 %v4674, 0.0
    %v5302 = vmax.f32 %v4676, 0.0
    %v5303 = vmax.f32 %v4867, 0.0
    %v5304 = vmax.f32 %v4869, 0.0
    %v5305 = vmax.f32 %v3520, 0.0
    %v5306 = vmax.f32 %v3522, 0.0
    %v5307 = vmax.f32 %v3713, 0.0
    %v5308 = vmax.f32 %v3715, 0.0
    %v5309 = vmax.f32 %v3906, 0.0
    %v5310 = vmax.f32 %v3908, 0.0
    %v5311 = vmax.f32 %v4099, 0.0
    %v5312 = vmax.f32 %v4101, 0.0
    %v5313 = vmax.f32 %v4292, 0.0
    %v5314 = vmax.f32 %v4294, 0.0
    %v5315 = vmax.f32 %v4485, 0.0
    %v5316 = vmax.f32 %v4487, 0.0
    %v5317 = vmax.f32 %v4678, 0.0
    %v5318 = vmax.f32 %v4680, 0.0
    %v5319 = vmax.f32 %v4871, 0.0
    %v5320 = vmax.f32 %v4873, 0.0
    %v5321 = vmax.f32 %v3526, 0.0
    %v5322 = vmax.f32 %v3528, 0.0
    %v5323 = vmax.f32 %v3719, 0.0
    %v5324 = vmax.f32 %v3721, 0.0
    %v5325 = vmax.f32 %v3912, 0.0
    %v5326 = vmax.f32 %v3914, 0.0
    %v5327 = vmax.f32 %v4105, 0.0
    %v5328 = vmax.f32 %v4107, 0.0
    %v5329 = vmax.f32 %v4298, 0.0
    %v5330 = vmax.f32 %v4300, 0.0
    %v5331 = vmax.f32 %v4491, 0.0
    %v5332 = vmax.f32 %v4493, 0.0
    %v5333 = vmax.f32 %v4684, 0.0
    %v5334 = vmax.f32 %v4686, 0.0
    %v5335 = vmax.f32 %v4877, 0.0
    %v5336 = vmax.f32 %v4879, 0.0
    %v5337 = vmax.f32 %v3530, 0.0
    %v5338 = vmax.f32 %v3532, 0.0
    %v5339 = vmax.f32 %v3723, 0.0
    %v5340 = vmax.f32 %v3725, 0.0
    %v5341 = vmax.f32 %v3916, 0.0
    %v5342 = vmax.f32 %v3918, 0.0
    %v5343 = vmax.f32 %v4109, 0.0
    %v5344 = vmax.f32 %v4111, 0.0
    %v5345 = vmax.f32 %v4302, 0.0
    %v5346 = vmax.f32 %v4304, 0.0
    %v5347 = vmax.f32 %v4495, 0.0
    %v5348 = vmax.f32 %v4497, 0.0
    %v5349 = vmax.f32 %v4688, 0.0
    %v5350 = vmax.f32 %v4690, 0.0
    %v5351 = vmax.f32 %v4881, 0.0
    %v5352 = vmax.f32 %v4883, 0.0
    %v5353 = vmax.f32 %v3536, 0.0
    %v5354 = vmax.f32 %v3538, 0.0
    %v5355 = vmax.f32 %v3729, 0.0
    %v5356 = vmax.f32 %v3731, 0.0
    %v5357 = vmax.f32 %v3922, 0.0
    %v5358 = vmax.f32 %v3924, 0.0
    %v5359 = vmax.f32 %v4115, 0.0
    %v5360 = vmax.f32 %v4117, 0.0
    %v5361 = vmax.f32 %v4308, 0.0
    %v5362 = vmax.f32 %v4310, 0.0
    %v5363 = vmax.f32 %v4501, 0.0
    %v5364 = vmax.f32 %v4503, 0.0
    %v5365 = vmax.f32 %v4694, 0.0
    %v5366 = vmax.f32 %v4696, 0.0
    %v5367 = vmax.f32 %v4887, 0.0
    %v5368 = vmax.f32 %v4889, 0.0
    %v5369 = vmax.f32 %v3540, 0.0
    %v5370 = vmax.f32 %v3542, 0.0
    %v5371 = vmax.f32 %v3733, 0.0
    %v5372 = vmax.f32 %v3735, 0.0
    %v5373 = vmax.f32 %v3926, 0.0
    %v5374 = vmax.f32 %v3928, 0.0
    %v5375 = vmax.f32 %v4119, 0.0
    %v5376 = vmax.f32 %v4121, 0.0
    %v5377 = vmax.f32 %v4312, 0.0
    %v5378 = vmax.f32 %v4314, 0.0
    %v5379 = vmax.f32 %v4505, 0.0
    %v5380 = vmax.f32 %v4507, 0.0
    %v5381 = vmax.f32 %v4698, 0.0
    %v5382 = vmax.f32 %v4700, 0.0
    %v5383 = vmax.f32 %v4891, 0.0
    %v5384 = vmax.f32 %v4893, 0.0
    %v5385 = vmax.f32 %v3546, 0.0
    %v5386 = vmax.f32 %v3548, 0.0
    %v5387 = vmax.f32 %v3739, 0.0
    %v5388 = vmax.f32 %v3741, 0.0
    %v5389 = vmax.f32 %v3932, 0.0
    %v5390 = vmax.f32 %v3934, 0.0
    %v5391 = vmax.f32 %v4125, 0.0
    %v5392 = vmax.f32 %v4127, 0.0
    %v5393 = vmax.f32 %v4318, 0.0
    %v5394 = vmax.f32 %v4320, 0.0
    %v5395 = vmax.f32 %v4511, 0.0
    %v5396 = vmax.f32 %v4513, 0.0
    %v5397 = vmax.f32 %v4704, 0.0
    %v5398 = vmax.f32 %v4706, 0.0
    %v5399 = vmax.f32 %v4897, 0.0
    %v5400 = vmax.f32 %v4899, 0.0
    %v5401 = vmax.f32 %v3550, 0.0
    %v5402 = vmax.f32 %v3552, 0.0
    %v5403 = vmax.f32 %v3743, 0.0
    %v5404 = vmax.f32 %v3745, 0.0
    %v5405 = vmax.f32 %v3936, 0.0
    %v5406 = vmax.f32 %v3938, 0.0
    %v5407 = vmax.f32 %v4129, 0.0
    %v5408 = vmax.f32 %v4131, 0.0
    %v5409 = vmax.f32 %v4322, 0.0
    %v5410 = vmax.f32 %v4324, 0.0
    %v5411 = vmax.f32 %v4515, 0.0
    %v5412 = vmax.f32 %v4517, 0.0
    %v5413 = vmax.f32 %v4708, 0.0
    %v5414 = vmax.f32 %v4710, 0.0
    %v5415 = vmax.f32 %v4901, 0.0
    %v5416 = vmax.f32 %v4903, 0.0
    %v5417 = vpack.c.bf16 %v4921, %v4905
    %v5418 = vpack.c.bf16 %v4922, %v4906
    %v5419 = vpack.c.bf16 %v4923, %v4907
    %v5420 = vpack.c.bf16 %v4924, %v4908
    %v5421 = vpack.c.bf16 %v4925, %v4909
    %v5422 = vpack.c.bf16 %v4926, %v4910
    %v5423 = vpack.c.bf16 %v4927, %v4911
    %v5424 = vpack.c.bf16 %v4928, %v4912
    %v5425 = vpack.c.bf16 %v4929, %v4913
    %v5426 = vpack.c.bf16 %v4930, %v4914
    %v5427 = vpack.c.bf16 %v4931, %v4915
    %v5428 = vpack.c.bf16 %v4932, %v4916
    %v5429 = vpack.c.bf16 %v4933, %v4917
    %v5430 = vpack.c.bf16 %v4934, %v4918
    %v5431 = vpack.c.bf16 %v4935, %v4919
    %v5432 = vpack.c.bf16 %v4936, %v4920
    %v5433 = vpack.c.bf16 %v4953, %v4937
    %v5434 = vpack.c.bf16 %v4954, %v4938
    %v5435 = vpack.c.bf16 %v4955, %v4939
    %v5436 = vpack.c.bf16 %v4956, %v4940
    %v5437 = vpack.c.bf16 %v4957, %v4941
    %v5438 = vpack.c.bf16 %v4958, %v4942
    %v5439 = vpack.c.bf16 %v4959, %v4943
    %v5440 = vpack.c.bf16 %v4960, %v4944
    %v5441 = vpack.c.bf16 %v4961, %v4945
    %v5442 = vpack.c.bf16 %v4962, %v4946
    %v5443 = vpack.c.bf16 %v4963, %v4947
    %v5444 = vpack.c.bf16 %v4964, %v4948
    %v5445 = vpack.c.bf16 %v4965, %v4949
    %v5446 = vpack.c.bf16 %v4966, %v4950
    %v5447 = vpack.c.bf16 %v4967, %v4951
    %v5448 = vpack.c.bf16 %v4968, %v4952
    %v5449 = vpack.c.bf16 %v4985, %v4969
    %v5450 = vpack.c.bf16 %v4986, %v4970
    %v5451 = vpack.c.bf16 %v4987, %v4971
    %v5452 = vpack.c.bf16 %v4988, %v4972
    %v5453 = vpack.c.bf16 %v4989, %v4973
    %v5454 = vpack.c.bf16 %v4990, %v4974
    %v5455 = vpack.c.bf16 %v4991, %v4975
    %v5456 = vpack.c.bf16 %v4992, %v4976
    %v5457 = vpack.c.bf16 %v4993, %v4977
    %v5458 = vpack.c.bf16 %v4994, %v4978
    %v5459 = vpack.c.bf16 %v4995, %v4979
    %v5460 = vpack.c.bf16 %v4996, %v4980
    %v5461 = vpack.c.bf16 %v4997, %v4981
    %v5462 = vpack.c.bf16 %v4998, %v4982
    %v5463 = vpack.c.bf16 %v4999, %v4983
    %v5464 = vpack.c.bf16 %v5000, %v4984
    %v5465 = vpack.c.bf16 %v5017, %v5001
    %v5466 = vpack.c.bf16 %v5018, %v5002
    %v5467 = vpack.c.bf16 %v5019, %v5003
    %v5468 = vpack.c.bf16 %v5020, %v5004
    %v5469 = vpack.c.bf16 %v5021, %v5005
    %v5470 = vpack.c.bf16 %v5022, %v5006
    %v5471 = vpack.c.bf16 %v5023, %v5007
    %v5472 = vpack.c.bf16 %v5024, %v5008
    %v5473 = vpack.c.bf16 %v5025, %v5009
    %v5474 = vpack.c.bf16 %v5026, %v5010
    %v5475 = vpack.c.bf16 %v5027, %v5011
    %v5476 = vpack.c.bf16 %v5028, %v5012
    %v5477 = vpack.c.bf16 %v5029, %v5013
    %v5478 = vpack.c.bf16 %v5030, %v5014
    %v5479 = vpack.c.bf16 %v5031, %v5015
    %v5480 = vpack.c.bf16 %v5032, %v5016
    %v5481 = vpack.c.bf16 %v5049, %v5033
    %v5482 = vpack.c.bf16 %v5050, %v5034
    %v5483 = vpack.c.bf16 %v5051, %v5035
    %v5484 = vpack.c.bf16 %v5052, %v5036
    %v5485 = vpack.c.bf16 %v5053, %v5037
    %v5486 = vpack.c.bf16 %v5054, %v5038
    %v5487 = vpack.c.bf16 %v5055, %v5039
    %v5488 = vpack.c.bf16 %v5056, %v5040
    %v5489 = vpack.c.bf16 %v5057, %v5041
    %v5490 = vpack.c.bf16 %v5058, %v5042
    %v5491 = vpack.c.bf16 %v5059, %v5043
    %v5492 = vpack.c.bf16 %v5060, %v5044
    %v5493 = vpack.c.bf16 %v5061, %v5045
    %v5494 = vpack.c.bf16 %v5062, %v5046
    %v5495 = vpack.c.bf16 %v5063, %v5047
    %v5496 = vpack.c.bf16 %v5064, %v5048
    %v5497 = vpack.c.bf16 %v5081, %v5065
    %v5498 = vpack.c.bf16 %v5082, %v5066
    %v5499 = vpack.c.bf16 %v5083, %v5067
    %v5500 = vpack.c.bf16 %v5084, %v5068
    %v5501 = vpack.c.bf16 %v5085, %v5069
    %v5502 = vpack.c.bf16 %v5086, %v5070
    %v5503 = vpack.c.bf16 %v5087, %v5071
    %v5504 = vpack.c.bf16 %v5088, %v5072
    %v5505 = vpack.c.bf16 %v5089, %v5073
    %v5506 = vpack.c.bf16 %v5090, %v5074
    %v5507 = vpack.c.bf16 %v5091, %v5075
    %v5508 = vpack.c.bf16 %v5092, %v5076
    %v5509 = vpack.c.bf16 %v5093, %v5077
    %v5510 = vpack.c.bf16 %v5094, %v5078
    %v5511 = vpack.c.bf16 %v5095, %v5079
    %v5512 = vpack.c.bf16 %v5096, %v5080
    %v5513 = vpack.c.bf16 %v5113, %v5097
    %v5514 = vpack.c.bf16 %v5114, %v5098
    %v5515 = vpack.c.bf16 %v5115, %v5099
    %v5516 = vpack.c.bf16 %v5116, %v5100
    %v5517 = vpack.c.bf16 %v5117, %v5101
    %v5518 = vpack.c.bf16 %v5118, %v5102
    %v5519 = vpack.c.bf16 %v5119, %v5103
    %v5520 = vpack.c.bf16 %v5120, %v5104
    %v5521 = vpack.c.bf16 %v5121, %v5105
    %v5522 = vpack.c.bf16 %v5122, %v5106
    %v5523 = vpack.c.bf16 %v5123, %v5107
    %v5524 = vpack.c.bf16 %v5124, %v5108
    %v5525 = vpack.c.bf16 %v5125, %v5109
    %v5526 = vpack.c.bf16 %v5126, %v5110
    %v5527 = vpack.c.bf16 %v5127, %v5111
    %v5528 = vpack.c.bf16 %v5128, %v5112
    %v5529 = vpack.c.bf16 %v5145, %v5129
    %v5530 = vpack.c.bf16 %v5146, %v5130
    %v5531 = vpack.c.bf16 %v5147, %v5131
    %v5532 = vpack.c.bf16 %v5148, %v5132
    %v5533 = vpack.c.bf16 %v5149, %v5133
    %v5534 = vpack.c.bf16 %v5150, %v5134
    %v5535 = vpack.c.bf16 %v5151, %v5135
    %v5536 = vpack.c.bf16 %v5152, %v5136
    %v5537 = vpack.c.bf16 %v5153, %v5137
    %v5538 = vpack.c.bf16 %v5154, %v5138
    %v5539 = vpack.c.bf16 %v5155, %v5139
    %v5540 = vpack.c.bf16 %v5156, %v5140
    %v5541 = vpack.c.bf16 %v5157, %v5141
    %v5542 = vpack.c.bf16 %v5158, %v5142
    %v5543 = vpack.c.bf16 %v5159, %v5143
    %v5544 = vpack.c.bf16 %v5160, %v5144
    %v5545 = vpack.c.bf16 %v5177, %v5161
    %v5546 = vpack.c.bf16 %v5178, %v5162
    %v5547 = vpack.c.bf16 %v5179, %v5163
    %v5548 = vpack.c.bf16 %v5180, %v5164
    %v5549 = vpack.c.bf16 %v5181, %v5165
    %v5550 = vpack.c.bf16 %v5182, %v5166
    %v5551 = vpack.c.bf16 %v5183, %v5167
    %v5552 = vpack.c.bf16 %v5184, %v5168
    %v5553 = vpack.c.bf16 %v5185, %v5169
    %v5554 = vpack.c.bf16 %v5186, %v5170
    %v5555 = vpack.c.bf16 %v5187, %v5171
    %v5556 = vpack.c.bf16 %v5188, %v5172
    %v5557 = vpack.c.bf16 %v5189, %v5173
    %v5558 = vpack.c.bf16 %v5190, %v5174
    %v5559 = vpack.c.bf16 %v5191, %v5175
    %v5560 = vpack.c.bf16 %v5192, %v5176
    %v5561 = vpack.c.bf16 %v5209, %v5193
    %v5562 = vpack.c.bf16 %v5210, %v5194
    %v5563 = vpack.c.bf16 %v5211, %v5195
    %v5564 = vpack.c.bf16 %v5212, %v5196
    %v5565 = vpack.c.bf16 %v5213, %v5197
    %v5566 = vpack.c.bf16 %v5214, %v5198
    %v5567 = vpack.c.bf16 %v5215, %v5199
    %v5568 = vpack.c.bf16 %v5216, %v5200
    %v5569 = vpack.c.bf16 %v5217, %v5201
    %v5570 = vpack.c.bf16 %v5218, %v5202
    %v5571 = vpack.c.bf16 %v5219, %v5203
    %v5572 = vpack.c.bf16 %v5220, %v5204
    %v5573 = vpack.c.bf16 %v5221, %v5205
    %v5574 = vpack.c.bf16 %v5222, %v5206
    %v5575 = vpack.c.bf16 %v5223, %v5207
    %v5576 = vpack.c.bf16 %v5224, %v5208
    %v5577 = vpack.c.bf16 %v5241, %v5225
    %v5578 = vpack.c.bf16 %v5242, %v5226
    %v5579 = vpack.c.bf16 %v5243, %v5227
    %v5580 = vpack.c.bf16 %v5244, %v5228
    %v5581 = vpack.c.bf16 %v5245, %v5229
    %v5582 = vpack.c.bf16 %v5246, %v5230
    %v5583 = vpack.c.bf16 %v5247, %v5231
    %v5584 = vpack.c.bf16 %v5248, %v5232
    %v5585 = vpack.c.bf16 %v5249, %v5233
    %v5586 = vpack.c.bf16 %v5250, %v5234
    %v5587 = vpack.c.bf16 %v5251, %v5235
    %v5588 = vpack.c.bf16 %v5252, %v5236
    %v5589 = vpack.c.bf16 %v5253, %v5237
    %v5590 = vpack.c.bf16 %v5254, %v5238
    %v5591 = vpack.c.bf16 %v5255, %v5239
    %v5592 = vpack.c.bf16 %v5256, %v5240
    %v5593 = vpack.c.bf16 %v5273, %v5257
    %v5594 = vpack.c.bf16 %v5274, %v5258
    %v5595 = vpack.c.bf16 %v5275, %v5259
    %v5596 = vpack.c.bf16 %v5276, %v5260
    %v5597 = vpack.c.bf16 %v5277, %v5261
    %v5598 = vpack.c.bf16 %v5278, %v5262
    %v5599 = vpack.c.bf16 %v5279, %v5263
    %v5600 = vpack.c.bf16 %v5280, %v5264
    %v5601 = vpack.c.bf16 %v5281, %v5265
    %v5602 = vpack.c.bf16 %v5282, %v5266
    %v5603 = vpack.c.bf16 %v5283, %v5267
    %v5604 = vpack.c.bf16 %v5284, %v5268
    %v5605 = vpack.c.bf16 %v5285, %v5269
    %v5606 = vpack.c.bf16 %v5286, %v5270
    %v5607 = vpack.c.bf16 %v5287, %v5271
    %v5608 = vpack.c.bf16 %v5288, %v5272
    %v5609 = vpack.c.bf16 %v5305, %v5289
    %v5610 = vpack.c.bf16 %v5306, %v5290
    %v5611 = vpack.c.bf16 %v5307, %v5291
    %v5612 = vpack.c.bf16 %v5308, %v5292
    %v5613 = vpack.c.bf16 %v5309, %v5293
    %v5614 = vpack.c.bf16 %v5310, %v5294
    %v5615 = vpack.c.bf16 %v5311, %v5295
    %v5616 = vpack.c.bf16 %v5312, %v5296
    %v5617 = vpack.c.bf16 %v5313, %v5297
    %v5618 = vpack.c.bf16 %v5314, %v5298
    %v5619 = vpack.c.bf16 %v5315, %v5299
    %v5620 = vpack.c.bf16 %v5316, %v5300
    %v5621 = vpack.c.bf16 %v5317, %v5301
    %v5622 = vpack.c.bf16 %v5318, %v5302
    %v5623 = vpack.c.bf16 %v5319, %v5303
    %v5624 = vpack.c.bf16 %v5320, %v5304
    %v5625 = vpack.c.bf16 %v5337, %v5321
    %v5626 = vpack.c.bf16 %v5338, %v5322
    %v5627 = vpack.c.bf16 %v5339, %v5323
    %v5628 = vpack.c.bf16 %v5340, %v5324
    %v5629 = vpack.c.bf16 %v5341, %v5325
    %v5630 = vpack.c.bf16 %v5342, %v5326
    %v5631 = vpack.c.bf16 %v5343, %v5327
    %v5632 = vpack.c.bf16 %v5344, %v5328
    %v5633 = vpack.c.bf16 %v5345, %v5329
    %v5634 = vpack.c.bf16 %v5346, %v5330
    %v5635 = vpack.c.bf16 %v5347, %v5331
    %v5636 = vpack.c.bf16 %v5348, %v5332
    %v5637 = vpack.c.bf16 %v5349, %v5333
    %v5638 = vpack.c.bf16 %v5350, %v5334
    %v5639 = vpack.c.bf16 %v5351, %v5335
    %v5640 = vpack.c.bf16 %v5352, %v5336
    %v5641 = vpack.c.bf16 %v5369, %v5353
    %v5642 = vpack.c.bf16 %v5370, %v5354
    %v5643 = vpack.c.bf16 %v5371, %v5355
    %v5644 = vpack.c.bf16 %v5372, %v5356
    %v5645 = vpack.c.bf16 %v5373, %v5357
    %v5646 = vpack.c.bf16 %v5374, %v5358
    %v5647 = vpack.c.bf16 %v5375, %v5359
    %v5648 = vpack.c.bf16 %v5376, %v5360
    %v5649 = vpack.c.bf16 %v5377, %v5361
    %v5650 = vpack.c.bf16 %v5378, %v5362
    %v5651 = vpack.c.bf16 %v5379, %v5363
    %v5652 = vpack.c.bf16 %v5380, %v5364
    %v5653 = vpack.c.bf16 %v5381, %v5365
    %v5654 = vpack.c.bf16 %v5382, %v5366
    %v5655 = vpack.c.bf16 %v5383, %v5367
    %v5656 = vpack.c.bf16 %v5384, %v5368
    %v5657 = vpack.c.bf16 %v5401, %v5385
    %v5658 = vpack.c.bf16 %v5402, %v5386
    %v5659 = vpack.c.bf16 %v5403, %v5387
    %v5660 = vpack.c.bf16 %v5404, %v5388
    %v5661 = vpack.c.bf16 %v5405, %v5389
    %v5662 = vpack.c.bf16 %v5406, %v5390
    %v5663 = vpack.c.bf16 %v5407, %v5391
    %v5664 = vpack.c.bf16 %v5408, %v5392
    %v5665 = vpack.c.bf16 %v5409, %v5393
    %v5666 = vpack.c.bf16 %v5410, %v5394
    %v5667 = vpack.c.bf16 %v5411, %v5395
    %v5668 = vpack.c.bf16 %v5412, %v5396
    %v5669 = vpack.c.bf16 %v5413, %v5397
    %v5670 = vpack.c.bf16 %v5414, %v5398
    %v5671 = vpack.c.bf16 %v5415, %v5399
    %v5672 = vpack.c.bf16 %v5416, %v5400
    %v5673 = vld [vmem:[#allocation2] sm:$0xff]
    %v5674 = vld [vmem:[#allocation2 + $0x8] sm:$0xff]
    %v5675 = vld [vmem:[#allocation2 + $0x10] sm:$0xff]
    %v5676 = vld [vmem:[#allocation2 + $0x18] sm:$0xff]
    %v5677 = vld [vmem:[#allocation2 + $0x20] sm:$0xff]
    %v5678 = vld [vmem:[#allocation2 + $0x28] sm:$0xff]
    %v5679 = vld [vmem:[#allocation2 + $0x30] sm:$0xff]
    %v5680 = vld [vmem:[#allocation2 + $0x38] sm:$0xff]
    %v5681 = vld [vmem:[#allocation2 + $0x40] sm:$0xff]
    %v5682 = vld [vmem:[#allocation2 + $0x48] sm:$0xff]
    %v5683 = vld [vmem:[#allocation2 + $0x50] sm:$0xff]
    %v5684 = vld [vmem:[#allocation2 + $0x58] sm:$0xff]
    %v5685 = vld [vmem:[#allocation2 + $0x60] sm:$0xff]
    %v5686 = vld [vmem:[#allocation2 + $0x68] sm:$0xff]
    %v5687 = vld [vmem:[#allocation2 + $0x70] sm:$0xff]
    %v5688 = vld [vmem:[#allocation2 + $0x78] sm:$0xff]
    %v5705 = vunpack.c.l.b16 %v5673
    %v5706 = vunpack.c.h.b16 %v5673
    %v5707 = vunpack.c.l.b16 %v5674
    %v5708 = vunpack.c.h.b16 %v5674
    %v5709 = vunpack.c.l.b16 %v5675
    %v5710 = vunpack.c.h.b16 %v5675
    %v5711 = vunpack.c.l.b16 %v5676
    %v5712 = vunpack.c.h.b16 %v5676
    %v5713 = vunpack.c.l.b16 %v5677
    %v5714 = vunpack.c.h.b16 %v5677
    %v5715 = vunpack.c.l.b16 %v5678
    %v5716 = vunpack.c.h.b16 %v5678
    %v5717 = vunpack.c.l.b16 %v5679
    %v5718 = vunpack.c.h.b16 %v5679
    %v5719 = vunpack.c.l.b16 %v5680
    %v5720 = vunpack.c.h.b16 %v5680
    %v5721 = vunpack.c.l.b16 %v5681
    %v5722 = vunpack.c.h.b16 %v5681
    %v5723 = vunpack.c.l.b16 %v5682
    %v5724 = vunpack.c.h.b16 %v5682
    %v5725 = vunpack.c.l.b16 %v5683
    %v5726 = vunpack.c.h.b16 %v5683
    %v5727 = vunpack.c.l.b16 %v5684
    %v5728 = vunpack.c.h.b16 %v5684
    %v5729 = vunpack.c.l.b16 %v5685
    %v5730 = vunpack.c.h.b16 %v5685
    %v5731 = vunpack.c.l.b16 %v5686
    %v5732 = vunpack.c.h.b16 %v5686
    %v5733 = vunpack.c.l.b16 %v5687
    %v5734 = vunpack.c.h.b16 %v5687
    %v5735 = vunpack.c.l.b16 %v5688
    %v5736 = vunpack.c.h.b16 %v5688
    %v5737 = vpack.c.b16 %v5721, %v5705
    %v5738 = vpack.c.b16 %v5722, %v5706
    %v5739 = vpack.c.b16 %v5723, %v5707
    %v5740 = vpack.c.b16 %v5724, %v5708
    %v5741 = vpack.c.b16 %v5725, %v5709
    %v5742 = vpack.c.b16 %v5726, %v5710
    %v5743 = vpack.c.b16 %v5727, %v5711
    %v5744 = vpack.c.b16 %v5728, %v5712
    %v5745 = vpack.c.b16 %v5729, %v5713
    %v5746 = vpack.c.b16 %v5730, %v5714
    %v5747 = vpack.c.b16 %v5731, %v5715
    %v5748 = vpack.c.b16 %v5732, %v5716
    %v5749 = vpack.c.b16 %v5733, %v5717
    %v5750 = vpack.c.b16 %v5734, %v5718
    %v5751 = vpack.c.b16 %v5735, %v5719
    %v5752 = vpack.c.b16 %v5736, %v5720
    %5769 = vmatprep.subr.bf16.mxu0 %v5418
    %5770 = vmatpush1.bf16.xpose.msra.mxu0 %v5417
    %5771 = vmatprep.subr.bf16.mxu0 %v5434
    %5772 = vmatpush1.bf16.xpose.msra.mxu0 %v5433
    %5773 = vmatprep.subr.bf16.mxu0 %v5450
    %5774 = vmatpush1.bf16.xpose.msra.mxu0 %v5449
    %5775 = vmatprep.subr.bf16.mxu0 %v5466
    %5776 = vmatpush1.bf16.xpose.msra.mxu0 %v5465
    %5777 = vmatprep.subr.bf16.mxu0 %v5482
    %5778 = vmatpush1.bf16.xpose.msra.mxu0 %v5481
    %5779 = vmatprep.subr.bf16.mxu0 %v5498
    %5780 = vmatpush1.bf16.xpose.msra.mxu0 %v5497
    %5781 = vmatprep.subr.bf16.mxu0 %v5514
    %5782 = vmatpush1.bf16.xpose.msra.mxu0 %v5513
    %5783 = vmatprep.subr.bf16.mxu0 %v5530
    %5784 = vmatpush1.bf16.xpose.msra.mxu0 %v5529
    %5785 = vmatprep.subr.bf16.mxu0 %v5546
    %5786 = vmatpush1.bf16.xpose.msra.mxu0 %v5545
    %5787 = vmatprep.subr.bf16.mxu0 %v5562
    %5788 = vmatpush1.bf16.xpose.msra.mxu0 %v5561
    %5789 = vmatprep.subr.bf16.mxu0 %v5578
    %5790 = vmatpush1.bf16.xpose.msra.mxu0 %v5577
    %5791 = vmatprep.subr.bf16.mxu0 %v5594
    %5792 = vmatpush1.bf16.xpose.msra.mxu0 %v5593
    %5793 = vmatprep.subr.bf16.mxu0 %v5610
    %5794 = vmatpush1.bf16.xpose.msra.mxu0 %v5609
    %5795 = vmatprep.subr.bf16.mxu0 %v5626
    %5796 = vmatpush1.bf16.xpose.msra.mxu0 %v5625
    %5797 = vmatprep.subr.bf16.mxu0 %v5642
    %5798 = vmatpush1.bf16.xpose.msra.mxu0 %v5641
    %5799 = vmatprep.subr.bf16.mxu0 %v5658
    %5800 = vmatpush1.bf16.xpose.msra.mxu0 %v5657
    %5801 = vmatprep.mubr.bf16.mxu0 %v5738
    %5802 = vmatmul.mubr.bf16.gmra.mrb[0].mxu0 %v5737
    %v5803 = vpop.f32.mrb[0].mxu0
    %v5804 = vadd.f32 0.0, %v5803
    %v5805 = vpop.f32.mrb[0].mxu0
    %v5806 = vadd.f32 0.0, %v5805
    %v5807 = vpop.f32.mrb[0].mxu0
    %v5808 = vadd.f32 0.0, %v5807
    %v5809 = vpop.f32.mrb[0].mxu0
    %v5810 = vadd.f32 0.0, %v5809
    %5811 = vdwg.mxu0
    %5812 = vmatprep.subr.bf16.mxu0 %v5420
    %5813 = vmatpush1.bf16.xpose.msra.mxu0 %v5419
    %5814 = vmatprep.subr.bf16.mxu0 %v5436
    %5815 = vmatpush1.bf16.xpose.msra.mxu0 %v5435
    %5816 = vmatprep.subr.bf16.mxu0 %v5452
    %5817 = vmatpush1.bf16.xpose.msra.mxu0 %v5451
    %5818 = vmatprep.subr.bf16.mxu0 %v5468
    %5819 = vmatpush1.bf16.xpose.msra.mxu0 %v5467
    %5820 = vmatprep.subr.bf16.mxu0 %v5484
    %5821 = vmatpush1.bf16.xpose.msra.mxu0 %v5483
    %5822 = vmatprep.subr.bf16.mxu0 %v5500
    %5823 = vmatpush1.bf16.xpose.msra.mxu0 %v5499
    %5824 = vmatprep.subr.bf16.mxu0 %v5516
    %5825 = vmatpush1.bf16.xpose.msra.mxu0 %v5515
    %5826 = vmatprep.subr.bf16.mxu0 %v5532
    %5827 = vmatpush1.bf16.xpose.msra.mxu0 %v5531
    %5828 = vmatprep.subr.bf16.mxu0 %v5548
    %5829 = vmatpush1.bf16.xpose.msra.mxu0 %v5547
    %5830 = vmatprep.subr.bf16.mxu0 %v5564
    %5831 = vmatpush1.bf16.xpose.msra.mxu0 %v5563
    %5832 = vmatprep.subr.bf16.mxu0 %v5580
    %5833 = vmatpush1.bf16.xpose.msra.mxu0 %v5579
    %5834 = vmatprep.subr.bf16.mxu0 %v5596
    %5835 = vmatpush1.bf16.xpose.msra.mxu0 %v5595
    %5836 = vmatprep.subr.bf16.mxu0 %v5612
    %5837 = vmatpush1.bf16.xpose.msra.mxu0 %v5611
    %5838 = vmatprep.subr.bf16.mxu0 %v5628
    %5839 = vmatpush1.bf16.xpose.msra.mxu0 %v5627
    %5840 = vmatprep.subr.bf16.mxu0 %v5644
    %5841 = vmatpush1.bf16.xpose.msra.mxu0 %v5643
    %5842 = vmatprep.subr.bf16.mxu0 %v5660
    %5843 = vmatpush1.bf16.xpose.msra.mxu0 %v5659
    %5844 = vmatprep.mubr.bf16.mxu0 %v5740
    %5845 = vmatmul.mubr.bf16.gmra.mrb[0].mxu0 %v5739
    %v5846 = vpop.f32.mrb[0].mxu0
    %v5847 = vadd.f32 %v5804, %v5846
    %v5848 = vpop.f32.mrb[0].mxu0
    %v5849 = vadd.f32 %v5806, %v5848
    %v5850 = vpop.f32.mrb[0].mxu0
    %v5851 = vadd.f32 %v5808, %v5850
    %v5852 = vpop.f32.mrb[0].mxu0
    %v5853 = vadd.f32 %v5810, %v5852
    %5854 = vdwg.mxu0
    %5855 = vmatprep.subr.bf16.mxu0 %v5422
    %5856 = vmatpush1.bf16.xpose.msra.mxu0 %v5421
    %5857 = vmatprep.subr.bf16.mxu0 %v5438
    %5858 = vmatpush1.bf16.xpose.msra.mxu0 %v5437
    %5859 = vmatprep.subr.bf16.mxu0 %v5454
    %5860 = vmatpush1.bf16.xpose.msra.mxu0 %v5453
    %5861 = vmatprep.subr.bf16.mxu0 %v5470
    %5862 = vmatpush1.bf16.xpose.msra.mxu0 %v5469
    %5863 = vmatprep.subr.bf16.mxu0 %v5486
    %5864 = vmatpush1.bf16.xpose.msra.mxu0 %v5485
    %5865 = vmatprep.subr.bf16.mxu0 %v5502
    %5866 = vmatpush1.bf16.xpose.msra.mxu0 %v5501
    %5867 = vmatprep.subr.bf16.mxu0 %v5518
    %5868 = vmatpush1.bf16.xpose.msra.mxu0 %v5517
    %5869 = vmatprep.subr.bf16.mxu0 %v5534
    %5870 = vmatpush1.bf16.xpose.msra.mxu0 %v5533
    %5871 = vmatprep.subr.bf16.mxu0 %v5550
    %5872 = vmatpush1.bf16.xpose.msra.mxu0 %v5549
    %5873 = vmatprep.subr.bf16.mxu0 %v5566
    %5874 = vmatpush1.bf16.xpose.msra.mxu0 %v5565
    %5875 = vmatprep.subr.bf16.mxu0 %v5582
    %5876 = vmatpush1.bf16.xpose.msra.mxu0 %v5581
    %5877 = vmatprep.subr.bf16.mxu0 %v5598
    %5878 = vmatpush1.bf16.xpose.msra.mxu0 %v5597
    %5879 = vmatprep.subr.bf16.mxu0 %v5614
    %5880 = vmatpush1.bf16.xpose.msra.mxu0 %v5613
    %5881 = vmatprep.subr.bf16.mxu0 %v5630
    %5882 = vmatpush1.bf16.xpose.msra.mxu0 %v5629
    %5883 = vmatprep.subr.bf16.mxu0 %v5646
    %5884 = vmatpush1.bf16.xpose.msra.mxu0 %v5645
    %5885 = vmatprep.subr.bf16.mxu0 %v5662
    %5886 = vmatpush1.bf16.xpose.msra.mxu0 %v5661
    %5887 = vmatprep.mubr.bf16.mxu0 %v5742
    %5888 = vmatmul.mubr.bf16.gmra.mrb[0].mxu0 %v5741
    %v5889 = vpop.f32.mrb[0].mxu0
    %v5890 = vadd.f32 %v5847, %v5889
    %v5891 = vpop.f32.mrb[0].mxu0
    %v5892 = vadd.f32 %v5849, %v5891
    %v5893 = vpop.f32.mrb[0].mxu0
    %v5894 = vadd.f32 %v5851, %v5893
    %v5895 = vpop.f32.mrb[0].mxu0
    %v5896 = vadd.f32 %v5853, %v5895
    %5897 = vdwg.mxu0
    %5898 = vmatprep.subr.bf16.mxu0 %v5424
    %5899 = vmatpush1.bf16.xpose.msra.mxu0 %v5423
    %5900 = vmatprep.subr.bf16.mxu0 %v5440
    %5901 = vmatpush1.bf16.xpose.msra.mxu0 %v5439
    %5902 = vmatprep.subr.bf16.mxu0 %v5456
    %5903 = vmatpush1.bf16.xpose.msra.mxu0 %v5455
    %5904 = vmatprep.subr.bf16.mxu0 %v5472
    %5905 = vmatpush1.bf16.xpose.msra.mxu0 %v5471
    %5906 = vmatprep.subr.bf16.mxu0 %v5488
    %5907 = vmatpush1.bf16.xpose.msra.mxu0 %v5487
    %5908 = vmatprep.subr.bf16.mxu0 %v5504
    %5909 = vmatpush1.bf16.xpose.msra.mxu0 %v5503
    %5910 = vmatprep.subr.bf16.mxu0 %v5520
    %5911 = vmatpush1.bf16.xpose.msra.mxu0 %v5519
    %5912 = vmatprep.subr.bf16.mxu0 %v5536
    %5913 = vmatpush1.bf16.xpose.msra.mxu0 %v5535
    %5914 = vmatprep.subr.bf16.mxu0 %v5552
    %5915 = vmatpush1.bf16.xpose.msra.mxu0 %v5551
    %5916 = vmatprep.subr.bf16.mxu0 %v5568
    %5917 = vmatpush1.bf16.xpose.msra.mxu0 %v5567
    %5918 = vmatprep.subr.bf16.mxu0 %v5584
    %5919 = vmatpush1.bf16.xpose.msra.mxu0 %v5583
    %5920 = vmatprep.subr.bf16.mxu0 %v5600
    %5921 = vmatpush1.bf16.xpose.msra.mxu0 %v5599
    %5922 = vmatprep.subr.bf16.mxu0 %v5616
    %5923 = vmatpush1.bf16.xpose.msra.mxu0 %v5615
    %5924 = vmatprep.subr.bf16.mxu0 %v5632
    %5925 = vmatpush1.bf16.xpose.msra.mxu0 %v5631
    %5926 = vmatprep.subr.bf16.mxu0 %v5648
    %5927 = vmatpush1.bf16.xpose.msra.mxu0 %v5647
    %5928 = vmatprep.subr.bf16.mxu0 %v5664
    %5929 = vmatpush1.bf16.xpose.msra.mxu0 %v5663
    %5930 = vmatprep.mubr.bf16.mxu0 %v5744
    %5931 = vmatmul.mubr.bf16.gmra.mrb[0].mxu0 %v5743
    %v5932 = vpop.f32.mrb[0].mxu0
    %v5933 = vadd.f32 %v5890, %v5932
    %v5934 = vpop.f32.mrb[0].mxu0
    %v5935 = vadd.f32 %v5892, %v5934
    %v5936 = vpop.f32.mrb[0].mxu0
    %v5937 = vadd.f32 %v5894, %v5936
    %v5938 = vpop.f32.mrb[0].mxu0
    %v5939 = vadd.f32 %v5896, %v5938
    %5940 = vdwg.mxu0
    %5941 = vmatprep.subr.bf16.mxu0 %v5426
    %5942 = vmatpush1.bf16.xpose.msra.mxu0 %v5425
    %5943 = vmatprep.subr.bf16.mxu0 %v5442
    %5944 = vmatpush1.bf16.xpose.msra.mxu0 %v5441
    %5945 = vmatprep.subr.bf16.mxu0 %v5458
    %5946 = vmatpush1.bf16.xpose.msra.mxu0 %v5457
    %5947 = vmatprep.subr.bf16.mxu0 %v5474
    %5948 = vmatpush1.bf16.xpose.msra.mxu0 %v5473
    %5949 = vmatprep.subr.bf16.mxu0 %v5490
    %5950 = vmatpush1.bf16.xpose.msra.mxu0 %v5489
    %5951 = vmatprep.subr.bf16.mxu0 %v5506
    %5952 = vmatpush1.bf16.xpose.msra.mxu0 %v5505
    %5953 = vmatprep.subr.bf16.mxu0 %v5522
    %5954 = vmatpush1.bf16.xpose.msra.mxu0 %v5521
    %5955 = vmatprep.subr.bf16.mxu0 %v5538
    %5956 = vmatpush1.bf16.xpose.msra.mxu0 %v5537
    %5957 = vmatprep.subr.bf16.mxu0 %v5554
    %5958 = vmatpush1.bf16.xpose.msra.mxu0 %v5553
    %5959 = vmatprep.subr.bf16.mxu0 %v5570
    %5960 = vmatpush1.bf16.xpose.msra.mxu0 %v5569
    %5961 = vmatprep.subr.bf16.mxu0 %v5586
    %5962 = vmatpush1.bf16.xpose.msra.mxu0 %v5585
    %5963 = vmatprep.subr.bf16.mxu0 %v5602
    %5964 = vmatpush1.bf16.xpose.msra.mxu0 %v5601
    %5965 = vmatprep.subr.bf16.mxu0 %v5618
    %5966 = vmatpush1.bf16.xpose.msra.mxu0 %v5617
    %5967 = vmatprep.subr.bf16.mxu0 %v5634
    %5968 = vmatpush1.bf16.xpose.msra.mxu0 %v5633
    %5969 = vmatprep.subr.bf16.mxu0 %v5650
    %5970 = vmatpush1.bf16.xpose.msra.mxu0 %v5649
    %5971 = vmatprep.subr.bf16.mxu0 %v5666
    %5972 = vmatpush1.bf16.xpose.msra.mxu0 %v5665
    %5973 = vmatprep.mubr.bf16.mxu0 %v5746
    %5974 = vmatmul.mubr.bf16.gmra.mrb[0].mxu0 %v5745
    %v5975 = vpop.f32.mrb[0].mxu0
    %v5976 = vadd.f32 %v5933, %v5975
    %v5977 = vpop.f32.mrb[0].mxu0
    %v5978 = vadd.f32 %v5935, %v5977
    %v5979 = vpop.f32.mrb[0].mxu0
    %v5980 = vadd.f32 %v5937, %v5979
    %v5981 = vpop.f32.mrb[0].mxu0
    %v5982 = vadd.f32 %v5939, %v5981
    %5983 = vdwg.mxu0
    %5984 = vmatprep.subr.bf16.mxu0 %v5428
    %5985 = vmatpush1.bf16.xpose.msra.mxu0 %v5427
    %5986 = vmatprep.subr.bf16.mxu0 %v5444
    %5987 = vmatpush1.bf16.xpose.msra.mxu0 %v5443
    %5988 = vmatprep.subr.bf16.mxu0 %v5460
    %5989 = vmatpush1.bf16.xpose.msra.mxu0 %v5459
    %5990 = vmatprep.subr.bf16.mxu0 %v5476
    %5991 = vmatpush1.bf16.xpose.msra.mxu0 %v5475
    %5992 = vmatprep.subr.bf16.mxu0 %v5492
    %5993 = vmatpush1.bf16.xpose.msra.mxu0 %v5491
    %5994 = vmatprep.subr.bf16.mxu0 %v5508
    %5995 = vmatpush1.bf16.xpose.msra.mxu0 %v5507
    %5996 = vmatprep.subr.bf16.mxu0 %v5524
    %5997 = vmatpush1.bf16.xpose.msra.mxu0 %v5523
    %5998 = vmatprep.subr.bf16.mxu0 %v5540
    %5999 = vmatpush1.bf16.xpose.msra.mxu0 %v5539
    %6000 = vmatprep.subr.bf16.mxu0 %v5556
    %6001 = vmatpush1.bf16.xpose.msra.mxu0 %v5555
    %6002 = vmatprep.subr.bf16.mxu0 %v5572
    %6003 = vmatpush1.bf16.xpose.msra.mxu0 %v5571
    %6004 = vmatprep.subr.bf16.mxu0 %v5588
    %6005 = vmatpush1.bf16.xpose.msra.mxu0 %v5587
    %6006 = vmatprep.subr.bf16.mxu0 %v5604
    %6007 = vmatpush1.bf16.xpose.msra.mxu0 %v5603
    %6008 = vmatprep.subr.bf16.mxu0 %v5620
    %6009 = vmatpush1.bf16.xpose.msra.mxu0 %v5619
    %6010 = vmatprep.subr.bf16.mxu0 %v5636
    %6011 = vmatpush1.bf16.xpose.msra.mxu0 %v5635
    %6012 = vmatprep.subr.bf16.mxu0 %v5652
    %6013 = vmatpush1.bf16.xpose.msra.mxu0 %v5651
    %6014 = vmatprep.subr.bf16.mxu0 %v5668
    %6015 = vmatpush1.bf16.xpose.msra.mxu0 %v5667
    %6016 = vmatprep.mubr.bf16.mxu0 %v5748
    %6017 = vmatmul.mubr.bf16.gmra.mrb[0].mxu0 %v5747
    %v6018 = vpop.f32.mrb[0].mxu0
    %v6019 = vadd.f32 %v5976, %v6018
    %v6020 = vpop.f32.mrb[0].mxu0
    %v6021 = vadd.f32 %v5978, %v6020
    %v6022 = vpop.f32.mrb[0].mxu0
    %v6023 = vadd.f32 %v5980, %v6022
    %v6024 = vpop.f32.mrb[0].mxu0
    %v6025 = vadd.f32 %v5982, %v6024
    %6026 = vdwg.mxu0
    %6027 = vmatprep.subr.bf16.mxu0 %v5430
    %6028 = vmatpush1.bf16.xpose.msra.mxu0 %v5429
    %6029 = vmatprep.subr.bf16.mxu0 %v5446
    %6030 = vmatpush1.bf16.xpose.msra.mxu0 %v5445
    %6031 = vmatprep.subr.bf16.mxu0 %v5462
    %6032 = vmatpush1.bf16.xpose.msra.mxu0 %v5461
    %6033 = vmatprep.subr.bf16.mxu0 %v5478
    %6034 = vmatpush1.bf16.xpose.msra.mxu0 %v5477
    %6035 = vmatprep.subr.bf16.mxu0 %v5494
    %6036 = vmatpush1.bf16.xpose.msra.mxu0 %v5493
    %6037 = vmatprep.subr.bf16.mxu0 %v5510
    %6038 = vmatpush1.bf16.xpose.msra.mxu0 %v5509
    %6039 = vmatprep.subr.bf16.mxu0 %v5526
    %6040 = vmatpush1.bf16.xpose.msra.mxu0 %v5525
    %6041 = vmatprep.subr.bf16.mxu0 %v5542
    %6042 = vmatpush1.bf16.xpose.msra.mxu0 %v5541
    %6043 = vmatprep.subr.bf16.mxu0 %v5558
    %6044 = vmatpush1.bf16.xpose.msra.mxu0 %v5557
    %6045 = vmatprep.subr.bf16.mxu0 %v5574
    %6046 = vmatpush1.bf16.xpose.msra.mxu0 %v5573
    %6047 = vmatprep.subr.bf16.mxu0 %v5590
    %6048 = vmatpush1.bf16.xpose.msra.mxu0 %v5589
    %6049 = vmatprep.subr.bf16.mxu0 %v5606
    %6050 = vmatpush1.bf16.xpose.msra.mxu0 %v5605
    %6051 = vmatprep.subr.bf16.mxu0 %v5622
    %6052 = vmatpush1.bf16.xpose.msra.mxu0 %v5621
    %6053 = vmatprep.subr.bf16.mxu0 %v5638
    %6054 = vmatpush1.bf16.xpose.msra.mxu0 %v5637
    %6055 = vmatprep.subr.bf16.mxu0 %v5654
    %6056 = vmatpush1.bf16.xpose.msra.mxu0 %v5653
    %6057 = vmatprep.subr.bf16.mxu0 %v5670
    %6058 = vmatpush1.bf16.xpose.msra.mxu0 %v5669
    %6059 = vmatprep.mubr.bf16.mxu0 %v5750
    %6060 = vmatmul.mubr.bf16.gmra.mrb[0].mxu0 %v5749
    %v6061 = vpop.f32.mrb[0].mxu0
    %v6062 = vadd.f32 %v6019, %v6061
    %v6063 = vpop.f32.mrb[0].mxu0
    %v6064 = vadd.f32 %v6021, %v6063
    %v6065 = vpop.f32.mrb[0].mxu0
    %v6066 = vadd.f32 %v6023, %v6065
    %v6067 = vpop.f32.mrb[0].mxu0
    %v6068 = vadd.f32 %v6025, %v6067
    %6069 = vdwg.mxu0
    %6070 = vmatprep.subr.bf16.mxu0 %v5432
    %6071 = vmatpush1.bf16.xpose.msra.mxu0 %v5431
    %6072 = vmatprep.subr.bf16.mxu0 %v5448
    %6073 = vmatpush1.bf16.xpose.msra.mxu0 %v5447
    %6074 = vmatprep.subr.bf16.mxu0 %v5464
    %6075 = vmatpush1.bf16.xpose.msra.mxu0 %v5463
    %6076 = vmatprep.subr.bf16.mxu0 %v5480
    %6077 = vmatpush1.bf16.xpose.msra.mxu0 %v5479
    %6078 = vmatprep.subr.bf16.mxu0 %v5496
    %6079 = vmatpush1.bf16.xpose.msra.mxu0 %v5495
    %6080 = vmatprep.subr.bf16.mxu0 %v5512
    %6081 = vmatpush1.bf16.xpose.msra.mxu0 %v5511
    %6082 = vmatprep.subr.bf16.mxu0 %v5528
    %6083 = vmatpush1.bf16.xpose.msra.mxu0 %v5527
    %6084 = vmatprep.subr.bf16.mxu0 %v5544
    %6085 = vmatpush1.bf16.xpose.msra.mxu0 %v5543
    %6086 = vmatprep.subr.bf16.mxu0 %v5560
    %6087 = vmatpush1.bf16.xpose.msra.mxu0 %v5559
    %6088 = vmatprep.subr.bf16.mxu0 %v5576
    %6089 = vmatpush1.bf16.xpose.msra.mxu0 %v5575
    %6090 = vmatprep.subr.bf16.mxu0 %v5592
    %6091 = vmatpush1.bf16.xpose.msra.mxu0 %v5591
    %6092 = vmatprep.subr.bf16.mxu0 %v5608
    %6093 = vmatpush1.bf16.xpose.msra.mxu0 %v5607
    %6094 = vmatprep.subr.bf16.mxu0 %v5624
    %6095 = vmatpush1.bf16.xpose.msra.mxu0 %v5623
    %6096 = vmatprep.subr.bf16.mxu0 %v5640
    %6097 = vmatpush1.bf16.xpose.msra.mxu0 %v5639
    %6098 = vmatprep.subr.bf16.mxu0 %v5656
    %6099 = vmatpush1.bf16.xpose.msra.mxu0 %v5655
    %6100 = vmatprep.subr.bf16.mxu0 %v5672
    %6101 = vmatpush1.bf16.xpose.msra.mxu0 %v5671
    %6102 = vmatprep.mubr.bf16.mxu0 %v5752
    %6103 = vmatmul.mubr.bf16.gmra.mrb[0].mxu0 %v5751
    %v6104 = vpop.f32.mrb[0].mxu0
    %v6105 = vadd.f32 %v6062, %v6104
    %v6106 = vpop.f32.mrb[0].mxu0
    %v6107 = vadd.f32 %v6064, %v6106
    %v6108 = vpop.f32.mrb[0].mxu0
    %v6109 = vadd.f32 %v6066, %v6108
    %v6110 = vpop.f32.mrb[0].mxu0
    %v6111 = vadd.f32 %v6068, %v6110
    %6112 = vdwg.mxu0
    %v6113 = vpack.c.bf16 %v6109, %v6105
    %v6114 = vpack.c.bf16 %v6111, %v6107
    %v6115 = vld [vmem:[#allocation5] sm:$0xf]
    %v6116 = vld [vmem:[#allocation5 + $0x4] sm:$0xf]
    %v6117 = vld [vmem:[#allocation5 + $0x8] sm:$0xf]
    %v6118 = vld [vmem:[#allocation5 + $0xc] sm:$0xf]
    %v6119 = vld [vmem:[#allocation5 + $0x10] sm:$0xf]
    %v6120 = vld [vmem:[#allocation5 + $0x14] sm:$0xf]
    %v6121 = vld [vmem:[#allocation5 + $0x18] sm:$0xf]
    %v6122 = vld [vmem:[#allocation5 + $0x1c] sm:$0xf]
    %v6123 = vld [vmem:[#allocation5 + $0x20] sm:$0xf]
    %v6124 = vld [vmem:[#allocation5 + $0x24] sm:$0xf]
    %v6125 = vld [vmem:[#allocation5 + $0x28] sm:$0xf]
    %v6126 = vld [vmem:[#allocation5 + $0x2c] sm:$0xf]
    %v6127 = vld [vmem:[#allocation5 + $0x30] sm:$0xf]
    %v6128 = vld [vmem:[#allocation5 + $0x34] sm:$0xf]
    %v6129 = vld [vmem:[#allocation5 + $0x38] sm:$0xf]
    %v6130 = vld [vmem:[#allocation5 + $0x3c] sm:$0xf]
    %v6131 = vld [vmem:[#allocation5 + $0x40] sm:$0xf]
    %v6132 = vld [vmem:[#allocation5 + $0x44] sm:$0xf]
    %v6133 = vld [vmem:[#allocation5 + $0x48] sm:$0xf]
    %v6134 = vld [vmem:[#allocation5 + $0x4c] sm:$0xf]
    %v6135 = vld [vmem:[#allocation5 + $0x50] sm:$0xf]
    %v6136 = vld [vmem:[#allocation5 + $0x54] sm:$0xf]
    %v6137 = vld [vmem:[#allocation5 + $0x58] sm:$0xf]
    %v6138 = vld [vmem:[#allocation5 + $0x5c] sm:$0xf]
    %v6139 = vld [vmem:[#allocation5 + $0x60] sm:$0xf]
    %v6140 = vld [vmem:[#allocation5 + $0x64] sm:$0xf]
    %v6141 = vld [vmem:[#allocation5 + $0x68] sm:$0xf]
    %v6142 = vld [vmem:[#allocation5 + $0x6c] sm:$0xf]
    %v6143 = vld [vmem:[#allocation5 + $0x70] sm:$0xf]
    %v6144 = vld [vmem:[#allocation5 + $0x74] sm:$0xf]
    %v6145 = vld [vmem:[#allocation5 + $0x78] sm:$0xf]
    %v6146 = vld [vmem:[#allocation5 + $0x7c] sm:$0xf]
    %v6147 = vld [vmem:[%s9] sm:$0x1]
    %v6148 = vlaneseq
    %v6149 = vshrl.u32 %v6148, 7
    %v6150 = vsub.s32 0, %v6149
    %v6151 = vrot.slane %v6147, %v6150
    %v6184 = vunpack.c.l.b16 %v6115
    %v6185 = vunpack.c.l.b16 %v6116
    %v6186 = vunpack.c.l.b16 %v6117
    %v6187 = vunpack.c.l.b16 %v6118
    %v6188 = vunpack.c.l.b16 %v6119
    %v6189 = vunpack.c.l.b16 %v6120
    %v6190 = vunpack.c.l.b16 %v6121
    %v6191 = vunpack.c.l.b16 %v6122
    %v6192 = vunpack.c.l.b16 %v6123
    %v6193 = vunpack.c.l.b16 %v6124
    %v6194 = vunpack.c.l.b16 %v6125
    %v6195 = vunpack.c.l.b16 %v6126
    %v6196 = vunpack.c.l.b16 %v6127
    %v6197 = vunpack.c.l.b16 %v6128
    %v6198 = vunpack.c.l.b16 %v6129
    %v6199 = vunpack.c.l.b16 %v6130
    %v6200 = vunpack.c.l.b16 %v6131
    %v6201 = vunpack.c.l.b16 %v6132
    %v6202 = vunpack.c.l.b16 %v6133
    %v6203 = vunpack.c.l.b16 %v6134
    %v6204 = vunpack.c.l.b16 %v6135
    %v6205 = vunpack.c.l.b16 %v6136
    %v6206 = vunpack.c.l.b16 %v6137
    %v6207 = vunpack.c.l.b16 %v6138
    %v6208 = vunpack.c.l.b16 %v6139
    %v6209 = vunpack.c.l.b16 %v6140
    %v6210 = vunpack.c.l.b16 %v6141
    %v6211 = vunpack.c.l.b16 %v6142
    %v6212 = vunpack.c.l.b16 %v6143
    %v6213 = vunpack.c.l.b16 %v6144
    %v6214 = vunpack.c.l.b16 %v6145
    %v6215 = vunpack.c.l.b16 %v6146
    %v6216 = vpack.c.b16 %v6185, %v6184
    %v6217 = vpack.c.b16 %v6187, %v6186
    %v6218 = vpack.c.b16 %v6189, %v6188
    %v6219 = vpack.c.b16 %v6191, %v6190
    %v6220 = vpack.c.b16 %v6193, %v6192
    %v6221 = vpack.c.b16 %v6195, %v6194
    %v6222 = vpack.c.b16 %v6197, %v6196
    %v6223 = vpack.c.b16 %v6199, %v6198
    %v6224 = vpack.c.b16 %v6201, %v6200
    %v6225 = vpack.c.b16 %v6203, %v6202
    %v6226 = vpack.c.b16 %v6205, %v6204
    %v6227 = vpack.c.b16 %v6207, %v6206
    %v6228 = vpack.c.b16 %v6209, %v6208
    %v6229 = vpack.c.b16 %v6211, %v6210
    %v6230 = vpack.c.b16 %v6213, %v6212
    %v6231 = vpack.c.b16 %v6215, %v6214
    %6248 = vmatprep.subr.bf16.mxu0 0
    %6249 = vmatpush1.bf16.msra.mxu0 %v6216
    %6250 = vmatprep.subr.bf16.mxu0 0
    %6251 = vmatpush1.bf16.msra.mxu0 %v6217
    %6252 = vmatprep.subr.bf16.mxu0 0
    %6253 = vmatpush1.bf16.msra.mxu0 %v6218
    %6254 = vmatprep.subr.bf16.mxu0 0
    %6255 = vmatpush1.bf16.msra.mxu0 %v6219
    %6256 = vmatprep.subr.bf16.mxu0 0
    %6257 = vmatpush1.bf16.msra.mxu0 %v6220
    %6258 = vmatprep.subr.bf16.mxu0 0
    %6259 = vmatpush1.bf16.msra.mxu0 %v6221
    %6260 = vmatprep.subr.bf16.mxu0 0
    %6261 = vmatpush1.bf16.msra.mxu0 %v6222
    %6262 = vmatprep.subr.bf16.mxu0 0
    %6263 = vmatpush1.bf16.msra.mxu0 %v6223
    %6264 = vmatprep.subr.bf16.mxu0 0
    %6265 = vmatpush1.bf16.msra.mxu0 %v6224
    %6266 = vmatprep.subr.bf16.mxu0 0
    %6267 = vmatpush1.bf16.msra.mxu0 %v6225
    %6268 = vmatprep.subr.bf16.mxu0 0
    %6269 = vmatpush1.bf16.msra.mxu0 %v6226
    %6270 = vmatprep.subr.bf16.mxu0 0
    %6271 = vmatpush1.bf16.msra.mxu0 %v6227
    %6272 = vmatprep.subr.bf16.mxu0 0
    %6273 = vmatpush1.bf16.msra.mxu0 %v6228
    %6274 = vmatprep.subr.bf16.mxu0 0
    %6275 = vmatpush1.bf16.msra.mxu0 %v6229
    %6276 = vmatprep.subr.bf16.mxu0 0
    %6277 = vmatpush1.bf16.msra.mxu0 %v6230
    %6278 = vmatprep.subr.bf16.mxu0 0
    %6279 = vmatpush1.bf16.msra.mxu0 %v6231
    %6280 = vmatprep.mubr.bf16.mxu0 %v6114
    %6281 = vmatmul.mubr.bf16.gmra.mrb[0].mxu0 %v6113
    %v6282 = vpop.f32.mrb[0].mxu0
    %v6283 = vadd.f32 %v6151, %v6282
    %v6284 = vpop.f32.mrb[0].mxu0
    %v6285 = vpop.f32.mrb[0].mxu0
    %v6286 = vadd.f32 %v6151, %v6285
    %v6287 = vpop.f32.mrb[0].mxu0
    %6288 = vdwg.mxu0
    %v6289 = vmax.f32 %v6283, 0.0
    %v6290 = vmax.f32 %v6286, 0.0
    %v6291 = vpack.c.bf16 %v6290, %v6289
    %v6292 = vld [vmem:[%s8] sm:$0xf]
    %v6293 = vld [vmem:[%s8 + $0x4] sm:$0xf]
    %v6294 = vld [vmem:[%s8 + $0x8] sm:$0xf]
    %v6295 = vld [vmem:[%s8 + $0xc] sm:$0xf]
    %v6296 = vld [vmem:[%s8 + $0x10] sm:$0xf]
    %v6297 = vld [vmem:[%s8 + $0x14] sm:$0xf]
    %v6298 = vld [vmem:[%s8 + $0x18] sm:$0xf]
    %v6299 = vld [vmem:[%s8 + $0x1c] sm:$0xf]
    %v6300 = vld [vmem:[%s8 + $0x20] sm:$0xf]
    %v6301 = vld [vmem:[%s8 + $0x24] sm:$0xf]
    %v6302 = vld [vmem:[%s8 + $0x28] sm:$0xf]
    %v6303 = vld [vmem:[%s8 + $0x2c] sm:$0xf]
    %v6304 = vld [vmem:[%s8 + $0x30] sm:$0xf]
    %v6305 = vld [vmem:[%s8 + $0x34] sm:$0xf]
    %v6306 = vld [vmem:[%s8 + $0x38] sm:$0xf]
    %v6307 = vld [vmem:[%s8 + $0x3c] sm:$0xf]
    %v6308 = vld [vmem:[%s9 + $0x1] sm:$0x1]
    %v6309 = vlaneseq
    %v6310 = vshrl.u32 %v6309, 7
    %v6311 = vsub.s32 0, %v6310
    %v6312 = vrot.slane %v6308, %v6311
    %v6329 = vunpack.c.l.b16 %v6292
    %v6330 = vunpack.c.l.b16 %v6293
    %v6331 = vunpack.c.l.b16 %v6294
    %v6332 = vunpack.c.l.b16 %v6295
    %v6333 = vunpack.c.l.b16 %v6296
    %v6334 = vunpack.c.l.b16 %v6297
    %v6335 = vunpack.c.l.b16 %v6298
    %v6336 = vunpack.c.l.b16 %v6299
    %v6337 = vunpack.c.l.b16 %v6300
    %v6338 = vunpack.c.l.b16 %v6301
    %v6339 = vunpack.c.l.b16 %v6302
    %v6340 = vunpack.c.l.b16 %v6303
    %v6341 = vunpack.c.l.b16 %v6304
    %v6342 = vunpack.c.l.b16 %v6305
    %v6343 = vunpack.c.l.b16 %v6306
    %v6344 = vunpack.c.l.b16 %v6307
    %v6345 = vpack.c.b16 %v6330, %v6329
    %v6346 = vpack.c.b16 %v6332, %v6331
    %v6347 = vpack.c.b16 %v6334, %v6333
    %v6348 = vpack.c.b16 %v6336, %v6335
    %v6349 = vpack.c.b16 %v6338, %v6337
    %v6350 = vpack.c.b16 %v6340, %v6339
    %v6351 = vpack.c.b16 %v6342, %v6341
    %v6352 = vpack.c.b16 %v6344, %v6343
    %6361 = vmatprep.subr.bf16.mxu0 0
    %6362 = vmatpush1.bf16.msra.mxu0 %v6345
    %6363 = vmatprep.subr.bf16.mxu0 0
    %6364 = vmatpush1.bf16.msra.mxu0 %v6346
    %6365 = vmatprep.subr.bf16.mxu0 0
    %6366 = vmatpush1.bf16.msra.mxu0 %v6347
    %6367 = vmatprep.subr.bf16.mxu0 0
    %6368 = vmatpush1.bf16.msra.mxu0 %v6348
    %6369 = vmatprep.subr.bf16.mxu0 0
    %6370 = vmatpush1.bf16.msra.mxu0 %v6349
    %6371 = vmatprep.subr.bf16.mxu0 0
    %6372 = vmatpush1.bf16.msra.mxu0 %v6350
    %6373 = vmatprep.subr.bf16.mxu0 0
    %6374 = vmatpush1.bf16.msra.mxu0 %v6351
    %6375 = vmatprep.subr.bf16.mxu0 0
    %6376 = vmatpush1.bf16.msra.mxu0 %v6352
    %6377 = vmatprep.subr.bf16.mxu0 0
    %6378 = vmatpush1.bf16.msra.mxu0 0
    %6379 = vmatprep.subr.bf16.mxu0 0
    %6380 = vmatpush1.bf16.msra.mxu0 0
    %6381 = vmatprep.subr.bf16.mxu0 0
    %6382 = vmatpush1.bf16.msra.mxu0 0
    %6383 = vmatprep.subr.bf16.mxu0 0
    %6384 = vmatpush1.bf16.msra.mxu0 0
    %6385 = vmatprep.subr.bf16.mxu0 0
    %6386 = vmatpush1.bf16.msra.mxu0 0
    %6387 = vmatprep.subr.bf16.mxu0 0
    %6388 = vmatpush1.bf16.msra.mxu0 0
    %6389 = vmatprep.subr.bf16.mxu0 0
    %6390 = vmatpush1.bf16.msra.mxu0 0
    %6391 = vmatprep.subr.bf16.mxu0 0
    %6392 = vmatpush1.bf16.msra.mxu0 0
    %6393 = vmatprep.mubr.bf16.mxu0 0
    %6394 = vmatmul.mubr.bf16.gmra.mrb[0].mxu0 %v6291
    %v6395 = vpop.f32.mrb[0].mxu0
    %v6396 = vadd.f32 %v6312, %v6395
    %v6397 = vpop.f32.mrb[0].mxu0
    %v6398 = vpop.f32.mrb[0].mxu0
    %v6399 = vadd.f32 %v6312, %v6398
    %v6400 = vpop.f32.mrb[0].mxu0
    %6401 = vdwg.mxu0
    %6402 = vst [vmem:[#allocation7] sm:$0xff] %v6396
    %6403 = vst [vmem:[#allocation7 + $0x8] sm:$0xff] %v6399
    // Predicated region
    $region50: #{tpu_custom_call.1} parent=1 // pred_check
      _
    $region51: #{tpu_custom_call.1} parent=1 // pred_check_branch
      %6405 = sbr.rel (0) target = $region53
    $region52: #{tpu_custom_call.1} parent=1 // pred_region
      %s6407 = ssub.s32 256, 256
      %6408 = vsyncadd [#allocation4], %s6407
      %s6409 = sshll.u32 [#allocation7], 4
      %s6410 = int_to_ptr.vmem [resolvable:$true] %s6409
      %6415 = dma.vmem_to_hbm [thread:$0]  %s6410, 256, %s10, [#allocation4], 128, 128, 8
    $region53: #{tpu_custom_call.1} parent=1 // pred_fallthru
      _
    // Predicated region
    $region54: #{tpu_custom_call.1} parent=1 // pred_check
      _
    $region55: #{tpu_custom_call.1} parent=1 // pred_check_branch
      %6417 = sbr.rel (0) target = $region57
    $region56: #{tpu_custom_call.1} parent=1 // pred_region
      %6418 = dma.done [#allocation4], 256
    $region57: #{tpu_custom_call.1} parent=1 // pred_fallthru
      _
    %6419 = vsyncpa [#allocation3], 1
    %6420 = vsyncpa [#allocation6], 1
    %6421 = vsyncpa [#allocation4], 1

</llo_original>
